<compile_context>
chip_gen: v6e
topology: v6e:2x2x1
jax: 0.10.0
libtpu: 0.0.40
codegen_flags: <defaults>
</compile_context>

<pallas_src>
import functools

import jax
import jax.numpy as jnp
from jax import lax
from jax.experimental import pallas as pl
from jax.experimental.pallas import tpu as pltpu


def _dlstm_kernel(w_hbm, b_ref, bfold_ref, h0_ref, c0_ref,
                  out_ref,
                  w_scr, cat_scr, c_scr,
                  *, t_block, seq_len, num_layers, hidden, chunk):
    """One grid step == t_block timesteps of the stacked-LSTM recurrence."""
    blk = pl.program_id(0)
    H = hidden
    L = num_layers
    n_chunks = H // chunk

    @pl.when(blk == 0)
    def _init():
        # Weights live in HBM (memory_space=pl.ANY) and are copied into a single
        # VMEM-resident scratch once -> no double-buffered weight residency.
        pltpu.sync_copy(w_hbm, w_scr)
        cat_scr[:, :, 0:H] = jnp.zeros(h0_ref.shape, cat_scr.dtype)      # x_0 = zeros
        cat_scr[:, :, H:2 * H] = h0_ref[...].astype(cat_scr.dtype)       # h_{-1}
        c_scr[...] = c0_ref[...]

    def run_step(t, lt):
        not_first = t > 0
        # TODO(synk): StackedLSTMCell applies dropout between layers; p=0.0 -> identity.
        for layer in range(L):
            # LHS of the fused [x ; h_prev] matmul.  Load ONCE before the chunked
            # writes below so the write-after-read ordering is explicit.
            cat = cat_scr[layer]                                     # (B, 2H)
            for ci in range(n_chunks):
                c0 = ci * chunk
                g0 = ci * 4 * chunk
                # Single MXU dot per chunk over gate-interleaved columns
                # [i_c | f_c | g_c | o_c]; result stays vreg-resident.
                gates = jnp.dot(cat, w_scr[layer, :, g0:g0 + 4 * chunk],
                                preferred_element_type=jnp.float32)
                gates = gates + b_ref[layer, :, g0:g0 + 4 * chunk]
                if layer == 0:
                    # Folded output-Linear bias (b_out @ W_ih0^T); absent at t==0
                    # because the PyTorch code feeds x = zeros there.
                    gates = gates + jnp.where(
                        not_first, bfold_ref[:, g0:g0 + 4 * chunk], 0.0)
                i_g = jax.nn.sigmoid(gates[:, 0 * chunk:1 * chunk])
                f_g = jax.nn.sigmoid(gates[:, 1 * chunk:2 * chunk])
                g_g = jnp.tanh(gates[:, 2 * chunk:3 * chunk])
                o_g = jax.nn.sigmoid(gates[:, 3 * chunk:4 * chunk])

                c_new = f_g * c_scr[layer, :, c0:c0 + chunk] + i_g * g_g
                c_scr[layer, :, c0:c0 + chunk] = c_new
                h_new = o_g * jnp.tanh(c_new)
                h_cast = h_new.astype(cat_scr.dtype)

                cat_scr[layer, :, H + c0:H + c0 + chunk] = h_cast    # h_prev for next t
                if layer + 1 < L:
                    cat_scr[layer + 1, :, c0:c0 + chunk] = h_cast    # next layer's input
                else:
                    cat_scr[0, :, c0:c0 + chunk] = h_cast            # folded x for next t
                    out_ref[lt, :, c0:c0 + chunk] = h_new            # f32 last_h output

    guard_tail = (seq_len % t_block) != 0

    def step(lt, carry):
        t = blk * t_block + lt
        if guard_tail:
            @pl.when(t < seq_len)                 # skip padded tail timesteps
            def _():
                run_step(t, lt)
        else:
            run_step(t, lt)
        return carry

    lax.fori_loop(0, t_block, step, 0, unroll=True)


@functools.partial(jax.jit, static_argnames=("seq_len", "param_dtype", "t_block"))
def dlstm_forward(seq_len, init_h, init_c,
                  w_ih, w_hh, b_ih, b_hh, w_out, b_out,
                  *, param_dtype=jnp.bfloat16, t_block=None):
    """Returns stacked out_feats of shape (seq_len, B, H)."""
    L, B, H = init_h.shape
    assert H % 128 == 0, "hidden size must be lane-aligned (multiple of 128)"
    assert w_out.shape == (H, H), "requires input_size == hidden_size (module default)"

    # Gate-column chunk width for the N-chunked matmul (divides H, <=512 lanes).
    if H % 512 == 0:
        chunk = 512
    elif H % 256 == 0:
        chunk = 256
    else:
        chunk = 128
    n_chunks = H // chunk

    # ---- weight prep (runs once under jit) ---------------------------------
    w_ih_t = jnp.transpose(w_ih, (0, 2, 1))                  # (L, H, 4H)
    w_hh_t = jnp.transpose(w_hh, (0, 2, 1))                  # (L, H, 4H)
    # Fold the output Linear into layer 0: x_t = last_h @ W_out^T + b_out.
    # TODO(synk): with bf16 weights the folded product is cast to bf16; validate
    # drift against real checkpoints (keep layer-0 input columns f32 if needed).
    w_comb = jnp.transpose(w_ih[0] @ w_out)                  # (H, 4H) == W_out^T @ W_ih0^T
    w_in = w_ih_t.at[0].set(w_comb)
    w_cat = jnp.concatenate([w_in, w_hh_t], axis=1)          # (L, 2H, 4H)
    b_sum = b_ih + b_hh                                      # (L, 4H)
    b_fold = b_out @ jnp.transpose(w_ih[0])                  # (4H,)  == b_out @ W_ih0^T

    # Interleave gate columns chunk-major ([i|f|g|o] -> per-chunk [i_c|f_c|g_c|o_c])
    # so each kernel chunk is one contiguous (2H, 4*chunk) MXU dot.
    def interleave(a):
        lead = a.shape[:-1]
        a = a.reshape(*lead, 4, n_chunks, chunk)
        a = jnp.swapaxes(a, -3, -2)
        return a.reshape(*lead, 4 * H)

    w_cat = interleave(w_cat).astype(param_dtype)                    # (L, 2H, 4H)
    b_sum = interleave(b_sum)[:, None, :].astype(jnp.float32)        # (L, 1, 4H)
    b_fold = interleave(b_fold)[None, :].astype(jnp.float32)         # (1, 4H)

    # ---- time blocking ------------------------------------------------------
    if t_block is None:
        t_block = 8 if H >= 1024 else (16 if H >= 512 else 32)
    tb = max(1, min(seq_len, t_block))
    num_blocks = pl.cdiv(seq_len, tb)
    padded = num_blocks * tb

    # ---- VMEM budget: 1x weights (scratch) + state + small pipelined bufs ---
    itemsz = jnp.dtype(param_dtype).itemsize
    w_res = L * (2 * H) * (4 * H) * itemsz                     # single resident copy
    state = L * B * 2 * H * itemsz + L * B * H * 4             # cat_scr + c_scr
    small_in = 2 * ((L * 4 * H + 4 * H) * 4 + 2 * L * B * H * 4)   # 2x-buffered biases+init
    out_buf = 2 * tb * B * H * 4
    need = w_res + state + small_in + out_buf
    try:
        vmem_cap = int(pltpu.get_tpu_info().vmem_capacity_bytes)
    except Exception:
        vmem_cap = 64 << 20                                    # conservative (v7x per-core)
    vmem_limit = int(max(16 << 20,
                         min(vmem_cap - (2 << 20), need + (need >> 2) + (4 << 20))))

    # TODO(synk): production H=2048 on v6e/v7x should use int8/fp8 weights (per-channel
    # scales) and, on v7x, split H across the two TensorCores (core_map + VMEM_SHARED)
    # instead of streaming full weights from HBM every timestep.
    # TODO(synk): B is fixed at 8 by the module; batching independent sequences toward
    # B=64-256 is the biggest MXU-utilization lever and must happen at the caller.

    full = lambda shape: pl.BlockSpec(shape, lambda b: (0,) * len(shape))
    kernel = functools.partial(_dlstm_kernel, t_block=tb, seq_len=seq_len,
                               num_layers=L, hidden=H, chunk=chunk)

    out = pl.pallas_call(
        kernel,
        out_shape=jax.ShapeDtypeStruct((padded, B, H), jnp.float32),
        grid_spec=pltpu.PrefetchScalarGridSpec(
            num_scalar_prefetch=0,
            grid=(num_blocks,),
            in_specs=[
                pl.BlockSpec(memory_space=pl.ANY),   # fused weights: stay in HBM
                full((L, 1, 4 * H)),                 # b_ih + b_hh (gate-interleaved)
                full((1, 4 * H)),                    # folded output-Linear bias
                full((L, B, H)),                     # init_h
                full((L, B, H)),                     # init_c
            ],
            out_specs=pl.BlockSpec((tb, B, H), lambda b: (b, 0, 0)),
            scratch_shapes=[
                pltpu.VMEM((L, 2 * H, 4 * H), param_dtype),   # resident weights (1 copy)
                pltpu.VMEM((L, B, 2 * H), param_dtype),       # persistent [input ; h]
                pltpu.VMEM((L, B, H), jnp.float32),           # cell state
            ],
        ),
        compiler_params=pltpu.CompilerParams(
            dimension_semantics=("arbitrary",),               # sequential recurrence
            vmem_limit_bytes=vmem_limit),
    )(w_cat, b_sum, b_fold, init_h, init_c)
    return out[:seq_len]


def dlstm_reference(seq_len, init_h, init_c,
                    w_ih, w_hh, b_ih, b_hh, w_out, b_out):
    """Pure-JAX reference mirroring the PyTorch forward."""
    L, B, H = init_h.shape
    x = jnp.zeros((B, H), jnp.float32)
    h, c = init_h, init_c
    outs = []
    for _ in range(seq_len):
        inp = x
        new_h, new_c = [], []
        for layer in range(L):
            gates = (inp @ w_ih[layer].T + b_ih[layer]
                     + h[layer] @ w_hh[layer].T + b_hh[layer])
            i_g, f_g, g_g, o_g = jnp.split(gates, 4, axis=-1)
            cc = jax.nn.sigmoid(f_g) * c[layer] + jax.nn.sigmoid(i_g) * jnp.tanh(g_g)
            hh = jax.nn.sigmoid(o_g) * jnp.tanh(cc)
            new_h.append(hh)
            new_c.append(cc)
            inp = hh
        h = jnp.stack(new_h)
        c = jnp.stack(new_c)
        outs.append(inp)                  # last_h
        x = inp @ w_out.T + b_out
    return jnp.stack(outs)


if __name__ == "__main__":
    # Small, TPU-friendly shapes consistent with the module (input==hidden).
    SEQ_LEN, L, B, H = 8, 2, 8, 128

    key = jax.random.PRNGKey(0)
    ks = jax.random.split(key, 8)
    scale = 1.0 / jnp.sqrt(H)
    w_ih = jax.random.uniform(ks[0], (L, 4 * H, H), jnp.float32, -scale, scale)
    w_hh = jax.random.uniform(ks[1], (L, 4 * H, H), jnp.float32, -scale, scale)
    b_ih = jax.random.uniform(ks[2], (L, 4 * H), jnp.float32, -scale, scale)
    b_hh = jax.random.uniform(ks[3], (L, 4 * H), jnp.float32, -scale, scale)
    w_out = jax.random.uniform(ks[4], (H, H), jnp.float32, -scale, scale)
    b_out = jax.random.uniform(ks[5], (H,), jnp.float32, -scale, scale)
    init_h = jax.random.normal(ks[6], (L, B, H), jnp.float32)
    init_c = jax.random.normal(ks[7], (L, B, H), jnp.float32)

    ref = dlstm_reference(SEQ_LEN, init_h, init_c,
                          w_ih, w_hh, b_ih, b_hh, w_out, b_out)

    # 1) f32 weights, default T-blocking (single grid step at these shapes).
    out = jax.block_until_ready(dlstm_forward(
        SEQ_LEN, init_h, init_c, w_ih, w_hh, b_ih, b_hh, w_out, b_out,
        param_dtype=jnp.float32))
    assert out.shape == (SEQ_LEN, B, H)
    assert jnp.allclose(out, ref, atol=1e-4, rtol=1e-4), (
        float(jnp.max(jnp.abs(out - ref))))

    # 2) f32 weights, multi-block grid with a partial final block
    #    (exercises T-blocking, the padded-tail pl.when guard, state carry).
    out_tb = jax.block_until_ready(dlstm_forward(
        SEQ_LEN, init_h, init_c, w_ih, w_hh, b_ih, b_hh, w_out, b_out,
        param_dtype=jnp.float32, t_block=3))
    assert jnp.allclose(out_tb, ref, atol=1e-4, rtol=1e-4), (
        float(jnp.max(jnp.abs(out_tb - ref))))

    # 3) default bf16 weights/activations on the MXU with f32 accumulation.
    out_bf16 = jax.block_until_ready(dlstm_forward(
        SEQ_LEN, init_h, init_c, w_ih, w_hh, b_ih, b_hh, w_out, b_out))
    assert jnp.allclose(out_bf16, ref, atol=1e-1, rtol=0.0), (
        float(jnp.max(jnp.abs(out_bf16 - ref))))

    print("KERNEL_OK")
</pallas_src>

<mosaic_0001>
module attributes {stable_mosaic.version = 11 : i64} {
  func.func @_dlstm_kernel(%arg0: i32, %arg1: memref<2x256x512xf32, #tpu.memory_space<any>>, %arg2: memref<2x1x512xf32, #tpu.memory_space<vmem>>, %arg3: memref<1x512xf32, #tpu.memory_space<vmem>>, %arg4: memref<2x8x128xf32, #tpu.memory_space<vmem>>, %arg5: memref<2x8x128xf32, #tpu.memory_space<vmem>>, %arg6: memref<8x8x128xf32, #tpu.memory_space<vmem>>, %arg7: memref<2x256x512xf32, #tpu.memory_space<vmem>>, %arg8: memref<2x8x256xf32, #tpu.memory_space<vmem>>, %arg9: memref<2x8x128xf32, #tpu.memory_space<vmem>>) attributes {dimension_semantics = [#tpu.dimension_semantics<arbitrary>], iteration_bounds = array<i64: 1>, scalar_prefetch = 0 : i64, scratch_operands = 3 : i64, tpu.core_type = #tpu.core_type<tc>, window_params = [{}, {pipeline_mode = #tpu.pipeline_mode<synchronous>, transform_indices = @transform_1, window_bounds = array<i64: 2, 1, 512>}, {pipeline_mode = #tpu.pipeline_mode<synchronous>, transform_indices = @transform_2, window_bounds = array<i64: 1, 512>}, {pipeline_mode = #tpu.pipeline_mode<synchronous>, transform_indices = @transform_3, window_bounds = array<i64: 2, 8, 128>}, {pipeline_mode = #tpu.pipeline_mode<synchronous>, transform_indices = @transform_4, window_bounds = array<i64: 2, 8, 128>}, {transform_indices = @transform_5, window_bounds = array<i64: 8, 8, 128>}]} {
    %c0_i32 = arith.constant 0 : i32
    %0 = arith.cmpi eq, %arg0, %c0_i32 : i32
    %1 = arith.extui %0 : i1 to i32
    %c0_i32_0 = arith.constant 0 : i32
    %2 = arith.cmpi ne, %1, %c0_i32_0 : i32
    scf.if %2 {
      "tpu.region"() ({
        %825 = tpu.sem_alloc : memref<!tpu.dma_semaphore, #tpu.memory_space<semaphore_mem>>
        tpu.enqueue_dma source(%arg1 : memref<2x256x512xf32, #tpu.memory_space<any>>) target(%arg7 : memref<2x256x512xf32, #tpu.memory_space<vmem>>) target_semaphore(%825 : memref<!tpu.dma_semaphore, #tpu.memory_space<semaphore_mem>>)
        tpu.wait_dma2 semaphore(%825 : memref<!tpu.dma_semaphore, #tpu.memory_space<semaphore_mem>>) src(%arg1 : memref<2x256x512xf32, #tpu.memory_space<any>>) dst(%arg7 : memref<2x256x512xf32, #tpu.memory_space<vmem>>)
        tpu.yield
      }) : () -> ()
      %cst_454 = arith.constant 0.000000e+00 : f32
      %819 = vector.broadcast %cst_454 : f32 to vector<2x8x128xf32>
      %c0_455 = arith.constant 0 : index
      %c0_456 = arith.constant 0 : index
      %c0_457 = arith.constant 0 : index
      %820 = vector.load %arg8[%c0_455, %c0_456, %c0_457] : memref<2x8x256xf32, #tpu.memory_space<vmem>>, vector<2x8x128xf32>
      tpu.vector_store %arg8[%c0_455, %c0_456, %c0_457], %819 {strides = array<i32>} : memref<2x8x256xf32, #tpu.memory_space<vmem>>, vector<2x8x128xf32>,
      %c0_458 = arith.constant 0 : index
      %c0_459 = arith.constant 0 : index
      %c0_460 = arith.constant 0 : index
      %821 = vector.load %arg4[%c0_458, %c0_459, %c0_460] : memref<2x8x128xf32, #tpu.memory_space<vmem>>, vector<2x8x128xf32>
      %c0_461 = arith.constant 0 : index
      %c0_462 = arith.constant 0 : index
      %c128_463 = arith.constant 128 : index
      %822 = vector.load %arg8[%c0_461, %c0_462, %c128_463] : memref<2x8x256xf32, #tpu.memory_space<vmem>>, vector<2x8x128xf32>
      tpu.vector_store %arg8[%c0_461, %c0_462, %c128_463], %821 {strides = array<i32>} : memref<2x8x256xf32, #tpu.memory_space<vmem>>, vector<2x8x128xf32>,
      %c0_464 = arith.constant 0 : index
      %c0_465 = arith.constant 0 : index
      %c0_466 = arith.constant 0 : index
      %823 = vector.load %arg5[%c0_464, %c0_465, %c0_466] : memref<2x8x128xf32, #tpu.memory_space<vmem>>, vector<2x8x128xf32>
      %c0_467 = arith.constant 0 : index
      %c0_468 = arith.constant 0 : index
      %c0_469 = arith.constant 0 : index
      %824 = vector.load %arg9[%c0_467, %c0_468, %c0_469] : memref<2x8x128xf32, #tpu.memory_space<vmem>>, vector<2x8x128xf32>
      tpu.vector_store %arg9[%c0_467, %c0_468, %c0_469], %823 {strides = array<i32>} : memref<2x8x128xf32, #tpu.memory_space<vmem>>, vector<2x8x128xf32>,
    } else {
    }
    %c0_i32_1 = arith.constant 0 : i32
    %c8_i32 = arith.constant 8 : i32
    %3 = arith.muli %arg0, %c8_i32 : i32
    %4 = arith.addi %3, %c0_i32_1 : i32
    %c0_i32_2 = arith.constant 0 : i32
    %5 = arith.cmpi sgt, %4, %c0_i32_2 : i32
    %c0 = arith.constant 0 : index
    %c0_3 = arith.constant 0 : index
    %c0_4 = arith.constant 0 : index
    %6 = vector.load %arg8[%c0, %c0_3, %c0_4] : memref<2x8x256xf32, #tpu.memory_space<vmem>>, vector<1x8x256xf32>
    %7 = vector.shape_cast %6 : vector<1x8x256xf32> to vector<8x256xf32>
    %c0_5 = arith.constant 0 : index
    %c0_6 = arith.constant 0 : index
    %c0_7 = arith.constant 0 : index
    %8 = vector.load %arg7[%c0_5, %c0_6, %c0_7] : memref<2x256x512xf32, #tpu.memory_space<vmem>>, vector<1x256x512xf32>
    %9 = vector.shape_cast %8 : vector<1x256x512xf32> to vector<256x512xf32>
    %cst = arith.constant dense<0.000000e+00> : vector<8x512xf32>
    %10 = tpu.matmul %7, %9, %cst {dimension_numbers = #tpu.dot_dimension_numbers<[1], [0], [0], [1], [0, 0, 1, 1], [], []>} : vector<8x256xf32>, vector<256x512xf32>, vector<8x512xf32> -> vector<8x512xf32>
    %c0_8 = arith.constant 0 : index
    %c0_9 = arith.constant 0 : index
    %c0_10 = arith.constant 0 : index
    %11 = vector.load %arg2[%c0_8, %c0_9, %c0_10] : memref<2x1x512xf32, #tpu.memory_space<vmem>>, vector<1x1x512xf32>
    %12 = vector.shape_cast %11 : vector<1x1x512xf32> to vector<1x512xf32>
    %13 = vector.broadcast %12 : vector<1x512xf32> to vector<8x512xf32>
    %14 = arith.addf %10, %13 : vector<8x512xf32>
    %c0_11 = arith.constant 0 : index
    %c0_12 = arith.constant 0 : index
    %15 = vector.load %arg3[%c0_11, %c0_12] : memref<1x512xf32, #tpu.memory_space<vmem>>, vector<1x512xf32>
    %cst_13 = arith.constant 0.000000e+00 : f32
    %16 = vector.broadcast %cst_13 : f32 to vector<1x512xf32>
    %17 = arith.select %5, %15, %16 : vector<1x512xf32>
    %18 = vector.broadcast %17 : vector<1x512xf32> to vector<8x512xf32>
    %19 = arith.addf %14, %18 : vector<8x512xf32>
    %20 = vector.extract_strided_slice %19 {offsets = [0, 0], sizes = [8, 128], strides = [1, 1]} : vector<8x512xf32> to vector<8x128xf32>
    %21 = arith.negf %20 : vector<8x128xf32>
    %22 = math.exp %21 : vector<8x128xf32>
    %cst_14 = arith.constant 1.000000e+00 : f32
    %23 = vector.broadcast %cst_14 : f32 to vector<8x128xf32>
    %24 = arith.addf %23, %22 : vector<8x128xf32>
    %25 = arith.divf %23, %24 : vector<8x128xf32>
    %26 = vector.extract_strided_slice %19 {offsets = [0, 128], sizes = [8, 128], strides = [1, 1]} : vector<8x512xf32> to vector<8x128xf32>
    %27 = arith.negf %26 : vector<8x128xf32>
    %28 = math.exp %27 : vector<8x128xf32>
    %cst_15 = arith.constant 1.000000e+00 : f32
    %29 = vector.broadcast %cst_15 : f32 to vector<8x128xf32>
    %30 = arith.addf %29, %28 : vector<8x128xf32>
    %31 = arith.divf %29, %30 : vector<8x128xf32>
    %32 = vector.extract_strided_slice %19 {offsets = [0, 256], sizes = [8, 128], strides = [1, 1]} : vector<8x512xf32> to vector<8x128xf32>
    %33 = math.tanh %32 : vector<8x128xf32>
    %34 = vector.extract_strided_slice %19 {offsets = [0, 384], sizes = [8, 128], strides = [1, 1]} : vector<8x512xf32> to vector<8x128xf32>
    %35 = arith.negf %34 : vector<8x128xf32>
    %36 = math.exp %35 : vector<8x128xf32>
    %cst_16 = arith.constant 1.000000e+00 : f32
    %37 = vector.broadcast %cst_16 : f32 to vector<8x128xf32>
    %38 = arith.addf %37, %36 : vector<8x128xf32>
    %39 = arith.divf %37, %38 : vector<8x128xf32>
    %c0_17 = arith.constant 0 : index
    %c0_18 = arith.constant 0 : index
    %c0_19 = arith.constant 0 : index
    %40 = vector.load %arg9[%c0_17, %c0_18, %c0_19] : memref<2x8x128xf32, #tpu.memory_space<vmem>>, vector<1x8x128xf32>
    %41 = vector.shape_cast %40 : vector<1x8x128xf32> to vector<8x128xf32>
    %42 = arith.mulf %31, %41 : vector<8x128xf32>
    %43 = arith.mulf %25, %33 : vector<8x128xf32>
    %44 = arith.addf %42, %43 : vector<8x128xf32>
    %c0_20 = arith.constant 0 : index
    %c0_21 = arith.constant 0 : index
    %c0_22 = arith.constant 0 : index
    %45 = vector.load %arg9[%c0_20, %c0_21, %c0_22] : memref<2x8x128xf32, #tpu.memory_space<vmem>>, vector<1x8x128xf32>
    %46 = vector.shape_cast %45 : vector<1x8x128xf32> to vector<8x128xf32>
    %47 = vector.shape_cast %44 : vector<8x128xf32> to vector<1x8x128xf32>
    tpu.vector_store %arg9[%c0_20, %c0_21, %c0_22], %47 {strides = array<i32>} : memref<2x8x128xf32, #tpu.memory_space<vmem>>, vector<1x8x128xf32>,
    %48 = math.tanh %44 : vector<8x128xf32>
    %49 = arith.mulf %39, %48 : vector<8x128xf32>
    %c0_23 = arith.constant 0 : index
    %c0_24 = arith.constant 0 : index
    %c128 = arith.constant 128 : index
    %50 = vector.load %arg8[%c0_23, %c0_24, %c128] : memref<2x8x256xf32, #tpu.memory_space<vmem>>, vector<1x8x128xf32>
    %51 = vector.shape_cast %50 : vector<1x8x128xf32> to vector<8x128xf32>
    %52 = vector.shape_cast %49 : vector<8x128xf32> to vector<1x8x128xf32>
    tpu.vector_store %arg8[%c0_23, %c0_24, %c128], %52 {strides = array<i32>} : memref<2x8x256xf32, #tpu.memory_space<vmem>>, vector<1x8x128xf32>,
    %c1 = arith.constant 1 : index
    %c0_25 = arith.constant 0 : index
    %c0_26 = arith.constant 0 : index
    %53 = vector.load %arg8[%c1, %c0_25, %c0_26] : memref<2x8x256xf32, #tpu.memory_space<vmem>>, vector<1x8x128xf32>
    %54 = vector.shape_cast %53 : vector<1x8x128xf32> to vector<8x128xf32>
    %55 = vector.shape_cast %49 : vector<8x128xf32> to vector<1x8x128xf32>
    tpu.vector_store %arg8[%c1, %c0_25, %c0_26], %55 {strides = array<i32>} : memref<2x8x256xf32, #tpu.memory_space<vmem>>, vector<1x8x128xf32>,
    %c1_27 = arith.constant 1 : index
    %c0_28 = arith.constant 0 : index
    %c0_29 = arith.constant 0 : index
    %56 = vector.load %arg8[%c1_27, %c0_28, %c0_29] : memref<2x8x256xf32, #tpu.memory_space<vmem>>, vector<1x8x256xf32>
    %57 = vector.shape_cast %56 : vector<1x8x256xf32> to vector<8x256xf32>
    %c1_30 = arith.constant 1 : index
    %c0_31 = arith.constant 0 : index
    %c0_32 = arith.constant 0 : index
    %58 = vector.load %arg7[%c1_30, %c0_31, %c0_32] : memref<2x256x512xf32, #tpu.memory_space<vmem>>, vector<1x256x512xf32>
    %59 = vector.shape_cast %58 : vector<1x256x512xf32> to vector<256x512xf32>
    %cst_33 = arith.constant dense<0.000000e+00> : vector<8x512xf32>
    %60 = tpu.matmul %57, %59, %cst_33 {dimension_numbers = #tpu.dot_dimension_numbers<[1], [0], [0], [1], [0, 0, 1, 1], [], []>} : vector<8x256xf32>, vector<256x512xf32>, vector<8x512xf32> -> vector<8x512xf32>
    %c1_34 = arith.constant 1 : index
    %c0_35 = arith.constant 0 : index
    %c0_36 = arith.constant 0 : index
    %61 = vector.load %arg2[%c1_34, %c0_35, %c0_36] : memref<2x1x512xf32, #tpu.memory_space<vmem>>, vector<1x1x512xf32>
    %62 = vector.shape_cast %61 : vector<1x1x512xf32> to vector<1x512xf32>
    %63 = vector.broadcast %62 : vector<1x512xf32> to vector<8x512xf32>
    %64 = arith.addf %60, %63 : vector<8x512xf32>
    %65 = vector.extract_strided_slice %64 {offsets = [0, 0], sizes = [8, 128], strides = [1, 1]} : vector<8x512xf32> to vector<8x128xf32>
    %66 = arith.negf %65 : vector<8x128xf32>
    %67 = math.exp %66 : vector<8x128xf32>
    %cst_37 = arith.constant 1.000000e+00 : f32
    %68 = vector.broadcast %cst_37 : f32 to vector<8x128xf32>
    %69 = arith.addf %68, %67 : vector<8x128xf32>
    %70 = arith.divf %68, %69 : vector<8x128xf32>
    %71 = vector.extract_strided_slice %64 {offsets = [0, 128], sizes = [8, 128], strides = [1, 1]} : vector<8x512xf32> to vector<8x128xf32>
    %72 = arith.negf %71 : vector<8x128xf32>
    %73 = math.exp %72 : vector<8x128xf32>
    %cst_38 = arith.constant 1.000000e+00 : f32
    %74 = vector.broadcast %cst_38 : f32 to vector<8x128xf32>
    %75 = arith.addf %74, %73 : vector<8x128xf32>
    %76 = arith.divf %74, %75 : vector<8x128xf32>
    %77 = vector.extract_strided_slice %64 {offsets = [0, 256], sizes = [8, 128], strides = [1, 1]} : vector<8x512xf32> to vector<8x128xf32>
    %78 = math.tanh %77 : vector<8x128xf32>
    %79 = vector.extract_strided_slice %64 {offsets = [0, 384], sizes = [8, 128], strides = [1, 1]} : vector<8x512xf32> to vector<8x128xf32>
    %80 = arith.negf %79 : vector<8x128xf32>
    %81 = math.exp %80 : vector<8x128xf32>
    %cst_39 = arith.constant 1.000000e+00 : f32
    %82 = vector.broadcast %cst_39 : f32 to vector<8x128xf32>
    %83 = arith.addf %82, %81 : vector<8x128xf32>
    %84 = arith.divf %82, %83 : vector<8x128xf32>
    %c1_40 = arith.constant 1 : index
    %c0_41 = arith.constant 0 : index
    %c0_42 = arith.constant 0 : index
    %85 = vector.load %arg9[%c1_40, %c0_41, %c0_42] : memref<2x8x128xf32, #tpu.memory_space<vmem>>, vector<1x8x128xf32>
    %86 = vector.shape_cast %85 : vector<1x8x128xf32> to vector<8x128xf32>
    %87 = arith.mulf %76, %86 : vector<8x128xf32>
    %88 = arith.mulf %70, %78 : vector<8x128xf32>
    %89 = arith.addf %87, %88 : vector<8x128xf32>
    %c1_43 = arith.constant 1 : index
    %c0_44 = arith.constant 0 : index
    %c0_45 = arith.constant 0 : index
    %90 = vector.load %arg9[%c1_43, %c0_44, %c0_45] : memref<2x8x128xf32, #tpu.memory_space<vmem>>, vector<1x8x128xf32>
    %91 = vector.shape_cast %90 : vector<1x8x128xf32> to vector<8x128xf32>
    %92 = vector.shape_cast %89 : vector<8x128xf32> to vector<1x8x128xf32>
    tpu.vector_store %arg9[%c1_43, %c0_44, %c0_45], %92 {strides = array<i32>} : memref<2x8x128xf32, #tpu.memory_space<vmem>>, vector<1x8x128xf32>,
    %93 = math.tanh %89 : vector<8x128xf32>
    %94 = arith.mulf %84, %93 : vector<8x128xf32>
    %c1_46 = arith.constant 1 : index
    %c0_47 = arith.constant 0 : index
    %c128_48 = arith.constant 128 : index
    %95 = vector.load %arg8[%c1_46, %c0_47, %c128_48] : memref<2x8x256xf32, #tpu.memory_space<vmem>>, vector<1x8x128xf32>
    %96 = vector.shape_cast %95 : vector<1x8x128xf32> to vector<8x128xf32>
    %97 = vector.shape_cast %94 : vector<8x128xf32> to vector<1x8x128xf32>
    tpu.vector_store %arg8[%c1_46, %c0_47, %c128_48], %97 {strides = array<i32>} : memref<2x8x256xf32, #tpu.memory_space<vmem>>, vector<1x8x128xf32>,
    %c0_49 = arith.constant 0 : index
    %c0_50 = arith.constant 0 : index
    %c0_51 = arith.constant 0 : index
    %98 = vector.load %arg8[%c0_49, %c0_50, %c0_51] : memref<2x8x256xf32, #tpu.memory_space<vmem>>, vector<1x8x128xf32>
    %99 = vector.shape_cast %98 : vector<1x8x128xf32> to vector<8x128xf32>
    %100 = vector.shape_cast %94 : vector<8x128xf32> to vector<1x8x128xf32>
    tpu.vector_store %arg8[%c0_49, %c0_50, %c0_51], %100 {strides = array<i32>} : memref<2x8x256xf32, #tpu.memory_space<vmem>>, vector<1x8x128xf32>,
    %101 = arith.index_cast %c0_i32_1 : i32 to index
    %c0_52 = arith.constant 0 : index
    %c0_53 = arith.constant 0 : index
    %102 = vector.load %arg6[%101, %c0_52, %c0_53] : memref<8x8x128xf32, #tpu.memory_space<vmem>>, vector<1x8x128xf32>
    %103 = vector.shape_cast %102 : vector<1x8x128xf32> to vector<8x128xf32>
    %104 = vector.shape_cast %94 : vector<8x128xf32> to vector<1x8x128xf32>
    tpu.vector_store %arg6[%101, %c0_52, %c0_53], %104 {strides = array<i32>} : memref<8x8x128xf32, #tpu.memory_space<vmem>>, vector<1x8x128xf32>,
    %c1_i32 = arith.constant 1 : i32
    %c8_i32_54 = arith.constant 8 : i32
    %105 = arith.muli %arg0, %c8_i32_54 : i32
    %106 = arith.addi %105, %c1_i32 : i32
    %c0_i32_55 = arith.constant 0 : i32
    %107 = arith.cmpi sgt, %106, %c0_i32_55 : i32
    %c0_56 = arith.constant 0 : index
    %c0_57 = arith.constant 0 : index
    %c0_58 = arith.constant 0 : index
    %108 = vector.load %arg8[%c0_56, %c0_57, %c0_58] : memref<2x8x256xf32, #tpu.memory_space<vmem>>, vector<1x8x256xf32>
    %109 = vector.shape_cast %108 : vector<1x8x256xf32> to vector<8x256xf32>
    %c0_59 = arith.constant 0 : index
    %c0_60 = arith.constant 0 : index
    %c0_61 = arith.constant 0 : index
    %110 = vector.load %arg7[%c0_59, %c0_60, %c0_61] : memref<2x256x512xf32, #tpu.memory_space<vmem>>, vector<1x256x512xf32>
    %111 = vector.shape_cast %110 : vector<1x256x512xf32> to vector<256x512xf32>
    %cst_62 = arith.constant dense<0.000000e+00> : vector<8x512xf32>
    %112 = tpu.matmul %109, %111, %cst_62 {dimension_numbers = #tpu.dot_dimension_numbers<[1], [0], [0], [1], [0, 0, 1, 1], [], []>} : vector<8x256xf32>, vector<256x512xf32>, vector<8x512xf32> -> vector<8x512xf32>
    %c0_63 = arith.constant 0 : index
    %c0_64 = arith.constant 0 : index
    %c0_65 = arith.constant 0 : index
    %113 = vector.load %arg2[%c0_63, %c0_64, %c0_65] : memref<2x1x512xf32, #tpu.memory_space<vmem>>, vector<1x1x512xf32>
    %114 = vector.shape_cast %113 : vector<1x1x512xf32> to vector<1x512xf32>
    %115 = vector.broadcast %114 : vector<1x512xf32> to vector<8x512xf32>
    %116 = arith.addf %112, %115 : vector<8x512xf32>
    %c0_66 = arith.constant 0 : index
    %c0_67 = arith.constant 0 : index
    %117 = vector.load %arg3[%c0_66, %c0_67] : memref<1x512xf32, #tpu.memory_space<vmem>>, vector<1x512xf32>
    %cst_68 = arith.constant 0.000000e+00 : f32
    %118 = vector.broadcast %cst_68 : f32 to vector<1x512xf32>
    %119 = arith.select %107, %117, %118 : vector<1x512xf32>
    %120 = vector.broadcast %119 : vector<1x512xf32> to vector<8x512xf32>
    %121 = arith.addf %116, %120 : vector<8x512xf32>
    %122 = vector.extract_strided_slice %121 {offsets = [0, 0], sizes = [8, 128], strides = [1, 1]} : vector<8x512xf32> to vector<8x128xf32>
    %123 = arith.negf %122 : vector<8x128xf32>
    %124 = math.exp %123 : vector<8x128xf32>
    %cst_69 = arith.constant 1.000000e+00 : f32
    %125 = vector.broadcast %cst_69 : f32 to vector<8x128xf32>
    %126 = arith.addf %125, %124 : vector<8x128xf32>
    %127 = arith.divf %125, %126 : vector<8x128xf32>
    %128 = vector.extract_strided_slice %121 {offsets = [0, 128], sizes = [8, 128], strides = [1, 1]} : vector<8x512xf32> to vector<8x128xf32>
    %129 = arith.negf %128 : vector<8x128xf32>
    %130 = math.exp %129 : vector<8x128xf32>
    %cst_70 = arith.constant 1.000000e+00 : f32
    %131 = vector.broadcast %cst_70 : f32 to vector<8x128xf32>
    %132 = arith.addf %131, %130 : vector<8x128xf32>
    %133 = arith.divf %131, %132 : vector<8x128xf32>
    %134 = vector.extract_strided_slice %121 {offsets = [0, 256], sizes = [8, 128], strides = [1, 1]} : vector<8x512xf32> to vector<8x128xf32>
    %135 = math.tanh %134 : vector<8x128xf32>
    %136 = vector.extract_strided_slice %121 {offsets = [0, 384], sizes = [8, 128], strides = [1, 1]} : vector<8x512xf32> to vector<8x128xf32>
    %137 = arith.negf %136 : vector<8x128xf32>
    %138 = math.exp %137 : vector<8x128xf32>
    %cst_71 = arith.constant 1.000000e+00 : f32
    %139 = vector.broadcast %cst_71 : f32 to vector<8x128xf32>
    %140 = arith.addf %139, %138 : vector<8x128xf32>
    %141 = arith.divf %139, %140 : vector<8x128xf32>
    %c0_72 = arith.constant 0 : index
    %c0_73 = arith.constant 0 : index
    %c0_74 = arith.constant 0 : index
    %142 = vector.load %arg9[%c0_72, %c0_73, %c0_74] : memref<2x8x128xf32, #tpu.memory_space<vmem>>, vector<1x8x128xf32>
    %143 = vector.shape_cast %142 : vector<1x8x128xf32> to vector<8x128xf32>
    %144 = arith.mulf %133, %143 : vector<8x128xf32>
    %145 = arith.mulf %127, %135 : vector<8x128xf32>
    %146 = arith.addf %144, %145 : vector<8x128xf32>
    %c0_75 = arith.constant 0 : index
    %c0_76 = arith.constant 0 : index
    %c0_77 = arith.constant 0 : index
    %147 = vector.load %arg9[%c0_75, %c0_76, %c0_77] : memref<2x8x128xf32, #tpu.memory_space<vmem>>, vector<1x8x128xf32>
    %148 = vector.shape_cast %147 : vector<1x8x128xf32> to vector<8x128xf32>
    %149 = vector.shape_cast %146 : vector<8x128xf32> to vector<1x8x128xf32>
    tpu.vector_store %arg9[%c0_75, %c0_76, %c0_77], %149 {strides = array<i32>} : memref<2x8x128xf32, #tpu.memory_space<vmem>>, vector<1x8x128xf32>,
    %150 = math.tanh %146 : vector<8x128xf32>
    %151 = arith.mulf %141, %150 : vector<8x128xf32>
    %c0_78 = arith.constant 0 : index
    %c0_79 = arith.constant 0 : index
    %c128_80 = arith.constant 128 : index
    %152 = vector.load %arg8[%c0_78, %c0_79, %c128_80] : memref<2x8x256xf32, #tpu.memory_space<vmem>>, vector<1x8x128xf32>
    %153 = vector.shape_cast %152 : vector<1x8x128xf32> to vector<8x128xf32>
    %154 = vector.shape_cast %151 : vector<8x128xf32> to vector<1x8x128xf32>
    tpu.vector_store %arg8[%c0_78, %c0_79, %c128_80], %154 {strides = array<i32>} : memref<2x8x256xf32, #tpu.memory_space<vmem>>, vector<1x8x128xf32>,
    %c1_81 = arith.constant 1 : index
    %c0_82 = arith.constant 0 : index
    %c0_83 = arith.constant 0 : index
    %155 = vector.load %arg8[%c1_81, %c0_82, %c0_83] : memref<2x8x256xf32, #tpu.memory_space<vmem>>, vector<1x8x128xf32>
    %156 = vector.shape_cast %155 : vector<1x8x128xf32> to vector<8x128xf32>
    %157 = vector.shape_cast %151 : vector<8x128xf32> to vector<1x8x128xf32>
    tpu.vector_store %arg8[%c1_81, %c0_82, %c0_83], %157 {strides = array<i32>} : memref<2x8x256xf32, #tpu.memory_space<vmem>>, vector<1x8x128xf32>,
    %c1_84 = arith.constant 1 : index
    %c0_85 = arith.constant 0 : index
    %c0_86 = arith.constant 0 : index
    %158 = vector.load %arg8[%c1_84, %c0_85, %c0_86] : memref<2x8x256xf32, #tpu.memory_space<vmem>>, vector<1x8x256xf32>
    %159 = vector.shape_cast %158 : vector<1x8x256xf32> to vector<8x256xf32>
    %c1_87 = arith.constant 1 : index
    %c0_88 = arith.constant 0 : index
    %c0_89 = arith.constant 0 : index
    %160 = vector.load %arg7[%c1_87, %c0_88, %c0_89] : memref<2x256x512xf32, #tpu.memory_space<vmem>>, vector<1x256x512xf32>
    %161 = vector.shape_cast %160 : vector<1x256x512xf32> to vector<256x512xf32>
    %cst_90 = arith.constant dense<0.000000e+00> : vector<8x512xf32>
    %162 = tpu.matmul %159, %161, %cst_90 {dimension_numbers = #tpu.dot_dimension_numbers<[1], [0], [0], [1], [0, 0, 1, 1], [], []>} : vector<8x256xf32>, vector<256x512xf32>, vector<8x512xf32> -> vector<8x512xf32>
    %c1_91 = arith.constant 1 : index
    %c0_92 = arith.constant 0 : index
    %c0_93 = arith.constant 0 : index
    %163 = vector.load %arg2[%c1_91, %c0_92, %c0_93] : memref<2x1x512xf32, #tpu.memory_space<vmem>>, vector<1x1x512xf32>
    %164 = vector.shape_cast %163 : vector<1x1x512xf32> to vector<1x512xf32>
    %165 = vector.broadcast %164 : vector<1x512xf32> to vector<8x512xf32>
    %166 = arith.addf %162, %165 : vector<8x512xf32>
    %167 = vector.extract_strided_slice %166 {offsets = [0, 0], sizes = [8, 128], strides = [1, 1]} : vector<8x512xf32> to vector<8x128xf32>
    %168 = arith.negf %167 : vector<8x128xf32>
    %169 = math.exp %168 : vector<8x128xf32>
    %cst_94 = arith.constant 1.000000e+00 : f32
    %170 = vector.broadcast %cst_94 : f32 to vector<8x128xf32>
    %171 = arith.addf %170, %169 : vector<8x128xf32>
    %172 = arith.divf %170, %171 : vector<8x128xf32>
    %173 = vector.extract_strided_slice %166 {offsets = [0, 128], sizes = [8, 128], strides = [1, 1]} : vector<8x512xf32> to vector<8x128xf32>
    %174 = arith.negf %173 : vector<8x128xf32>
    %175 = math.exp %174 : vector<8x128xf32>
    %cst_95 = arith.constant 1.000000e+00 : f32
    %176 = vector.broadcast %cst_95 : f32 to vector<8x128xf32>
    %177 = arith.addf %176, %175 : vector<8x128xf32>
    %178 = arith.divf %176, %177 : vector<8x128xf32>
    %179 = vector.extract_strided_slice %166 {offsets = [0, 256], sizes = [8, 128], strides = [1, 1]} : vector<8x512xf32> to vector<8x128xf32>
    %180 = math.tanh %179 : vector<8x128xf32>
    %181 = vector.extract_strided_slice %166 {offsets = [0, 384], sizes = [8, 128], strides = [1, 1]} : vector<8x512xf32> to vector<8x128xf32>
    %182 = arith.negf %181 : vector<8x128xf32>
    %183 = math.exp %182 : vector<8x128xf32>
    %cst_96 = arith.constant 1.000000e+00 : f32
    %184 = vector.broadcast %cst_96 : f32 to vector<8x128xf32>
    %185 = arith.addf %184, %183 : vector<8x128xf32>
    %186 = arith.divf %184, %185 : vector<8x128xf32>
    %c1_97 = arith.constant 1 : index
    %c0_98 = arith.constant 0 : index
    %c0_99 = arith.constant 0 : index
    %187 = vector.load %arg9[%c1_97, %c0_98, %c0_99] : memref<2x8x128xf32, #tpu.memory_space<vmem>>, vector<1x8x128xf32>
    %188 = vector.shape_cast %187 : vector<1x8x128xf32> to vector<8x128xf32>
    %189 = arith.mulf %178, %188 : vector<8x128xf32>
    %190 = arith.mulf %172, %180 : vector<8x128xf32>
    %191 = arith.addf %189, %190 : vector<8x128xf32>
    %c1_100 = arith.constant 1 : index
    %c0_101 = arith.constant 0 : index
    %c0_102 = arith.constant 0 : index
    %192 = vector.load %arg9[%c1_100, %c0_101, %c0_102] : memref<2x8x128xf32, #tpu.memory_space<vmem>>, vector<1x8x128xf32>
    %193 = vector.shape_cast %192 : vector<1x8x128xf32> to vector<8x128xf32>
    %194 = vector.shape_cast %191 : vector<8x128xf32> to vector<1x8x128xf32>
    tpu.vector_store %arg9[%c1_100, %c0_101, %c0_102], %194 {strides = array<i32>} : memref<2x8x128xf32, #tpu.memory_space<vmem>>, vector<1x8x128xf32>,
    %195 = math.tanh %191 : vector<8x128xf32>
    %196 = arith.mulf %186, %195 : vector<8x128xf32>
    %c1_103 = arith.constant 1 : index
    %c0_104 = arith.constant 0 : index
    %c128_105 = arith.constant 128 : index
    %197 = vector.load %arg8[%c1_103, %c0_104, %c128_105] : memref<2x8x256xf32, #tpu.memory_space<vmem>>, vector<1x8x128xf32>
    %198 = vector.shape_cast %197 : vector<1x8x128xf32> to vector<8x128xf32>
    %199 = vector.shape_cast %196 : vector<8x128xf32> to vector<1x8x128xf32>
    tpu.vector_store %arg8[%c1_103, %c0_104, %c128_105], %199 {strides = array<i32>} : memref<2x8x256xf32, #tpu.memory_space<vmem>>, vector<1x8x128xf32>,
    %c0_106 = arith.constant 0 : index
    %c0_107 = arith.constant 0 : index
    %c0_108 = arith.constant 0 : index
    %200 = vector.load %arg8[%c0_106, %c0_107, %c0_108] : memref<2x8x256xf32, #tpu.memory_space<vmem>>, vector<1x8x128xf32>
    %201 = vector.shape_cast %200 : vector<1x8x128xf32> to vector<8x128xf32>
    %202 = vector.shape_cast %196 : vector<8x128xf32> to vector<1x8x128xf32>
    tpu.vector_store %arg8[%c0_106, %c0_107, %c0_108], %202 {strides = array<i32>} : memref<2x8x256xf32, #tpu.memory_space<vmem>>, vector<1x8x128xf32>,
    %203 = arith.index_cast %c1_i32 : i32 to index
    %c0_109 = arith.constant 0 : index
    %c0_110 = arith.constant 0 : index
    %204 = vector.load %arg6[%203, %c0_109, %c0_110] : memref<8x8x128xf32, #tpu.memory_space<vmem>>, vector<1x8x128xf32>
    %205 = vector.shape_cast %204 : vector<1x8x128xf32> to vector<8x128xf32>
    %206 = vector.shape_cast %196 : vector<8x128xf32> to vector<1x8x128xf32>
    tpu.vector_store %arg6[%203, %c0_109, %c0_110], %206 {strides = array<i32>} : memref<8x8x128xf32, #tpu.memory_space<vmem>>, vector<1x8x128xf32>,
    %c2_i32 = arith.constant 2 : i32
    %c8_i32_111 = arith.constant 8 : i32
    %207 = arith.muli %arg0, %c8_i32_111 : i32
    %208 = arith.addi %207, %c2_i32 : i32
    %c0_i32_112 = arith.constant 0 : i32
    %209 = arith.cmpi sgt, %208, %c0_i32_112 : i32
    %c0_113 = arith.constant 0 : index
    %c0_114 = arith.constant 0 : index
    %c0_115 = arith.constant 0 : index
    %210 = vector.load %arg8[%c0_113, %c0_114, %c0_115] : memref<2x8x256xf32, #tpu.memory_space<vmem>>, vector<1x8x256xf32>
    %211 = vector.shape_cast %210 : vector<1x8x256xf32> to vector<8x256xf32>
    %c0_116 = arith.constant 0 : index
    %c0_117 = arith.constant 0 : index
    %c0_118 = arith.constant 0 : index
    %212 = vector.load %arg7[%c0_116, %c0_117, %c0_118] : memref<2x256x512xf32, #tpu.memory_space<vmem>>, vector<1x256x512xf32>
    %213 = vector.shape_cast %212 : vector<1x256x512xf32> to vector<256x512xf32>
    %cst_119 = arith.constant dense<0.000000e+00> : vector<8x512xf32>
    %214 = tpu.matmul %211, %213, %cst_119 {dimension_numbers = #tpu.dot_dimension_numbers<[1], [0], [0], [1], [0, 0, 1, 1], [], []>} : vector<8x256xf32>, vector<256x512xf32>, vector<8x512xf32> -> vector<8x512xf32>
    %c0_120 = arith.constant 0 : index
    %c0_121 = arith.constant 0 : index
    %c0_122 = arith.constant 0 : index
    %215 = vector.load %arg2[%c0_120, %c0_121, %c0_122] : memref<2x1x512xf32, #tpu.memory_space<vmem>>, vector<1x1x512xf32>
    %216 = vector.shape_cast %215 : vector<1x1x512xf32> to vector<1x512xf32>
    %217 = vector.broadcast %216 : vector<1x512xf32> to vector<8x512xf32>
    %218 = arith.addf %214, %217 : vector<8x512xf32>
    %c0_123 = arith.constant 0 : index
    %c0_124 = arith.constant 0 : index
    %219 = vector.load %arg3[%c0_123, %c0_124] : memref<1x512xf32, #tpu.memory_space<vmem>>, vector<1x512xf32>
    %cst_125 = arith.constant 0.000000e+00 : f32
    %220 = vector.broadcast %cst_125 : f32 to vector<1x512xf32>
    %221 = arith.select %209, %219, %220 : vector<1x512xf32>
    %222 = vector.broadcast %221 : vector<1x512xf32> to vector<8x512xf32>
    %223 = arith.addf %218, %222 : vector<8x512xf32>
    %224 = vector.extract_strided_slice %223 {offsets = [0, 0], sizes = [8, 128], strides = [1, 1]} : vector<8x512xf32> to vector<8x128xf32>
    %225 = arith.negf %224 : vector<8x128xf32>
    %226 = math.exp %225 : vector<8x128xf32>
    %cst_126 = arith.constant 1.000000e+00 : f32
    %227 = vector.broadcast %cst_126 : f32 to vector<8x128xf32>
    %228 = arith.addf %227, %226 : vector<8x128xf32>
    %229 = arith.divf %227, %228 : vector<8x128xf32>
    %230 = vector.extract_strided_slice %223 {offsets = [0, 128], sizes = [8, 128], strides = [1, 1]} : vector<8x512xf32> to vector<8x128xf32>
    %231 = arith.negf %230 : vector<8x128xf32>
    %232 = math.exp %231 : vector<8x128xf32>
    %cst_127 = arith.constant 1.000000e+00 : f32
    %233 = vector.broadcast %cst_127 : f32 to vector<8x128xf32>
    %234 = arith.addf %233, %232 : vector<8x128xf32>
    %235 = arith.divf %233, %234 : vector<8x128xf32>
    %236 = vector.extract_strided_slice %223 {offsets = [0, 256], sizes = [8, 128], strides = [1, 1]} : vector<8x512xf32> to vector<8x128xf32>
    %237 = math.tanh %236 : vector<8x128xf32>
    %238 = vector.extract_strided_slice %223 {offsets = [0, 384], sizes = [8, 128], strides = [1, 1]} : vector<8x512xf32> to vector<8x128xf32>
    %239 = arith.negf %238 : vector<8x128xf32>
    %240 = math.exp %239 : vector<8x128xf32>
    %cst_128 = arith.constant 1.000000e+00 : f32
    %241 = vector.broadcast %cst_128 : f32 to vector<8x128xf32>
    %242 = arith.addf %241, %240 : vector<8x128xf32>
    %243 = arith.divf %241, %242 : vector<8x128xf32>
    %c0_129 = arith.constant 0 : index
    %c0_130 = arith.constant 0 : index
    %c0_131 = arith.constant 0 : index
    %244 = vector.load %arg9[%c0_129, %c0_130, %c0_131] : memref<2x8x128xf32, #tpu.memory_space<vmem>>, vector<1x8x128xf32>
    %245 = vector.shape_cast %244 : vector<1x8x128xf32> to vector<8x128xf32>
    %246 = arith.mulf %235, %245 : vector<8x128xf32>
    %247 = arith.mulf %229, %237 : vector<8x128xf32>
    %248 = arith.addf %246, %247 : vector<8x128xf32>
    %c0_132 = arith.constant 0 : index
    %c0_133 = arith.constant 0 : index
    %c0_134 = arith.constant 0 : index
    %249 = vector.load %arg9[%c0_132, %c0_133, %c0_134] : memref<2x8x128xf32, #tpu.memory_space<vmem>>, vector<1x8x128xf32>
    %250 = vector.shape_cast %249 : vector<1x8x128xf32> to vector<8x128xf32>
    %251 = vector.shape_cast %248 : vector<8x128xf32> to vector<1x8x128xf32>
    tpu.vector_store %arg9[%c0_132, %c0_133, %c0_134], %251 {strides = array<i32>} : memref<2x8x128xf32, #tpu.memory_space<vmem>>, vector<1x8x128xf32>,
    %252 = math.tanh %248 : vector<8x128xf32>
    %253 = arith.mulf %243, %252 : vector<8x128xf32>
    %c0_135 = arith.constant 0 : index
    %c0_136 = arith.constant 0 : index
    %c128_137 = arith.constant 128 : index
    %254 = vector.load %arg8[%c0_135, %c0_136, %c128_137] : memref<2x8x256xf32, #tpu.memory_space<vmem>>, vector<1x8x128xf32>
    %255 = vector.shape_cast %254 : vector<1x8x128xf32> to vector<8x128xf32>
    %256 = vector.shape_cast %253 : vector<8x128xf32> to vector<1x8x128xf32>
    tpu.vector_store %arg8[%c0_135, %c0_136, %c128_137], %256 {strides = array<i32>} : memref<2x8x256xf32, #tpu.memory_space<vmem>>, vector<1x8x128xf32>,
    %c1_138 = arith.constant 1 : index
    %c0_139 = arith.constant 0 : index
    %c0_140 = arith.constant 0 : index
    %257 = vector.load %arg8[%c1_138, %c0_139, %c0_140] : memref<2x8x256xf32, #tpu.memory_space<vmem>>, vector<1x8x128xf32>
    %258 = vector.shape_cast %257 : vector<1x8x128xf32> to vector<8x128xf32>
    %259 = vector.shape_cast %253 : vector<8x128xf32> to vector<1x8x128xf32>
    tpu.vector_store %arg8[%c1_138, %c0_139, %c0_140], %259 {strides = array<i32>} : memref<2x8x256xf32, #tpu.memory_space<vmem>>, vector<1x8x128xf32>,
    %c1_141 = arith.constant 1 : index
    %c0_142 = arith.constant 0 : index
    %c0_143 = arith.constant 0 : index
    %260 = vector.load %arg8[%c1_141, %c0_142, %c0_143] : memref<2x8x256xf32, #tpu.memory_space<vmem>>, vector<1x8x256xf32>
    %261 = vector.shape_cast %260 : vector<1x8x256xf32> to vector<8x256xf32>
    %c1_144 = arith.constant 1 : index
    %c0_145 = arith.constant 0 : index
    %c0_146 = arith.constant 0 : index
    %262 = vector.load %arg7[%c1_144, %c0_145, %c0_146] : memref<2x256x512xf32, #tpu.memory_space<vmem>>, vector<1x256x512xf32>
    %263 = vector.shape_cast %262 : vector<1x256x512xf32> to vector<256x512xf32>
    %cst_147 = arith.constant dense<0.000000e+00> : vector<8x512xf32>
    %264 = tpu.matmul %261, %263, %cst_147 {dimension_numbers = #tpu.dot_dimension_numbers<[1], [0], [0], [1], [0, 0, 1, 1], [], []>} : vector<8x256xf32>, vector<256x512xf32>, vector<8x512xf32> -> vector<8x512xf32>
    %c1_148 = arith.constant 1 : index
    %c0_149 = arith.constant 0 : index
    %c0_150 = arith.constant 0 : index
    %265 = vector.load %arg2[%c1_148, %c0_149, %c0_150] : memref<2x1x512xf32, #tpu.memory_space<vmem>>, vector<1x1x512xf32>
    %266 = vector.shape_cast %265 : vector<1x1x512xf32> to vector<1x512xf32>
    %267 = vector.broadcast %266 : vector<1x512xf32> to vector<8x512xf32>
    %268 = arith.addf %264, %267 : vector<8x512xf32>
    %269 = vector.extract_strided_slice %268 {offsets = [0, 0], sizes = [8, 128], strides = [1, 1]} : vector<8x512xf32> to vector<8x128xf32>
    %270 = arith.negf %269 : vector<8x128xf32>
    %271 = math.exp %270 : vector<8x128xf32>
    %cst_151 = arith.constant 1.000000e+00 : f32
    %272 = vector.broadcast %cst_151 : f32 to vector<8x128xf32>
    %273 = arith.addf %272, %271 : vector<8x128xf32>
    %274 = arith.divf %272, %273 : vector<8x128xf32>
    %275 = vector.extract_strided_slice %268 {offsets = [0, 128], sizes = [8, 128], strides = [1, 1]} : vector<8x512xf32> to vector<8x128xf32>
    %276 = arith.negf %275 : vector<8x128xf32>
    %277 = math.exp %276 : vector<8x128xf32>
    %cst_152 = arith.constant 1.000000e+00 : f32
    %278 = vector.broadcast %cst_152 : f32 to vector<8x128xf32>
    %279 = arith.addf %278, %277 : vector<8x128xf32>
    %280 = arith.divf %278, %279 : vector<8x128xf32>
    %281 = vector.extract_strided_slice %268 {offsets = [0, 256], sizes = [8, 128], strides = [1, 1]} : vector<8x512xf32> to vector<8x128xf32>
    %282 = math.tanh %281 : vector<8x128xf32>
    %283 = vector.extract_strided_slice %268 {offsets = [0, 384], sizes = [8, 128], strides = [1, 1]} : vector<8x512xf32> to vector<8x128xf32>
    %284 = arith.negf %283 : vector<8x128xf32>
    %285 = math.exp %284 : vector<8x128xf32>
    %cst_153 = arith.constant 1.000000e+00 : f32
    %286 = vector.broadcast %cst_153 : f32 to vector<8x128xf32>
    %287 = arith.addf %286, %285 : vector<8x128xf32>
    %288 = arith.divf %286, %287 : vector<8x128xf32>
    %c1_154 = arith.constant 1 : index
    %c0_155 = arith.constant 0 : index
    %c0_156 = arith.constant 0 : index
    %289 = vector.load %arg9[%c1_154, %c0_155, %c0_156] : memref<2x8x128xf32, #tpu.memory_space<vmem>>, vector<1x8x128xf32>
    %290 = vector.shape_cast %289 : vector<1x8x128xf32> to vector<8x128xf32>
    %291 = arith.mulf %280, %290 : vector<8x128xf32>
    %292 = arith.mulf %274, %282 : vector<8x128xf32>
    %293 = arith.addf %291, %292 : vector<8x128xf32>
    %c1_157 = arith.constant 1 : index
    %c0_158 = arith.constant 0 : index
    %c0_159 = arith.constant 0 : index
    %294 = vector.load %arg9[%c1_157, %c0_158, %c0_159] : memref<2x8x128xf32, #tpu.memory_space<vmem>>, vector<1x8x128xf32>
    %295 = vector.shape_cast %294 : vector<1x8x128xf32> to vector<8x128xf32>
    %296 = vector.shape_cast %293 : vector<8x128xf32> to vector<1x8x128xf32>
    tpu.vector_store %arg9[%c1_157, %c0_158, %c0_159], %296 {strides = array<i32>} : memref<2x8x128xf32, #tpu.memory_space<vmem>>, vector<1x8x128xf32>,
    %297 = math.tanh %293 : vector<8x128xf32>
    %298 = arith.mulf %288, %297 : vector<8x128xf32>
    %c1_160 = arith.constant 1 : index
    %c0_161 = arith.constant 0 : index
    %c128_162 = arith.constant 128 : index
    %299 = vector.load %arg8[%c1_160, %c0_161, %c128_162] : memref<2x8x256xf32, #tpu.memory_space<vmem>>, vector<1x8x128xf32>
    %300 = vector.shape_cast %299 : vector<1x8x128xf32> to vector<8x128xf32>
    %301 = vector.shape_cast %298 : vector<8x128xf32> to vector<1x8x128xf32>
    tpu.vector_store %arg8[%c1_160, %c0_161, %c128_162], %301 {strides = array<i32>} : memref<2x8x256xf32, #tpu.memory_space<vmem>>, vector<1x8x128xf32>,
    %c0_163 = arith.constant 0 : index
    %c0_164 = arith.constant 0 : index
    %c0_165 = arith.constant 0 : index
    %302 = vector.load %arg8[%c0_163, %c0_164, %c0_165] : memref<2x8x256xf32, #tpu.memory_space<vmem>>, vector<1x8x128xf32>
    %303 = vector.shape_cast %302 : vector<1x8x128xf32> to vector<8x128xf32>
    %304 = vector.shape_cast %298 : vector<8x128xf32> to vector<1x8x128xf32>
    tpu.vector_store %arg8[%c0_163, %c0_164, %c0_165], %304 {strides = array<i32>} : memref<2x8x256xf32, #tpu.memory_space<vmem>>, vector<1x8x128xf32>,
    %305 = arith.index_cast %c2_i32 : i32 to index
    %c0_166 = arith.constant 0 : index
    %c0_167 = arith.constant 0 : index
    %306 = vector.load %arg6[%305, %c0_166, %c0_167] : memref<8x8x128xf32, #tpu.memory_space<vmem>>, vector<1x8x128xf32>
    %307 = vector.shape_cast %306 : vector<1x8x128xf32> to vector<8x128xf32>
    %308 = vector.shape_cast %298 : vector<8x128xf32> to vector<1x8x128xf32>
    tpu.vector_store %arg6[%305, %c0_166, %c0_167], %308 {strides = array<i32>} : memref<8x8x128xf32, #tpu.memory_space<vmem>>, vector<1x8x128xf32>,
    %c3_i32 = arith.constant 3 : i32
    %c8_i32_168 = arith.constant 8 : i32
    %309 = arith.muli %arg0, %c8_i32_168 : i32
    %310 = arith.addi %309, %c3_i32 : i32
    %c0_i32_169 = arith.constant 0 : i32
    %311 = arith.cmpi sgt, %310, %c0_i32_169 : i32
    %c0_170 = arith.constant 0 : index
    %c0_171 = arith.constant 0 : index
    %c0_172 = arith.constant 0 : index
    %312 = vector.load %arg8[%c0_170, %c0_171, %c0_172] : memref<2x8x256xf32, #tpu.memory_space<vmem>>, vector<1x8x256xf32>
    %313 = vector.shape_cast %312 : vector<1x8x256xf32> to vector<8x256xf32>
    %c0_173 = arith.constant 0 : index
    %c0_174 = arith.constant 0 : index
    %c0_175 = arith.constant 0 : index
    %314 = vector.load %arg7[%c0_173, %c0_174, %c0_175] : memref<2x256x512xf32, #tpu.memory_space<vmem>>, vector<1x256x512xf32>
    %315 = vector.shape_cast %314 : vector<1x256x512xf32> to vector<256x512xf32>
    %cst_176 = arith.constant dense<0.000000e+00> : vector<8x512xf32>
    %316 = tpu.matmul %313, %315, %cst_176 {dimension_numbers = #tpu.dot_dimension_numbers<[1], [0], [0], [1], [0, 0, 1, 1], [], []>} : vector<8x256xf32>, vector<256x512xf32>, vector<8x512xf32> -> vector<8x512xf32>
    %c0_177 = arith.constant 0 : index
    %c0_178 = arith.constant 0 : index
    %c0_179 = arith.constant 0 : index
    %317 = vector.load %arg2[%c0_177, %c0_178, %c0_179] : memref<2x1x512xf32, #tpu.memory_space<vmem>>, vector<1x1x512xf32>
    %318 = vector.shape_cast %317 : vector<1x1x512xf32> to vector<1x512xf32>
    %319 = vector.broadcast %318 : vector<1x512xf32> to vector<8x512xf32>
    %320 = arith.addf %316, %319 : vector<8x512xf32>
    %c0_180 = arith.constant 0 : index
    %c0_181 = arith.constant 0 : index
    %321 = vector.load %arg3[%c0_180, %c0_181] : memref<1x512xf32, #tpu.memory_space<vmem>>, vector<1x512xf32>
    %cst_182 = arith.constant 0.000000e+00 : f32
    %322 = vector.broadcast %cst_182 : f32 to vector<1x512xf32>
    %323 = arith.select %311, %321, %322 : vector<1x512xf32>
    %324 = vector.broadcast %323 : vector<1x512xf32> to vector<8x512xf32>
    %325 = arith.addf %320, %324 : vector<8x512xf32>
    %326 = vector.extract_strided_slice %325 {offsets = [0, 0], sizes = [8, 128], strides = [1, 1]} : vector<8x512xf32> to vector<8x128xf32>
    %327 = arith.negf %326 : vector<8x128xf32>
    %328 = math.exp %327 : vector<8x128xf32>
    %cst_183 = arith.constant 1.000000e+00 : f32
    %329 = vector.broadcast %cst_183 : f32 to vector<8x128xf32>
    %330 = arith.addf %329, %328 : vector<8x128xf32>
    %331 = arith.divf %329, %330 : vector<8x128xf32>
    %332 = vector.extract_strided_slice %325 {offsets = [0, 128], sizes = [8, 128], strides = [1, 1]} : vector<8x512xf32> to vector<8x128xf32>
    %333 = arith.negf %332 : vector<8x128xf32>
    %334 = math.exp %333 : vector<8x128xf32>
    %cst_184 = arith.constant 1.000000e+00 : f32
    %335 = vector.broadcast %cst_184 : f32 to vector<8x128xf32>
    %336 = arith.addf %335, %334 : vector<8x128xf32>
    %337 = arith.divf %335, %336 : vector<8x128xf32>
    %338 = vector.extract_strided_slice %325 {offsets = [0, 256], sizes = [8, 128], strides = [1, 1]} : vector<8x512xf32> to vector<8x128xf32>
    %339 = math.tanh %338 : vector<8x128xf32>
    %340 = vector.extract_strided_slice %325 {offsets = [0, 384], sizes = [8, 128], strides = [1, 1]} : vector<8x512xf32> to vector<8x128xf32>
    %341 = arith.negf %340 : vector<8x128xf32>
    %342 = math.exp %341 : vector<8x128xf32>
    %cst_185 = arith.constant 1.000000e+00 : f32
    %343 = vector.broadcast %cst_185 : f32 to vector<8x128xf32>
    %344 = arith.addf %343, %342 : vector<8x128xf32>
    %345 = arith.divf %343, %344 : vector<8x128xf32>
    %c0_186 = arith.constant 0 : index
    %c0_187 = arith.constant 0 : index
    %c0_188 = arith.constant 0 : index
    %346 = vector.load %arg9[%c0_186, %c0_187, %c0_188] : memref<2x8x128xf32, #tpu.memory_space<vmem>>, vector<1x8x128xf32>
    %347 = vector.shape_cast %346 : vector<1x8x128xf32> to vector<8x128xf32>
    %348 = arith.mulf %337, %347 : vector<8x128xf32>
    %349 = arith.mulf %331, %339 : vector<8x128xf32>
    %350 = arith.addf %348, %349 : vector<8x128xf32>
    %c0_189 = arith.constant 0 : index
    %c0_190 = arith.constant 0 : index
    %c0_191 = arith.constant 0 : index
    %351 = vector.load %arg9[%c0_189, %c0_190, %c0_191] : memref<2x8x128xf32, #tpu.memory_space<vmem>>, vector<1x8x128xf32>
    %352 = vector.shape_cast %351 : vector<1x8x128xf32> to vector<8x128xf32>
    %353 = vector.shape_cast %350 : vector<8x128xf32> to vector<1x8x128xf32>
    tpu.vector_store %arg9[%c0_189, %c0_190, %c0_191], %353 {strides = array<i32>} : memref<2x8x128xf32, #tpu.memory_space<vmem>>, vector<1x8x128xf32>,
    %354 = math.tanh %350 : vector<8x128xf32>
    %355 = arith.mulf %345, %354 : vector<8x128xf32>
    %c0_192 = arith.constant 0 : index
    %c0_193 = arith.constant 0 : index
    %c128_194 = arith.constant 128 : index
    %356 = vector.load %arg8[%c0_192, %c0_193, %c128_194] : memref<2x8x256xf32, #tpu.memory_space<vmem>>, vector<1x8x128xf32>
    %357 = vector.shape_cast %356 : vector<1x8x128xf32> to vector<8x128xf32>
    %358 = vector.shape_cast %355 : vector<8x128xf32> to vector<1x8x128xf32>
    tpu.vector_store %arg8[%c0_192, %c0_193, %c128_194], %358 {strides = array<i32>} : memref<2x8x256xf32, #tpu.memory_space<vmem>>, vector<1x8x128xf32>,
    %c1_195 = arith.constant 1 : index
    %c0_196 = arith.constant 0 : index
    %c0_197 = arith.constant 0 : index
    %359 = vector.load %arg8[%c1_195, %c0_196, %c0_197] : memref<2x8x256xf32, #tpu.memory_space<vmem>>, vector<1x8x128xf32>
    %360 = vector.shape_cast %359 : vector<1x8x128xf32> to vector<8x128xf32>
    %361 = vector.shape_cast %355 : vector<8x128xf32> to vector<1x8x128xf32>
    tpu.vector_store %arg8[%c1_195, %c0_196, %c0_197], %361 {strides = array<i32>} : memref<2x8x256xf32, #tpu.memory_space<vmem>>, vector<1x8x128xf32>,
    %c1_198 = arith.constant 1 : index
    %c0_199 = arith.constant 0 : index
    %c0_200 = arith.constant 0 : index
    %362 = vector.load %arg8[%c1_198, %c0_199, %c0_200] : memref<2x8x256xf32, #tpu.memory_space<vmem>>, vector<1x8x256xf32>
    %363 = vector.shape_cast %362 : vector<1x8x256xf32> to vector<8x256xf32>
    %c1_201 = arith.constant 1 : index
    %c0_202 = arith.constant 0 : index
    %c0_203 = arith.constant 0 : index
    %364 = vector.load %arg7[%c1_201, %c0_202, %c0_203] : memref<2x256x512xf32, #tpu.memory_space<vmem>>, vector<1x256x512xf32>
    %365 = vector.shape_cast %364 : vector<1x256x512xf32> to vector<256x512xf32>
    %cst_204 = arith.constant dense<0.000000e+00> : vector<8x512xf32>
    %366 = tpu.matmul %363, %365, %cst_204 {dimension_numbers = #tpu.dot_dimension_numbers<[1], [0], [0], [1], [0, 0, 1, 1], [], []>} : vector<8x256xf32>, vector<256x512xf32>, vector<8x512xf32> -> vector<8x512xf32>
    %c1_205 = arith.constant 1 : index
    %c0_206 = arith.constant 0 : index
    %c0_207 = arith.constant 0 : index
    %367 = vector.load %arg2[%c1_205, %c0_206, %c0_207] : memref<2x1x512xf32, #tpu.memory_space<vmem>>, vector<1x1x512xf32>
    %368 = vector.shape_cast %367 : vector<1x1x512xf32> to vector<1x512xf32>
    %369 = vector.broadcast %368 : vector<1x512xf32> to vector<8x512xf32>
    %370 = arith.addf %366, %369 : vector<8x512xf32>
    %371 = vector.extract_strided_slice %370 {offsets = [0, 0], sizes = [8, 128], strides = [1, 1]} : vector<8x512xf32> to vector<8x128xf32>
    %372 = arith.negf %371 : vector<8x128xf32>
    %373 = math.exp %372 : vector<8x128xf32>
    %cst_208 = arith.constant 1.000000e+00 : f32
    %374 = vector.broadcast %cst_208 : f32 to vector<8x128xf32>
    %375 = arith.addf %374, %373 : vector<8x128xf32>
    %376 = arith.divf %374, %375 : vector<8x128xf32>
    %377 = vector.extract_strided_slice %370 {offsets = [0, 128], sizes = [8, 128], strides = [1, 1]} : vector<8x512xf32> to vector<8x128xf32>
    %378 = arith.negf %377 : vector<8x128xf32>
    %379 = math.exp %378 : vector<8x128xf32>
    %cst_209 = arith.constant 1.000000e+00 : f32
    %380 = vector.broadcast %cst_209 : f32 to vector<8x128xf32>
    %381 = arith.addf %380, %379 : vector<8x128xf32>
    %382 = arith.divf %380, %381 : vector<8x128xf32>
    %383 = vector.extract_strided_slice %370 {offsets = [0, 256], sizes = [8, 128], strides = [1, 1]} : vector<8x512xf32> to vector<8x128xf32>
    %384 = math.tanh %383 : vector<8x128xf32>
    %385 = vector.extract_strided_slice %370 {offsets = [0, 384], sizes = [8, 128], strides = [1, 1]} : vector<8x512xf32> to vector<8x128xf32>
    %386 = arith.negf %385 : vector<8x128xf32>
    %387 = math.exp %386 : vector<8x128xf32>
    %cst_210 = arith.constant 1.000000e+00 : f32
    %388 = vector.broadcast %cst_210 : f32 to vector<8x128xf32>
    %389 = arith.addf %388, %387 : vector<8x128xf32>
    %390 = arith.divf %388, %389 : vector<8x128xf32>
    %c1_211 = arith.constant 1 : index
    %c0_212 = arith.constant 0 : index
    %c0_213 = arith.constant 0 : index
    %391 = vector.load %arg9[%c1_211, %c0_212, %c0_213] : memref<2x8x128xf32, #tpu.memory_space<vmem>>, vector<1x8x128xf32>
    %392 = vector.shape_cast %391 : vector<1x8x128xf32> to vector<8x128xf32>
    %393 = arith.mulf %382, %392 : vector<8x128xf32>
    %394 = arith.mulf %376, %384 : vector<8x128xf32>
    %395 = arith.addf %393, %394 : vector<8x128xf32>
    %c1_214 = arith.constant 1 : index
    %c0_215 = arith.constant 0 : index
    %c0_216 = arith.constant 0 : index
    %396 = vector.load %arg9[%c1_214, %c0_215, %c0_216] : memref<2x8x128xf32, #tpu.memory_space<vmem>>, vector<1x8x128xf32>
    %397 = vector.shape_cast %396 : vector<1x8x128xf32> to vector<8x128xf32>
    %398 = vector.shape_cast %395 : vector<8x128xf32> to vector<1x8x128xf32>
    tpu.vector_store %arg9[%c1_214, %c0_215, %c0_216], %398 {strides = array<i32>} : memref<2x8x128xf32, #tpu.memory_space<vmem>>, vector<1x8x128xf32>,
    %399 = math.tanh %395 : vector<8x128xf32>
    %400 = arith.mulf %390, %399 : vector<8x128xf32>
    %c1_217 = arith.constant 1 : index
    %c0_218 = arith.constant 0 : index
    %c128_219 = arith.constant 128 : index
    %401 = vector.load %arg8[%c1_217, %c0_218, %c128_219] : memref<2x8x256xf32, #tpu.memory_space<vmem>>, vector<1x8x128xf32>
    %402 = vector.shape_cast %401 : vector<1x8x128xf32> to vector<8x128xf32>
    %403 = vector.shape_cast %400 : vector<8x128xf32> to vector<1x8x128xf32>
    tpu.vector_store %arg8[%c1_217, %c0_218, %c128_219], %403 {strides = array<i32>} : memref<2x8x256xf32, #tpu.memory_space<vmem>>, vector<1x8x128xf32>,
    %c0_220 = arith.constant 0 : index
    %c0_221 = arith.constant 0 : index
    %c0_222 = arith.constant 0 : index
    %404 = vector.load %arg8[%c0_220, %c0_221, %c0_222] : memref<2x8x256xf32, #tpu.memory_space<vmem>>, vector<1x8x128xf32>
    %405 = vector.shape_cast %404 : vector<1x8x128xf32> to vector<8x128xf32>
    %406 = vector.shape_cast %400 : vector<8x128xf32> to vector<1x8x128xf32>
    tpu.vector_store %arg8[%c0_220, %c0_221, %c0_222], %406 {strides = array<i32>} : memref<2x8x256xf32, #tpu.memory_space<vmem>>, vector<1x8x128xf32>,
    %407 = arith.index_cast %c3_i32 : i32 to index
    %c0_223 = arith.constant 0 : index
    %c0_224 = arith.constant 0 : index
    %408 = vector.load %arg6[%407, %c0_223, %c0_224] : memref<8x8x128xf32, #tpu.memory_space<vmem>>, vector<1x8x128xf32>
    %409 = vector.shape_cast %408 : vector<1x8x128xf32> to vector<8x128xf32>
    %410 = vector.shape_cast %400 : vector<8x128xf32> to vector<1x8x128xf32>
    tpu.vector_store %arg6[%407, %c0_223, %c0_224], %410 {strides = array<i32>} : memref<8x8x128xf32, #tpu.memory_space<vmem>>, vector<1x8x128xf32>,
    %c4_i32 = arith.constant 4 : i32
    %c8_i32_225 = arith.constant 8 : i32
    %411 = arith.muli %arg0, %c8_i32_225 : i32
    %412 = arith.addi %411, %c4_i32 : i32
    %c0_i32_226 = arith.constant 0 : i32
    %413 = arith.cmpi sgt, %412, %c0_i32_226 : i32
    %c0_227 = arith.constant 0 : index
    %c0_228 = arith.constant 0 : index
    %c0_229 = arith.constant 0 : index
    %414 = vector.load %arg8[%c0_227, %c0_228, %c0_229] : memref<2x8x256xf32, #tpu.memory_space<vmem>>, vector<1x8x256xf32>
    %415 = vector.shape_cast %414 : vector<1x8x256xf32> to vector<8x256xf32>
    %c0_230 = arith.constant 0 : index
    %c0_231 = arith.constant 0 : index
    %c0_232 = arith.constant 0 : index
    %416 = vector.load %arg7[%c0_230, %c0_231, %c0_232] : memref<2x256x512xf32, #tpu.memory_space<vmem>>, vector<1x256x512xf32>
    %417 = vector.shape_cast %416 : vector<1x256x512xf32> to vector<256x512xf32>
    %cst_233 = arith.constant dense<0.000000e+00> : vector<8x512xf32>
    %418 = tpu.matmul %415, %417, %cst_233 {dimension_numbers = #tpu.dot_dimension_numbers<[1], [0], [0], [1], [0, 0, 1, 1], [], []>} : vector<8x256xf32>, vector<256x512xf32>, vector<8x512xf32> -> vector<8x512xf32>
    %c0_234 = arith.constant 0 : index
    %c0_235 = arith.constant 0 : index
    %c0_236 = arith.constant 0 : index
    %419 = vector.load %arg2[%c0_234, %c0_235, %c0_236] : memref<2x1x512xf32, #tpu.memory_space<vmem>>, vector<1x1x512xf32>
    %420 = vector.shape_cast %419 : vector<1x1x512xf32> to vector<1x512xf32>
    %421 = vector.broadcast %420 : vector<1x512xf32> to vector<8x512xf32>
    %422 = arith.addf %418, %421 : vector<8x512xf32>
    %c0_237 = arith.constant 0 : index
    %c0_238 = arith.constant 0 : index
    %423 = vector.load %arg3[%c0_237, %c0_238] : memref<1x512xf32, #tpu.memory_space<vmem>>, vector<1x512xf32>
    %cst_239 = arith.constant 0.000000e+00 : f32
    %424 = vector.broadcast %cst_239 : f32 to vector<1x512xf32>
    %425 = arith.select %413, %423, %424 : vector<1x512xf32>
    %426 = vector.broadcast %425 : vector<1x512xf32> to vector<8x512xf32>
    %427 = arith.addf %422, %426 : vector<8x512xf32>
    %428 = vector.extract_strided_slice %427 {offsets = [0, 0], sizes = [8, 128], strides = [1, 1]} : vector<8x512xf32> to vector<8x128xf32>
    %429 = arith.negf %428 : vector<8x128xf32>
    %430 = math.exp %429 : vector<8x128xf32>
    %cst_240 = arith.constant 1.000000e+00 : f32
    %431 = vector.broadcast %cst_240 : f32 to vector<8x128xf32>
    %432 = arith.addf %431, %430 : vector<8x128xf32>
    %433 = arith.divf %431, %432 : vector<8x128xf32>
    %434 = vector.extract_strided_slice %427 {offsets = [0, 128], sizes = [8, 128], strides = [1, 1]} : vector<8x512xf32> to vector<8x128xf32>
    %435 = arith.negf %434 : vector<8x128xf32>
    %436 = math.exp %435 : vector<8x128xf32>
    %cst_241 = arith.constant 1.000000e+00 : f32
    %437 = vector.broadcast %cst_241 : f32 to vector<8x128xf32>
    %438 = arith.addf %437, %436 : vector<8x128xf32>
    %439 = arith.divf %437, %438 : vector<8x128xf32>
    %440 = vector.extract_strided_slice %427 {offsets = [0, 256], sizes = [8, 128], strides = [1, 1]} : vector<8x512xf32> to vector<8x128xf32>
    %441 = math.tanh %440 : vector<8x128xf32>
    %442 = vector.extract_strided_slice %427 {offsets = [0, 384], sizes = [8, 128], strides = [1, 1]} : vector<8x512xf32> to vector<8x128xf32>
    %443 = arith.negf %442 : vector<8x128xf32>
    %444 = math.exp %443 : vector<8x128xf32>
    %cst_242 = arith.constant 1.000000e+00 : f32
    %445 = vector.broadcast %cst_242 : f32 to vector<8x128xf32>
    %446 = arith.addf %445, %444 : vector<8x128xf32>
    %447 = arith.divf %445, %446 : vector<8x128xf32>
    %c0_243 = arith.constant 0 : index
    %c0_244 = arith.constant 0 : index
    %c0_245 = arith.constant 0 : index
    %448 = vector.load %arg9[%c0_243, %c0_244, %c0_245] : memref<2x8x128xf32, #tpu.memory_space<vmem>>, vector<1x8x128xf32>
    %449 = vector.shape_cast %448 : vector<1x8x128xf32> to vector<8x128xf32>
    %450 = arith.mulf %439, %449 : vector<8x128xf32>
    %451 = arith.mulf %433, %441 : vector<8x128xf32>
    %452 = arith.addf %450, %451 : vector<8x128xf32>
    %c0_246 = arith.constant 0 : index
    %c0_247 = arith.constant 0 : index
    %c0_248 = arith.constant 0 : index
    %453 = vector.load %arg9[%c0_246, %c0_247, %c0_248] : memref<2x8x128xf32, #tpu.memory_space<vmem>>, vector<1x8x128xf32>
    %454 = vector.shape_cast %453 : vector<1x8x128xf32> to vector<8x128xf32>
    %455 = vector.shape_cast %452 : vector<8x128xf32> to vector<1x8x128xf32>
    tpu.vector_store %arg9[%c0_246, %c0_247, %c0_248], %455 {strides = array<i32>} : memref<2x8x128xf32, #tpu.memory_space<vmem>>, vector<1x8x128xf32>,
    %456 = math.tanh %452 : vector<8x128xf32>
    %457 = arith.mulf %447, %456 : vector<8x128xf32>
    %c0_249 = arith.constant 0 : index
    %c0_250 = arith.constant 0 : index
    %c128_251 = arith.constant 128 : index
    %458 = vector.load %arg8[%c0_249, %c0_250, %c128_251] : memref<2x8x256xf32, #tpu.memory_space<vmem>>, vector<1x8x128xf32>
    %459 = vector.shape_cast %458 : vector<1x8x128xf32> to vector<8x128xf32>
    %460 = vector.shape_cast %457 : vector<8x128xf32> to vector<1x8x128xf32>
    tpu.vector_store %arg8[%c0_249, %c0_250, %c128_251], %460 {strides = array<i32>} : memref<2x8x256xf32, #tpu.memory_space<vmem>>, vector<1x8x128xf32>,
    %c1_252 = arith.constant 1 : index
    %c0_253 = arith.constant 0 : index
    %c0_254 = arith.constant 0 : index
    %461 = vector.load %arg8[%c1_252, %c0_253, %c0_254] : memref<2x8x256xf32, #tpu.memory_space<vmem>>, vector<1x8x128xf32>
    %462 = vector.shape_cast %461 : vector<1x8x128xf32> to vector<8x128xf32>
    %463 = vector.shape_cast %457 : vector<8x128xf32> to vector<1x8x128xf32>
    tpu.vector_store %arg8[%c1_252, %c0_253, %c0_254], %463 {strides = array<i32>} : memref<2x8x256xf32, #tpu.memory_space<vmem>>, vector<1x8x128xf32>,
    %c1_255 = arith.constant 1 : index
    %c0_256 = arith.constant 0 : index
    %c0_257 = arith.constant 0 : index
    %464 = vector.load %arg8[%c1_255, %c0_256, %c0_257] : memref<2x8x256xf32, #tpu.memory_space<vmem>>, vector<1x8x256xf32>
    %465 = vector.shape_cast %464 : vector<1x8x256xf32> to vector<8x256xf32>
    %c1_258 = arith.constant 1 : index
    %c0_259 = arith.constant 0 : index
    %c0_260 = arith.constant 0 : index
    %466 = vector.load %arg7[%c1_258, %c0_259, %c0_260] : memref<2x256x512xf32, #tpu.memory_space<vmem>>, vector<1x256x512xf32>
    %467 = vector.shape_cast %466 : vector<1x256x512xf32> to vector<256x512xf32>
    %cst_261 = arith.constant dense<0.000000e+00> : vector<8x512xf32>
    %468 = tpu.matmul %465, %467, %cst_261 {dimension_numbers = #tpu.dot_dimension_numbers<[1], [0], [0], [1], [0, 0, 1, 1], [], []>} : vector<8x256xf32>, vector<256x512xf32>, vector<8x512xf32> -> vector<8x512xf32>
    %c1_262 = arith.constant 1 : index
    %c0_263 = arith.constant 0 : index
    %c0_264 = arith.constant 0 : index
    %469 = vector.load %arg2[%c1_262, %c0_263, %c0_264] : memref<2x1x512xf32, #tpu.memory_space<vmem>>, vector<1x1x512xf32>
    %470 = vector.shape_cast %469 : vector<1x1x512xf32> to vector<1x512xf32>
    %471 = vector.broadcast %470 : vector<1x512xf32> to vector<8x512xf32>
    %472 = arith.addf %468, %471 : vector<8x512xf32>
    %473 = vector.extract_strided_slice %472 {offsets = [0, 0], sizes = [8, 128], strides = [1, 1]} : vector<8x512xf32> to vector<8x128xf32>
    %474 = arith.negf %473 : vector<8x128xf32>
    %475 = math.exp %474 : vector<8x128xf32>
    %cst_265 = arith.constant 1.000000e+00 : f32
    %476 = vector.broadcast %cst_265 : f32 to vector<8x128xf32>
    %477 = arith.addf %476, %475 : vector<8x128xf32>
    %478 = arith.divf %476, %477 : vector<8x128xf32>
    %479 = vector.extract_strided_slice %472 {offsets = [0, 128], sizes = [8, 128], strides = [1, 1]} : vector<8x512xf32> to vector<8x128xf32>
    %480 = arith.negf %479 : vector<8x128xf32>
    %481 = math.exp %480 : vector<8x128xf32>
    %cst_266 = arith.constant 1.000000e+00 : f32
    %482 = vector.broadcast %cst_266 : f32 to vector<8x128xf32>
    %483 = arith.addf %482, %481 : vector<8x128xf32>
    %484 = arith.divf %482, %483 : vector<8x128xf32>
    %485 = vector.extract_strided_slice %472 {offsets = [0, 256], sizes = [8, 128], strides = [1, 1]} : vector<8x512xf32> to vector<8x128xf32>
    %486 = math.tanh %485 : vector<8x128xf32>
    %487 = vector.extract_strided_slice %472 {offsets = [0, 384], sizes = [8, 128], strides = [1, 1]} : vector<8x512xf32> to vector<8x128xf32>
    %488 = arith.negf %487 : vector<8x128xf32>
    %489 = math.exp %488 : vector<8x128xf32>
    %cst_267 = arith.constant 1.000000e+00 : f32
    %490 = vector.broadcast %cst_267 : f32 to vector<8x128xf32>
    %491 = arith.addf %490, %489 : vector<8x128xf32>
    %492 = arith.divf %490, %491 : vector<8x128xf32>
    %c1_268 = arith.constant 1 : index
    %c0_269 = arith.constant 0 : index
    %c0_270 = arith.constant 0 : index
    %493 = vector.load %arg9[%c1_268, %c0_269, %c0_270] : memref<2x8x128xf32, #tpu.memory_space<vmem>>, vector<1x8x128xf32>
    %494 = vector.shape_cast %493 : vector<1x8x128xf32> to vector<8x128xf32>
    %495 = arith.mulf %484, %494 : vector<8x128xf32>
    %496 = arith.mulf %478, %486 : vector<8x128xf32>
    %497 = arith.addf %495, %496 : vector<8x128xf32>
    %c1_271 = arith.constant 1 : index
    %c0_272 = arith.constant 0 : index
    %c0_273 = arith.constant 0 : index
    %498 = vector.load %arg9[%c1_271, %c0_272, %c0_273] : memref<2x8x128xf32, #tpu.memory_space<vmem>>, vector<1x8x128xf32>
    %499 = vector.shape_cast %498 : vector<1x8x128xf32> to vector<8x128xf32>
    %500 = vector.shape_cast %497 : vector<8x128xf32> to vector<1x8x128xf32>
    tpu.vector_store %arg9[%c1_271, %c0_272, %c0_273], %500 {strides = array<i32>} : memref<2x8x128xf32, #tpu.memory_space<vmem>>, vector<1x8x128xf32>,
    %501 = math.tanh %497 : vector<8x128xf32>
    %502 = arith.mulf %492, %501 : vector<8x128xf32>
    %c1_274 = arith.constant 1 : index
    %c0_275 = arith.constant 0 : index
    %c128_276 = arith.constant 128 : index
    %503 = vector.load %arg8[%c1_274, %c0_275, %c128_276] : memref<2x8x256xf32, #tpu.memory_space<vmem>>, vector<1x8x128xf32>
    %504 = vector.shape_cast %503 : vector<1x8x128xf32> to vector<8x128xf32>
    %505 = vector.shape_cast %502 : vector<8x128xf32> to vector<1x8x128xf32>
    tpu.vector_store %arg8[%c1_274, %c0_275, %c128_276], %505 {strides = array<i32>} : memref<2x8x256xf32, #tpu.memory_space<vmem>>, vector<1x8x128xf32>,
    %c0_277 = arith.constant 0 : index
    %c0_278 = arith.constant 0 : index
    %c0_279 = arith.constant 0 : index
    %506 = vector.load %arg8[%c0_277, %c0_278, %c0_279] : memref<2x8x256xf32, #tpu.memory_space<vmem>>, vector<1x8x128xf32>
    %507 = vector.shape_cast %506 : vector<1x8x128xf32> to vector<8x128xf32>
    %508 = vector.shape_cast %502 : vector<8x128xf32> to vector<1x8x128xf32>
    tpu.vector_store %arg8[%c0_277, %c0_278, %c0_279], %508 {strides = array<i32>} : memref<2x8x256xf32, #tpu.memory_space<vmem>>, vector<1x8x128xf32>,
    %509 = arith.index_cast %c4_i32 : i32 to index
    %c0_280 = arith.constant 0 : index
    %c0_281 = arith.constant 0 : index
    %510 = vector.load %arg6[%509, %c0_280, %c0_281] : memref<8x8x128xf32, #tpu.memory_space<vmem>>, vector<1x8x128xf32>
    %511 = vector.shape_cast %510 : vector<1x8x128xf32> to vector<8x128xf32>
    %512 = vector.shape_cast %502 : vector<8x128xf32> to vector<1x8x128xf32>
    tpu.vector_store %arg6[%509, %c0_280, %c0_281], %512 {strides = array<i32>} : memref<8x8x128xf32, #tpu.memory_space<vmem>>, vector<1x8x128xf32>,
    %c5_i32 = arith.constant 5 : i32
    %c8_i32_282 = arith.constant 8 : i32
    %513 = arith.muli %arg0, %c8_i32_282 : i32
    %514 = arith.addi %513, %c5_i32 : i32
    %c0_i32_283 = arith.constant 0 : i32
    %515 = arith.cmpi sgt, %514, %c0_i32_283 : i32
    %c0_284 = arith.constant 0 : index
    %c0_285 = arith.constant 0 : index
    %c0_286 = arith.constant 0 : index
    %516 = vector.load %arg8[%c0_284, %c0_285, %c0_286] : memref<2x8x256xf32, #tpu.memory_space<vmem>>, vector<1x8x256xf32>
    %517 = vector.shape_cast %516 : vector<1x8x256xf32> to vector<8x256xf32>
    %c0_287 = arith.constant 0 : index
    %c0_288 = arith.constant 0 : index
    %c0_289 = arith.constant 0 : index
    %518 = vector.load %arg7[%c0_287, %c0_288, %c0_289] : memref<2x256x512xf32, #tpu.memory_space<vmem>>, vector<1x256x512xf32>
    %519 = vector.shape_cast %518 : vector<1x256x512xf32> to vector<256x512xf32>
    %cst_290 = arith.constant dense<0.000000e+00> : vector<8x512xf32>
    %520 = tpu.matmul %517, %519, %cst_290 {dimension_numbers = #tpu.dot_dimension_numbers<[1], [0], [0], [1], [0, 0, 1, 1], [], []>} : vector<8x256xf32>, vector<256x512xf32>, vector<8x512xf32> -> vector<8x512xf32>
    %c0_291 = arith.constant 0 : index
    %c0_292 = arith.constant 0 : index
    %c0_293 = arith.constant 0 : index
    %521 = vector.load %arg2[%c0_291, %c0_292, %c0_293] : memref<2x1x512xf32, #tpu.memory_space<vmem>>, vector<1x1x512xf32>
    %522 = vector.shape_cast %521 : vector<1x1x512xf32> to vector<1x512xf32>
    %523 = vector.broadcast %522 : vector<1x512xf32> to vector<8x512xf32>
    %524 = arith.addf %520, %523 : vector<8x512xf32>
    %c0_294 = arith.constant 0 : index
    %c0_295 = arith.constant 0 : index
    %525 = vector.load %arg3[%c0_294, %c0_295] : memref<1x512xf32, #tpu.memory_space<vmem>>, vector<1x512xf32>
    %cst_296 = arith.constant 0.000000e+00 : f32
    %526 = vector.broadcast %cst_296 : f32 to vector<1x512xf32>
    %527 = arith.select %515, %525, %526 : vector<1x512xf32>
    %528 = vector.broadcast %527 : vector<1x512xf32> to vector<8x512xf32>
    %529 = arith.addf %524, %528 : vector<8x512xf32>
    %530 = vector.extract_strided_slice %529 {offsets = [0, 0], sizes = [8, 128], strides = [1, 1]} : vector<8x512xf32> to vector<8x128xf32>
    %531 = arith.negf %530 : vector<8x128xf32>
    %532 = math.exp %531 : vector<8x128xf32>
    %cst_297 = arith.constant 1.000000e+00 : f32
    %533 = vector.broadcast %cst_297 : f32 to vector<8x128xf32>
    %534 = arith.addf %533, %532 : vector<8x128xf32>
    %535 = arith.divf %533, %534 : vector<8x128xf32>
    %536 = vector.extract_strided_slice %529 {offsets = [0, 128], sizes = [8, 128], strides = [1, 1]} : vector<8x512xf32> to vector<8x128xf32>
    %537 = arith.negf %536 : vector<8x128xf32>
    %538 = math.exp %537 : vector<8x128xf32>
    %cst_298 = arith.constant 1.000000e+00 : f32
    %539 = vector.broadcast %cst_298 : f32 to vector<8x128xf32>
    %540 = arith.addf %539, %538 : vector<8x128xf32>
    %541 = arith.divf %539, %540 : vector<8x128xf32>
    %542 = vector.extract_strided_slice %529 {offsets = [0, 256], sizes = [8, 128], strides = [1, 1]} : vector<8x512xf32> to vector<8x128xf32>
    %543 = math.tanh %542 : vector<8x128xf32>
    %544 = vector.extract_strided_slice %529 {offsets = [0, 384], sizes = [8, 128], strides = [1, 1]} : vector<8x512xf32> to vector<8x128xf32>
    %545 = arith.negf %544 : vector<8x128xf32>
    %546 = math.exp %545 : vector<8x128xf32>
    %cst_299 = arith.constant 1.000000e+00 : f32
    %547 = vector.broadcast %cst_299 : f32 to vector<8x128xf32>
    %548 = arith.addf %547, %546 : vector<8x128xf32>
    %549 = arith.divf %547, %548 : vector<8x128xf32>
    %c0_300 = arith.constant 0 : index
    %c0_301 = arith.constant 0 : index
    %c0_302 = arith.constant 0 : index
    %550 = vector.load %arg9[%c0_300, %c0_301, %c0_302] : memref<2x8x128xf32, #tpu.memory_space<vmem>>, vector<1x8x128xf32>
    %551 = vector.shape_cast %550 : vector<1x8x128xf32> to vector<8x128xf32>
    %552 = arith.mulf %541, %551 : vector<8x128xf32>
    %553 = arith.mulf %535, %543 : vector<8x128xf32>
    %554 = arith.addf %552, %553 : vector<8x128xf32>
    %c0_303 = arith.constant 0 : index
    %c0_304 = arith.constant 0 : index
    %c0_305 = arith.constant 0 : index
    %555 = vector.load %arg9[%c0_303, %c0_304, %c0_305] : memref<2x8x128xf32, #tpu.memory_space<vmem>>, vector<1x8x128xf32>
    %556 = vector.shape_cast %555 : vector<1x8x128xf32> to vector<8x128xf32>
    %557 = vector.shape_cast %554 : vector<8x128xf32> to vector<1x8x128xf32>
    tpu.vector_store %arg9[%c0_303, %c0_304, %c0_305], %557 {strides = array<i32>} : memref<2x8x128xf32, #tpu.memory_space<vmem>>, vector<1x8x128xf32>,
    %558 = math.tanh %554 : vector<8x128xf32>
    %559 = arith.mulf %549, %558 : vector<8x128xf32>
    %c0_306 = arith.constant 0 : index
    %c0_307 = arith.constant 0 : index
    %c128_308 = arith.constant 128 : index
    %560 = vector.load %arg8[%c0_306, %c0_307, %c128_308] : memref<2x8x256xf32, #tpu.memory_space<vmem>>, vector<1x8x128xf32>
    %561 = vector.shape_cast %560 : vector<1x8x128xf32> to vector<8x128xf32>
    %562 = vector.shape_cast %559 : vector<8x128xf32> to vector<1x8x128xf32>
    tpu.vector_store %arg8[%c0_306, %c0_307, %c128_308], %562 {strides = array<i32>} : memref<2x8x256xf32, #tpu.memory_space<vmem>>, vector<1x8x128xf32>,
    %c1_309 = arith.constant 1 : index
    %c0_310 = arith.constant 0 : index
    %c0_311 = arith.constant 0 : index
    %563 = vector.load %arg8[%c1_309, %c0_310, %c0_311] : memref<2x8x256xf32, #tpu.memory_space<vmem>>, vector<1x8x128xf32>
    %564 = vector.shape_cast %563 : vector<1x8x128xf32> to vector<8x128xf32>
    %565 = vector.shape_cast %559 : vector<8x128xf32> to vector<1x8x128xf32>
    tpu.vector_store %arg8[%c1_309, %c0_310, %c0_311], %565 {strides = array<i32>} : memref<2x8x256xf32, #tpu.memory_space<vmem>>, vector<1x8x128xf32>,
    %c1_312 = arith.constant 1 : index
    %c0_313 = arith.constant 0 : index
    %c0_314 = arith.constant 0 : index
    %566 = vector.load %arg8[%c1_312, %c0_313, %c0_314] : memref<2x8x256xf32, #tpu.memory_space<vmem>>, vector<1x8x256xf32>
    %567 = vector.shape_cast %566 : vector<1x8x256xf32> to vector<8x256xf32>
    %c1_315 = arith.constant 1 : index
    %c0_316 = arith.constant 0 : index
    %c0_317 = arith.constant 0 : index
    %568 = vector.load %arg7[%c1_315, %c0_316, %c0_317] : memref<2x256x512xf32, #tpu.memory_space<vmem>>, vector<1x256x512xf32>
    %569 = vector.shape_cast %568 : vector<1x256x512xf32> to vector<256x512xf32>
    %cst_318 = arith.constant dense<0.000000e+00> : vector<8x512xf32>
    %570 = tpu.matmul %567, %569, %cst_318 {dimension_numbers = #tpu.dot_dimension_numbers<[1], [0], [0], [1], [0, 0, 1, 1], [], []>} : vector<8x256xf32>, vector<256x512xf32>, vector<8x512xf32> -> vector<8x512xf32>
    %c1_319 = arith.constant 1 : index
    %c0_320 = arith.constant 0 : index
    %c0_321 = arith.constant 0 : index
    %571 = vector.load %arg2[%c1_319, %c0_320, %c0_321] : memref<2x1x512xf32, #tpu.memory_space<vmem>>, vector<1x1x512xf32>
    %572 = vector.shape_cast %571 : vector<1x1x512xf32> to vector<1x512xf32>
    %573 = vector.broadcast %572 : vector<1x512xf32> to vector<8x512xf32>
    %574 = arith.addf %570, %573 : vector<8x512xf32>
    %575 = vector.extract_strided_slice %574 {offsets = [0, 0], sizes = [8, 128], strides = [1, 1]} : vector<8x512xf32> to vector<8x128xf32>
    %576 = arith.negf %575 : vector<8x128xf32>
    %577 = math.exp %576 : vector<8x128xf32>
    %cst_322 = arith.constant 1.000000e+00 : f32
    %578 = vector.broadcast %cst_322 : f32 to vector<8x128xf32>
    %579 = arith.addf %578, %577 : vector<8x128xf32>
    %580 = arith.divf %578, %579 : vector<8x128xf32>
    %581 = vector.extract_strided_slice %574 {offsets = [0, 128], sizes = [8, 128], strides = [1, 1]} : vector<8x512xf32> to vector<8x128xf32>
    %582 = arith.negf %581 : vector<8x128xf32>
    %583 = math.exp %582 : vector<8x128xf32>
    %cst_323 = arith.constant 1.000000e+00 : f32
    %584 = vector.broadcast %cst_323 : f32 to vector<8x128xf32>
    %585 = arith.addf %584, %583 : vector<8x128xf32>
    %586 = arith.divf %584, %585 : vector<8x128xf32>
    %587 = vector.extract_strided_slice %574 {offsets = [0, 256], sizes = [8, 128], strides = [1, 1]} : vector<8x512xf32> to vector<8x128xf32>
    %588 = math.tanh %587 : vector<8x128xf32>
    %589 = vector.extract_strided_slice %574 {offsets = [0, 384], sizes = [8, 128], strides = [1, 1]} : vector<8x512xf32> to vector<8x128xf32>
    %590 = arith.negf %589 : vector<8x128xf32>
    %591 = math.exp %590 : vector<8x128xf32>
    %cst_324 = arith.constant 1.000000e+00 : f32
    %592 = vector.broadcast %cst_324 : f32 to vector<8x128xf32>
    %593 = arith.addf %592, %591 : vector<8x128xf32>
    %594 = arith.divf %592, %593 : vector<8x128xf32>
    %c1_325 = arith.constant 1 : index
    %c0_326 = arith.constant 0 : index
    %c0_327 = arith.constant 0 : index
    %595 = vector.load %arg9[%c1_325, %c0_326, %c0_327] : memref<2x8x128xf32, #tpu.memory_space<vmem>>, vector<1x8x128xf32>
    %596 = vector.shape_cast %595 : vector<1x8x128xf32> to vector<8x128xf32>
    %597 = arith.mulf %586, %596 : vector<8x128xf32>
    %598 = arith.mulf %580, %588 : vector<8x128xf32>
    %599 = arith.addf %597, %598 : vector<8x128xf32>
    %c1_328 = arith.constant 1 : index
    %c0_329 = arith.constant 0 : index
    %c0_330 = arith.constant 0 : index
    %600 = vector.load %arg9[%c1_328, %c0_329, %c0_330] : memref<2x8x128xf32, #tpu.memory_space<vmem>>, vector<1x8x128xf32>
    %601 = vector.shape_cast %600 : vector<1x8x128xf32> to vector<8x128xf32>
    %602 = vector.shape_cast %599 : vector<8x128xf32> to vector<1x8x128xf32>
    tpu.vector_store %arg9[%c1_328, %c0_329, %c0_330], %602 {strides = array<i32>} : memref<2x8x128xf32, #tpu.memory_space<vmem>>, vector<1x8x128xf32>,
    %603 = math.tanh %599 : vector<8x128xf32>
    %604 = arith.mulf %594, %603 : vector<8x128xf32>
    %c1_331 = arith.constant 1 : index
    %c0_332 = arith.constant 0 : index
    %c128_333 = arith.constant 128 : index
    %605 = vector.load %arg8[%c1_331, %c0_332, %c128_333] : memref<2x8x256xf32, #tpu.memory_space<vmem>>, vector<1x8x128xf32>
    %606 = vector.shape_cast %605 : vector<1x8x128xf32> to vector<8x128xf32>
    %607 = vector.shape_cast %604 : vector<8x128xf32> to vector<1x8x128xf32>
    tpu.vector_store %arg8[%c1_331, %c0_332, %c128_333], %607 {strides = array<i32>} : memref<2x8x256xf32, #tpu.memory_space<vmem>>, vector<1x8x128xf32>,
    %c0_334 = arith.constant 0 : index
    %c0_335 = arith.constant 0 : index
    %c0_336 = arith.constant 0 : index
    %608 = vector.load %arg8[%c0_334, %c0_335, %c0_336] : memref<2x8x256xf32, #tpu.memory_space<vmem>>, vector<1x8x128xf32>
    %609 = vector.shape_cast %608 : vector<1x8x128xf32> to vector<8x128xf32>
    %610 = vector.shape_cast %604 : vector<8x128xf32> to vector<1x8x128xf32>
    tpu.vector_store %arg8[%c0_334, %c0_335, %c0_336], %610 {strides = array<i32>} : memref<2x8x256xf32, #tpu.memory_space<vmem>>, vector<1x8x128xf32>,
    %611 = arith.index_cast %c5_i32 : i32 to index
    %c0_337 = arith.constant 0 : index
    %c0_338 = arith.constant 0 : index
    %612 = vector.load %arg6[%611, %c0_337, %c0_338] : memref<8x8x128xf32, #tpu.memory_space<vmem>>, vector<1x8x128xf32>
    %613 = vector.shape_cast %612 : vector<1x8x128xf32> to vector<8x128xf32>
    %614 = vector.shape_cast %604 : vector<8x128xf32> to vector<1x8x128xf32>
    tpu.vector_store %arg6[%611, %c0_337, %c0_338], %614 {strides = array<i32>} : memref<8x8x128xf32, #tpu.memory_space<vmem>>, vector<1x8x128xf32>,
    %c6_i32 = arith.constant 6 : i32
    %c8_i32_339 = arith.constant 8 : i32
    %615 = arith.muli %arg0, %c8_i32_339 : i32
    %616 = arith.addi %615, %c6_i32 : i32
    %c0_i32_340 = arith.constant 0 : i32
    %617 = arith.cmpi sgt, %616, %c0_i32_340 : i32
    %c0_341 = arith.constant 0 : index
    %c0_342 = arith.constant 0 : index
    %c0_343 = arith.constant 0 : index
    %618 = vector.load %arg8[%c0_341, %c0_342, %c0_343] : memref<2x8x256xf32, #tpu.memory_space<vmem>>, vector<1x8x256xf32>
    %619 = vector.shape_cast %618 : vector<1x8x256xf32> to vector<8x256xf32>
    %c0_344 = arith.constant 0 : index
    %c0_345 = arith.constant 0 : index
    %c0_346 = arith.constant 0 : index
    %620 = vector.load %arg7[%c0_344, %c0_345, %c0_346] : memref<2x256x512xf32, #tpu.memory_space<vmem>>, vector<1x256x512xf32>
    %621 = vector.shape_cast %620 : vector<1x256x512xf32> to vector<256x512xf32>
    %cst_347 = arith.constant dense<0.000000e+00> : vector<8x512xf32>
    %622 = tpu.matmul %619, %621, %cst_347 {dimension_numbers = #tpu.dot_dimension_numbers<[1], [0], [0], [1], [0, 0, 1, 1], [], []>} : vector<8x256xf32>, vector<256x512xf32>, vector<8x512xf32> -> vector<8x512xf32>
    %c0_348 = arith.constant 0 : index
    %c0_349 = arith.constant 0 : index
    %c0_350 = arith.constant 0 : index
    %623 = vector.load %arg2[%c0_348, %c0_349, %c0_350] : memref<2x1x512xf32, #tpu.memory_space<vmem>>, vector<1x1x512xf32>
    %624 = vector.shape_cast %623 : vector<1x1x512xf32> to vector<1x512xf32>
    %625 = vector.broadcast %624 : vector<1x512xf32> to vector<8x512xf32>
    %626 = arith.addf %622, %625 : vector<8x512xf32>
    %c0_351 = arith.constant 0 : index
    %c0_352 = arith.constant 0 : index
    %627 = vector.load %arg3[%c0_351, %c0_352] : memref<1x512xf32, #tpu.memory_space<vmem>>, vector<1x512xf32>
    %cst_353 = arith.constant 0.000000e+00 : f32
    %628 = vector.broadcast %cst_353 : f32 to vector<1x512xf32>
    %629 = arith.select %617, %627, %628 : vector<1x512xf32>
    %630 = vector.broadcast %629 : vector<1x512xf32> to vector<8x512xf32>
    %631 = arith.addf %626, %630 : vector<8x512xf32>
    %632 = vector.extract_strided_slice %631 {offsets = [0, 0], sizes = [8, 128], strides = [1, 1]} : vector<8x512xf32> to vector<8x128xf32>
    %633 = arith.negf %632 : vector<8x128xf32>
    %634 = math.exp %633 : vector<8x128xf32>
    %cst_354 = arith.constant 1.000000e+00 : f32
    %635 = vector.broadcast %cst_354 : f32 to vector<8x128xf32>
    %636 = arith.addf %635, %634 : vector<8x128xf32>
    %637 = arith.divf %635, %636 : vector<8x128xf32>
    %638 = vector.extract_strided_slice %631 {offsets = [0, 128], sizes = [8, 128], strides = [1, 1]} : vector<8x512xf32> to vector<8x128xf32>
    %639 = arith.negf %638 : vector<8x128xf32>
    %640 = math.exp %639 : vector<8x128xf32>
    %cst_355 = arith.constant 1.000000e+00 : f32
    %641 = vector.broadcast %cst_355 : f32 to vector<8x128xf32>
    %642 = arith.addf %641, %640 : vector<8x128xf32>
    %643 = arith.divf %641, %642 : vector<8x128xf32>
    %644 = vector.extract_strided_slice %631 {offsets = [0, 256], sizes = [8, 128], strides = [1, 1]} : vector<8x512xf32> to vector<8x128xf32>
    %645 = math.tanh %644 : vector<8x128xf32>
    %646 = vector.extract_strided_slice %631 {offsets = [0, 384], sizes = [8, 128], strides = [1, 1]} : vector<8x512xf32> to vector<8x128xf32>
    %647 = arith.negf %646 : vector<8x128xf32>
    %648 = math.exp %647 : vector<8x128xf32>
    %cst_356 = arith.constant 1.000000e+00 : f32
    %649 = vector.broadcast %cst_356 : f32 to vector<8x128xf32>
    %650 = arith.addf %649, %648 : vector<8x128xf32>
    %651 = arith.divf %649, %650 : vector<8x128xf32>
    %c0_357 = arith.constant 0 : index
    %c0_358 = arith.constant 0 : index
    %c0_359 = arith.constant 0 : index
    %652 = vector.load %arg9[%c0_357, %c0_358, %c0_359] : memref<2x8x128xf32, #tpu.memory_space<vmem>>, vector<1x8x128xf32>
    %653 = vector.shape_cast %652 : vector<1x8x128xf32> to vector<8x128xf32>
    %654 = arith.mulf %643, %653 : vector<8x128xf32>
    %655 = arith.mulf %637, %645 : vector<8x128xf32>
    %656 = arith.addf %654, %655 : vector<8x128xf32>
    %c0_360 = arith.constant 0 : index
    %c0_361 = arith.constant 0 : index
    %c0_362 = arith.constant 0 : index
    %657 = vector.load %arg9[%c0_360, %c0_361, %c0_362] : memref<2x8x128xf32, #tpu.memory_space<vmem>>, vector<1x8x128xf32>
    %658 = vector.shape_cast %657 : vector<1x8x128xf32> to vector<8x128xf32>
    %659 = vector.shape_cast %656 : vector<8x128xf32> to vector<1x8x128xf32>
    tpu.vector_store %arg9[%c0_360, %c0_361, %c0_362], %659 {strides = array<i32>} : memref<2x8x128xf32, #tpu.memory_space<vmem>>, vector<1x8x128xf32>,
    %660 = math.tanh %656 : vector<8x128xf32>
    %661 = arith.mulf %651, %660 : vector<8x128xf32>
    %c0_363 = arith.constant 0 : index
    %c0_364 = arith.constant 0 : index
    %c128_365 = arith.constant 128 : index
    %662 = vector.load %arg8[%c0_363, %c0_364, %c128_365] : memref<2x8x256xf32, #tpu.memory_space<vmem>>, vector<1x8x128xf32>
    %663 = vector.shape_cast %662 : vector<1x8x128xf32> to vector<8x128xf32>
    %664 = vector.shape_cast %661 : vector<8x128xf32> to vector<1x8x128xf32>
    tpu.vector_store %arg8[%c0_363, %c0_364, %c128_365], %664 {strides = array<i32>} : memref<2x8x256xf32, #tpu.memory_space<vmem>>, vector<1x8x128xf32>,
    %c1_366 = arith.constant 1 : index
    %c0_367 = arith.constant 0 : index
    %c0_368 = arith.constant 0 : index
    %665 = vector.load %arg8[%c1_366, %c0_367, %c0_368] : memref<2x8x256xf32, #tpu.memory_space<vmem>>, vector<1x8x128xf32>
    %666 = vector.shape_cast %665 : vector<1x8x128xf32> to vector<8x128xf32>
    %667 = vector.shape_cast %661 : vector<8x128xf32> to vector<1x8x128xf32>
    tpu.vector_store %arg8[%c1_366, %c0_367, %c0_368], %667 {strides = array<i32>} : memref<2x8x256xf32, #tpu.memory_space<vmem>>, vector<1x8x128xf32>,
    %c1_369 = arith.constant 1 : index
    %c0_370 = arith.constant 0 : index
    %c0_371 = arith.constant 0 : index
    %668 = vector.load %arg8[%c1_369, %c0_370, %c0_371] : memref<2x8x256xf32, #tpu.memory_space<vmem>>, vector<1x8x256xf32>
    %669 = vector.shape_cast %668 : vector<1x8x256xf32> to vector<8x256xf32>
    %c1_372 = arith.constant 1 : index
    %c0_373 = arith.constant 0 : index
    %c0_374 = arith.constant 0 : index
    %670 = vector.load %arg7[%c1_372, %c0_373, %c0_374] : memref<2x256x512xf32, #tpu.memory_space<vmem>>, vector<1x256x512xf32>
    %671 = vector.shape_cast %670 : vector<1x256x512xf32> to vector<256x512xf32>
    %cst_375 = arith.constant dense<0.000000e+00> : vector<8x512xf32>
    %672 = tpu.matmul %669, %671, %cst_375 {dimension_numbers = #tpu.dot_dimension_numbers<[1], [0], [0], [1], [0, 0, 1, 1], [], []>} : vector<8x256xf32>, vector<256x512xf32>, vector<8x512xf32> -> vector<8x512xf32>
    %c1_376 = arith.constant 1 : index
    %c0_377 = arith.constant 0 : index
    %c0_378 = arith.constant 0 : index
    %673 = vector.load %arg2[%c1_376, %c0_377, %c0_378] : memref<2x1x512xf32, #tpu.memory_space<vmem>>, vector<1x1x512xf32>
    %674 = vector.shape_cast %673 : vector<1x1x512xf32> to vector<1x512xf32>
    %675 = vector.broadcast %674 : vector<1x512xf32> to vector<8x512xf32>
    %676 = arith.addf %672, %675 : vector<8x512xf32>
    %677 = vector.extract_strided_slice %676 {offsets = [0, 0], sizes = [8, 128], strides = [1, 1]} : vector<8x512xf32> to vector<8x128xf32>
    %678 = arith.negf %677 : vector<8x128xf32>
    %679 = math.exp %678 : vector<8x128xf32>
    %cst_379 = arith.constant 1.000000e+00 : f32
    %680 = vector.broadcast %cst_379 : f32 to vector<8x128xf32>
    %681 = arith.addf %680, %679 : vector<8x128xf32>
    %682 = arith.divf %680, %681 : vector<8x128xf32>
    %683 = vector.extract_strided_slice %676 {offsets = [0, 128], sizes = [8, 128], strides = [1, 1]} : vector<8x512xf32> to vector<8x128xf32>
    %684 = arith.negf %683 : vector<8x128xf32>
    %685 = math.exp %684 : vector<8x128xf32>
    %cst_380 = arith.constant 1.000000e+00 : f32
    %686 = vector.broadcast %cst_380 : f32 to vector<8x128xf32>
    %687 = arith.addf %686, %685 : vector<8x128xf32>
    %688 = arith.divf %686, %687 : vector<8x128xf32>
    %689 = vector.extract_strided_slice %676 {offsets = [0, 256], sizes = [8, 128], strides = [1, 1]} : vector<8x512xf32> to vector<8x128xf32>
    %690 = math.tanh %689 : vector<8x128xf32>
    %691 = vector.extract_strided_slice %676 {offsets = [0, 384], sizes = [8, 128], strides = [1, 1]} : vector<8x512xf32> to vector<8x128xf32>
    %692 = arith.negf %691 : vector<8x128xf32>
    %693 = math.exp %692 : vector<8x128xf32>
    %cst_381 = arith.constant 1.000000e+00 : f32
    %694 = vector.broadcast %cst_381 : f32 to vector<8x128xf32>
    %695 = arith.addf %694, %693 : vector<8x128xf32>
    %696 = arith.divf %694, %695 : vector<8x128xf32>
    %c1_382 = arith.constant 1 : index
    %c0_383 = arith.constant 0 : index
    %c0_384 = arith.constant 0 : index
    %697 = vector.load %arg9[%c1_382, %c0_383, %c0_384] : memref<2x8x128xf32, #tpu.memory_space<vmem>>, vector<1x8x128xf32>
    %698 = vector.shape_cast %697 : vector<1x8x128xf32> to vector<8x128xf32>
    %699 = arith.mulf %688, %698 : vector<8x128xf32>
    %700 = arith.mulf %682, %690 : vector<8x128xf32>
    %701 = arith.addf %699, %700 : vector<8x128xf32>
    %c1_385 = arith.constant 1 : index
    %c0_386 = arith.constant 0 : index
    %c0_387 = arith.constant 0 : index
    %702 = vector.load %arg9[%c1_385, %c0_386, %c0_387] : memref<2x8x128xf32, #tpu.memory_space<vmem>>, vector<1x8x128xf32>
    %703 = vector.shape_cast %702 : vector<1x8x128xf32> to vector<8x128xf32>
    %704 = vector.shape_cast %701 : vector<8x128xf32> to vector<1x8x128xf32>
    tpu.vector_store %arg9[%c1_385, %c0_386, %c0_387], %704 {strides = array<i32>} : memref<2x8x128xf32, #tpu.memory_space<vmem>>, vector<1x8x128xf32>,
    %705 = math.tanh %701 : vector<8x128xf32>
    %706 = arith.mulf %696, %705 : vector<8x128xf32>
    %c1_388 = arith.constant 1 : index
    %c0_389 = arith.constant 0 : index
    %c128_390 = arith.constant 128 : index
    %707 = vector.load %arg8[%c1_388, %c0_389, %c128_390] : memref<2x8x256xf32, #tpu.memory_space<vmem>>, vector<1x8x128xf32>
    %708 = vector.shape_cast %707 : vector<1x8x128xf32> to vector<8x128xf32>
    %709 = vector.shape_cast %706 : vector<8x128xf32> to vector<1x8x128xf32>
    tpu.vector_store %arg8[%c1_388, %c0_389, %c128_390], %709 {strides = array<i32>} : memref<2x8x256xf32, #tpu.memory_space<vmem>>, vector<1x8x128xf32>,
    %c0_391 = arith.constant 0 : index
    %c0_392 = arith.constant 0 : index
    %c0_393 = arith.constant 0 : index
    %710 = vector.load %arg8[%c0_391, %c0_392, %c0_393] : memref<2x8x256xf32, #tpu.memory_space<vmem>>, vector<1x8x128xf32>
    %711 = vector.shape_cast %710 : vector<1x8x128xf32> to vector<8x128xf32>
    %712 = vector.shape_cast %706 : vector<8x128xf32> to vector<1x8x128xf32>
    tpu.vector_store %arg8[%c0_391, %c0_392, %c0_393], %712 {strides = array<i32>} : memref<2x8x256xf32, #tpu.memory_space<vmem>>, vector<1x8x128xf32>,
    %713 = arith.index_cast %c6_i32 : i32 to index
    %c0_394 = arith.constant 0 : index
    %c0_395 = arith.constant 0 : index
    %714 = vector.load %arg6[%713, %c0_394, %c0_395] : memref<8x8x128xf32, #tpu.memory_space<vmem>>, vector<1x8x128xf32>
    %715 = vector.shape_cast %714 : vector<1x8x128xf32> to vector<8x128xf32>
    %716 = vector.shape_cast %706 : vector<8x128xf32> to vector<1x8x128xf32>
    tpu.vector_store %arg6[%713, %c0_394, %c0_395], %716 {strides = array<i32>} : memref<8x8x128xf32, #tpu.memory_space<vmem>>, vector<1x8x128xf32>,
    %c7_i32 = arith.constant 7 : i32
    %c8_i32_396 = arith.constant 8 : i32
    %717 = arith.muli %arg0, %c8_i32_396 : i32
    %718 = arith.addi %717, %c7_i32 : i32
    %c0_i32_397 = arith.constant 0 : i32
    %719 = arith.cmpi sgt, %718, %c0_i32_397 : i32
    %c0_398 = arith.constant 0 : index
    %c0_399 = arith.constant 0 : index
    %c0_400 = arith.constant 0 : index
    %720 = vector.load %arg8[%c0_398, %c0_399, %c0_400] : memref<2x8x256xf32, #tpu.memory_space<vmem>>, vector<1x8x256xf32>
    %721 = vector.shape_cast %720 : vector<1x8x256xf32> to vector<8x256xf32>
    %c0_401 = arith.constant 0 : index
    %c0_402 = arith.constant 0 : index
    %c0_403 = arith.constant 0 : index
    %722 = vector.load %arg7[%c0_401, %c0_402, %c0_403] : memref<2x256x512xf32, #tpu.memory_space<vmem>>, vector<1x256x512xf32>
    %723 = vector.shape_cast %722 : vector<1x256x512xf32> to vector<256x512xf32>
    %cst_404 = arith.constant dense<0.000000e+00> : vector<8x512xf32>
    %724 = tpu.matmul %721, %723, %cst_404 {dimension_numbers = #tpu.dot_dimension_numbers<[1], [0], [0], [1], [0, 0, 1, 1], [], []>} : vector<8x256xf32>, vector<256x512xf32>, vector<8x512xf32> -> vector<8x512xf32>
    %c0_405 = arith.constant 0 : index
    %c0_406 = arith.constant 0 : index
    %c0_407 = arith.constant 0 : index
    %725 = vector.load %arg2[%c0_405, %c0_406, %c0_407] : memref<2x1x512xf32, #tpu.memory_space<vmem>>, vector<1x1x512xf32>
    %726 = vector.shape_cast %725 : vector<1x1x512xf32> to vector<1x512xf32>
    %727 = vector.broadcast %726 : vector<1x512xf32> to vector<8x512xf32>
    %728 = arith.addf %724, %727 : vector<8x512xf32>
    %c0_408 = arith.constant 0 : index
    %c0_409 = arith.constant 0 : index
    %729 = vector.load %arg3[%c0_408, %c0_409] : memref<1x512xf32, #tpu.memory_space<vmem>>, vector<1x512xf32>
    %cst_410 = arith.constant 0.000000e+00 : f32
    %730 = vector.broadcast %cst_410 : f32 to vector<1x512xf32>
    %731 = arith.select %719, %729, %730 : vector<1x512xf32>
    %732 = vector.broadcast %731 : vector<1x512xf32> to vector<8x512xf32>
    %733 = arith.addf %728, %732 : vector<8x512xf32>
    %734 = vector.extract_strided_slice %733 {offsets = [0, 0], sizes = [8, 128], strides = [1, 1]} : vector<8x512xf32> to vector<8x128xf32>
    %735 = arith.negf %734 : vector<8x128xf32>
    %736 = math.exp %735 : vector<8x128xf32>
    %cst_411 = arith.constant 1.000000e+00 : f32
    %737 = vector.broadcast %cst_411 : f32 to vector<8x128xf32>
    %738 = arith.addf %737, %736 : vector<8x128xf32>
    %739 = arith.divf %737, %738 : vector<8x128xf32>
    %740 = vector.extract_strided_slice %733 {offsets = [0, 128], sizes = [8, 128], strides = [1, 1]} : vector<8x512xf32> to vector<8x128xf32>
    %741 = arith.negf %740 : vector<8x128xf32>
    %742 = math.exp %741 : vector<8x128xf32>
    %cst_412 = arith.constant 1.000000e+00 : f32
    %743 = vector.broadcast %cst_412 : f32 to vector<8x128xf32>
    %744 = arith.addf %743, %742 : vector<8x128xf32>
    %745 = arith.divf %743, %744 : vector<8x128xf32>
    %746 = vector.extract_strided_slice %733 {offsets = [0, 256], sizes = [8, 128], strides = [1, 1]} : vector<8x512xf32> to vector<8x128xf32>
    %747 = math.tanh %746 : vector<8x128xf32>
    %748 = vector.extract_strided_slice %733 {offsets = [0, 384], sizes = [8, 128], strides = [1, 1]} : vector<8x512xf32> to vector<8x128xf32>
    %749 = arith.negf %748 : vector<8x128xf32>
    %750 = math.exp %749 : vector<8x128xf32>
    %cst_413 = arith.constant 1.000000e+00 : f32
    %751 = vector.broadcast %cst_413 : f32 to vector<8x128xf32>
    %752 = arith.addf %751, %750 : vector<8x128xf32>
    %753 = arith.divf %751, %752 : vector<8x128xf32>
    %c0_414 = arith.constant 0 : index
    %c0_415 = arith.constant 0 : index
    %c0_416 = arith.constant 0 : index
    %754 = vector.load %arg9[%c0_414, %c0_415, %c0_416] : memref<2x8x128xf32, #tpu.memory_space<vmem>>, vector<1x8x128xf32>
    %755 = vector.shape_cast %754 : vector<1x8x128xf32> to vector<8x128xf32>
    %756 = arith.mulf %745, %755 : vector<8x128xf32>
    %757 = arith.mulf %739, %747 : vector<8x128xf32>
    %758 = arith.addf %756, %757 : vector<8x128xf32>
    %c0_417 = arith.constant 0 : index
    %c0_418 = arith.constant 0 : index
    %c0_419 = arith.constant 0 : index
    %759 = vector.load %arg9[%c0_417, %c0_418, %c0_419] : memref<2x8x128xf32, #tpu.memory_space<vmem>>, vector<1x8x128xf32>
    %760 = vector.shape_cast %759 : vector<1x8x128xf32> to vector<8x128xf32>
    %761 = vector.shape_cast %758 : vector<8x128xf32> to vector<1x8x128xf32>
    tpu.vector_store %arg9[%c0_417, %c0_418, %c0_419], %761 {strides = array<i32>} : memref<2x8x128xf32, #tpu.memory_space<vmem>>, vector<1x8x128xf32>,
    %762 = math.tanh %758 : vector<8x128xf32>
    %763 = arith.mulf %753, %762 : vector<8x128xf32>
    %c0_420 = arith.constant 0 : index
    %c0_421 = arith.constant 0 : index
    %c128_422 = arith.constant 128 : index
    %764 = vector.load %arg8[%c0_420, %c0_421, %c128_422] : memref<2x8x256xf32, #tpu.memory_space<vmem>>, vector<1x8x128xf32>
    %765 = vector.shape_cast %764 : vector<1x8x128xf32> to vector<8x128xf32>
    %766 = vector.shape_cast %763 : vector<8x128xf32> to vector<1x8x128xf32>
    tpu.vector_store %arg8[%c0_420, %c0_421, %c128_422], %766 {strides = array<i32>} : memref<2x8x256xf32, #tpu.memory_space<vmem>>, vector<1x8x128xf32>,
    %c1_423 = arith.constant 1 : index
    %c0_424 = arith.constant 0 : index
    %c0_425 = arith.constant 0 : index
    %767 = vector.load %arg8[%c1_423, %c0_424, %c0_425] : memref<2x8x256xf32, #tpu.memory_space<vmem>>, vector<1x8x128xf32>
    %768 = vector.shape_cast %767 : vector<1x8x128xf32> to vector<8x128xf32>
    %769 = vector.shape_cast %763 : vector<8x128xf32> to vector<1x8x128xf32>
    tpu.vector_store %arg8[%c1_423, %c0_424, %c0_425], %769 {strides = array<i32>} : memref<2x8x256xf32, #tpu.memory_space<vmem>>, vector<1x8x128xf32>,
    %c1_426 = arith.constant 1 : index
    %c0_427 = arith.constant 0 : index
    %c0_428 = arith.constant 0 : index
    %770 = vector.load %arg8[%c1_426, %c0_427, %c0_428] : memref<2x8x256xf32, #tpu.memory_space<vmem>>, vector<1x8x256xf32>
    %771 = vector.shape_cast %770 : vector<1x8x256xf32> to vector<8x256xf32>
    %c1_429 = arith.constant 1 : index
    %c0_430 = arith.constant 0 : index
    %c0_431 = arith.constant 0 : index
    %772 = vector.load %arg7[%c1_429, %c0_430, %c0_431] : memref<2x256x512xf32, #tpu.memory_space<vmem>>, vector<1x256x512xf32>
    %773 = vector.shape_cast %772 : vector<1x256x512xf32> to vector<256x512xf32>
    %cst_432 = arith.constant dense<0.000000e+00> : vector<8x512xf32>
    %774 = tpu.matmul %771, %773, %cst_432 {dimension_numbers = #tpu.dot_dimension_numbers<[1], [0], [0], [1], [0, 0, 1, 1], [], []>} : vector<8x256xf32>, vector<256x512xf32>, vector<8x512xf32> -> vector<8x512xf32>
    %c1_433 = arith.constant 1 : index
    %c0_434 = arith.constant 0 : index
    %c0_435 = arith.constant 0 : index
    %775 = vector.load %arg2[%c1_433, %c0_434, %c0_435] : memref<2x1x512xf32, #tpu.memory_space<vmem>>, vector<1x1x512xf32>
    %776 = vector.shape_cast %775 : vector<1x1x512xf32> to vector<1x512xf32>
    %777 = vector.broadcast %776 : vector<1x512xf32> to vector<8x512xf32>
    %778 = arith.addf %774, %777 : vector<8x512xf32>
    %779 = vector.extract_strided_slice %778 {offsets = [0, 0], sizes = [8, 128], strides = [1, 1]} : vector<8x512xf32> to vector<8x128xf32>
    %780 = arith.negf %779 : vector<8x128xf32>
    %781 = math.exp %780 : vector<8x128xf32>
    %cst_436 = arith.constant 1.000000e+00 : f32
    %782 = vector.broadcast %cst_436 : f32 to vector<8x128xf32>
    %783 = arith.addf %782, %781 : vector<8x128xf32>
    %784 = arith.divf %782, %783 : vector<8x128xf32>
    %785 = vector.extract_strided_slice %778 {offsets = [0, 128], sizes = [8, 128], strides = [1, 1]} : vector<8x512xf32> to vector<8x128xf32>
    %786 = arith.negf %785 : vector<8x128xf32>
    %787 = math.exp %786 : vector<8x128xf32>
    %cst_437 = arith.constant 1.000000e+00 : f32
    %788 = vector.broadcast %cst_437 : f32 to vector<8x128xf32>
    %789 = arith.addf %788, %787 : vector<8x128xf32>
    %790 = arith.divf %788, %789 : vector<8x128xf32>
    %791 = vector.extract_strided_slice %778 {offsets = [0, 256], sizes = [8, 128], strides = [1, 1]} : vector<8x512xf32> to vector<8x128xf32>
    %792 = math.tanh %791 : vector<8x128xf32>
    %793 = vector.extract_strided_slice %778 {offsets = [0, 384], sizes = [8, 128], strides = [1, 1]} : vector<8x512xf32> to vector<8x128xf32>
    %794 = arith.negf %793 : vector<8x128xf32>
    %795 = math.exp %794 : vector<8x128xf32>
    %cst_438 = arith.constant 1.000000e+00 : f32
    %796 = vector.broadcast %cst_438 : f32 to vector<8x128xf32>
    %797 = arith.addf %796, %795 : vector<8x128xf32>
    %798 = arith.divf %796, %797 : vector<8x128xf32>
    %c1_439 = arith.constant 1 : index
    %c0_440 = arith.constant 0 : index
    %c0_441 = arith.constant 0 : index
    %799 = vector.load %arg9[%c1_439, %c0_440, %c0_441] : memref<2x8x128xf32, #tpu.memory_space<vmem>>, vector<1x8x128xf32>
    %800 = vector.shape_cast %799 : vector<1x8x128xf32> to vector<8x128xf32>
    %801 = arith.mulf %790, %800 : vector<8x128xf32>
    %802 = arith.mulf %784, %792 : vector<8x128xf32>
    %803 = arith.addf %801, %802 : vector<8x128xf32>
    %c1_442 = arith.constant 1 : index
    %c0_443 = arith.constant 0 : index
    %c0_444 = arith.constant 0 : index
    %804 = vector.load %arg9[%c1_442, %c0_443, %c0_444] : memref<2x8x128xf32, #tpu.memory_space<vmem>>, vector<1x8x128xf32>
    %805 = vector.shape_cast %804 : vector<1x8x128xf32> to vector<8x128xf32>
    %806 = vector.shape_cast %803 : vector<8x128xf32> to vector<1x8x128xf32>
    tpu.vector_store %arg9[%c1_442, %c0_443, %c0_444], %806 {strides = array<i32>} : memref<2x8x128xf32, #tpu.memory_space<vmem>>, vector<1x8x128xf32>,
    %807 = math.tanh %803 : vector<8x128xf32>
    %808 = arith.mulf %798, %807 : vector<8x128xf32>
    %c1_445 = arith.constant 1 : index
    %c0_446 = arith.constant 0 : index
    %c128_447 = arith.constant 128 : index
    %809 = vector.load %arg8[%c1_445, %c0_446, %c128_447] : memref<2x8x256xf32, #tpu.memory_space<vmem>>, vector<1x8x128xf32>
    %810 = vector.shape_cast %809 : vector<1x8x128xf32> to vector<8x128xf32>
    %811 = vector.shape_cast %808 : vector<8x128xf32> to vector<1x8x128xf32>
    tpu.vector_store %arg8[%c1_445, %c0_446, %c128_447], %811 {strides = array<i32>} : memref<2x8x256xf32, #tpu.memory_space<vmem>>, vector<1x8x128xf32>,
    %c0_448 = arith.constant 0 : index
    %c0_449 = arith.constant 0 : index
    %c0_450 = arith.constant 0 : index
    %812 = vector.load %arg8[%c0_448, %c0_449, %c0_450] : memref<2x8x256xf32, #tpu.memory_space<vmem>>, vector<1x8x128xf32>
    %813 = vector.shape_cast %812 : vector<1x8x128xf32> to vector<8x128xf32>
    %814 = vector.shape_cast %808 : vector<8x128xf32> to vector<1x8x128xf32>
    tpu.vector_store %arg8[%c0_448, %c0_449, %c0_450], %814 {strides = array<i32>} : memref<2x8x256xf32, #tpu.memory_space<vmem>>, vector<1x8x128xf32>,
    %815 = arith.index_cast %c7_i32 : i32 to index
    %c0_451 = arith.constant 0 : index
    %c0_452 = arith.constant 0 : index
    %816 = vector.load %arg6[%815, %c0_451, %c0_452] : memref<8x8x128xf32, #tpu.memory_space<vmem>>, vector<1x8x128xf32>
    %817 = vector.shape_cast %816 : vector<1x8x128xf32> to vector<8x128xf32>
    %818 = vector.shape_cast %808 : vector<8x128xf32> to vector<1x8x128xf32>
    tpu.vector_store %arg6[%815, %c0_451, %c0_452], %818 {strides = array<i32>} : memref<8x8x128xf32, #tpu.memory_space<vmem>>, vector<1x8x128xf32>,
    %c8_i32_453 = arith.constant 8 : i32
    return
  }
  func.func @transform_1(%arg0: i32) -> (i32, i32, i32) {
    %c0_i32 = arith.constant 0 : i32
    %c0_i32_0 = arith.constant 0 : i32
    %c0_i32_1 = arith.constant 0 : i32
    %c0_i32_2 = arith.constant 0 : i32
    return %c0_i32, %c0_i32_0, %c0_i32_1 : i32, i32, i32
  }
  func.func @transform_2(%arg0: i32) -> (i32, i32) {
    %c0_i32 = arith.constant 0 : i32
    %c0_i32_0 = arith.constant 0 : i32
    %c0_i32_1 = arith.constant 0 : i32
    return %c0_i32, %c0_i32_0 : i32, i32
  }
  func.func @transform_3(%arg0: i32) -> (i32, i32, i32) {
    %c0_i32 = arith.constant 0 : i32
    %c0_i32_0 = arith.constant 0 : i32
    %c0_i32_1 = arith.constant 0 : i32
    %c0_i32_2 = arith.constant 0 : i32
    return %c0_i32, %c0_i32_0, %c0_i32_1 : i32, i32, i32
  }
  func.func @transform_4(%arg0: i32) -> (i32, i32, i32) {
    %c0_i32 = arith.constant 0 : i32
    %c0_i32_0 = arith.constant 0 : i32
    %c0_i32_1 = arith.constant 0 : i32
    %c0_i32_2 = arith.constant 0 : i32
    return %c0_i32, %c0_i32_0, %c0_i32_1 : i32, i32, i32
  }
  func.func @transform_5(%arg0: i32) -> (i32, i32, i32) {
    %c0_i32 = arith.constant 0 : i32
    %c0_i32_0 = arith.constant 0 : i32
    %c0_i32_1 = arith.constant 0 : i32
    return %arg0, %c0_i32, %c0_i32_0 : i32, i32, i32
  }
}

</mosaic_0001>

<llo_original>
// kernel: dlstm_forward.1
$region0: #{dlstm_forward.1}
  #allocation0 [shape = 'u32[]', space=smem, size = 0x4, offset = 0x4, fixed_abs, tag = 'smem constant byte address 0x4 - core index']
  #allocation1 [shape = 'u32[144,128]{1,0:T(1,128)}', space=vmem, size = 0x12000, scoped, tag = 'internal scratch']
  #allocation2 [shape = 'f32[2,256,512]{2,1,0:T(8,128)}', space=vmem, size = 0x100000, scoped, tag = 'scratch operand']
  #allocation3 [shape = 'f32[2,8,256]{2,1,0:T(8,128)}', space=vmem, size = 0x4000, scoped, tag = 'scratch operand']
  #allocation4 [shape = 'f32[2,8,128]{2,1,0:T(8,128)}', space=vmem, size = 0x2000, scoped, tag = 'scratch operand']
  #allocation8 [shape = 's32[]', space=sflag, size = 0x4, offset = 0, fixed_abs, tag = 'sflag constant byte address 0x0 - dummy sync flag']
  %s0 = inlined_call_operand.vmem [shape: f32[2,256,512], index: 0, kind: input, shape index: {}]
  %s1 = inlined_call_operand.vmem [shape: f32[2,1,512], index: 1, kind: input, shape index: {}]
  %s2 = inlined_call_operand.vmem [shape: f32[1,512], index: 2, kind: input, shape index: {}]
  %s3 = inlined_call_operand.vmem [shape: f32[2,8,128], index: 3, kind: input, shape index: {}]
  %s4 = inlined_call_operand.vmem [shape: f32[2,8,128], index: 4, kind: input, shape index: {}]
  %s5 = inlined_call_operand.hbm [shape: f32[8,8,128], index: 5, kind: output, shape index: {}]
  %s6 = sld [smem:[#allocation0]]
  $region65: #{dlstm_forward.1} parent=0
    _
  %s8 = ssub.s32 1, %s6
  %s9 = scalar_select 0, %s8, %s6
  $region1: #{dlstm_forward.1} parent=0
    #allocation5 [shape = 'u8[32768]{0}', space=vmem, size = 0x8000, scoped, tag = 'output window, operand 0, single buffered']
    #allocation6 [shape = 's32[1]{0}', space=sflag, size = 0x4, scoped, tag = 'scoped memory for dlstm_forward.1']
    %10 = vsyncpa [#allocation6], 0
    // Predicated region
    $region2: #{dlstm_forward.1} parent=1 // pred_check
      _
    $region3: #{dlstm_forward.1} parent=1 // pred_check_branch
      %12 = sbr.rel (0) target = $region5
    $region4: #{dlstm_forward.1} parent=1 // pred_region
      _
    $region5: #{dlstm_forward.1} parent=1 // pred_fallthru
      _
    // Predicated region
    $region6: #{dlstm_forward.1} parent=1 // pred_check
      _
    $region7: #{dlstm_forward.1} parent=1 // pred_check_branch
      %14 = sbr.rel (0) target = $region9
    $region8: #{dlstm_forward.1} parent=1 // pred_region
      _
    $region9: #{dlstm_forward.1} parent=1 // pred_fallthru
      _
    // Predicated region
    $region10: #{dlstm_forward.1} parent=1 // pred_check
      _
    $region11: #{dlstm_forward.1} parent=1 // pred_check_branch
      %16 = sbr.rel (0) target = $region13
    $region12: #{dlstm_forward.1} parent=1 // pred_region
      _
    $region13: #{dlstm_forward.1} parent=1 // pred_fallthru
      _
    // Predicated region
    $region14: #{dlstm_forward.1} parent=1 // pred_check
      _
    $region15: #{dlstm_forward.1} parent=1 // pred_check_branch
      %18 = sbr.rel (0) target = $region17
    $region16: #{dlstm_forward.1} parent=1 // pred_region
      _
    $region17: #{dlstm_forward.1} parent=1 // pred_fallthru
      _
    %p19 = scmp.eq.s32.totalorder 0, 0
    // Predicated region
    $region18: #{dlstm_forward.1} parent=1 // pred_check
      %p20 = pneg %p19
    $region19: #{dlstm_forward.1} parent=1 // pred_check_branch
      %22 = sbr.rel (%p20) target = $region21
    $region20: #{dlstm_forward.1} parent=1 // pred_region
      $region22: #{dlstm_forward.1} parent=20
        #allocation7 [shape = 's32[1]{0}', space=sflag, size = 0x4, scoped, tag = 'scoped memory for dlstm_forward.1']
        %p24 = scmp.lt.u32.totalorder 2048, 8
        %p25 = pneg %p24
        // Predicated region
        $region23: #{dlstm_forward.1} parent=22 // pred_check
          _
        $region24: #{dlstm_forward.1} parent=22 // pred_check_branch
          %27 = sbr.rel (%p24) target = $region26
        $region25: #{dlstm_forward.1} parent=22 // pred_region
          %s43 = sand.u32 2048, 7
          %p44 = scmp.eq.s32.totalorder %s43, 0
          // Predicated region
          $region38: #{dlstm_forward.1} parent=25 // pred_check
            %p45 = pneg %p44
          $region39: #{dlstm_forward.1} parent=25 // pred_check_branch
            %47 = sbr.rel (%p45) target = $region41
          $region40: #{dlstm_forward.1} parent=25 // pred_region
            loop: start=0, step=1, limit=1
            $region42: #{dlstm_forward.1} parent=40 // loop_pre_header
              _
            $region43: #{dlstm_forward.1} parent=40 // loop_header
              %s49 = sphi 0, %s53
              %p50 = scmp.ge.s32.totalorder %s49, 1
              %s54 = sphi %s0, %s0
              %s55 = sphi [#allocation2], [#allocation2]
            $region44: #{dlstm_forward.1} parent=40 // loop_header_branch
              %52 = sbr.rel (%p50) target = $region48
            $region45: #{dlstm_forward.1} parent=40 // loop_body
              %v56 = vld [vmem:[%s54] sm:$0xff]
              %57 = vst [vmem:[%s55] sm:$0xff] %v56
              %v58 = vld [vmem:[%s54 + $0x8] sm:$0xff]
              %59 = vst [vmem:[%s55 + $0x8] sm:$0xff] %v58
              %v60 = vld [vmem:[%s54 + $0x10] sm:$0xff]
              %61 = vst [vmem:[%s55 + $0x10] sm:$0xff] %v60
              %v62 = vld [vmem:[%s54 + $0x18] sm:$0xff]
              %63 = vst [vmem:[%s55 + $0x18] sm:$0xff] %v62
              %v64 = vld [vmem:[%s54 + $0x20] sm:$0xff]
              %65 = vst [vmem:[%s55 + $0x20] sm:$0xff] %v64
              %v66 = vld [vmem:[%s54 + $0x28] sm:$0xff]
              %67 = vst [vmem:[%s55 + $0x28] sm:$0xff] %v66
              %v68 = vld [vmem:[%s54 + $0x30] sm:$0xff]
              %69 = vst [vmem:[%s55 + $0x30] sm:$0xff] %v68
              %v70 = vld [vmem:[%s54 + $0x38] sm:$0xff]
              %71 = vst [vmem:[%s55 + $0x38] sm:$0xff] %v70
              %v72 = vld [vmem:[%s54 + $0x40] sm:$0xff]
              %73 = vst [vmem:[%s55 + $0x40] sm:$0xff] %v72
              %v74 = vld [vmem:[%s54 + $0x48] sm:$0xff]
              %75 = vst [vmem:[%s55 + $0x48] sm:$0xff] %v74
              %v76 = vld [vmem:[%s54 + $0x50] sm:$0xff]
              %77 = vst [vmem:[%s55 + $0x50] sm:$0xff] %v76
              %v78 = vld [vmem:[%s54 + $0x58] sm:$0xff]
              %79 = vst [vmem:[%s55 + $0x58] sm:$0xff] %v78
              %v80 = vld [vmem:[%s54 + $0x60] sm:$0xff]
              %81 = vst [vmem:[%s55 + $0x60] sm:$0xff] %v80
              %v82 = vld [vmem:[%s54 + $0x68] sm:$0xff]
              %83 = vst [vmem:[%s55 + $0x68] sm:$0xff] %v82
              %v84 = vld [vmem:[%s54 + $0x70] sm:$0xff]
              %85 = vst [vmem:[%s55 + $0x70] sm:$0xff] %v84
              %v86 = vld [vmem:[%s54 + $0x78] sm:$0xff]
              %87 = vst [vmem:[%s55 + $0x78] sm:$0xff] %v86
              %v88 = vld [vmem:[%s54 + $0x80] sm:$0xff]
              %89 = vst [vmem:[%s55 + $0x80] sm:$0xff] %v88
              %v90 = vld [vmem:[%s54 + $0x88] sm:$0xff]
              %91 = vst [vmem:[%s55 + $0x88] sm:$0xff] %v90
              %v92 = vld [vmem:[%s54 + $0x90] sm:$0xff]
              %93 = vst [vmem:[%s55 + $0x90] sm:$0xff] %v92
              %v94 = vld [vmem:[%s54 + $0x98] sm:$0xff]
              %95 = vst [vmem:[%s55 + $0x98] sm:$0xff] %v94
              %v96 = vld [vmem:[%s54 + $0xa0] sm:$0xff]
              %97 = vst [vmem:[%s55 + $0xa0] sm:$0xff] %v96
              %v98 = vld [vmem:[%s54 + $0xa8] sm:$0xff]
              %99 = vst [vmem:[%s55 + $0xa8] sm:$0xff] %v98
              %v100 = vld [vmem:[%s54 + $0xb0] sm:$0xff]
              %101 = vst [vmem:[%s55 + $0xb0] sm:$0xff] %v100
              %v102 = vld [vmem:[%s54 + $0xb8] sm:$0xff]
              %103 = vst [vmem:[%s55 + $0xb8] sm:$0xff] %v102
              %v104 = vld [vmem:[%s54 + $0xc0] sm:$0xff]
              %105 = vst [vmem:[%s55 + $0xc0] sm:$0xff] %v104
              %v106 = vld [vmem:[%s54 + $0xc8] sm:$0xff]
              %107 = vst [vmem:[%s55 + $0xc8] sm:$0xff] %v106
              %v108 = vld [vmem:[%s54 + $0xd0] sm:$0xff]
              %109 = vst [vmem:[%s55 + $0xd0] sm:$0xff] %v108
              %v110 = vld [vmem:[%s54 + $0xd8] sm:$0xff]
              %111 = vst [vmem:[%s55 + $0xd8] sm:$0xff] %v110
              %v112 = vld [vmem:[%s54 + $0xe0] sm:$0xff]
              %113 = vst [vmem:[%s55 + $0xe0] sm:$0xff] %v112
              %v114 = vld [vmem:[%s54 + $0xe8] sm:$0xff]
              %115 = vst [vmem:[%s55 + $0xe8] sm:$0xff] %v114
              %v116 = vld [vmem:[%s54 + $0xf0] sm:$0xff]
              %117 = vst [vmem:[%s55 + $0xf0] sm:$0xff] %v116
              %v118 = vld [vmem:[%s54 + $0xf8] sm:$0xff]
              %119 = vst [vmem:[%s55 + $0xf8] sm:$0xff] %v118
              %v120 = vld [vmem:[%s54 + $0x100] sm:$0xff]
              %121 = vst [vmem:[%s55 + $0x100] sm:$0xff] %v120
              %v122 = vld [vmem:[%s54 + $0x108] sm:$0xff]
              %123 = vst [vmem:[%s55 + $0x108] sm:$0xff] %v122
              %v124 = vld [vmem:[%s54 + $0x110] sm:$0xff]
              %125 = vst [vmem:[%s55 + $0x110] sm:$0xff] %v124
              %v126 = vld [vmem:[%s54 + $0x118] sm:$0xff]
              %127 = vst [vmem:[%s55 + $0x118] sm:$0xff] %v126
              %v128 = vld [vmem:[%s54 + $0x120] sm:$0xff]
              %129 = vst [vmem:[%s55 + $0x120] sm:$0xff] %v128
              %v130 = vld [vmem:[%s54 + $0x128] sm:$0xff]
              %131 = vst [vmem:[%s55 + $0x128] sm:$0xff] %v130
              %v132 = vld [vmem:[%s54 + $0x130] sm:$0xff]
              %133 = vst [vmem:[%s55 + $0x130] sm:$0xff] %v132
              %v134 = vld [vmem:[%s54 + $0x138] sm:$0xff]
              %135 = vst [vmem:[%s55 + $0x138] sm:$0xff] %v134
              %v136 = vld [vmem:[%s54 + $0x140] sm:$0xff]
              %137 = vst [vmem:[%s55 + $0x140] sm:$0xff] %v136
              %v138 = vld [vmem:[%s54 + $0x148] sm:$0xff]
              %139 = vst [vmem:[%s55 + $0x148] sm:$0xff] %v138
              %v140 = vld [vmem:[%s54 + $0x150] sm:$0xff]
              %141 = vst [vmem:[%s55 + $0x150] sm:$0xff] %v140
              %v142 = vld [vmem:[%s54 + $0x158] sm:$0xff]
              %143 = vst [vmem:[%s55 + $0x158] sm:$0xff] %v142
              %v144 = vld [vmem:[%s54 + $0x160] sm:$0xff]
              %145 = vst [vmem:[%s55 + $0x160] sm:$0xff] %v144
              %v146 = vld [vmem:[%s54 + $0x168] sm:$0xff]
              %147 = vst [vmem:[%s55 + $0x168] sm:$0xff] %v146
              %v148 = vld [vmem:[%s54 + $0x170] sm:$0xff]
              %149 = vst [vmem:[%s55 + $0x170] sm:$0xff] %v148
              %v150 = vld [vmem:[%s54 + $0x178] sm:$0xff]
              %151 = vst [vmem:[%s55 + $0x178] sm:$0xff] %v150
              %v152 = vld [vmem:[%s54 + $0x180] sm:$0xff]
              %153 = vst [vmem:[%s55 + $0x180] sm:$0xff] %v152
              %v154 = vld [vmem:[%s54 + $0x188] sm:$0xff]
              %155 = vst [vmem:[%s55 + $0x188] sm:$0xff] %v154
              %v156 = vld [vmem:[%s54 + $0x190] sm:$0xff]
              %157 = vst [vmem:[%s55 + $0x190] sm:$0xff] %v156
              %v158 = vld [vmem:[%s54 + $0x198] sm:$0xff]
              %159 = vst [vmem:[%s55 + $0x198] sm:$0xff] %v158
              %v160 = vld [vmem:[%s54 + $0x1a0] sm:$0xff]
              %161 = vst [vmem:[%s55 + $0x1a0] sm:$0xff] %v160
              %v162 = vld [vmem:[%s54 + $0x1a8] sm:$0xff]
              %163 = vst [vmem:[%s55 + $0x1a8] sm:$0xff] %v162
              %v164 = vld [vmem:[%s54 + $0x1b0] sm:$0xff]
              %165 = vst [vmem:[%s55 + $0x1b0] sm:$0xff] %v164
              %v166 = vld [vmem:[%s54 + $0x1b8] sm:$0xff]
              %167 = vst [vmem:[%s55 + $0x1b8] sm:$0xff] %v166
              %v168 = vld [vmem:[%s54 + $0x1c0] sm:$0xff]
              %169 = vst [vmem:[%s55 + $0x1c0] sm:$0xff] %v168
              %v170 = vld [vmem:[%s54 + $0x1c8] sm:$0xff]
              %171 = vst [vmem:[%s55 + $0x1c8] sm:$0xff] %v170
              %v172 = vld [vmem:[%s54 + $0x1d0] sm:$0xff]
              %173 = vst [vmem:[%s55 + $0x1d0] sm:$0xff] %v172
              %v174 = vld [vmem:[%s54 + $0x1d8] sm:$0xff]
              %175 = vst [vmem:[%s55 + $0x1d8] sm:$0xff] %v174
              %v176 = vld [vmem:[%s54 + $0x1e0] sm:$0xff]
              %177 = vst [vmem:[%s55 + $0x1e0] sm:$0xff] %v176
              %v178 = vld [vmem:[%s54 + $0x1e8] sm:$0xff]
              %179 = vst [vmem:[%s55 + $0x1e8] sm:$0xff] %v178
              %v180 = vld [vmem:[%s54 + $0x1f0] sm:$0xff]
              %181 = vst [vmem:[%s55 + $0x1f0] sm:$0xff] %v180
              %v182 = vld [vmem:[%s54 + $0x1f8] sm:$0xff]
              %183 = vst [vmem:[%s55 + $0x1f8] sm:$0xff] %v182
              %v184 = vld [vmem:[%s54 + $0x200] sm:$0xff]
              %185 = vst [vmem:[%s55 + $0x200] sm:$0xff] %v184
              %v186 = vld [vmem:[%s54 + $0x208] sm:$0xff]
              %187 = vst [vmem:[%s55 + $0x208] sm:$0xff] %v186
              %v188 = vld [vmem:[%s54 + $0x210] sm:$0xff]
              %189 = vst [vmem:[%s55 + $0x210] sm:$0xff] %v188
              %v190 = vld [vmem:[%s54 + $0x218] sm:$0xff]
              %191 = vst [vmem:[%s55 + $0x218] sm:$0xff] %v190
              %v192 = vld [vmem:[%s54 + $0x220] sm:$0xff]
              %193 = vst [vmem:[%s55 + $0x220] sm:$0xff] %v192
              %v194 = vld [vmem:[%s54 + $0x228] sm:$0xff]
              %195 = vst [vmem:[%s55 + $0x228] sm:$0xff] %v194
              %v196 = vld [vmem:[%s54 + $0x230] sm:$0xff]
              %197 = vst [vmem:[%s55 + $0x230] sm:$0xff] %v196
              %v198 = vld [vmem:[%s54 + $0x238] sm:$0xff]
              %199 = vst [vmem:[%s55 + $0x238] sm:$0xff] %v198
              %v200 = vld [vmem:[%s54 + $0x240] sm:$0xff]
              %201 = vst [vmem:[%s55 + $0x240] sm:$0xff] %v200
              %v202 = vld [vmem:[%s54 + $0x248] sm:$0xff]
              %203 = vst [vmem:[%s55 + $0x248] sm:$0xff] %v202
              %v204 = vld [vmem:[%s54 + $0x250] sm:$0xff]
              %205 = vst [vmem:[%s55 + $0x250] sm:$0xff] %v204
              %v206 = vld [vmem:[%s54 + $0x258] sm:$0xff]
              %207 = vst [vmem:[%s55 + $0x258] sm:$0xff] %v206
              %v208 = vld [vmem:[%s54 + $0x260] sm:$0xff]
              %209 = vst [vmem:[%s55 + $0x260] sm:$0xff] %v208
              %v210 = vld [vmem:[%s54 + $0x268] sm:$0xff]
              %211 = vst [vmem:[%s55 + $0x268] sm:$0xff] %v210
              %v212 = vld [vmem:[%s54 + $0x270] sm:$0xff]
              %213 = vst [vmem:[%s55 + $0x270] sm:$0xff] %v212
              %v214 = vld [vmem:[%s54 + $0x278] sm:$0xff]
              %215 = vst [vmem:[%s55 + $0x278] sm:$0xff] %v214
              %v216 = vld [vmem:[%s54 + $0x280] sm:$0xff]
              %217 = vst [vmem:[%s55 + $0x280] sm:$0xff] %v216
              %v218 = vld [vmem:[%s54 + $0x288] sm:$0xff]
              %219 = vst [vmem:[%s55 + $0x288] sm:$0xff] %v218
              %v220 = vld [vmem:[%s54 + $0x290] sm:$0xff]
              %221 = vst [vmem:[%s55 + $0x290] sm:$0xff] %v220
              %v222 = vld [vmem:[%s54 + $0x298] sm:$0xff]
              %223 = vst [vmem:[%s55 + $0x298] sm:$0xff] %v222
              %v224 = vld [vmem:[%s54 + $0x2a0] sm:$0xff]
              %225 = vst [vmem:[%s55 + $0x2a0] sm:$0xff] %v224
              %v226 = vld [vmem:[%s54 + $0x2a8] sm:$0xff]
              %227 = vst [vmem:[%s55 + $0x2a8] sm:$0xff] %v226
              %v228 = vld [vmem:[%s54 + $0x2b0] sm:$0xff]
              %229 = vst [vmem:[%s55 + $0x2b0] sm:$0xff] %v228
              %v230 = vld [vmem:[%s54 + $0x2b8] sm:$0xff]
              %231 = vst [vmem:[%s55 + $0x2b8] sm:$0xff] %v230
              %v232 = vld [vmem:[%s54 + $0x2c0] sm:$0xff]
              %233 = vst [vmem:[%s55 + $0x2c0] sm:$0xff] %v232
              %v234 = vld [vmem:[%s54 + $0x2c8] sm:$0xff]
              %235 = vst [vmem:[%s55 + $0x2c8] sm:$0xff] %v234
              %v236 = vld [vmem:[%s54 + $0x2d0] sm:$0xff]
              %237 = vst [vmem:[%s55 + $0x2d0] sm:$0xff] %v236
              %v238 = vld [vmem:[%s54 + $0x2d8] sm:$0xff]
              %239 = vst [vmem:[%s55 + $0x2d8] sm:$0xff] %v238
              %v240 = vld [vmem:[%s54 + $0x2e0] sm:$0xff]
              %241 = vst [vmem:[%s55 + $0x2e0] sm:$0xff] %v240
              %v242 = vld [vmem:[%s54 + $0x2e8] sm:$0xff]
              %243 = vst [vmem:[%s55 + $0x2e8] sm:$0xff] %v242
              %v244 = vld [vmem:[%s54 + $0x2f0] sm:$0xff]
              %245 = vst [vmem:[%s55 + $0x2f0] sm:$0xff] %v244
              %v246 = vld [vmem:[%s54 + $0x2f8] sm:$0xff]
              %247 = vst [vmem:[%s55 + $0x2f8] sm:$0xff] %v246
              %v248 = vld [vmem:[%s54 + $0x300] sm:$0xff]
              %249 = vst [vmem:[%s55 + $0x300] sm:$0xff] %v248
              %v250 = vld [vmem:[%s54 + $0x308] sm:$0xff]
              %251 = vst [vmem:[%s55 + $0x308] sm:$0xff] %v250
              %v252 = vld [vmem:[%s54 + $0x310] sm:$0xff]
              %253 = vst [vmem:[%s55 + $0x310] sm:$0xff] %v252
              %v254 = vld [vmem:[%s54 + $0x318] sm:$0xff]
              %255 = vst [vmem:[%s55 + $0x318] sm:$0xff] %v254
              %v256 = vld [vmem:[%s54 + $0x320] sm:$0xff]
              %257 = vst [vmem:[%s55 + $0x320] sm:$0xff] %v256
              %v258 = vld [vmem:[%s54 + $0x328] sm:$0xff]
              %259 = vst [vmem:[%s55 + $0x328] sm:$0xff] %v258
              %v260 = vld [vmem:[%s54 + $0x330] sm:$0xff]
              %261 = vst [vmem:[%s55 + $0x330] sm:$0xff] %v260
              %v262 = vld [vmem:[%s54 + $0x338] sm:$0xff]
              %263 = vst [vmem:[%s55 + $0x338] sm:$0xff] %v262
              %v264 = vld [vmem:[%s54 + $0x340] sm:$0xff]
              %265 = vst [vmem:[%s55 + $0x340] sm:$0xff] %v264
              %v266 = vld [vmem:[%s54 + $0x348] sm:$0xff]
              %267 = vst [vmem:[%s55 + $0x348] sm:$0xff] %v266
              %v268 = vld [vmem:[%s54 + $0x350] sm:$0xff]
              %269 = vst [vmem:[%s55 + $0x350] sm:$0xff] %v268
              %v270 = vld [vmem:[%s54 + $0x358] sm:$0xff]
              %271 = vst [vmem:[%s55 + $0x358] sm:$0xff] %v270
              %v272 = vld [vmem:[%s54 + $0x360] sm:$0xff]
              %273 = vst [vmem:[%s55 + $0x360] sm:$0xff] %v272
              %v274 = vld [vmem:[%s54 + $0x368] sm:$0xff]
              %275 = vst [vmem:[%s55 + $0x368] sm:$0xff] %v274
              %v276 = vld [vmem:[%s54 + $0x370] sm:$0xff]
              %277 = vst [vmem:[%s55 + $0x370] sm:$0xff] %v276
              %v278 = vld [vmem:[%s54 + $0x378] sm:$0xff]
              %279 = vst [vmem:[%s55 + $0x378] sm:$0xff] %v278
              %v280 = vld [vmem:[%s54 + $0x380] sm:$0xff]
              %281 = vst [vmem:[%s55 + $0x380] sm:$0xff] %v280
              %v282 = vld [vmem:[%s54 + $0x388] sm:$0xff]
              %283 = vst [vmem:[%s55 + $0x388] sm:$0xff] %v282
              %v284 = vld [vmem:[%s54 + $0x390] sm:$0xff]
              %285 = vst [vmem:[%s55 + $0x390] sm:$0xff] %v284
              %v286 = vld [vmem:[%s54 + $0x398] sm:$0xff]
              %287 = vst [vmem:[%s55 + $0x398] sm:$0xff] %v286
              %v288 = vld [vmem:[%s54 + $0x3a0] sm:$0xff]
              %289 = vst [vmem:[%s55 + $0x3a0] sm:$0xff] %v288
              %v290 = vld [vmem:[%s54 + $0x3a8] sm:$0xff]
              %291 = vst [vmem:[%s55 + $0x3a8] sm:$0xff] %v290
              %v292 = vld [vmem:[%s54 + $0x3b0] sm:$0xff]
              %293 = vst [vmem:[%s55 + $0x3b0] sm:$0xff] %v292
              %v294 = vld [vmem:[%s54 + $0x3b8] sm:$0xff]
              %295 = vst [vmem:[%s55 + $0x3b8] sm:$0xff] %v294
              %v296 = vld [vmem:[%s54 + $0x3c0] sm:$0xff]
              %297 = vst [vmem:[%s55 + $0x3c0] sm:$0xff] %v296
              %v298 = vld [vmem:[%s54 + $0x3c8] sm:$0xff]
              %299 = vst [vmem:[%s55 + $0x3c8] sm:$0xff] %v298
              %v300 = vld [vmem:[%s54 + $0x3d0] sm:$0xff]
              %301 = vst [vmem:[%s55 + $0x3d0] sm:$0xff] %v300
              %v302 = vld [vmem:[%s54 + $0x3d8] sm:$0xff]
              %303 = vst [vmem:[%s55 + $0x3d8] sm:$0xff] %v302
              %v304 = vld [vmem:[%s54 + $0x3e0] sm:$0xff]
              %305 = vst [vmem:[%s55 + $0x3e0] sm:$0xff] %v304
              %v306 = vld [vmem:[%s54 + $0x3e8] sm:$0xff]
              %307 = vst [vmem:[%s55 + $0x3e8] sm:$0xff] %v306
              %v308 = vld [vmem:[%s54 + $0x3f0] sm:$0xff]
              %309 = vst [vmem:[%s55 + $0x3f0] sm:$0xff] %v308
              %v310 = vld [vmem:[%s54 + $0x3f8] sm:$0xff]
              %311 = vst [vmem:[%s55 + $0x3f8] sm:$0xff] %v310
              %v312 = vld [vmem:[%s54 + $0x400] sm:$0xff]
              %313 = vst [vmem:[%s55 + $0x400] sm:$0xff] %v312
              %v314 = vld [vmem:[%s54 + $0x408] sm:$0xff]
              %315 = vst [vmem:[%s55 + $0x408] sm:$0xff] %v314
              %v316 = vld [vmem:[%s54 + $0x410] sm:$0xff]
              %317 = vst [vmem:[%s55 + $0x410] sm:$0xff] %v316
              %v318 = vld [vmem:[%s54 + $0x418] sm:$0xff]
              %319 = vst [vmem:[%s55 + $0x418] sm:$0xff] %v318
              %v320 = vld [vmem:[%s54 + $0x420] sm:$0xff]
              %321 = vst [vmem:[%s55 + $0x420] sm:$0xff] %v320
              %v322 = vld [vmem:[%s54 + $0x428] sm:$0xff]
              %323 = vst [vmem:[%s55 + $0x428] sm:$0xff] %v322
              %v324 = vld [vmem:[%s54 + $0x430] sm:$0xff]
              %325 = vst [vmem:[%s55 + $0x430] sm:$0xff] %v324
              %v326 = vld [vmem:[%s54 + $0x438] sm:$0xff]
              %327 = vst [vmem:[%s55 + $0x438] sm:$0xff] %v326
              %v328 = vld [vmem:[%s54 + $0x440] sm:$0xff]
              %329 = vst [vmem:[%s55 + $0x440] sm:$0xff] %v328
              %v330 = vld [vmem:[%s54 + $0x448] sm:$0xff]
              %331 = vst [vmem:[%s55 + $0x448] sm:$0xff] %v330
              %v332 = vld [vmem:[%s54 + $0x450] sm:$0xff]
              %333 = vst [vmem:[%s55 + $0x450] sm:$0xff] %v332
              %v334 = vld [vmem:[%s54 + $0x458] sm:$0xff]
              %335 = vst [vmem:[%s55 + $0x458] sm:$0xff] %v334
              %v336 = vld [vmem:[%s54 + $0x460] sm:$0xff]
              %337 = vst [vmem:[%s55 + $0x460] sm:$0xff] %v336
              %v338 = vld [vmem:[%s54 + $0x468] sm:$0xff]
              %339 = vst [vmem:[%s55 + $0x468] sm:$0xff] %v338
              %v340 = vld [vmem:[%s54 + $0x470] sm:$0xff]
              %341 = vst [vmem:[%s55 + $0x470] sm:$0xff] %v340
              %v342 = vld [vmem:[%s54 + $0x478] sm:$0xff]
              %343 = vst [vmem:[%s55 + $0x478] sm:$0xff] %v342
              %v344 = vld [vmem:[%s54 + $0x480] sm:$0xff]
              %345 = vst [vmem:[%s55 + $0x480] sm:$0xff] %v344
              %v346 = vld [vmem:[%s54 + $0x488] sm:$0xff]
              %347 = vst [vmem:[%s55 + $0x488] sm:$0xff] %v346
              %v348 = vld [vmem:[%s54 + $0x490] sm:$0xff]
              %349 = vst [vmem:[%s55 + $0x490] sm:$0xff] %v348
              %v350 = vld [vmem:[%s54 + $0x498] sm:$0xff]
              %351 = vst [vmem:[%s55 + $0x498] sm:$0xff] %v350
              %v352 = vld [vmem:[%s54 + $0x4a0] sm:$0xff]
              %353 = vst [vmem:[%s55 + $0x4a0] sm:$0xff] %v352
              %v354 = vld [vmem:[%s54 + $0x4a8] sm:$0xff]
              %355 = vst [vmem:[%s55 + $0x4a8] sm:$0xff] %v354
              %v356 = vld [vmem:[%s54 + $0x4b0] sm:$0xff]
              %357 = vst [vmem:[%s55 + $0x4b0] sm:$0xff] %v356
              %v358 = vld [vmem:[%s54 + $0x4b8] sm:$0xff]
              %359 = vst [vmem:[%s55 + $0x4b8] sm:$0xff] %v358
              %v360 = vld [vmem:[%s54 + $0x4c0] sm:$0xff]
              %361 = vst [vmem:[%s55 + $0x4c0] sm:$0xff] %v360
              %v362 = vld [vmem:[%s54 + $0x4c8] sm:$0xff]
              %363 = vst [vmem:[%s55 + $0x4c8] sm:$0xff] %v362
              %v364 = vld [vmem:[%s54 + $0x4d0] sm:$0xff]
              %365 = vst [vmem:[%s55 + $0x4d0] sm:$0xff] %v364
              %v366 = vld [vmem:[%s54 + $0x4d8] sm:$0xff]
              %367 = vst [vmem:[%s55 + $0x4d8] sm:$0xff] %v366
              %v368 = vld [vmem:[%s54 + $0x4e0] sm:$0xff]
              %369 = vst [vmem:[%s55 + $0x4e0] sm:$0xff] %v368
              %v370 = vld [vmem:[%s54 + $0x4e8] sm:$0xff]
              %371 = vst [vmem:[%s55 + $0x4e8] sm:$0xff] %v370
              %v372 = vld [vmem:[%s54 + $0x4f0] sm:$0xff]
              %373 = vst [vmem:[%s55 + $0x4f0] sm:$0xff] %v372
              %v374 = vld [vmem:[%s54 + $0x4f8] sm:$0xff]
              %375 = vst [vmem:[%s55 + $0x4f8] sm:$0xff] %v374
              %v376 = vld [vmem:[%s54 + $0x500] sm:$0xff]
              %377 = vst [vmem:[%s55 + $0x500] sm:$0xff] %v376
              %v378 = vld [vmem:[%s54 + $0x508] sm:$0xff]
              %379 = vst [vmem:[%s55 + $0x508] sm:$0xff] %v378
              %v380 = vld [vmem:[%s54 + $0x510] sm:$0xff]
              %381 = vst [vmem:[%s55 + $0x510] sm:$0xff] %v380
              %v382 = vld [vmem:[%s54 + $0x518] sm:$0xff]
              %383 = vst [vmem:[%s55 + $0x518] sm:$0xff] %v382
              %v384 = vld [vmem:[%s54 + $0x520] sm:$0xff]
              %385 = vst [vmem:[%s55 + $0x520] sm:$0xff] %v384
              %v386 = vld [vmem:[%s54 + $0x528] sm:$0xff]
              %387 = vst [vmem:[%s55 + $0x528] sm:$0xff] %v386
              %v388 = vld [vmem:[%s54 + $0x530] sm:$0xff]
              %389 = vst [vmem:[%s55 + $0x530] sm:$0xff] %v388
              %v390 = vld [vmem:[%s54 + $0x538] sm:$0xff]
              %391 = vst [vmem:[%s55 + $0x538] sm:$0xff] %v390
              %v392 = vld [vmem:[%s54 + $0x540] sm:$0xff]
              %393 = vst [vmem:[%s55 + $0x540] sm:$0xff] %v392
              %v394 = vld [vmem:[%s54 + $0x548] sm:$0xff]
              %395 = vst [vmem:[%s55 + $0x548] sm:$0xff] %v394
              %v396 = vld [vmem:[%s54 + $0x550] sm:$0xff]
              %397 = vst [vmem:[%s55 + $0x550] sm:$0xff] %v396
              %v398 = vld [vmem:[%s54 + $0x558] sm:$0xff]
              %399 = vst [vmem:[%s55 + $0x558] sm:$0xff] %v398
              %v400 = vld [vmem:[%s54 + $0x560] sm:$0xff]
              %401 = vst [vmem:[%s55 + $0x560] sm:$0xff] %v400
              %v402 = vld [vmem:[%s54 + $0x568] sm:$0xff]
              %403 = vst [vmem:[%s55 + $0x568] sm:$0xff] %v402
              %v404 = vld [vmem:[%s54 + $0x570] sm:$0xff]
              %405 = vst [vmem:[%s55 + $0x570] sm:$0xff] %v404
              %v406 = vld [vmem:[%s54 + $0x578] sm:$0xff]
              %407 = vst [vmem:[%s55 + $0x578] sm:$0xff] %v406
              %v408 = vld [vmem:[%s54 + $0x580] sm:$0xff]
              %409 = vst [vmem:[%s55 + $0x580] sm:$0xff] %v408
              %v410 = vld [vmem:[%s54 + $0x588] sm:$0xff]
              %411 = vst [vmem:[%s55 + $0x588] sm:$0xff] %v410
              %v412 = vld [vmem:[%s54 + $0x590] sm:$0xff]
              %413 = vst [vmem:[%s55 + $0x590] sm:$0xff] %v412
              %v414 = vld [vmem:[%s54 + $0x598] sm:$0xff]
              %415 = vst [vmem:[%s55 + $0x598] sm:$0xff] %v414
              %v416 = vld [vmem:[%s54 + $0x5a0] sm:$0xff]
              %417 = vst [vmem:[%s55 + $0x5a0] sm:$0xff] %v416
              %v418 = vld [vmem:[%s54 + $0x5a8] sm:$0xff]
              %419 = vst [vmem:[%s55 + $0x5a8] sm:$0xff] %v418
              %v420 = vld [vmem:[%s54 + $0x5b0] sm:$0xff]
              %421 = vst [vmem:[%s55 + $0x5b0] sm:$0xff] %v420
              %v422 = vld [vmem:[%s54 + $0x5b8] sm:$0xff]
              %423 = vst [vmem:[%s55 + $0x5b8] sm:$0xff] %v422
              %v424 = vld [vmem:[%s54 + $0x5c0] sm:$0xff]
              %425 = vst [vmem:[%s55 + $0x5c0] sm:$0xff] %v424
              %v426 = vld [vmem:[%s54 + $0x5c8] sm:$0xff]
              %427 = vst [vmem:[%s55 + $0x5c8] sm:$0xff] %v426
              %v428 = vld [vmem:[%s54 + $0x5d0] sm:$0xff]
              %429 = vst [vmem:[%s55 + $0x5d0] sm:$0xff] %v428
              %v430 = vld [vmem:[%s54 + $0x5d8] sm:$0xff]
              %431 = vst [vmem:[%s55 + $0x5d8] sm:$0xff] %v430
              %v432 = vld [vmem:[%s54 + $0x5e0] sm:$0xff]
              %433 = vst [vmem:[%s55 + $0x5e0] sm:$0xff] %v432
              %v434 = vld [vmem:[%s54 + $0x5e8] sm:$0xff]
              %435 = vst [vmem:[%s55 + $0x5e8] sm:$0xff] %v434
              %v436 = vld [vmem:[%s54 + $0x5f0] sm:$0xff]
              %437 = vst [vmem:[%s55 + $0x5f0] sm:$0xff] %v436
              %v438 = vld [vmem:[%s54 + $0x5f8] sm:$0xff]
              %439 = vst [vmem:[%s55 + $0x5f8] sm:$0xff] %v438
              %v440 = vld [vmem:[%s54 + $0x600] sm:$0xff]
              %441 = vst [vmem:[%s55 + $0x600] sm:$0xff] %v440
              %v442 = vld [vmem:[%s54 + $0x608] sm:$0xff]
              %443 = vst [vmem:[%s55 + $0x608] sm:$0xff] %v442
              %v444 = vld [vmem:[%s54 + $0x610] sm:$0xff]
              %445 = vst [vmem:[%s55 + $0x610] sm:$0xff] %v444
              %v446 = vld [vmem:[%s54 + $0x618] sm:$0xff]
              %447 = vst [vmem:[%s55 + $0x618] sm:$0xff] %v446
              %v448 = vld [vmem:[%s54 + $0x620] sm:$0xff]
              %449 = vst [vmem:[%s55 + $0x620] sm:$0xff] %v448
              %v450 = vld [vmem:[%s54 + $0x628] sm:$0xff]
              %451 = vst [vmem:[%s55 + $0x628] sm:$0xff] %v450
              %v452 = vld [vmem:[%s54 + $0x630] sm:$0xff]
              %453 = vst [vmem:[%s55 + $0x630] sm:$0xff] %v452
              %v454 = vld [vmem:[%s54 + $0x638] sm:$0xff]
              %455 = vst [vmem:[%s55 + $0x638] sm:$0xff] %v454
              %v456 = vld [vmem:[%s54 + $0x640] sm:$0xff]
              %457 = vst [vmem:[%s55 + $0x640] sm:$0xff] %v456
              %v458 = vld [vmem:[%s54 + $0x648] sm:$0xff]
              %459 = vst [vmem:[%s55 + $0x648] sm:$0xff] %v458
              %v460 = vld [vmem:[%s54 + $0x650] sm:$0xff]
              %461 = vst [vmem:[%s55 + $0x650] sm:$0xff] %v460
              %v462 = vld [vmem:[%s54 + $0x658] sm:$0xff]
              %463 = vst [vmem:[%s55 + $0x658] sm:$0xff] %v462
              %v464 = vld [vmem:[%s54 + $0x660] sm:$0xff]
              %465 = vst [vmem:[%s55 + $0x660] sm:$0xff] %v464
              %v466 = vld [vmem:[%s54 + $0x668] sm:$0xff]
              %467 = vst [vmem:[%s55 + $0x668] sm:$0xff] %v466
              %v468 = vld [vmem:[%s54 + $0x670] sm:$0xff]
              %469 = vst [vmem:[%s55 + $0x670] sm:$0xff] %v468
              %v470 = vld [vmem:[%s54 + $0x678] sm:$0xff]
              %471 = vst [vmem:[%s55 + $0x678] sm:$0xff] %v470
              %v472 = vld [vmem:[%s54 + $0x680] sm:$0xff]
              %473 = vst [vmem:[%s55 + $0x680] sm:$0xff] %v472
              %v474 = vld [vmem:[%s54 + $0x688] sm:$0xff]
              %475 = vst [vmem:[%s55 + $0x688] sm:$0xff] %v474
              %v476 = vld [vmem:[%s54 + $0x690] sm:$0xff]
              %477 = vst [vmem:[%s55 + $0x690] sm:$0xff] %v476
              %v478 = vld [vmem:[%s54 + $0x698] sm:$0xff]
              %479 = vst [vmem:[%s55 + $0x698] sm:$0xff] %v478
              %v480 = vld [vmem:[%s54 + $0x6a0] sm:$0xff]
              %481 = vst [vmem:[%s55 + $0x6a0] sm:$0xff] %v480
              %v482 = vld [vmem:[%s54 + $0x6a8] sm:$0xff]
              %483 = vst [vmem:[%s55 + $0x6a8] sm:$0xff] %v482
              %v484 = vld [vmem:[%s54 + $0x6b0] sm:$0xff]
              %485 = vst [vmem:[%s55 + $0x6b0] sm:$0xff] %v484
              %v486 = vld [vmem:[%s54 + $0x6b8] sm:$0xff]
              %487 = vst [vmem:[%s55 + $0x6b8] sm:$0xff] %v486
              %v488 = vld [vmem:[%s54 + $0x6c0] sm:$0xff]
              %489 = vst [vmem:[%s55 + $0x6c0] sm:$0xff] %v488
              %v490 = vld [vmem:[%s54 + $0x6c8] sm:$0xff]
              %491 = vst [vmem:[%s55 + $0x6c8] sm:$0xff] %v490
              %v492 = vld [vmem:[%s54 + $0x6d0] sm:$0xff]
              %493 = vst [vmem:[%s55 + $0x6d0] sm:$0xff] %v492
              %v494 = vld [vmem:[%s54 + $0x6d8] sm:$0xff]
              %495 = vst [vmem:[%s55 + $0x6d8] sm:$0xff] %v494
              %v496 = vld [vmem:[%s54 + $0x6e0] sm:$0xff]
              %497 = vst [vmem:[%s55 + $0x6e0] sm:$0xff] %v496
              %v498 = vld [vmem:[%s54 + $0x6e8] sm:$0xff]
              %499 = vst [vmem:[%s55 + $0x6e8] sm:$0xff] %v498
              %v500 = vld [vmem:[%s54 + $0x6f0] sm:$0xff]
              %501 = vst [vmem:[%s55 + $0x6f0] sm:$0xff] %v500
              %v502 = vld [vmem:[%s54 + $0x6f8] sm:$0xff]
              %503 = vst [vmem:[%s55 + $0x6f8] sm:$0xff] %v502
              %v504 = vld [vmem:[%s54 + $0x700] sm:$0xff]
              %505 = vst [vmem:[%s55 + $0x700] sm:$0xff] %v504
              %v506 = vld [vmem:[%s54 + $0x708] sm:$0xff]
              %507 = vst [vmem:[%s55 + $0x708] sm:$0xff] %v506
              %v508 = vld [vmem:[%s54 + $0x710] sm:$0xff]
              %509 = vst [vmem:[%s55 + $0x710] sm:$0xff] %v508
              %v510 = vld [vmem:[%s54 + $0x718] sm:$0xff]
              %511 = vst [vmem:[%s55 + $0x718] sm:$0xff] %v510
              %v512 = vld [vmem:[%s54 + $0x720] sm:$0xff]
              %513 = vst [vmem:[%s55 + $0x720] sm:$0xff] %v512
              %v514 = vld [vmem:[%s54 + $0x728] sm:$0xff]
              %515 = vst [vmem:[%s55 + $0x728] sm:$0xff] %v514
              %v516 = vld [vmem:[%s54 + $0x730] sm:$0xff]
              %517 = vst [vmem:[%s55 + $0x730] sm:$0xff] %v516
              %v518 = vld [vmem:[%s54 + $0x738] sm:$0xff]
              %519 = vst [vmem:[%s55 + $0x738] sm:$0xff] %v518
              %v520 = vld [vmem:[%s54 + $0x740] sm:$0xff]
              %521 = vst [vmem:[%s55 + $0x740] sm:$0xff] %v520
              %v522 = vld [vmem:[%s54 + $0x748] sm:$0xff]
              %523 = vst [vmem:[%s55 + $0x748] sm:$0xff] %v522
              %v524 = vld [vmem:[%s54 + $0x750] sm:$0xff]
              %525 = vst [vmem:[%s55 + $0x750] sm:$0xff] %v524
              %v526 = vld [vmem:[%s54 + $0x758] sm:$0xff]
              %527 = vst [vmem:[%s55 + $0x758] sm:$0xff] %v526
              %v528 = vld [vmem:[%s54 + $0x760] sm:$0xff]
              %529 = vst [vmem:[%s55 + $0x760] sm:$0xff] %v528
              %v530 = vld [vmem:[%s54 + $0x768] sm:$0xff]
              %531 = vst [vmem:[%s55 + $0x768] sm:$0xff] %v530
              %v532 = vld [vmem:[%s54 + $0x770] sm:$0xff]
              %533 = vst [vmem:[%s55 + $0x770] sm:$0xff] %v532
              %v534 = vld [vmem:[%s54 + $0x778] sm:$0xff]
              %535 = vst [vmem:[%s55 + $0x778] sm:$0xff] %v534
              %v536 = vld [vmem:[%s54 + $0x780] sm:$0xff]
              %537 = vst [vmem:[%s55 + $0x780] sm:$0xff] %v536
              %v538 = vld [vmem:[%s54 + $0x788] sm:$0xff]
              %539 = vst [vmem:[%s55 + $0x788] sm:$0xff] %v538
              %v540 = vld [vmem:[%s54 + $0x790] sm:$0xff]
              %541 = vst [vmem:[%s55 + $0x790] sm:$0xff] %v540
              %v542 = vld [vmem:[%s54 + $0x798] sm:$0xff]
              %543 = vst [vmem:[%s55 + $0x798] sm:$0xff] %v542
              %v544 = vld [vmem:[%s54 + $0x7a0] sm:$0xff]
              %545 = vst [vmem:[%s55 + $0x7a0] sm:$0xff] %v544
              %v546 = vld [vmem:[%s54 + $0x7a8] sm:$0xff]
              %547 = vst [vmem:[%s55 + $0x7a8] sm:$0xff] %v546
              %v548 = vld [vmem:[%s54 + $0x7b0] sm:$0xff]
              %549 = vst [vmem:[%s55 + $0x7b0] sm:$0xff] %v548
              %v550 = vld [vmem:[%s54 + $0x7b8] sm:$0xff]
              %551 = vst [vmem:[%s55 + $0x7b8] sm:$0xff] %v550
              %v552 = vld [vmem:[%s54 + $0x7c0] sm:$0xff]
              %553 = vst [vmem:[%s55 + $0x7c0] sm:$0xff] %v552
              %v554 = vld [vmem:[%s54 + $0x7c8] sm:$0xff]
              %555 = vst [vmem:[%s55 + $0x7c8] sm:$0xff] %v554
              %v556 = vld [vmem:[%s54 + $0x7d0] sm:$0xff]
              %557 = vst [vmem:[%s55 + $0x7d0] sm:$0xff] %v556
              %v558 = vld [vmem:[%s54 + $0x7d8] sm:$0xff]
              %559 = vst [vmem:[%s55 + $0x7d8] sm:$0xff] %v558
              %v560 = vld [vmem:[%s54 + $0x7e0] sm:$0xff]
              %561 = vst [vmem:[%s55 + $0x7e0] sm:$0xff] %v560
              %v562 = vld [vmem:[%s54 + $0x7e8] sm:$0xff]
              %563 = vst [vmem:[%s55 + $0x7e8] sm:$0xff] %v562
              %v564 = vld [vmem:[%s54 + $0x7f0] sm:$0xff]
              %565 = vst [vmem:[%s55 + $0x7f0] sm:$0xff] %v564
              %v566 = vld [vmem:[%s54 + $0x7f8] sm:$0xff]
              %567 = vst [vmem:[%s55 + $0x7f8] sm:$0xff] %v566
            $region46: #{dlstm_forward.1} parent=40 // loop_footer
              %s53 = sadd.s32 1, %s49
            $region47: #{dlstm_forward.1} parent=40 // loop_footer_branch
              %48 = sbr.rel target = $region43
            $region48: #{dlstm_forward.1} parent=40 // loop_exit
              _
          $region41: #{dlstm_forward.1} parent=25 // pred_fallthru
            _
          %p568 = pneg %p44
          // Predicated region
          $region49: #{dlstm_forward.1} parent=25 // pred_check
            _
          $region50: #{dlstm_forward.1} parent=25 // pred_check_branch
            %570 = sbr.rel (%p44) target = $region52
          $region51: #{dlstm_forward.1} parent=25 // pred_region
            %s571 = sand.u32 2048, 7
          $region52: #{dlstm_forward.1} parent=25 // pred_fallthru
            _
        $region26: #{dlstm_forward.1} parent=22 // pred_fallthru
          _
        // Predicated region
        $region27: #{dlstm_forward.1} parent=22 // pred_check
          %p28 = pneg %p24
        $region28: #{dlstm_forward.1} parent=22 // pred_check_branch
          %30 = sbr.rel (%p28) target = $region30
        $region29: #{dlstm_forward.1} parent=22 // pred_region
          %s31 = sshll.u32 1, 2048
          %s32 = ssub.s32 %s31, 1
          loop: start=0, step=1, limit=1
          $region31: #{dlstm_forward.1} parent=29 // loop_pre_header
            _
          $region32: #{dlstm_forward.1} parent=29 // loop_header
            %s34 = sphi 0, %s38
            %p35 = scmp.ge.s32.totalorder %s34, 1
            %s39 = sphi %s0, %s0
            %s40 = sphi [#allocation2], [#allocation2]
          $region33: #{dlstm_forward.1} parent=29 // loop_header_branch
            %37 = sbr.rel (%p35) target = $region37
          $region34: #{dlstm_forward.1} parent=29 // loop_body
            %v41 = vld [vmem:[%s39] sm:%s32]
            %42 = vst [vmem:[%s40] sm:%s32] %v41
          $region35: #{dlstm_forward.1} parent=29 // loop_footer
            %s38 = sadd.s32 1, %s34
          $region36: #{dlstm_forward.1} parent=29 // loop_footer_branch
            %33 = sbr.rel target = $region32
          $region37: #{dlstm_forward.1} parent=29 // loop_exit
            _
        $region30: #{dlstm_forward.1} parent=22 // pred_fallthru
          _
        // Predicated region
        $region53: #{dlstm_forward.1} parent=22 // pred_check
          _
        $region54: #{dlstm_forward.1} parent=22 // pred_check_branch
          %574 = sbr.rel (0) target = $region56
        $region55: #{dlstm_forward.1} parent=22 // pred_region
          %575 = vsyncadd [#allocation7], 32768
        $region56: #{dlstm_forward.1} parent=22 // pred_fallthru
          _
        %s576 = smul.u32 8, 2
        %s577 = smul.u32 %s576, 32
        %s578 = smul.u32 %s577, 4
        %s579 = sshll.u32 %s578, 4
        %580 = dma.done [#allocation7], %s579
      %581 = vst [vmem:[#allocation3] sm:$0xff] 0.0
      %582 = vst [vmem:[#allocation3 + $0x10] sm:$0xff] 0.0
      %v583 = vld [vmem:[%s3] sm:$0xff]
      %v584 = vld [vmem:[%s3 + $0x8] sm:$0xff]
      %585 = vst [vmem:[#allocation3 + $0x8] sm:$0xff] %v583
      %586 = vst [vmem:[#allocation3 + $0x18] sm:$0xff] %v584
      %v587 = vld [vmem:[%s4] sm:$0xff]
      %v588 = vld [vmem:[%s4 + $0x8] sm:$0xff]
      %589 = vst [vmem:[#allocation4] sm:$0xff] %v587
      %590 = vst [vmem:[#allocation4 + $0x8] sm:$0xff] %v588
    $region21: #{dlstm_forward.1} parent=1 // pred_fallthru
      _
    %s591 = smul.u32 0, 8
    %p592 = scmp.gt.s32.totalorder %s591, 0
    %v593 = vld [vmem:[#allocation3] sm:$0xff]
    %v594 = vld [vmem:[#allocation3 + $0x8] sm:$0xff]
    %v595 = vld [vmem:[#allocation2] sm:$0xff]
    %v596 = vld [vmem:[#allocation2 + $0x8] sm:$0xff]
    %v597 = vld [vmem:[#allocation2 + $0x10] sm:$0xff]
    %v598 = vld [vmem:[#allocation2 + $0x18] sm:$0xff]
    %v599 = vld [vmem:[#allocation2 + $0x20] sm:$0xff]
    %v600 = vld [vmem:[#allocation2 + $0x28] sm:$0xff]
    %v601 = vld [vmem:[#allocation2 + $0x30] sm:$0xff]
    %v602 = vld [vmem:[#allocation2 + $0x38] sm:$0xff]
    %v603 = vld [vmem:[#allocation2 + $0x40] sm:$0xff]
    %v604 = vld [vmem:[#allocation2 + $0x48] sm:$0xff]
    %v605 = vld [vmem:[#allocation2 + $0x50] sm:$0xff]
    %v606 = vld [vmem:[#allocation2 + $0x58] sm:$0xff]
    %v607 = vld [vmem:[#allocation2 + $0x60] sm:$0xff]
    %v608 = vld [vmem:[#allocation2 + $0x68] sm:$0xff]
    %v609 = vld [vmem:[#allocation2 + $0x70] sm:$0xff]
    %v610 = vld [vmem:[#allocation2 + $0x78] sm:$0xff]
    %v611 = vld [vmem:[#allocation2 + $0x80] sm:$0xff]
    %v612 = vld [vmem:[#allocation2 + $0x88] sm:$0xff]
    %v613 = vld [vmem:[#allocation2 + $0x90] sm:$0xff]
    %v614 = vld [vmem:[#allocation2 + $0x98] sm:$0xff]
    %v615 = vld [vmem:[#allocation2 + $0xa0] sm:$0xff]
    %v616 = vld [vmem:[#allocation2 + $0xa8] sm:$0xff]
    %v617 = vld [vmem:[#allocation2 + $0xb0] sm:$0xff]
    %v618 = vld [vmem:[#allocation2 + $0xb8] sm:$0xff]
    %v619 = vld [vmem:[#allocation2 + $0xc0] sm:$0xff]
    %v620 = vld [vmem:[#allocation2 + $0xc8] sm:$0xff]
    %v621 = vld [vmem:[#allocation2 + $0xd0] sm:$0xff]
    %v622 = vld [vmem:[#allocation2 + $0xd8] sm:$0xff]
    %v623 = vld [vmem:[#allocation2 + $0xe0] sm:$0xff]
    %v624 = vld [vmem:[#allocation2 + $0xe8] sm:$0xff]
    %v625 = vld [vmem:[#allocation2 + $0xf0] sm:$0xff]
    %v626 = vld [vmem:[#allocation2 + $0xf8] sm:$0xff]
    %v627 = vld [vmem:[#allocation2 + $0x100] sm:$0xff]
    %v628 = vld [vmem:[#allocation2 + $0x108] sm:$0xff]
    %v629 = vld [vmem:[#allocation2 + $0x110] sm:$0xff]
    %v630 = vld [vmem:[#allocation2 + $0x118] sm:$0xff]
    %v631 = vld [vmem:[#allocation2 + $0x120] sm:$0xff]
    %v632 = vld [vmem:[#allocation2 + $0x128] sm:$0xff]
    %v633 = vld [vmem:[#allocation2 + $0x130] sm:$0xff]
    %v634 = vld [vmem:[#allocation2 + $0x138] sm:$0xff]
    %v635 = vld [vmem:[#allocation2 + $0x140] sm:$0xff]
    %v636 = vld [vmem:[#allocation2 + $0x148] sm:$0xff]
    %v637 = vld [vmem:[#allocation2 + $0x150] sm:$0xff]
    %v638 = vld [vmem:[#allocation2 + $0x158] sm:$0xff]
    %v639 = vld [vmem:[#allocation2 + $0x160] sm:$0xff]
    %v640 = vld [vmem:[#allocation2 + $0x168] sm:$0xff]
    %v641 = vld [vmem:[#allocation2 + $0x170] sm:$0xff]
    %v642 = vld [vmem:[#allocation2 + $0x178] sm:$0xff]
    %v643 = vld [vmem:[#allocation2 + $0x180] sm:$0xff]
    %v644 = vld [vmem:[#allocation2 + $0x188] sm:$0xff]
    %v645 = vld [vmem:[#allocation2 + $0x190] sm:$0xff]
    %v646 = vld [vmem:[#allocation2 + $0x198] sm:$0xff]
    %v647 = vld [vmem:[#allocation2 + $0x1a0] sm:$0xff]
    %v648 = vld [vmem:[#allocation2 + $0x1a8] sm:$0xff]
    %v649 = vld [vmem:[#allocation2 + $0x1b0] sm:$0xff]
    %v650 = vld [vmem:[#allocation2 + $0x1b8] sm:$0xff]
    %v651 = vld [vmem:[#allocation2 + $0x1c0] sm:$0xff]
    %v652 = vld [vmem:[#allocation2 + $0x1c8] sm:$0xff]
    %v653 = vld [vmem:[#allocation2 + $0x1d0] sm:$0xff]
    %v654 = vld [vmem:[#allocation2 + $0x1d8] sm:$0xff]
    %v655 = vld [vmem:[#allocation2 + $0x1e0] sm:$0xff]
    %v656 = vld [vmem:[#allocation2 + $0x1e8] sm:$0xff]
    %v657 = vld [vmem:[#allocation2 + $0x1f0] sm:$0xff]
    %v658 = vld [vmem:[#allocation2 + $0x1f8] sm:$0xff]
    %v659 = vld [vmem:[#allocation2 + $0x200] sm:$0xff]
    %v660 = vld [vmem:[#allocation2 + $0x208] sm:$0xff]
    %v661 = vld [vmem:[#allocation2 + $0x210] sm:$0xff]
    %v662 = vld [vmem:[#allocation2 + $0x218] sm:$0xff]
    %v663 = vld [vmem:[#allocation2 + $0x220] sm:$0xff]
    %v664 = vld [vmem:[#allocation2 + $0x228] sm:$0xff]
    %v665 = vld [vmem:[#allocation2 + $0x230] sm:$0xff]
    %v666 = vld [vmem:[#allocation2 + $0x238] sm:$0xff]
    %v667 = vld [vmem:[#allocation2 + $0x240] sm:$0xff]
    %v668 = vld [vmem:[#allocation2 + $0x248] sm:$0xff]
    %v669 = vld [vmem:[#allocation2 + $0x250] sm:$0xff]
    %v670 = vld [vmem:[#allocation2 + $0x258] sm:$0xff]
    %v671 = vld [vmem:[#allocation2 + $0x260] sm:$0xff]
    %v672 = vld [vmem:[#allocation2 + $0x268] sm:$0xff]
    %v673 = vld [vmem:[#allocation2 + $0x270] sm:$0xff]
    %v674 = vld [vmem:[#allocation2 + $0x278] sm:$0xff]
    %v675 = vld [vmem:[#allocation2 + $0x280] sm:$0xff]
    %v676 = vld [vmem:[#allocation2 + $0x288] sm:$0xff]
    %v677 = vld [vmem:[#allocation2 + $0x290] sm:$0xff]
    %v678 = vld [vmem:[#allocation2 + $0x298] sm:$0xff]
    %v679 = vld [vmem:[#allocation2 + $0x2a0] sm:$0xff]
    %v680 = vld [vmem:[#allocation2 + $0x2a8] sm:$0xff]
    %v681 = vld [vmem:[#allocation2 + $0x2b0] sm:$0xff]
    %v682 = vld [vmem:[#allocation2 + $0x2b8] sm:$0xff]
    %v683 = vld [vmem:[#allocation2 + $0x2c0] sm:$0xff]
    %v684 = vld [vmem:[#allocation2 + $0x2c8] sm:$0xff]
    %v685 = vld [vmem:[#allocation2 + $0x2d0] sm:$0xff]
    %v686 = vld [vmem:[#allocation2 + $0x2d8] sm:$0xff]
    %v687 = vld [vmem:[#allocation2 + $0x2e0] sm:$0xff]
    %v688 = vld [vmem:[#allocation2 + $0x2e8] sm:$0xff]
    %v689 = vld [vmem:[#allocation2 + $0x2f0] sm:$0xff]
    %v690 = vld [vmem:[#allocation2 + $0x2f8] sm:$0xff]
    %v691 = vld [vmem:[#allocation2 + $0x300] sm:$0xff]
    %v692 = vld [vmem:[#allocation2 + $0x308] sm:$0xff]
    %v693 = vld [vmem:[#allocation2 + $0x310] sm:$0xff]
    %v694 = vld [vmem:[#allocation2 + $0x318] sm:$0xff]
    %v695 = vld [vmem:[#allocation2 + $0x320] sm:$0xff]
    %v696 = vld [vmem:[#allocation2 + $0x328] sm:$0xff]
    %v697 = vld [vmem:[#allocation2 + $0x330] sm:$0xff]
    %v698 = vld [vmem:[#allocation2 + $0x338] sm:$0xff]
    %v699 = vld [vmem:[#allocation2 + $0x340] sm:$0xff]
    %v700 = vld [vmem:[#allocation2 + $0x348] sm:$0xff]
    %v701 = vld [vmem:[#allocation2 + $0x350] sm:$0xff]
    %v702 = vld [vmem:[#allocation2 + $0x358] sm:$0xff]
    %v703 = vld [vmem:[#allocation2 + $0x360] sm:$0xff]
    %v704 = vld [vmem:[#allocation2 + $0x368] sm:$0xff]
    %v705 = vld [vmem:[#allocation2 + $0x370] sm:$0xff]
    %v706 = vld [vmem:[#allocation2 + $0x378] sm:$0xff]
    %v707 = vld [vmem:[#allocation2 + $0x380] sm:$0xff]
    %v708 = vld [vmem:[#allocation2 + $0x388] sm:$0xff]
    %v709 = vld [vmem:[#allocation2 + $0x390] sm:$0xff]
    %v710 = vld [vmem:[#allocation2 + $0x398] sm:$0xff]
    %v711 = vld [vmem:[#allocation2 + $0x3a0] sm:$0xff]
    %v712 = vld [vmem:[#allocation2 + $0x3a8] sm:$0xff]
    %v713 = vld [vmem:[#allocation2 + $0x3b0] sm:$0xff]
    %v714 = vld [vmem:[#allocation2 + $0x3b8] sm:$0xff]
    %v715 = vld [vmem:[#allocation2 + $0x3c0] sm:$0xff]
    %v716 = vld [vmem:[#allocation2 + $0x3c8] sm:$0xff]
    %v717 = vld [vmem:[#allocation2 + $0x3d0] sm:$0xff]
    %v718 = vld [vmem:[#allocation2 + $0x3d8] sm:$0xff]
    %v719 = vld [vmem:[#allocation2 + $0x3e0] sm:$0xff]
    %v720 = vld [vmem:[#allocation2 + $0x3e8] sm:$0xff]
    %v721 = vld [vmem:[#allocation2 + $0x3f0] sm:$0xff]
    %v722 = vld [vmem:[#allocation2 + $0x3f8] sm:$0xff]
    %v723 = vld [vmem:[%s1] sm:$0xf]
    %v725 = vlaneseq
    %v726 = vshrl.u32 %v725, 7
    %v727 = vsub.s32 0, %v726
    %v728 = vrot.slane %v723, %v727
    %v729 = vlaneseq
    %v730 = vshrl.u32 %v729, 7
    %v731 = vsub.s32 1, %v730
    %v732 = vrot.slane %v723, %v731
    %v733 = vlaneseq
    %v734 = vshrl.u32 %v733, 7
    %v735 = vsub.s32 2, %v734
    %v736 = vrot.slane %v723, %v735
    %v737 = vlaneseq
    %v738 = vshrl.u32 %v737, 7
    %v739 = vsub.s32 3, %v738
    %v740 = vrot.slane %v723, %v739
    %745 = vmatprep.subr.mxu0 %v656
    %746 = vmatpush1.msra.mxu0 %v655
    %747 = vmatprep.subr.mxu0 %v652
    %748 = vmatpush1.msra.mxu0 %v651
    %749 = vmatprep.subr.mxu0 %v648
    %750 = vmatpush1.msra.mxu0 %v647
    %751 = vmatprep.subr.mxu0 %v644
    %752 = vmatpush1.msra.mxu0 %v643
    %753 = vmatprep.subr.mxu0 %v640
    %754 = vmatpush1.msra.mxu0 %v639
    %755 = vmatprep.subr.mxu0 %v636
    %756 = vmatpush1.msra.mxu0 %v635
    %757 = vmatprep.subr.mxu0 %v632
    %758 = vmatpush1.msra.mxu0 %v631
    %759 = vmatprep.subr.mxu0 %v628
    %760 = vmatpush1.msra.mxu0 %v627
    %761 = vmatprep.subr.mxu0 %v624
    %762 = vmatpush1.msra.mxu0 %v623
    %763 = vmatprep.subr.mxu0 %v620
    %764 = vmatpush1.msra.mxu0 %v619
    %765 = vmatprep.subr.mxu0 %v616
    %766 = vmatpush1.msra.mxu0 %v615
    %767 = vmatprep.subr.mxu0 %v612
    %768 = vmatpush1.msra.mxu0 %v611
    %769 = vmatprep.subr.mxu0 %v608
    %770 = vmatpush1.msra.mxu0 %v607
    %771 = vmatprep.subr.mxu0 %v604
    %772 = vmatpush1.msra.mxu0 %v603
    %773 = vmatprep.subr.mxu0 %v600
    %774 = vmatpush1.msra.mxu0 %v599
    %775 = vmatprep.subr.mxu0 %v596
    %776 = vmatpush1.msra.mxu0 %v595
    %777 = vmatprep.subr.mxu0 %v720
    %778 = vmatpush2.msra.mxu0 %v719
    %779 = vmatprep.subr.mxu0 %v716
    %780 = vmatpush2.msra.mxu0 %v715
    %781 = vmatprep.subr.mxu0 %v712
    %782 = vmatpush2.msra.mxu0 %v711
    %783 = vmatprep.subr.mxu0 %v708
    %784 = vmatpush2.msra.mxu0 %v707
    %785 = vmatprep.subr.mxu0 %v704
    %786 = vmatpush2.msra.mxu0 %v703
    %787 = vmatprep.subr.mxu0 %v700
    %788 = vmatpush2.msra.mxu0 %v699
    %789 = vmatprep.subr.mxu0 %v696
    %790 = vmatpush2.msra.mxu0 %v695
    %791 = vmatprep.subr.mxu0 %v692
    %792 = vmatpush2.msra.mxu0 %v691
    %793 = vmatprep.subr.mxu0 %v688
    %794 = vmatpush2.msra.mxu0 %v687
    %795 = vmatprep.subr.mxu0 %v684
    %796 = vmatpush2.msra.mxu0 %v683
    %797 = vmatprep.subr.mxu0 %v680
    %798 = vmatpush2.msra.mxu0 %v679
    %799 = vmatprep.subr.mxu0 %v676
    %800 = vmatpush2.msra.mxu0 %v675
    %801 = vmatprep.subr.mxu0 %v672
    %802 = vmatpush2.msra.mxu0 %v671
    %803 = vmatprep.subr.mxu0 %v668
    %804 = vmatpush2.msra.mxu0 %v667
    %805 = vmatprep.subr.mxu0 %v664
    %806 = vmatpush2.msra.mxu0 %v663
    %807 = vmatprep.subr.mxu0 %v660
    %808 = vmatpush2.msra.mxu0 %v659
    %809 = vmatprep.mubr.f32.mxu0 %v594
    %810 = vmatmul.mubr.f32.gmra.mxu0 %v593
    %v811 = vpop.f32.mrf.mxu0
    %v812 = vadd.f32 %v728, %v811
    %v813 = vpop.f32.mrf.mxu0
    %v814 = vadd.f32 %v732, %v813
    %815 = vdwg.mxu0
    %816 = vmatprep.subr.mxu0 %v658
    %817 = vmatpush1.msra.mxu0 %v657
    %818 = vmatprep.subr.mxu0 %v654
    %819 = vmatpush1.msra.mxu0 %v653
    %820 = vmatprep.subr.mxu0 %v650
    %821 = vmatpush1.msra.mxu0 %v649
    %822 = vmatprep.subr.mxu0 %v646
    %823 = vmatpush1.msra.mxu0 %v645
    %824 = vmatprep.subr.mxu0 %v642
    %825 = vmatpush1.msra.mxu0 %v641
    %826 = vmatprep.subr.mxu0 %v638
    %827 = vmatpush1.msra.mxu0 %v637
    %828 = vmatprep.subr.mxu0 %v634
    %829 = vmatpush1.msra.mxu0 %v633
    %830 = vmatprep.subr.mxu0 %v630
    %831 = vmatpush1.msra.mxu0 %v629
    %832 = vmatprep.subr.mxu0 %v626
    %833 = vmatpush1.msra.mxu0 %v625
    %834 = vmatprep.subr.mxu0 %v622
    %835 = vmatpush1.msra.mxu0 %v621
    %836 = vmatprep.subr.mxu0 %v618
    %837 = vmatpush1.msra.mxu0 %v617
    %838 = vmatprep.subr.mxu0 %v614
    %839 = vmatpush1.msra.mxu0 %v613
    %840 = vmatprep.subr.mxu0 %v610
    %841 = vmatpush1.msra.mxu0 %v609
    %842 = vmatprep.subr.mxu0 %v606
    %843 = vmatpush1.msra.mxu0 %v605
    %844 = vmatprep.subr.mxu0 %v602
    %845 = vmatpush1.msra.mxu0 %v601
    %846 = vmatprep.subr.mxu0 %v598
    %847 = vmatpush1.msra.mxu0 %v597
    %848 = vmatprep.subr.mxu0 %v722
    %849 = vmatpush2.msra.mxu0 %v721
    %850 = vmatprep.subr.mxu0 %v718
    %851 = vmatpush2.msra.mxu0 %v717
    %852 = vmatprep.subr.mxu0 %v714
    %853 = vmatpush2.msra.mxu0 %v713
    %854 = vmatprep.subr.mxu0 %v710
    %855 = vmatpush2.msra.mxu0 %v709
    %856 = vmatprep.subr.mxu0 %v706
    %857 = vmatpush2.msra.mxu0 %v705
    %858 = vmatprep.subr.mxu0 %v702
    %859 = vmatpush2.msra.mxu0 %v701
    %860 = vmatprep.subr.mxu0 %v698
    %861 = vmatpush2.msra.mxu0 %v697
    %862 = vmatprep.subr.mxu0 %v694
    %863 = vmatpush2.msra.mxu0 %v693
    %864 = vmatprep.subr.mxu0 %v690
    %865 = vmatpush2.msra.mxu0 %v689
    %866 = vmatprep.subr.mxu0 %v686
    %867 = vmatpush2.msra.mxu0 %v685
    %868 = vmatprep.subr.mxu0 %v682
    %869 = vmatpush2.msra.mxu0 %v681
    %870 = vmatprep.subr.mxu0 %v678
    %871 = vmatpush2.msra.mxu0 %v677
    %872 = vmatprep.subr.mxu0 %v674
    %873 = vmatpush2.msra.mxu0 %v673
    %874 = vmatprep.subr.mxu0 %v670
    %875 = vmatpush2.msra.mxu0 %v669
    %876 = vmatprep.subr.mxu0 %v666
    %877 = vmatpush2.msra.mxu0 %v665
    %878 = vmatprep.subr.mxu0 %v662
    %879 = vmatpush2.msra.mxu0 %v661
    %880 = vmatprep.mubr.f32.mxu0 %v594
    %881 = vmatmul.mubr.f32.gmra.mxu0 %v593
    %v882 = vpop.f32.mrf.mxu0
    %v883 = vadd.f32 %v736, %v882
    %v884 = vpop.f32.mrf.mxu0
    %v885 = vadd.f32 %v740, %v884
    %886 = vdwg.mxu0
    %v887 = vld [vmem:[%s2] sm:$0xf]
    %s888 = scalar_select %p592, 1, 0
    %v889 = vstv %s888
    %vm890 = vcmp.eq.s32.totalorder %v889, 1
    %v891 = vsel %vm890, %v887, 0.0
    %v893 = vlaneseq
    %v894 = vshrl.u32 %v893, 7
    %v895 = vsub.s32 0, %v894
    %v896 = vrot.slane %v891, %v895
    %v897 = vlaneseq
    %v898 = vshrl.u32 %v897, 7
    %v899 = vsub.s32 1, %v898
    %v900 = vrot.slane %v891, %v899
    %v901 = vlaneseq
    %v902 = vshrl.u32 %v901, 7
    %v903 = vsub.s32 2, %v902
    %v904 = vrot.slane %v891, %v903
    %v905 = vlaneseq
    %v906 = vshrl.u32 %v905, 7
    %v907 = vsub.s32 3, %v906
    %v908 = vrot.slane %v891, %v907
    %v913 = vadd.f32 %v812, %v896
    %v914 = vadd.f32 %v814, %v900
    %v915 = vadd.f32 %v883, %v904
    %v916 = vadd.f32 %v885, %v908
    %v917 = vxor.u32 %v913, 2147483648
    %v918 = vmul.f32 %v917, 1.442695
    %v919 = vpow.pop %v918
    %v920 = vadd.f32 %v919, 1.0
    %v921 = vrcp.pop %v920
    %v922 = vmul.f32 1.0, %v921
    %v923 = vxor.u32 %v914, 2147483648
    %v924 = vmul.f32 %v923, 1.442695
    %v925 = vpow.pop %v924
    %v926 = vadd.f32 %v925, 1.0
    %v927 = vrcp.pop %v926
    %v928 = vmul.f32 1.0, %v927
    %v929 = vtanh.pop %v915
    %v930 = vxor.u32 %v916, 2147483648
    %v931 = vmul.f32 %v930, 1.442695
    %v932 = vpow.pop %v931
    %v933 = vadd.f32 %v932, 1.0
    %v934 = vrcp.pop %v933
    %v935 = vmul.f32 1.0, %v934
    %v936 = vld [vmem:[#allocation4] sm:$0xff]
    %v937 = vmul.f32 %v928, %v936
    %v938 = vmul.f32 %v922, %v929
    %v939 = vadd.f32 %v937, %v938
    %940 = vst [vmem:[#allocation4] sm:$0xff] %v939
    %v941 = vtanh.pop %v939
    %v942 = vmul.f32 %v935, %v941
    %943 = vst [vmem:[#allocation3 + $0x8] sm:$0xff] %v942
    %s944 = scalar_lea.vmem [#allocation3], 16
    %945 = vst [vmem:[%s944] sm:$0xff] %v942
    %v946 = vld [vmem:[%s944] sm:$0xff]
    %v947 = vld [vmem:[%s944 + $0x8] sm:$0xff]
    %s948 = scalar_lea.vmem [#allocation2], 1024
    %v949 = vld [vmem:[%s948] sm:$0xff]
    %v950 = vld [vmem:[%s948 + $0x8] sm:$0xff]
    %v951 = vld [vmem:[%s948 + $0x10] sm:$0xff]
    %v952 = vld [vmem:[%s948 + $0x18] sm:$0xff]
    %v953 = vld [vmem:[%s948 + $0x20] sm:$0xff]
    %v954 = vld [vmem:[%s948 + $0x28] sm:$0xff]
    %v955 = vld [vmem:[%s948 + $0x30] sm:$0xff]
    %v956 = vld [vmem:[%s948 + $0x38] sm:$0xff]
    %v957 = vld [vmem:[%s948 + $0x40] sm:$0xff]
    %v958 = vld [vmem:[%s948 + $0x48] sm:$0xff]
    %v959 = vld [vmem:[%s948 + $0x50] sm:$0xff]
    %v960 = vld [vmem:[%s948 + $0x58] sm:$0xff]
    %v961 = vld [vmem:[%s948 + $0x60] sm:$0xff]
    %v962 = vld [vmem:[%s948 + $0x68] sm:$0xff]
    %v963 = vld [vmem:[%s948 + $0x70] sm:$0xff]
    %v964 = vld [vmem:[%s948 + $0x78] sm:$0xff]
    %v965 = vld [vmem:[%s948 + $0x80] sm:$0xff]
    %v966 = vld [vmem:[%s948 + $0x88] sm:$0xff]
    %v967 = vld [vmem:[%s948 + $0x90] sm:$0xff]
    %v968 = vld [vmem:[%s948 + $0x98] sm:$0xff]
    %v969 = vld [vmem:[%s948 + $0xa0] sm:$0xff]
    %v970 = vld [vmem:[%s948 + $0xa8] sm:$0xff]
    %v971 = vld [vmem:[%s948 + $0xb0] sm:$0xff]
    %v972 = vld [vmem:[%s948 + $0xb8] sm:$0xff]
    %v973 = vld [vmem:[%s948 + $0xc0] sm:$0xff]
    %v974 = vld [vmem:[%s948 + $0xc8] sm:$0xff]
    %v975 = vld [vmem:[%s948 + $0xd0] sm:$0xff]
    %v976 = vld [vmem:[%s948 + $0xd8] sm:$0xff]
    %v977 = vld [vmem:[%s948 + $0xe0] sm:$0xff]
    %v978 = vld [vmem:[%s948 + $0xe8] sm:$0xff]
    %v979 = vld [vmem:[%s948 + $0xf0] sm:$0xff]
    %v980 = vld [vmem:[%s948 + $0xf8] sm:$0xff]
    %v981 = vld [vmem:[%s948 + $0x100] sm:$0xff]
    %v982 = vld [vmem:[%s948 + $0x108] sm:$0xff]
    %v983 = vld [vmem:[%s948 + $0x110] sm:$0xff]
    %v984 = vld [vmem:[%s948 + $0x118] sm:$0xff]
    %v985 = vld [vmem:[%s948 + $0x120] sm:$0xff]
    %v986 = vld [vmem:[%s948 + $0x128] sm:$0xff]
    %v987 = vld [vmem:[%s948 + $0x130] sm:$0xff]
    %v988 = vld [vmem:[%s948 + $0x138] sm:$0xff]
    %v989 = vld [vmem:[%s948 + $0x140] sm:$0xff]
    %v990 = vld [vmem:[%s948 + $0x148] sm:$0xff]
    %v991 = vld [vmem:[%s948 + $0x150] sm:$0xff]
    %v992 = vld [vmem:[%s948 + $0x158] sm:$0xff]
    %v993 = vld [vmem:[%s948 + $0x160] sm:$0xff]
    %v994 = vld [vmem:[%s948 + $0x168] sm:$0xff]
    %v995 = vld [vmem:[%s948 + $0x170] sm:$0xff]
    %v996 = vld [vmem:[%s948 + $0x178] sm:$0xff]
    %v997 = vld [vmem:[%s948 + $0x180] sm:$0xff]
    %v998 = vld [vmem:[%s948 + $0x188] sm:$0xff]
    %v999 = vld [vmem:[%s948 + $0x190] sm:$0xff]
    %v1000 = vld [vmem:[%s948 + $0x198] sm:$0xff]
    %v1001 = vld [vmem:[%s948 + $0x1a0] sm:$0xff]
    %v1002 = vld [vmem:[%s948 + $0x1a8] sm:$0xff]
    %v1003 = vld [vmem:[%s948 + $0x1b0] sm:$0xff]
    %v1004 = vld [vmem:[%s948 + $0x1b8] sm:$0xff]
    %v1005 = vld [vmem:[%s948 + $0x1c0] sm:$0xff]
    %v1006 = vld [vmem:[%s948 + $0x1c8] sm:$0xff]
    %v1007 = vld [vmem:[%s948 + $0x1d0] sm:$0xff]
    %v1008 = vld [vmem:[%s948 + $0x1d8] sm:$0xff]
    %v1009 = vld [vmem:[%s948 + $0x1e0] sm:$0xff]
    %v1010 = vld [vmem:[%s948 + $0x1e8] sm:$0xff]
    %v1011 = vld [vmem:[%s948 + $0x1f0] sm:$0xff]
    %v1012 = vld [vmem:[%s948 + $0x1f8] sm:$0xff]
    %v1013 = vld [vmem:[%s948 + $0x200] sm:$0xff]
    %v1014 = vld [vmem:[%s948 + $0x208] sm:$0xff]
    %v1015 = vld [vmem:[%s948 + $0x210] sm:$0xff]
    %v1016 = vld [vmem:[%s948 + $0x218] sm:$0xff]
    %v1017 = vld [vmem:[%s948 + $0x220] sm:$0xff]
    %v1018 = vld [vmem:[%s948 + $0x228] sm:$0xff]
    %v1019 = vld [vmem:[%s948 + $0x230] sm:$0xff]
    %v1020 = vld [vmem:[%s948 + $0x238] sm:$0xff]
    %v1021 = vld [vmem:[%s948 + $0x240] sm:$0xff]
    %v1022 = vld [vmem:[%s948 + $0x248] sm:$0xff]
    %v1023 = vld [vmem:[%s948 + $0x250] sm:$0xff]
    %v1024 = vld [vmem:[%s948 + $0x258] sm:$0xff]
    %v1025 = vld [vmem:[%s948 + $0x260] sm:$0xff]
    %v1026 = vld [vmem:[%s948 + $0x268] sm:$0xff]
    %v1027 = vld [vmem:[%s948 + $0x270] sm:$0xff]
    %v1028 = vld [vmem:[%s948 + $0x278] sm:$0xff]
    %v1029 = vld [vmem:[%s948 + $0x280] sm:$0xff]
    %v1030 = vld [vmem:[%s948 + $0x288] sm:$0xff]
    %v1031 = vld [vmem:[%s948 + $0x290] sm:$0xff]
    %v1032 = vld [vmem:[%s948 + $0x298] sm:$0xff]
    %v1033 = vld [vmem:[%s948 + $0x2a0] sm:$0xff]
    %v1034 = vld [vmem:[%s948 + $0x2a8] sm:$0xff]
    %v1035 = vld [vmem:[%s948 + $0x2b0] sm:$0xff]
    %v1036 = vld [vmem:[%s948 + $0x2b8] sm:$0xff]
    %v1037 = vld [vmem:[%s948 + $0x2c0] sm:$0xff]
    %v1038 = vld [vmem:[%s948 + $0x2c8] sm:$0xff]
    %v1039 = vld [vmem:[%s948 + $0x2d0] sm:$0xff]
    %v1040 = vld [vmem:[%s948 + $0x2d8] sm:$0xff]
    %v1041 = vld [vmem:[%s948 + $0x2e0] sm:$0xff]
    %v1042 = vld [vmem:[%s948 + $0x2e8] sm:$0xff]
    %v1043 = vld [vmem:[%s948 + $0x2f0] sm:$0xff]
    %v1044 = vld [vmem:[%s948 + $0x2f8] sm:$0xff]
    %v1045 = vld [vmem:[%s948 + $0x300] sm:$0xff]
    %v1046 = vld [vmem:[%s948 + $0x308] sm:$0xff]
    %v1047 = vld [vmem:[%s948 + $0x310] sm:$0xff]
    %v1048 = vld [vmem:[%s948 + $0x318] sm:$0xff]
    %v1049 = vld [vmem:[%s948 + $0x320] sm:$0xff]
    %v1050 = vld [vmem:[%s948 + $0x328] sm:$0xff]
    %v1051 = vld [vmem:[%s948 + $0x330] sm:$0xff]
    %v1052 = vld [vmem:[%s948 + $0x338] sm:$0xff]
    %v1053 = vld [vmem:[%s948 + $0x340] sm:$0xff]
    %v1054 = vld [vmem:[%s948 + $0x348] sm:$0xff]
    %v1055 = vld [vmem:[%s948 + $0x350] sm:$0xff]
    %v1056 = vld [vmem:[%s948 + $0x358] sm:$0xff]
    %v1057 = vld [vmem:[%s948 + $0x360] sm:$0xff]
    %v1058 = vld [vmem:[%s948 + $0x368] sm:$0xff]
    %v1059 = vld [vmem:[%s948 + $0x370] sm:$0xff]
    %v1060 = vld [vmem:[%s948 + $0x378] sm:$0xff]
    %v1061 = vld [vmem:[%s948 + $0x380] sm:$0xff]
    %v1062 = vld [vmem:[%s948 + $0x388] sm:$0xff]
    %v1063 = vld [vmem:[%s948 + $0x390] sm:$0xff]
    %v1064 = vld [vmem:[%s948 + $0x398] sm:$0xff]
    %v1065 = vld [vmem:[%s948 + $0x3a0] sm:$0xff]
    %v1066 = vld [vmem:[%s948 + $0x3a8] sm:$0xff]
    %v1067 = vld [vmem:[%s948 + $0x3b0] sm:$0xff]
    %v1068 = vld [vmem:[%s948 + $0x3b8] sm:$0xff]
    %v1069 = vld [vmem:[%s948 + $0x3c0] sm:$0xff]
    %v1070 = vld [vmem:[%s948 + $0x3c8] sm:$0xff]
    %v1071 = vld [vmem:[%s948 + $0x3d0] sm:$0xff]
    %v1072 = vld [vmem:[%s948 + $0x3d8] sm:$0xff]
    %v1073 = vld [vmem:[%s948 + $0x3e0] sm:$0xff]
    %v1074 = vld [vmem:[%s948 + $0x3e8] sm:$0xff]
    %v1075 = vld [vmem:[%s948 + $0x3f0] sm:$0xff]
    %v1076 = vld [vmem:[%s948 + $0x3f8] sm:$0xff]
    %s1077 = scalar_lea.vmem %s1, 4
    %v1078 = vld [vmem:[%s1077] sm:$0xf]
    %v1080 = vlaneseq
    %v1081 = vshrl.u32 %v1080, 7
    %v1082 = vsub.s32 0, %v1081
    %v1083 = vrot.slane %v1078, %v1082
    %v1084 = vlaneseq
    %v1085 = vshrl.u32 %v1084, 7
    %v1086 = vsub.s32 1, %v1085
    %v1087 = vrot.slane %v1078, %v1086
    %v1088 = vlaneseq
    %v1089 = vshrl.u32 %v1088, 7
    %v1090 = vsub.s32 2, %v1089
    %v1091 = vrot.slane %v1078, %v1090
    %v1092 = vlaneseq
    %v1093 = vshrl.u32 %v1092, 7
    %v1094 = vsub.s32 3, %v1093
    %v1095 = vrot.slane %v1078, %v1094
    %1100 = vmatprep.subr.mxu0 %v1010
    %1101 = vmatpush1.msra.mxu0 %v1009
    %1102 = vmatprep.subr.mxu0 %v1006
    %1103 = vmatpush1.msra.mxu0 %v1005
    %1104 = vmatprep.subr.mxu0 %v1002
    %1105 = vmatpush1.msra.mxu0 %v1001
    %1106 = vmatprep.subr.mxu0 %v998
    %1107 = vmatpush1.msra.mxu0 %v997
    %1108 = vmatprep.subr.mxu0 %v994
    %1109 = vmatpush1.msra.mxu0 %v993
    %1110 = vmatprep.subr.mxu0 %v990
    %1111 = vmatpush1.msra.mxu0 %v989
    %1112 = vmatprep.subr.mxu0 %v986
    %1113 = vmatpush1.msra.mxu0 %v985
    %1114 = vmatprep.subr.mxu0 %v982
    %1115 = vmatpush1.msra.mxu0 %v981
    %1116 = vmatprep.subr.mxu0 %v978
    %1117 = vmatpush1.msra.mxu0 %v977
    %1118 = vmatprep.subr.mxu0 %v974
    %1119 = vmatpush1.msra.mxu0 %v973
    %1120 = vmatprep.subr.mxu0 %v970
    %1121 = vmatpush1.msra.mxu0 %v969
    %1122 = vmatprep.subr.mxu0 %v966
    %1123 = vmatpush1.msra.mxu0 %v965
    %1124 = vmatprep.subr.mxu0 %v962
    %1125 = vmatpush1.msra.mxu0 %v961
    %1126 = vmatprep.subr.mxu0 %v958
    %1127 = vmatpush1.msra.mxu0 %v957
    %1128 = vmatprep.subr.mxu0 %v954
    %1129 = vmatpush1.msra.mxu0 %v953
    %1130 = vmatprep.subr.mxu0 %v950
    %1131 = vmatpush1.msra.mxu0 %v949
    %1132 = vmatprep.subr.mxu0 %v1074
    %1133 = vmatpush2.msra.mxu0 %v1073
    %1134 = vmatprep.subr.mxu0 %v1070
    %1135 = vmatpush2.msra.mxu0 %v1069
    %1136 = vmatprep.subr.mxu0 %v1066
    %1137 = vmatpush2.msra.mxu0 %v1065
    %1138 = vmatprep.subr.mxu0 %v1062
    %1139 = vmatpush2.msra.mxu0 %v1061
    %1140 = vmatprep.subr.mxu0 %v1058
    %1141 = vmatpush2.msra.mxu0 %v1057
    %1142 = vmatprep.subr.mxu0 %v1054
    %1143 = vmatpush2.msra.mxu0 %v1053
    %1144 = vmatprep.subr.mxu0 %v1050
    %1145 = vmatpush2.msra.mxu0 %v1049
    %1146 = vmatprep.subr.mxu0 %v1046
    %1147 = vmatpush2.msra.mxu0 %v1045
    %1148 = vmatprep.subr.mxu0 %v1042
    %1149 = vmatpush2.msra.mxu0 %v1041
    %1150 = vmatprep.subr.mxu0 %v1038
    %1151 = vmatpush2.msra.mxu0 %v1037
    %1152 = vmatprep.subr.mxu0 %v1034
    %1153 = vmatpush2.msra.mxu0 %v1033
    %1154 = vmatprep.subr.mxu0 %v1030
    %1155 = vmatpush2.msra.mxu0 %v1029
    %1156 = vmatprep.subr.mxu0 %v1026
    %1157 = vmatpush2.msra.mxu0 %v1025
    %1158 = vmatprep.subr.mxu0 %v1022
    %1159 = vmatpush2.msra.mxu0 %v1021
    %1160 = vmatprep.subr.mxu0 %v1018
    %1161 = vmatpush2.msra.mxu0 %v1017
    %1162 = vmatprep.subr.mxu0 %v1014
    %1163 = vmatpush2.msra.mxu0 %v1013
    %1164 = vmatprep.mubr.f32.mxu0 %v947
    %1165 = vmatmul.mubr.f32.gmra.mxu0 %v946
    %v1166 = vpop.f32.mrf.mxu0
    %v1167 = vadd.f32 %v1083, %v1166
    %v1168 = vpop.f32.mrf.mxu0
    %v1169 = vadd.f32 %v1087, %v1168
    %1170 = vdwg.mxu0
    %1171 = vmatprep.subr.mxu0 %v1012
    %1172 = vmatpush1.msra.mxu0 %v1011
    %1173 = vmatprep.subr.mxu0 %v1008
    %1174 = vmatpush1.msra.mxu0 %v1007
    %1175 = vmatprep.subr.mxu0 %v1004
    %1176 = vmatpush1.msra.mxu0 %v1003
    %1177 = vmatprep.subr.mxu0 %v1000
    %1178 = vmatpush1.msra.mxu0 %v999
    %1179 = vmatprep.subr.mxu0 %v996
    %1180 = vmatpush1.msra.mxu0 %v995
    %1181 = vmatprep.subr.mxu0 %v992
    %1182 = vmatpush1.msra.mxu0 %v991
    %1183 = vmatprep.subr.mxu0 %v988
    %1184 = vmatpush1.msra.mxu0 %v987
    %1185 = vmatprep.subr.mxu0 %v984
    %1186 = vmatpush1.msra.mxu0 %v983
    %1187 = vmatprep.subr.mxu0 %v980
    %1188 = vmatpush1.msra.mxu0 %v979
    %1189 = vmatprep.subr.mxu0 %v976
    %1190 = vmatpush1.msra.mxu0 %v975
    %1191 = vmatprep.subr.mxu0 %v972
    %1192 = vmatpush1.msra.mxu0 %v971
    %1193 = vmatprep.subr.mxu0 %v968
    %1194 = vmatpush1.msra.mxu0 %v967
    %1195 = vmatprep.subr.mxu0 %v964
    %1196 = vmatpush1.msra.mxu0 %v963
    %1197 = vmatprep.subr.mxu0 %v960
    %1198 = vmatpush1.msra.mxu0 %v959
    %1199 = vmatprep.subr.mxu0 %v956
    %1200 = vmatpush1.msra.mxu0 %v955
    %1201 = vmatprep.subr.mxu0 %v952
    %1202 = vmatpush1.msra.mxu0 %v951
    %1203 = vmatprep.subr.mxu0 %v1076
    %1204 = vmatpush2.msra.mxu0 %v1075
    %1205 = vmatprep.subr.mxu0 %v1072
    %1206 = vmatpush2.msra.mxu0 %v1071
    %1207 = vmatprep.subr.mxu0 %v1068
    %1208 = vmatpush2.msra.mxu0 %v1067
    %1209 = vmatprep.subr.mxu0 %v1064
    %1210 = vmatpush2.msra.mxu0 %v1063
    %1211 = vmatprep.subr.mxu0 %v1060
    %1212 = vmatpush2.msra.mxu0 %v1059
    %1213 = vmatprep.subr.mxu0 %v1056
    %1214 = vmatpush2.msra.mxu0 %v1055
    %1215 = vmatprep.subr.mxu0 %v1052
    %1216 = vmatpush2.msra.mxu0 %v1051
    %1217 = vmatprep.subr.mxu0 %v1048
    %1218 = vmatpush2.msra.mxu0 %v1047
    %1219 = vmatprep.subr.mxu0 %v1044
    %1220 = vmatpush2.msra.mxu0 %v1043
    %1221 = vmatprep.subr.mxu0 %v1040
    %1222 = vmatpush2.msra.mxu0 %v1039
    %1223 = vmatprep.subr.mxu0 %v1036
    %1224 = vmatpush2.msra.mxu0 %v1035
    %1225 = vmatprep.subr.mxu0 %v1032
    %1226 = vmatpush2.msra.mxu0 %v1031
    %1227 = vmatprep.subr.mxu0 %v1028
    %1228 = vmatpush2.msra.mxu0 %v1027
    %1229 = vmatprep.subr.mxu0 %v1024
    %1230 = vmatpush2.msra.mxu0 %v1023
    %1231 = vmatprep.subr.mxu0 %v1020
    %1232 = vmatpush2.msra.mxu0 %v1019
    %1233 = vmatprep.subr.mxu0 %v1016
    %1234 = vmatpush2.msra.mxu0 %v1015
    %1235 = vmatprep.mubr.f32.mxu0 %v947
    %1236 = vmatmul.mubr.f32.gmra.mxu0 %v946
    %v1237 = vpop.f32.mrf.mxu0
    %v1238 = vadd.f32 %v1091, %v1237
    %v1239 = vpop.f32.mrf.mxu0
    %v1240 = vadd.f32 %v1095, %v1239
    %1241 = vdwg.mxu0
    %v1242 = vxor.u32 %v1167, 2147483648
    %v1243 = vmul.f32 %v1242, 1.442695
    %v1244 = vpow.pop %v1243
    %v1245 = vadd.f32 %v1244, 1.0
    %v1246 = vrcp.pop %v1245
    %v1247 = vmul.f32 1.0, %v1246
    %v1248 = vxor.u32 %v1169, 2147483648
    %v1249 = vmul.f32 %v1248, 1.442695
    %v1250 = vpow.pop %v1249
    %v1251 = vadd.f32 %v1250, 1.0
    %v1252 = vrcp.pop %v1251
    %v1253 = vmul.f32 1.0, %v1252
    %v1254 = vtanh.pop %v1238
    %v1255 = vxor.u32 %v1240, 2147483648
    %v1256 = vmul.f32 %v1255, 1.442695
    %v1257 = vpow.pop %v1256
    %v1258 = vadd.f32 %v1257, 1.0
    %v1259 = vrcp.pop %v1258
    %v1260 = vmul.f32 1.0, %v1259
    %s1261 = scalar_lea.vmem [#allocation4], 8
    %v1262 = vld [vmem:[%s1261] sm:$0xff]
    %v1263 = vmul.f32 %v1253, %v1262
    %v1264 = vmul.f32 %v1247, %v1254
    %v1265 = vadd.f32 %v1263, %v1264
    %1266 = vst [vmem:[%s1261] sm:$0xff] %v1265
    %v1267 = vtanh.pop %v1265
    %v1268 = vmul.f32 %v1260, %v1267
    %1269 = vst [vmem:[%s944 + $0x8] sm:$0xff] %v1268
    %1270 = vst [vmem:[#allocation3] sm:$0xff] %v1268
    %1271 = vst [vmem:[#allocation5] sm:$0xff] %v1268
    %s1272 = sadd.s32 %s591, 1
    %p1273 = scmp.gt.s32.totalorder %s1272, 0
    %v1274 = vld [vmem:[#allocation3] sm:$0xff]
    %v1275 = vld [vmem:[#allocation3 + $0x8] sm:$0xff]
    %v1276 = vld [vmem:[#allocation2] sm:$0xff]
    %v1277 = vld [vmem:[#allocation2 + $0x8] sm:$0xff]
    %v1278 = vld [vmem:[#allocation2 + $0x10] sm:$0xff]
    %v1279 = vld [vmem:[#allocation2 + $0x18] sm:$0xff]
    %v1280 = vld [vmem:[#allocation2 + $0x20] sm:$0xff]
    %v1281 = vld [vmem:[#allocation2 + $0x28] sm:$0xff]
    %v1282 = vld [vmem:[#allocation2 + $0x30] sm:$0xff]
    %v1283 = vld [vmem:[#allocation2 + $0x38] sm:$0xff]
    %v1284 = vld [vmem:[#allocation2 + $0x40] sm:$0xff]
    %v1285 = vld [vmem:[#allocation2 + $0x48] sm:$0xff]
    %v1286 = vld [vmem:[#allocation2 + $0x50] sm:$0xff]
    %v1287 = vld [vmem:[#allocation2 + $0x58] sm:$0xff]
    %v1288 = vld [vmem:[#allocation2 + $0x60] sm:$0xff]
    %v1289 = vld [vmem:[#allocation2 + $0x68] sm:$0xff]
    %v1290 = vld [vmem:[#allocation2 + $0x70] sm:$0xff]
    %v1291 = vld [vmem:[#allocation2 + $0x78] sm:$0xff]
    %v1292 = vld [vmem:[#allocation2 + $0x80] sm:$0xff]
    %v1293 = vld [vmem:[#allocation2 + $0x88] sm:$0xff]
    %v1294 = vld [vmem:[#allocation2 + $0x90] sm:$0xff]
    %v1295 = vld [vmem:[#allocation2 + $0x98] sm:$0xff]
    %v1296 = vld [vmem:[#allocation2 + $0xa0] sm:$0xff]
    %v1297 = vld [vmem:[#allocation2 + $0xa8] sm:$0xff]
    %v1298 = vld [vmem:[#allocation2 + $0xb0] sm:$0xff]
    %v1299 = vld [vmem:[#allocation2 + $0xb8] sm:$0xff]
    %v1300 = vld [vmem:[#allocation2 + $0xc0] sm:$0xff]
    %v1301 = vld [vmem:[#allocation2 + $0xc8] sm:$0xff]
    %v1302 = vld [vmem:[#allocation2 + $0xd0] sm:$0xff]
    %v1303 = vld [vmem:[#allocation2 + $0xd8] sm:$0xff]
    %v1304 = vld [vmem:[#allocation2 + $0xe0] sm:$0xff]
    %v1305 = vld [vmem:[#allocation2 + $0xe8] sm:$0xff]
    %v1306 = vld [vmem:[#allocation2 + $0xf0] sm:$0xff]
    %v1307 = vld [vmem:[#allocation2 + $0xf8] sm:$0xff]
    %v1308 = vld [vmem:[#allocation2 + $0x100] sm:$0xff]
    %v1309 = vld [vmem:[#allocation2 + $0x108] sm:$0xff]
    %v1310 = vld [vmem:[#allocation2 + $0x110] sm:$0xff]
    %v1311 = vld [vmem:[#allocation2 + $0x118] sm:$0xff]
    %v1312 = vld [vmem:[#allocation2 + $0x120] sm:$0xff]
    %v1313 = vld [vmem:[#allocation2 + $0x128] sm:$0xff]
    %v1314 = vld [vmem:[#allocation2 + $0x130] sm:$0xff]
    %v1315 = vld [vmem:[#allocation2 + $0x138] sm:$0xff]
    %v1316 = vld [vmem:[#allocation2 + $0x140] sm:$0xff]
    %v1317 = vld [vmem:[#allocation2 + $0x148] sm:$0xff]
    %v1318 = vld [vmem:[#allocation2 + $0x150] sm:$0xff]
    %v1319 = vld [vmem:[#allocation2 + $0x158] sm:$0xff]
    %v1320 = vld [vmem:[#allocation2 + $0x160] sm:$0xff]
    %v1321 = vld [vmem:[#allocation2 + $0x168] sm:$0xff]
    %v1322 = vld [vmem:[#allocation2 + $0x170] sm:$0xff]
    %v1323 = vld [vmem:[#allocation2 + $0x178] sm:$0xff]
    %v1324 = vld [vmem:[#allocation2 + $0x180] sm:$0xff]
    %v1325 = vld [vmem:[#allocation2 + $0x188] sm:$0xff]
    %v1326 = vld [vmem:[#allocation2 + $0x190] sm:$0xff]
    %v1327 = vld [vmem:[#allocation2 + $0x198] sm:$0xff]
    %v1328 = vld [vmem:[#allocation2 + $0x1a0] sm:$0xff]
    %v1329 = vld [vmem:[#allocation2 + $0x1a8] sm:$0xff]
    %v1330 = vld [vmem:[#allocation2 + $0x1b0] sm:$0xff]
    %v1331 = vld [vmem:[#allocation2 + $0x1b8] sm:$0xff]
    %v1332 = vld [vmem:[#allocation2 + $0x1c0] sm:$0xff]
    %v1333 = vld [vmem:[#allocation2 + $0x1c8] sm:$0xff]
    %v1334 = vld [vmem:[#allocation2 + $0x1d0] sm:$0xff]
    %v1335 = vld [vmem:[#allocation2 + $0x1d8] sm:$0xff]
    %v1336 = vld [vmem:[#allocation2 + $0x1e0] sm:$0xff]
    %v1337 = vld [vmem:[#allocation2 + $0x1e8] sm:$0xff]
    %v1338 = vld [vmem:[#allocation2 + $0x1f0] sm:$0xff]
    %v1339 = vld [vmem:[#allocation2 + $0x1f8] sm:$0xff]
    %v1340 = vld [vmem:[#allocation2 + $0x200] sm:$0xff]
    %v1341 = vld [vmem:[#allocation2 + $0x208] sm:$0xff]
    %v1342 = vld [vmem:[#allocation2 + $0x210] sm:$0xff]
    %v1343 = vld [vmem:[#allocation2 + $0x218] sm:$0xff]
    %v1344 = vld [vmem:[#allocation2 + $0x220] sm:$0xff]
    %v1345 = vld [vmem:[#allocation2 + $0x228] sm:$0xff]
    %v1346 = vld [vmem:[#allocation2 + $0x230] sm:$0xff]
    %v1347 = vld [vmem:[#allocation2 + $0x238] sm:$0xff]
    %v1348 = vld [vmem:[#allocation2 + $0x240] sm:$0xff]
    %v1349 = vld [vmem:[#allocation2 + $0x248] sm:$0xff]
    %v1350 = vld [vmem:[#allocation2 + $0x250] sm:$0xff]
    %v1351 = vld [vmem:[#allocation2 + $0x258] sm:$0xff]
    %v1352 = vld [vmem:[#allocation2 + $0x260] sm:$0xff]
    %v1353 = vld [vmem:[#allocation2 + $0x268] sm:$0xff]
    %v1354 = vld [vmem:[#allocation2 + $0x270] sm:$0xff]
    %v1355 = vld [vmem:[#allocation2 + $0x278] sm:$0xff]
    %v1356 = vld [vmem:[#allocation2 + $0x280] sm:$0xff]
    %v1357 = vld [vmem:[#allocation2 + $0x288] sm:$0xff]
    %v1358 = vld [vmem:[#allocation2 + $0x290] sm:$0xff]
    %v1359 = vld [vmem:[#allocation2 + $0x298] sm:$0xff]
    %v1360 = vld [vmem:[#allocation2 + $0x2a0] sm:$0xff]
    %v1361 = vld [vmem:[#allocation2 + $0x2a8] sm:$0xff]
    %v1362 = vld [vmem:[#allocation2 + $0x2b0] sm:$0xff]
    %v1363 = vld [vmem:[#allocation2 + $0x2b8] sm:$0xff]
    %v1364 = vld [vmem:[#allocation2 + $0x2c0] sm:$0xff]
    %v1365 = vld [vmem:[#allocation2 + $0x2c8] sm:$0xff]
    %v1366 = vld [vmem:[#allocation2 + $0x2d0] sm:$0xff]
    %v1367 = vld [vmem:[#allocation2 + $0x2d8] sm:$0xff]
    %v1368 = vld [vmem:[#allocation2 + $0x2e0] sm:$0xff]
    %v1369 = vld [vmem:[#allocation2 + $0x2e8] sm:$0xff]
    %v1370 = vld [vmem:[#allocation2 + $0x2f0] sm:$0xff]
    %v1371 = vld [vmem:[#allocation2 + $0x2f8] sm:$0xff]
    %v1372 = vld [vmem:[#allocation2 + $0x300] sm:$0xff]
    %v1373 = vld [vmem:[#allocation2 + $0x308] sm:$0xff]
    %v1374 = vld [vmem:[#allocation2 + $0x310] sm:$0xff]
    %v1375 = vld [vmem:[#allocation2 + $0x318] sm:$0xff]
    %v1376 = vld [vmem:[#allocation2 + $0x320] sm:$0xff]
    %v1377 = vld [vmem:[#allocation2 + $0x328] sm:$0xff]
    %v1378 = vld [vmem:[#allocation2 + $0x330] sm:$0xff]
    %v1379 = vld [vmem:[#allocation2 + $0x338] sm:$0xff]
    %v1380 = vld [vmem:[#allocation2 + $0x340] sm:$0xff]
    %v1381 = vld [vmem:[#allocation2 + $0x348] sm:$0xff]
    %v1382 = vld [vmem:[#allocation2 + $0x350] sm:$0xff]
    %v1383 = vld [vmem:[#allocation2 + $0x358] sm:$0xff]
    %v1384 = vld [vmem:[#allocation2 + $0x360] sm:$0xff]
    %v1385 = vld [vmem:[#allocation2 + $0x368] sm:$0xff]
    %v1386 = vld [vmem:[#allocation2 + $0x370] sm:$0xff]
    %v1387 = vld [vmem:[#allocation2 + $0x378] sm:$0xff]
    %v1388 = vld [vmem:[#allocation2 + $0x380] sm:$0xff]
    %v1389 = vld [vmem:[#allocation2 + $0x388] sm:$0xff]
    %v1390 = vld [vmem:[#allocation2 + $0x390] sm:$0xff]
    %v1391 = vld [vmem:[#allocation2 + $0x398] sm:$0xff]
    %v1392 = vld [vmem:[#allocation2 + $0x3a0] sm:$0xff]
    %v1393 = vld [vmem:[#allocation2 + $0x3a8] sm:$0xff]
    %v1394 = vld [vmem:[#allocation2 + $0x3b0] sm:$0xff]
    %v1395 = vld [vmem:[#allocation2 + $0x3b8] sm:$0xff]
    %v1396 = vld [vmem:[#allocation2 + $0x3c0] sm:$0xff]
    %v1397 = vld [vmem:[#allocation2 + $0x3c8] sm:$0xff]
    %v1398 = vld [vmem:[#allocation2 + $0x3d0] sm:$0xff]
    %v1399 = vld [vmem:[#allocation2 + $0x3d8] sm:$0xff]
    %v1400 = vld [vmem:[#allocation2 + $0x3e0] sm:$0xff]
    %v1401 = vld [vmem:[#allocation2 + $0x3e8] sm:$0xff]
    %v1402 = vld [vmem:[#allocation2 + $0x3f0] sm:$0xff]
    %v1403 = vld [vmem:[#allocation2 + $0x3f8] sm:$0xff]
    %v1404 = vld [vmem:[%s1] sm:$0xf]
    %v1406 = vlaneseq
    %v1407 = vshrl.u32 %v1406, 7
    %v1408 = vsub.s32 0, %v1407
    %v1409 = vrot.slane %v1404, %v1408
    %v1410 = vlaneseq
    %v1411 = vshrl.u32 %v1410, 7
    %v1412 = vsub.s32 1, %v1411
    %v1413 = vrot.slane %v1404, %v1412
    %v1414 = vlaneseq
    %v1415 = vshrl.u32 %v1414, 7
    %v1416 = vsub.s32 2, %v1415
    %v1417 = vrot.slane %v1404, %v1416
    %v1418 = vlaneseq
    %v1419 = vshrl.u32 %v1418, 7
    %v1420 = vsub.s32 3, %v1419
    %v1421 = vrot.slane %v1404, %v1420
    %1426 = vmatprep.subr.mxu0 %v1337
    %1427 = vmatpush1.msra.mxu0 %v1336
    %1428 = vmatprep.subr.mxu0 %v1333
    %1429 = vmatpush1.msra.mxu0 %v1332
    %1430 = vmatprep.subr.mxu0 %v1329
    %1431 = vmatpush1.msra.mxu0 %v1328
    %1432 = vmatprep.subr.mxu0 %v1325
    %1433 = vmatpush1.msra.mxu0 %v1324
    %1434 = vmatprep.subr.mxu0 %v1321
    %1435 = vmatpush1.msra.mxu0 %v1320
    %1436 = vmatprep.subr.mxu0 %v1317
    %1437 = vmatpush1.msra.mxu0 %v1316
    %1438 = vmatprep.subr.mxu0 %v1313
    %1439 = vmatpush1.msra.mxu0 %v1312
    %1440 = vmatprep.subr.mxu0 %v1309
    %1441 = vmatpush1.msra.mxu0 %v1308
    %1442 = vmatprep.subr.mxu0 %v1305
    %1443 = vmatpush1.msra.mxu0 %v1304
    %1444 = vmatprep.subr.mxu0 %v1301
    %1445 = vmatpush1.msra.mxu0 %v1300
    %1446 = vmatprep.subr.mxu0 %v1297
    %1447 = vmatpush1.msra.mxu0 %v1296
    %1448 = vmatprep.subr.mxu0 %v1293
    %1449 = vmatpush1.msra.mxu0 %v1292
    %1450 = vmatprep.subr.mxu0 %v1289
    %1451 = vmatpush1.msra.mxu0 %v1288
    %1452 = vmatprep.subr.mxu0 %v1285
    %1453 = vmatpush1.msra.mxu0 %v1284
    %1454 = vmatprep.subr.mxu0 %v1281
    %1455 = vmatpush1.msra.mxu0 %v1280
    %1456 = vmatprep.subr.mxu0 %v1277
    %1457 = vmatpush1.msra.mxu0 %v1276
    %1458 = vmatprep.subr.mxu0 %v1401
    %1459 = vmatpush2.msra.mxu0 %v1400
    %1460 = vmatprep.subr.mxu0 %v1397
    %1461 = vmatpush2.msra.mxu0 %v1396
    %1462 = vmatprep.subr.mxu0 %v1393
    %1463 = vmatpush2.msra.mxu0 %v1392
    %1464 = vmatprep.subr.mxu0 %v1389
    %1465 = vmatpush2.msra.mxu0 %v1388
    %1466 = vmatprep.subr.mxu0 %v1385
    %1467 = vmatpush2.msra.mxu0 %v1384
    %1468 = vmatprep.subr.mxu0 %v1381
    %1469 = vmatpush2.msra.mxu0 %v1380
    %1470 = vmatprep.subr.mxu0 %v1377
    %1471 = vmatpush2.msra.mxu0 %v1376
    %1472 = vmatprep.subr.mxu0 %v1373
    %1473 = vmatpush2.msra.mxu0 %v1372
    %1474 = vmatprep.subr.mxu0 %v1369
    %1475 = vmatpush2.msra.mxu0 %v1368
    %1476 = vmatprep.subr.mxu0 %v1365
    %1477 = vmatpush2.msra.mxu0 %v1364
    %1478 = vmatprep.subr.mxu0 %v1361
    %1479 = vmatpush2.msra.mxu0 %v1360
    %1480 = vmatprep.subr.mxu0 %v1357
    %1481 = vmatpush2.msra.mxu0 %v1356
    %1482 = vmatprep.subr.mxu0 %v1353
    %1483 = vmatpush2.msra.mxu0 %v1352
    %1484 = vmatprep.subr.mxu0 %v1349
    %1485 = vmatpush2.msra.mxu0 %v1348
    %1486 = vmatprep.subr.mxu0 %v1345
    %1487 = vmatpush2.msra.mxu0 %v1344
    %1488 = vmatprep.subr.mxu0 %v1341
    %1489 = vmatpush2.msra.mxu0 %v1340
    %1490 = vmatprep.mubr.f32.mxu0 %v1275
    %1491 = vmatmul.mubr.f32.gmra.mxu0 %v1274
    %v1492 = vpop.f32.mrf.mxu0
    %v1493 = vadd.f32 %v1409, %v1492
    %v1494 = vpop.f32.mrf.mxu0
    %v1495 = vadd.f32 %v1413, %v1494
    %1496 = vdwg.mxu0
    %1497 = vmatprep.subr.mxu0 %v1339
    %1498 = vmatpush1.msra.mxu0 %v1338
    %1499 = vmatprep.subr.mxu0 %v1335
    %1500 = vmatpush1.msra.mxu0 %v1334
    %1501 = vmatprep.subr.mxu0 %v1331
    %1502 = vmatpush1.msra.mxu0 %v1330
    %1503 = vmatprep.subr.mxu0 %v1327
    %1504 = vmatpush1.msra.mxu0 %v1326
    %1505 = vmatprep.subr.mxu0 %v1323
    %1506 = vmatpush1.msra.mxu0 %v1322
    %1507 = vmatprep.subr.mxu0 %v1319
    %1508 = vmatpush1.msra.mxu0 %v1318
    %1509 = vmatprep.subr.mxu0 %v1315
    %1510 = vmatpush1.msra.mxu0 %v1314
    %1511 = vmatprep.subr.mxu0 %v1311
    %1512 = vmatpush1.msra.mxu0 %v1310
    %1513 = vmatprep.subr.mxu0 %v1307
    %1514 = vmatpush1.msra.mxu0 %v1306
    %1515 = vmatprep.subr.mxu0 %v1303
    %1516 = vmatpush1.msra.mxu0 %v1302
    %1517 = vmatprep.subr.mxu0 %v1299
    %1518 = vmatpush1.msra.mxu0 %v1298
    %1519 = vmatprep.subr.mxu0 %v1295
    %1520 = vmatpush1.msra.mxu0 %v1294
    %1521 = vmatprep.subr.mxu0 %v1291
    %1522 = vmatpush1.msra.mxu0 %v1290
    %1523 = vmatprep.subr.mxu0 %v1287
    %1524 = vmatpush1.msra.mxu0 %v1286
    %1525 = vmatprep.subr.mxu0 %v1283
    %1526 = vmatpush1.msra.mxu0 %v1282
    %1527 = vmatprep.subr.mxu0 %v1279
    %1528 = vmatpush1.msra.mxu0 %v1278
    %1529 = vmatprep.subr.mxu0 %v1403
    %1530 = vmatpush2.msra.mxu0 %v1402
    %1531 = vmatprep.subr.mxu0 %v1399
    %1532 = vmatpush2.msra.mxu0 %v1398
    %1533 = vmatprep.subr.mxu0 %v1395
    %1534 = vmatpush2.msra.mxu0 %v1394
    %1535 = vmatprep.subr.mxu0 %v1391
    %1536 = vmatpush2.msra.mxu0 %v1390
    %1537 = vmatprep.subr.mxu0 %v1387
    %1538 = vmatpush2.msra.mxu0 %v1386
    %1539 = vmatprep.subr.mxu0 %v1383
    %1540 = vmatpush2.msra.mxu0 %v1382
    %1541 = vmatprep.subr.mxu0 %v1379
    %1542 = vmatpush2.msra.mxu0 %v1378
    %1543 = vmatprep.subr.mxu0 %v1375
    %1544 = vmatpush2.msra.mxu0 %v1374
    %1545 = vmatprep.subr.mxu0 %v1371
    %1546 = vmatpush2.msra.mxu0 %v1370
    %1547 = vmatprep.subr.mxu0 %v1367
    %1548 = vmatpush2.msra.mxu0 %v1366
    %1549 = vmatprep.subr.mxu0 %v1363
    %1550 = vmatpush2.msra.mxu0 %v1362
    %1551 = vmatprep.subr.mxu0 %v1359
    %1552 = vmatpush2.msra.mxu0 %v1358
    %1553 = vmatprep.subr.mxu0 %v1355
    %1554 = vmatpush2.msra.mxu0 %v1354
    %1555 = vmatprep.subr.mxu0 %v1351
    %1556 = vmatpush2.msra.mxu0 %v1350
    %1557 = vmatprep.subr.mxu0 %v1347
    %1558 = vmatpush2.msra.mxu0 %v1346
    %1559 = vmatprep.subr.mxu0 %v1343
    %1560 = vmatpush2.msra.mxu0 %v1342
    %1561 = vmatprep.mubr.f32.mxu0 %v1275
    %1562 = vmatmul.mubr.f32.gmra.mxu0 %v1274
    %v1563 = vpop.f32.mrf.mxu0
    %v1564 = vadd.f32 %v1417, %v1563
    %v1565 = vpop.f32.mrf.mxu0
    %v1566 = vadd.f32 %v1421, %v1565
    %1567 = vdwg.mxu0
    %v1568 = vld [vmem:[%s2] sm:$0xf]
    %s1569 = scalar_select %p1273, 1, 0
    %v1570 = vstv %s1569
    %vm1571 = vcmp.eq.s32.totalorder %v1570, 1
    %v1572 = vsel %vm1571, %v1568, 0.0
    %v1574 = vlaneseq
    %v1575 = vshrl.u32 %v1574, 7
    %v1576 = vsub.s32 0, %v1575
    %v1577 = vrot.slane %v1572, %v1576
    %v1578 = vlaneseq
    %v1579 = vshrl.u32 %v1578, 7
    %v1580 = vsub.s32 1, %v1579
    %v1581 = vrot.slane %v1572, %v1580
    %v1582 = vlaneseq
    %v1583 = vshrl.u32 %v1582, 7
    %v1584 = vsub.s32 2, %v1583
    %v1585 = vrot.slane %v1572, %v1584
    %v1586 = vlaneseq
    %v1587 = vshrl.u32 %v1586, 7
    %v1588 = vsub.s32 3, %v1587
    %v1589 = vrot.slane %v1572, %v1588
    %v1594 = vadd.f32 %v1493, %v1577
    %v1595 = vadd.f32 %v1495, %v1581
    %v1596 = vadd.f32 %v1564, %v1585
    %v1597 = vadd.f32 %v1566, %v1589
    %v1598 = vxor.u32 %v1594, 2147483648
    %v1599 = vmul.f32 %v1598, 1.442695
    %v1600 = vpow.pop %v1599
    %v1601 = vadd.f32 %v1600, 1.0
    %v1602 = vrcp.pop %v1601
    %v1603 = vmul.f32 1.0, %v1602
    %v1604 = vxor.u32 %v1595, 2147483648
    %v1605 = vmul.f32 %v1604, 1.442695
    %v1606 = vpow.pop %v1605
    %v1607 = vadd.f32 %v1606, 1.0
    %v1608 = vrcp.pop %v1607
    %v1609 = vmul.f32 1.0, %v1608
    %v1610 = vtanh.pop %v1596
    %v1611 = vxor.u32 %v1597, 2147483648
    %v1612 = vmul.f32 %v1611, 1.442695
    %v1613 = vpow.pop %v1612
    %v1614 = vadd.f32 %v1613, 1.0
    %v1615 = vrcp.pop %v1614
    %v1616 = vmul.f32 1.0, %v1615
    %v1617 = vld [vmem:[#allocation4] sm:$0xff]
    %v1618 = vmul.f32 %v1609, %v1617
    %v1619 = vmul.f32 %v1603, %v1610
    %v1620 = vadd.f32 %v1618, %v1619
    %1621 = vst [vmem:[#allocation4] sm:$0xff] %v1620
    %v1622 = vtanh.pop %v1620
    %v1623 = vmul.f32 %v1616, %v1622
    %1624 = vst [vmem:[#allocation3 + $0x8] sm:$0xff] %v1623
    %1625 = vst [vmem:[%s944] sm:$0xff] %v1623
    %v1626 = vld [vmem:[%s944] sm:$0xff]
    %v1627 = vld [vmem:[%s944 + $0x8] sm:$0xff]
    %v1628 = vld [vmem:[%s948] sm:$0xff]
    %v1629 = vld [vmem:[%s948 + $0x8] sm:$0xff]
    %v1630 = vld [vmem:[%s948 + $0x10] sm:$0xff]
    %v1631 = vld [vmem:[%s948 + $0x18] sm:$0xff]
    %v1632 = vld [vmem:[%s948 + $0x20] sm:$0xff]
    %v1633 = vld [vmem:[%s948 + $0x28] sm:$0xff]
    %v1634 = vld [vmem:[%s948 + $0x30] sm:$0xff]
    %v1635 = vld [vmem:[%s948 + $0x38] sm:$0xff]
    %v1636 = vld [vmem:[%s948 + $0x40] sm:$0xff]
    %v1637 = vld [vmem:[%s948 + $0x48] sm:$0xff]
    %v1638 = vld [vmem:[%s948 + $0x50] sm:$0xff]
    %v1639 = vld [vmem:[%s948 + $0x58] sm:$0xff]
    %v1640 = vld [vmem:[%s948 + $0x60] sm:$0xff]
    %v1641 = vld [vmem:[%s948 + $0x68] sm:$0xff]
    %v1642 = vld [vmem:[%s948 + $0x70] sm:$0xff]
    %v1643 = vld [vmem:[%s948 + $0x78] sm:$0xff]
    %v1644 = vld [vmem:[%s948 + $0x80] sm:$0xff]
    %v1645 = vld [vmem:[%s948 + $0x88] sm:$0xff]
    %v1646 = vld [vmem:[%s948 + $0x90] sm:$0xff]
    %v1647 = vld [vmem:[%s948 + $0x98] sm:$0xff]
    %v1648 = vld [vmem:[%s948 + $0xa0] sm:$0xff]
    %v1649 = vld [vmem:[%s948 + $0xa8] sm:$0xff]
    %v1650 = vld [vmem:[%s948 + $0xb0] sm:$0xff]
    %v1651 = vld [vmem:[%s948 + $0xb8] sm:$0xff]
    %v1652 = vld [vmem:[%s948 + $0xc0] sm:$0xff]
    %v1653 = vld [vmem:[%s948 + $0xc8] sm:$0xff]
    %v1654 = vld [vmem:[%s948 + $0xd0] sm:$0xff]
    %v1655 = vld [vmem:[%s948 + $0xd8] sm:$0xff]
    %v1656 = vld [vmem:[%s948 + $0xe0] sm:$0xff]
    %v1657 = vld [vmem:[%s948 + $0xe8] sm:$0xff]
    %v1658 = vld [vmem:[%s948 + $0xf0] sm:$0xff]
    %v1659 = vld [vmem:[%s948 + $0xf8] sm:$0xff]
    %v1660 = vld [vmem:[%s948 + $0x100] sm:$0xff]
    %v1661 = vld [vmem:[%s948 + $0x108] sm:$0xff]
    %v1662 = vld [vmem:[%s948 + $0x110] sm:$0xff]
    %v1663 = vld [vmem:[%s948 + $0x118] sm:$0xff]
    %v1664 = vld [vmem:[%s948 + $0x120] sm:$0xff]
    %v1665 = vld [vmem:[%s948 + $0x128] sm:$0xff]
    %v1666 = vld [vmem:[%s948 + $0x130] sm:$0xff]
    %v1667 = vld [vmem:[%s948 + $0x138] sm:$0xff]
    %v1668 = vld [vmem:[%s948 + $0x140] sm:$0xff]
    %v1669 = vld [vmem:[%s948 + $0x148] sm:$0xff]
    %v1670 = vld [vmem:[%s948 + $0x150] sm:$0xff]
    %v1671 = vld [vmem:[%s948 + $0x158] sm:$0xff]
    %v1672 = vld [vmem:[%s948 + $0x160] sm:$0xff]
    %v1673 = vld [vmem:[%s948 + $0x168] sm:$0xff]
    %v1674 = vld [vmem:[%s948 + $0x170] sm:$0xff]
    %v1675 = vld [vmem:[%s948 + $0x178] sm:$0xff]
    %v1676 = vld [vmem:[%s948 + $0x180] sm:$0xff]
    %v1677 = vld [vmem:[%s948 + $0x188] sm:$0xff]
    %v1678 = vld [vmem:[%s948 + $0x190] sm:$0xff]
    %v1679 = vld [vmem:[%s948 + $0x198] sm:$0xff]
    %v1680 = vld [vmem:[%s948 + $0x1a0] sm:$0xff]
    %v1681 = vld [vmem:[%s948 + $0x1a8] sm:$0xff]
    %v1682 = vld [vmem:[%s948 + $0x1b0] sm:$0xff]
    %v1683 = vld [vmem:[%s948 + $0x1b8] sm:$0xff]
    %v1684 = vld [vmem:[%s948 + $0x1c0] sm:$0xff]
    %v1685 = vld [vmem:[%s948 + $0x1c8] sm:$0xff]
    %v1686 = vld [vmem:[%s948 + $0x1d0] sm:$0xff]
    %v1687 = vld [vmem:[%s948 + $0x1d8] sm:$0xff]
    %v1688 = vld [vmem:[%s948 + $0x1e0] sm:$0xff]
    %v1689 = vld [vmem:[%s948 + $0x1e8] sm:$0xff]
    %v1690 = vld [vmem:[%s948 + $0x1f0] sm:$0xff]
    %v1691 = vld [vmem:[%s948 + $0x1f8] sm:$0xff]
    %v1692 = vld [vmem:[%s948 + $0x200] sm:$0xff]
    %v1693 = vld [vmem:[%s948 + $0x208] sm:$0xff]
    %v1694 = vld [vmem:[%s948 + $0x210] sm:$0xff]
    %v1695 = vld [vmem:[%s948 + $0x218] sm:$0xff]
    %v1696 = vld [vmem:[%s948 + $0x220] sm:$0xff]
    %v1697 = vld [vmem:[%s948 + $0x228] sm:$0xff]
    %v1698 = vld [vmem:[%s948 + $0x230] sm:$0xff]
    %v1699 = vld [vmem:[%s948 + $0x238] sm:$0xff]
    %v1700 = vld [vmem:[%s948 + $0x240] sm:$0xff]
    %v1701 = vld [vmem:[%s948 + $0x248] sm:$0xff]
    %v1702 = vld [vmem:[%s948 + $0x250] sm:$0xff]
    %v1703 = vld [vmem:[%s948 + $0x258] sm:$0xff]
    %v1704 = vld [vmem:[%s948 + $0x260] sm:$0xff]
    %v1705 = vld [vmem:[%s948 + $0x268] sm:$0xff]
    %v1706 = vld [vmem:[%s948 + $0x270] sm:$0xff]
    %v1707 = vld [vmem:[%s948 + $0x278] sm:$0xff]
    %v1708 = vld [vmem:[%s948 + $0x280] sm:$0xff]
    %v1709 = vld [vmem:[%s948 + $0x288] sm:$0xff]
    %v1710 = vld [vmem:[%s948 + $0x290] sm:$0xff]
    %v1711 = vld [vmem:[%s948 + $0x298] sm:$0xff]
    %v1712 = vld [vmem:[%s948 + $0x2a0] sm:$0xff]
    %v1713 = vld [vmem:[%s948 + $0x2a8] sm:$0xff]
    %v1714 = vld [vmem:[%s948 + $0x2b0] sm:$0xff]
    %v1715 = vld [vmem:[%s948 + $0x2b8] sm:$0xff]
    %v1716 = vld [vmem:[%s948 + $0x2c0] sm:$0xff]
    %v1717 = vld [vmem:[%s948 + $0x2c8] sm:$0xff]
    %v1718 = vld [vmem:[%s948 + $0x2d0] sm:$0xff]
    %v1719 = vld [vmem:[%s948 + $0x2d8] sm:$0xff]
    %v1720 = vld [vmem:[%s948 + $0x2e0] sm:$0xff]
    %v1721 = vld [vmem:[%s948 + $0x2e8] sm:$0xff]
    %v1722 = vld [vmem:[%s948 + $0x2f0] sm:$0xff]
    %v1723 = vld [vmem:[%s948 + $0x2f8] sm:$0xff]
    %v1724 = vld [vmem:[%s948 + $0x300] sm:$0xff]
    %v1725 = vld [vmem:[%s948 + $0x308] sm:$0xff]
    %v1726 = vld [vmem:[%s948 + $0x310] sm:$0xff]
    %v1727 = vld [vmem:[%s948 + $0x318] sm:$0xff]
    %v1728 = vld [vmem:[%s948 + $0x320] sm:$0xff]
    %v1729 = vld [vmem:[%s948 + $0x328] sm:$0xff]
    %v1730 = vld [vmem:[%s948 + $0x330] sm:$0xff]
    %v1731 = vld [vmem:[%s948 + $0x338] sm:$0xff]
    %v1732 = vld [vmem:[%s948 + $0x340] sm:$0xff]
    %v1733 = vld [vmem:[%s948 + $0x348] sm:$0xff]
    %v1734 = vld [vmem:[%s948 + $0x350] sm:$0xff]
    %v1735 = vld [vmem:[%s948 + $0x358] sm:$0xff]
    %v1736 = vld [vmem:[%s948 + $0x360] sm:$0xff]
    %v1737 = vld [vmem:[%s948 + $0x368] sm:$0xff]
    %v1738 = vld [vmem:[%s948 + $0x370] sm:$0xff]
    %v1739 = vld [vmem:[%s948 + $0x378] sm:$0xff]
    %v1740 = vld [vmem:[%s948 + $0x380] sm:$0xff]
    %v1741 = vld [vmem:[%s948 + $0x388] sm:$0xff]
    %v1742 = vld [vmem:[%s948 + $0x390] sm:$0xff]
    %v1743 = vld [vmem:[%s948 + $0x398] sm:$0xff]
    %v1744 = vld [vmem:[%s948 + $0x3a0] sm:$0xff]
    %v1745 = vld [vmem:[%s948 + $0x3a8] sm:$0xff]
    %v1746 = vld [vmem:[%s948 + $0x3b0] sm:$0xff]
    %v1747 = vld [vmem:[%s948 + $0x3b8] sm:$0xff]
    %v1748 = vld [vmem:[%s948 + $0x3c0] sm:$0xff]
    %v1749 = vld [vmem:[%s948 + $0x3c8] sm:$0xff]
    %v1750 = vld [vmem:[%s948 + $0x3d0] sm:$0xff]
    %v1751 = vld [vmem:[%s948 + $0x3d8] sm:$0xff]
    %v1752 = vld [vmem:[%s948 + $0x3e0] sm:$0xff]
    %v1753 = vld [vmem:[%s948 + $0x3e8] sm:$0xff]
    %v1754 = vld [vmem:[%s948 + $0x3f0] sm:$0xff]
    %v1755 = vld [vmem:[%s948 + $0x3f8] sm:$0xff]
    %v1756 = vld [vmem:[%s1077] sm:$0xf]
    %v1758 = vlaneseq
    %v1759 = vshrl.u32 %v1758, 7
    %v1760 = vsub.s32 0, %v1759
    %v1761 = vrot.slane %v1756, %v1760
    %v1762 = vlaneseq
    %v1763 = vshrl.u32 %v1762, 7
    %v1764 = vsub.s32 1, %v1763
    %v1765 = vrot.slane %v1756, %v1764
    %v1766 = vlaneseq
    %v1767 = vshrl.u32 %v1766, 7
    %v1768 = vsub.s32 2, %v1767
    %v1769 = vrot.slane %v1756, %v1768
    %v1770 = vlaneseq
    %v1771 = vshrl.u32 %v1770, 7
    %v1772 = vsub.s32 3, %v1771
    %v1773 = vrot.slane %v1756, %v1772
    %1778 = vmatprep.subr.mxu0 %v1689
    %1779 = vmatpush1.msra.mxu0 %v1688
    %1780 = vmatprep.subr.mxu0 %v1685
    %1781 = vmatpush1.msra.mxu0 %v1684
    %1782 = vmatprep.subr.mxu0 %v1681
    %1783 = vmatpush1.msra.mxu0 %v1680
    %1784 = vmatprep.subr.mxu0 %v1677
    %1785 = vmatpush1.msra.mxu0 %v1676
    %1786 = vmatprep.subr.mxu0 %v1673
    %1787 = vmatpush1.msra.mxu0 %v1672
    %1788 = vmatprep.subr.mxu0 %v1669
    %1789 = vmatpush1.msra.mxu0 %v1668
    %1790 = vmatprep.subr.mxu0 %v1665
    %1791 = vmatpush1.msra.mxu0 %v1664
    %1792 = vmatprep.subr.mxu0 %v1661
    %1793 = vmatpush1.msra.mxu0 %v1660
    %1794 = vmatprep.subr.mxu0 %v1657
    %1795 = vmatpush1.msra.mxu0 %v1656
    %1796 = vmatprep.subr.mxu0 %v1653
    %1797 = vmatpush1.msra.mxu0 %v1652
    %1798 = vmatprep.subr.mxu0 %v1649
    %1799 = vmatpush1.msra.mxu0 %v1648
    %1800 = vmatprep.subr.mxu0 %v1645
    %1801 = vmatpush1.msra.mxu0 %v1644
    %1802 = vmatprep.subr.mxu0 %v1641
    %1803 = vmatpush1.msra.mxu0 %v1640
    %1804 = vmatprep.subr.mxu0 %v1637
    %1805 = vmatpush1.msra.mxu0 %v1636
    %1806 = vmatprep.subr.mxu0 %v1633
    %1807 = vmatpush1.msra.mxu0 %v1632
    %1808 = vmatprep.subr.mxu0 %v1629
    %1809 = vmatpush1.msra.mxu0 %v1628
    %1810 = vmatprep.subr.mxu0 %v1753
    %1811 = vmatpush2.msra.mxu0 %v1752
    %1812 = vmatprep.subr.mxu0 %v1749
    %1813 = vmatpush2.msra.mxu0 %v1748
    %1814 = vmatprep.subr.mxu0 %v1745
    %1815 = vmatpush2.msra.mxu0 %v1744
    %1816 = vmatprep.subr.mxu0 %v1741
    %1817 = vmatpush2.msra.mxu0 %v1740
    %1818 = vmatprep.subr.mxu0 %v1737
    %1819 = vmatpush2.msra.mxu0 %v1736
    %1820 = vmatprep.subr.mxu0 %v1733
    %1821 = vmatpush2.msra.mxu0 %v1732
    %1822 = vmatprep.subr.mxu0 %v1729
    %1823 = vmatpush2.msra.mxu0 %v1728
    %1824 = vmatprep.subr.mxu0 %v1725
    %1825 = vmatpush2.msra.mxu0 %v1724
    %1826 = vmatprep.subr.mxu0 %v1721
    %1827 = vmatpush2.msra.mxu0 %v1720
    %1828 = vmatprep.subr.mxu0 %v1717
    %1829 = vmatpush2.msra.mxu0 %v1716
    %1830 = vmatprep.subr.mxu0 %v1713
    %1831 = vmatpush2.msra.mxu0 %v1712
    %1832 = vmatprep.subr.mxu0 %v1709
    %1833 = vmatpush2.msra.mxu0 %v1708
    %1834 = vmatprep.subr.mxu0 %v1705
    %1835 = vmatpush2.msra.mxu0 %v1704
    %1836 = vmatprep.subr.mxu0 %v1701
    %1837 = vmatpush2.msra.mxu0 %v1700
    %1838 = vmatprep.subr.mxu0 %v1697
    %1839 = vmatpush2.msra.mxu0 %v1696
    %1840 = vmatprep.subr.mxu0 %v1693
    %1841 = vmatpush2.msra.mxu0 %v1692
    %1842 = vmatprep.mubr.f32.mxu0 %v1627
    %1843 = vmatmul.mubr.f32.gmra.mxu0 %v1626
    %v1844 = vpop.f32.mrf.mxu0
    %v1845 = vadd.f32 %v1761, %v1844
    %v1846 = vpop.f32.mrf.mxu0
    %v1847 = vadd.f32 %v1765, %v1846
    %1848 = vdwg.mxu0
    %1849 = vmatprep.subr.mxu0 %v1691
    %1850 = vmatpush1.msra.mxu0 %v1690
    %1851 = vmatprep.subr.mxu0 %v1687
    %1852 = vmatpush1.msra.mxu0 %v1686
    %1853 = vmatprep.subr.mxu0 %v1683
    %1854 = vmatpush1.msra.mxu0 %v1682
    %1855 = vmatprep.subr.mxu0 %v1679
    %1856 = vmatpush1.msra.mxu0 %v1678
    %1857 = vmatprep.subr.mxu0 %v1675
    %1858 = vmatpush1.msra.mxu0 %v1674
    %1859 = vmatprep.subr.mxu0 %v1671
    %1860 = vmatpush1.msra.mxu0 %v1670
    %1861 = vmatprep.subr.mxu0 %v1667
    %1862 = vmatpush1.msra.mxu0 %v1666
    %1863 = vmatprep.subr.mxu0 %v1663
    %1864 = vmatpush1.msra.mxu0 %v1662
    %1865 = vmatprep.subr.mxu0 %v1659
    %1866 = vmatpush1.msra.mxu0 %v1658
    %1867 = vmatprep.subr.mxu0 %v1655
    %1868 = vmatpush1.msra.mxu0 %v1654
    %1869 = vmatprep.subr.mxu0 %v1651
    %1870 = vmatpush1.msra.mxu0 %v1650
    %1871 = vmatprep.subr.mxu0 %v1647
    %1872 = vmatpush1.msra.mxu0 %v1646
    %1873 = vmatprep.subr.mxu0 %v1643
    %1874 = vmatpush1.msra.mxu0 %v1642
    %1875 = vmatprep.subr.mxu0 %v1639
    %1876 = vmatpush1.msra.mxu0 %v1638
    %1877 = vmatprep.subr.mxu0 %v1635
    %1878 = vmatpush1.msra.mxu0 %v1634
    %1879 = vmatprep.subr.mxu0 %v1631
    %1880 = vmatpush1.msra.mxu0 %v1630
    %1881 = vmatprep.subr.mxu0 %v1755
    %1882 = vmatpush2.msra.mxu0 %v1754
    %1883 = vmatprep.subr.mxu0 %v1751
    %1884 = vmatpush2.msra.mxu0 %v1750
    %1885 = vmatprep.subr.mxu0 %v1747
    %1886 = vmatpush2.msra.mxu0 %v1746
    %1887 = vmatprep.subr.mxu0 %v1743
    %1888 = vmatpush2.msra.mxu0 %v1742
    %1889 = vmatprep.subr.mxu0 %v1739
    %1890 = vmatpush2.msra.mxu0 %v1738
    %1891 = vmatprep.subr.mxu0 %v1735
    %1892 = vmatpush2.msra.mxu0 %v1734
    %1893 = vmatprep.subr.mxu0 %v1731
    %1894 = vmatpush2.msra.mxu0 %v1730
    %1895 = vmatprep.subr.mxu0 %v1727
    %1896 = vmatpush2.msra.mxu0 %v1726
    %1897 = vmatprep.subr.mxu0 %v1723
    %1898 = vmatpush2.msra.mxu0 %v1722
    %1899 = vmatprep.subr.mxu0 %v1719
    %1900 = vmatpush2.msra.mxu0 %v1718
    %1901 = vmatprep.subr.mxu0 %v1715
    %1902 = vmatpush2.msra.mxu0 %v1714
    %1903 = vmatprep.subr.mxu0 %v1711
    %1904 = vmatpush2.msra.mxu0 %v1710
    %1905 = vmatprep.subr.mxu0 %v1707
    %1906 = vmatpush2.msra.mxu0 %v1706
    %1907 = vmatprep.subr.mxu0 %v1703
    %1908 = vmatpush2.msra.mxu0 %v1702
    %1909 = vmatprep.subr.mxu0 %v1699
    %1910 = vmatpush2.msra.mxu0 %v1698
    %1911 = vmatprep.subr.mxu0 %v1695
    %1912 = vmatpush2.msra.mxu0 %v1694
    %1913 = vmatprep.mubr.f32.mxu0 %v1627
    %1914 = vmatmul.mubr.f32.gmra.mxu0 %v1626
    %v1915 = vpop.f32.mrf.mxu0
    %v1916 = vadd.f32 %v1769, %v1915
    %v1917 = vpop.f32.mrf.mxu0
    %v1918 = vadd.f32 %v1773, %v1917
    %1919 = vdwg.mxu0
    %v1920 = vxor.u32 %v1845, 2147483648
    %v1921 = vmul.f32 %v1920, 1.442695
    %v1922 = vpow.pop %v1921
    %v1923 = vadd.f32 %v1922, 1.0
    %v1924 = vrcp.pop %v1923
    %v1925 = vmul.f32 1.0, %v1924
    %v1926 = vxor.u32 %v1847, 2147483648
    %v1927 = vmul.f32 %v1926, 1.442695
    %v1928 = vpow.pop %v1927
    %v1929 = vadd.f32 %v1928, 1.0
    %v1930 = vrcp.pop %v1929
    %v1931 = vmul.f32 1.0, %v1930
    %v1932 = vtanh.pop %v1916
    %v1933 = vxor.u32 %v1918, 2147483648
    %v1934 = vmul.f32 %v1933, 1.442695
    %v1935 = vpow.pop %v1934
    %v1936 = vadd.f32 %v1935, 1.0
    %v1937 = vrcp.pop %v1936
    %v1938 = vmul.f32 1.0, %v1937
    %v1939 = vld [vmem:[%s1261] sm:$0xff]
    %v1940 = vmul.f32 %v1931, %v1939
    %v1941 = vmul.f32 %v1925, %v1932
    %v1942 = vadd.f32 %v1940, %v1941
    %1943 = vst [vmem:[%s1261] sm:$0xff] %v1942
    %v1944 = vtanh.pop %v1942
    %v1945 = vmul.f32 %v1938, %v1944
    %1946 = vst [vmem:[%s944 + $0x8] sm:$0xff] %v1945
    %1947 = vst [vmem:[#allocation3] sm:$0xff] %v1945
    %s1948 = scalar_lea.vmem [#allocation5], 8
    %1949 = vst [vmem:[%s1948] sm:$0xff] %v1945
    %s1950 = sadd.s32 %s591, 2
    %p1951 = scmp.gt.s32.totalorder %s1950, 0
    %v1952 = vld [vmem:[#allocation3] sm:$0xff]
    %v1953 = vld [vmem:[#allocation3 + $0x8] sm:$0xff]
    %v1954 = vld [vmem:[#allocation2] sm:$0xff]
    %v1955 = vld [vmem:[#allocation2 + $0x8] sm:$0xff]
    %v1956 = vld [vmem:[#allocation2 + $0x10] sm:$0xff]
    %v1957 = vld [vmem:[#allocation2 + $0x18] sm:$0xff]
    %v1958 = vld [vmem:[#allocation2 + $0x20] sm:$0xff]
    %v1959 = vld [vmem:[#allocation2 + $0x28] sm:$0xff]
    %v1960 = vld [vmem:[#allocation2 + $0x30] sm:$0xff]
    %v1961 = vld [vmem:[#allocation2 + $0x38] sm:$0xff]
    %v1962 = vld [vmem:[#allocation2 + $0x40] sm:$0xff]
    %v1963 = vld [vmem:[#allocation2 + $0x48] sm:$0xff]
    %v1964 = vld [vmem:[#allocation2 + $0x50] sm:$0xff]
    %v1965 = vld [vmem:[#allocation2 + $0x58] sm:$0xff]
    %v1966 = vld [vmem:[#allocation2 + $0x60] sm:$0xff]
    %v1967 = vld [vmem:[#allocation2 + $0x68] sm:$0xff]
    %v1968 = vld [vmem:[#allocation2 + $0x70] sm:$0xff]
    %v1969 = vld [vmem:[#allocation2 + $0x78] sm:$0xff]
    %v1970 = vld [vmem:[#allocation2 + $0x80] sm:$0xff]
    %v1971 = vld [vmem:[#allocation2 + $0x88] sm:$0xff]
    %v1972 = vld [vmem:[#allocation2 + $0x90] sm:$0xff]
    %v1973 = vld [vmem:[#allocation2 + $0x98] sm:$0xff]
    %v1974 = vld [vmem:[#allocation2 + $0xa0] sm:$0xff]
    %v1975 = vld [vmem:[#allocation2 + $0xa8] sm:$0xff]
    %v1976 = vld [vmem:[#allocation2 + $0xb0] sm:$0xff]
    %v1977 = vld [vmem:[#allocation2 + $0xb8] sm:$0xff]
    %v1978 = vld [vmem:[#allocation2 + $0xc0] sm:$0xff]
    %v1979 = vld [vmem:[#allocation2 + $0xc8] sm:$0xff]
    %v1980 = vld [vmem:[#allocation2 + $0xd0] sm:$0xff]
    %v1981 = vld [vmem:[#allocation2 + $0xd8] sm:$0xff]
    %v1982 = vld [vmem:[#allocation2 + $0xe0] sm:$0xff]
    %v1983 = vld [vmem:[#allocation2 + $0xe8] sm:$0xff]
    %v1984 = vld [vmem:[#allocation2 + $0xf0] sm:$0xff]
    %v1985 = vld [vmem:[#allocation2 + $0xf8] sm:$0xff]
    %v1986 = vld [vmem:[#allocation2 + $0x100] sm:$0xff]
    %v1987 = vld [vmem:[#allocation2 + $0x108] sm:$0xff]
    %v1988 = vld [vmem:[#allocation2 + $0x110] sm:$0xff]
    %v1989 = vld [vmem:[#allocation2 + $0x118] sm:$0xff]
    %v1990 = vld [vmem:[#allocation2 + $0x120] sm:$0xff]
    %v1991 = vld [vmem:[#allocation2 + $0x128] sm:$0xff]
    %v1992 = vld [vmem:[#allocation2 + $0x130] sm:$0xff]
    %v1993 = vld [vmem:[#allocation2 + $0x138] sm:$0xff]
    %v1994 = vld [vmem:[#allocation2 + $0x140] sm:$0xff]
    %v1995 = vld [vmem:[#allocation2 + $0x148] sm:$0xff]
    %v1996 = vld [vmem:[#allocation2 + $0x150] sm:$0xff]
    %v1997 = vld [vmem:[#allocation2 + $0x158] sm:$0xff]
    %v1998 = vld [vmem:[#allocation2 + $0x160] sm:$0xff]
    %v1999 = vld [vmem:[#allocation2 + $0x168] sm:$0xff]
    %v2000 = vld [vmem:[#allocation2 + $0x170] sm:$0xff]
    %v2001 = vld [vmem:[#allocation2 + $0x178] sm:$0xff]
    %v2002 = vld [vmem:[#allocation2 + $0x180] sm:$0xff]
    %v2003 = vld [vmem:[#allocation2 + $0x188] sm:$0xff]
    %v2004 = vld [vmem:[#allocation2 + $0x190] sm:$0xff]
    %v2005 = vld [vmem:[#allocation2 + $0x198] sm:$0xff]
    %v2006 = vld [vmem:[#allocation2 + $0x1a0] sm:$0xff]
    %v2007 = vld [vmem:[#allocation2 + $0x1a8] sm:$0xff]
    %v2008 = vld [vmem:[#allocation2 + $0x1b0] sm:$0xff]
    %v2009 = vld [vmem:[#allocation2 + $0x1b8] sm:$0xff]
    %v2010 = vld [vmem:[#allocation2 + $0x1c0] sm:$0xff]
    %v2011 = vld [vmem:[#allocation2 + $0x1c8] sm:$0xff]
    %v2012 = vld [vmem:[#allocation2 + $0x1d0] sm:$0xff]
    %v2013 = vld [vmem:[#allocation2 + $0x1d8] sm:$0xff]
    %v2014 = vld [vmem:[#allocation2 + $0x1e0] sm:$0xff]
    %v2015 = vld [vmem:[#allocation2 + $0x1e8] sm:$0xff]
    %v2016 = vld [vmem:[#allocation2 + $0x1f0] sm:$0xff]
    %v2017 = vld [vmem:[#allocation2 + $0x1f8] sm:$0xff]
    %v2018 = vld [vmem:[#allocation2 + $0x200] sm:$0xff]
    %v2019 = vld [vmem:[#allocation2 + $0x208] sm:$0xff]
    %v2020 = vld [vmem:[#allocation2 + $0x210] sm:$0xff]
    %v2021 = vld [vmem:[#allocation2 + $0x218] sm:$0xff]
    %v2022 = vld [vmem:[#allocation2 + $0x220] sm:$0xff]
    %v2023 = vld [vmem:[#allocation2 + $0x228] sm:$0xff]
    %v2024 = vld [vmem:[#allocation2 + $0x230] sm:$0xff]
    %v2025 = vld [vmem:[#allocation2 + $0x238] sm:$0xff]
    %v2026 = vld [vmem:[#allocation2 + $0x240] sm:$0xff]
    %v2027 = vld [vmem:[#allocation2 + $0x248] sm:$0xff]
    %v2028 = vld [vmem:[#allocation2 + $0x250] sm:$0xff]
    %v2029 = vld [vmem:[#allocation2 + $0x258] sm:$0xff]
    %v2030 = vld [vmem:[#allocation2 + $0x260] sm:$0xff]
    %v2031 = vld [vmem:[#allocation2 + $0x268] sm:$0xff]
    %v2032 = vld [vmem:[#allocation2 + $0x270] sm:$0xff]
    %v2033 = vld [vmem:[#allocation2 + $0x278] sm:$0xff]
    %v2034 = vld [vmem:[#allocation2 + $0x280] sm:$0xff]
    %v2035 = vld [vmem:[#allocation2 + $0x288] sm:$0xff]
    %v2036 = vld [vmem:[#allocation2 + $0x290] sm:$0xff]
    %v2037 = vld [vmem:[#allocation2 + $0x298] sm:$0xff]
    %v2038 = vld [vmem:[#allocation2 + $0x2a0] sm:$0xff]
    %v2039 = vld [vmem:[#allocation2 + $0x2a8] sm:$0xff]
    %v2040 = vld [vmem:[#allocation2 + $0x2b0] sm:$0xff]
    %v2041 = vld [vmem:[#allocation2 + $0x2b8] sm:$0xff]
    %v2042 = vld [vmem:[#allocation2 + $0x2c0] sm:$0xff]
    %v2043 = vld [vmem:[#allocation2 + $0x2c8] sm:$0xff]
    %v2044 = vld [vmem:[#allocation2 + $0x2d0] sm:$0xff]
    %v2045 = vld [vmem:[#allocation2 + $0x2d8] sm:$0xff]
    %v2046 = vld [vmem:[#allocation2 + $0x2e0] sm:$0xff]
    %v2047 = vld [vmem:[#allocation2 + $0x2e8] sm:$0xff]
    %v2048 = vld [vmem:[#allocation2 + $0x2f0] sm:$0xff]
    %v2049 = vld [vmem:[#allocation2 + $0x2f8] sm:$0xff]
    %v2050 = vld [vmem:[#allocation2 + $0x300] sm:$0xff]
    %v2051 = vld [vmem:[#allocation2 + $0x308] sm:$0xff]
    %v2052 = vld [vmem:[#allocation2 + $0x310] sm:$0xff]
    %v2053 = vld [vmem:[#allocation2 + $0x318] sm:$0xff]
    %v2054 = vld [vmem:[#allocation2 + $0x320] sm:$0xff]
    %v2055 = vld [vmem:[#allocation2 + $0x328] sm:$0xff]
    %v2056 = vld [vmem:[#allocation2 + $0x330] sm:$0xff]
    %v2057 = vld [vmem:[#allocation2 + $0x338] sm:$0xff]
    %v2058 = vld [vmem:[#allocation2 + $0x340] sm:$0xff]
    %v2059 = vld [vmem:[#allocation2 + $0x348] sm:$0xff]
    %v2060 = vld [vmem:[#allocation2 + $0x350] sm:$0xff]
    %v2061 = vld [vmem:[#allocation2 + $0x358] sm:$0xff]
    %v2062 = vld [vmem:[#allocation2 + $0x360] sm:$0xff]
    %v2063 = vld [vmem:[#allocation2 + $0x368] sm:$0xff]
    %v2064 = vld [vmem:[#allocation2 + $0x370] sm:$0xff]
    %v2065 = vld [vmem:[#allocation2 + $0x378] sm:$0xff]
    %v2066 = vld [vmem:[#allocation2 + $0x380] sm:$0xff]
    %v2067 = vld [vmem:[#allocation2 + $0x388] sm:$0xff]
    %v2068 = vld [vmem:[#allocation2 + $0x390] sm:$0xff]
    %v2069 = vld [vmem:[#allocation2 + $0x398] sm:$0xff]
    %v2070 = vld [vmem:[#allocation2 + $0x3a0] sm:$0xff]
    %v2071 = vld [vmem:[#allocation2 + $0x3a8] sm:$0xff]
    %v2072 = vld [vmem:[#allocation2 + $0x3b0] sm:$0xff]
    %v2073 = vld [vmem:[#allocation2 + $0x3b8] sm:$0xff]
    %v2074 = vld [vmem:[#allocation2 + $0x3c0] sm:$0xff]
    %v2075 = vld [vmem:[#allocation2 + $0x3c8] sm:$0xff]
    %v2076 = vld [vmem:[#allocation2 + $0x3d0] sm:$0xff]
    %v2077 = vld [vmem:[#allocation2 + $0x3d8] sm:$0xff]
    %v2078 = vld [vmem:[#allocation2 + $0x3e0] sm:$0xff]
    %v2079 = vld [vmem:[#allocation2 + $0x3e8] sm:$0xff]
    %v2080 = vld [vmem:[#allocation2 + $0x3f0] sm:$0xff]
    %v2081 = vld [vmem:[#allocation2 + $0x3f8] sm:$0xff]
    %v2082 = vld [vmem:[%s1] sm:$0xf]
    %v2084 = vlaneseq
    %v2085 = vshrl.u32 %v2084, 7
    %v2086 = vsub.s32 0, %v2085
    %v2087 = vrot.slane %v2082, %v2086
    %v2088 = vlaneseq
    %v2089 = vshrl.u32 %v2088, 7
    %v2090 = vsub.s32 1, %v2089
    %v2091 = vrot.slane %v2082, %v2090
    %v2092 = vlaneseq
    %v2093 = vshrl.u32 %v2092, 7
    %v2094 = vsub.s32 2, %v2093
    %v2095 = vrot.slane %v2082, %v2094
    %v2096 = vlaneseq
    %v2097 = vshrl.u32 %v2096, 7
    %v2098 = vsub.s32 3, %v2097
    %v2099 = vrot.slane %v2082, %v2098
    %2104 = vmatprep.subr.mxu0 %v2015
    %2105 = vmatpush1.msra.mxu0 %v2014
    %2106 = vmatprep.subr.mxu0 %v2011
    %2107 = vmatpush1.msra.mxu0 %v2010
    %2108 = vmatprep.subr.mxu0 %v2007
    %2109 = vmatpush1.msra.mxu0 %v2006
    %2110 = vmatprep.subr.mxu0 %v2003
    %2111 = vmatpush1.msra.mxu0 %v2002
    %2112 = vmatprep.subr.mxu0 %v1999
    %2113 = vmatpush1.msra.mxu0 %v1998
    %2114 = vmatprep.subr.mxu0 %v1995
    %2115 = vmatpush1.msra.mxu0 %v1994
    %2116 = vmatprep.subr.mxu0 %v1991
    %2117 = vmatpush1.msra.mxu0 %v1990
    %2118 = vmatprep.subr.mxu0 %v1987
    %2119 = vmatpush1.msra.mxu0 %v1986
    %2120 = vmatprep.subr.mxu0 %v1983
    %2121 = vmatpush1.msra.mxu0 %v1982
    %2122 = vmatprep.subr.mxu0 %v1979
    %2123 = vmatpush1.msra.mxu0 %v1978
    %2124 = vmatprep.subr.mxu0 %v1975
    %2125 = vmatpush1.msra.mxu0 %v1974
    %2126 = vmatprep.subr.mxu0 %v1971
    %2127 = vmatpush1.msra.mxu0 %v1970
    %2128 = vmatprep.subr.mxu0 %v1967
    %2129 = vmatpush1.msra.mxu0 %v1966
    %2130 = vmatprep.subr.mxu0 %v1963
    %2131 = vmatpush1.msra.mxu0 %v1962
    %2132 = vmatprep.subr.mxu0 %v1959
    %2133 = vmatpush1.msra.mxu0 %v1958
    %2134 = vmatprep.subr.mxu0 %v1955
    %2135 = vmatpush1.msra.mxu0 %v1954
    %2136 = vmatprep.subr.mxu0 %v2079
    %2137 = vmatpush2.msra.mxu0 %v2078
    %2138 = vmatprep.subr.mxu0 %v2075
    %2139 = vmatpush2.msra.mxu0 %v2074
    %2140 = vmatprep.subr.mxu0 %v2071
    %2141 = vmatpush2.msra.mxu0 %v2070
    %2142 = vmatprep.subr.mxu0 %v2067
    %2143 = vmatpush2.msra.mxu0 %v2066
    %2144 = vmatprep.subr.mxu0 %v2063
    %2145 = vmatpush2.msra.mxu0 %v2062
    %2146 = vmatprep.subr.mxu0 %v2059
    %2147 = vmatpush2.msra.mxu0 %v2058
    %2148 = vmatprep.subr.mxu0 %v2055
    %2149 = vmatpush2.msra.mxu0 %v2054
    %2150 = vmatprep.subr.mxu0 %v2051
    %2151 = vmatpush2.msra.mxu0 %v2050
    %2152 = vmatprep.subr.mxu0 %v2047
    %2153 = vmatpush2.msra.mxu0 %v2046
    %2154 = vmatprep.subr.mxu0 %v2043
    %2155 = vmatpush2.msra.mxu0 %v2042
    %2156 = vmatprep.subr.mxu0 %v2039
    %2157 = vmatpush2.msra.mxu0 %v2038
    %2158 = vmatprep.subr.mxu0 %v2035
    %2159 = vmatpush2.msra.mxu0 %v2034
    %2160 = vmatprep.subr.mxu0 %v2031
    %2161 = vmatpush2.msra.mxu0 %v2030
    %2162 = vmatprep.subr.mxu0 %v2027
    %2163 = vmatpush2.msra.mxu0 %v2026
    %2164 = vmatprep.subr.mxu0 %v2023
    %2165 = vmatpush2.msra.mxu0 %v2022
    %2166 = vmatprep.subr.mxu0 %v2019
    %2167 = vmatpush2.msra.mxu0 %v2018
    %2168 = vmatprep.mubr.f32.mxu0 %v1953
    %2169 = vmatmul.mubr.f32.gmra.mxu0 %v1952
    %v2170 = vpop.f32.mrf.mxu0
    %v2171 = vadd.f32 %v2087, %v2170
    %v2172 = vpop.f32.mrf.mxu0
    %v2173 = vadd.f32 %v2091, %v2172
    %2174 = vdwg.mxu0
    %2175 = vmatprep.subr.mxu0 %v2017
    %2176 = vmatpush1.msra.mxu0 %v2016
    %2177 = vmatprep.subr.mxu0 %v2013
    %2178 = vmatpush1.msra.mxu0 %v2012
    %2179 = vmatprep.subr.mxu0 %v2009
    %2180 = vmatpush1.msra.mxu0 %v2008
    %2181 = vmatprep.subr.mxu0 %v2005
    %2182 = vmatpush1.msra.mxu0 %v2004
    %2183 = vmatprep.subr.mxu0 %v2001
    %2184 = vmatpush1.msra.mxu0 %v2000
    %2185 = vmatprep.subr.mxu0 %v1997
    %2186 = vmatpush1.msra.mxu0 %v1996
    %2187 = vmatprep.subr.mxu0 %v1993
    %2188 = vmatpush1.msra.mxu0 %v1992
    %2189 = vmatprep.subr.mxu0 %v1989
    %2190 = vmatpush1.msra.mxu0 %v1988
    %2191 = vmatprep.subr.mxu0 %v1985
    %2192 = vmatpush1.msra.mxu0 %v1984
    %2193 = vmatprep.subr.mxu0 %v1981
    %2194 = vmatpush1.msra.mxu0 %v1980
    %2195 = vmatprep.subr.mxu0 %v1977
    %2196 = vmatpush1.msra.mxu0 %v1976
    %2197 = vmatprep.subr.mxu0 %v1973
    %2198 = vmatpush1.msra.mxu0 %v1972
    %2199 = vmatprep.subr.mxu0 %v1969
    %2200 = vmatpush1.msra.mxu0 %v1968
    %2201 = vmatprep.subr.mxu0 %v1965
    %2202 = vmatpush1.msra.mxu0 %v1964
    %2203 = vmatprep.subr.mxu0 %v1961
    %2204 = vmatpush1.msra.mxu0 %v1960
    %2205 = vmatprep.subr.mxu0 %v1957
    %2206 = vmatpush1.msra.mxu0 %v1956
    %2207 = vmatprep.subr.mxu0 %v2081
    %2208 = vmatpush2.msra.mxu0 %v2080
    %2209 = vmatprep.subr.mxu0 %v2077
    %2210 = vmatpush2.msra.mxu0 %v2076
    %2211 = vmatprep.subr.mxu0 %v2073
    %2212 = vmatpush2.msra.mxu0 %v2072
    %2213 = vmatprep.subr.mxu0 %v2069
    %2214 = vmatpush2.msra.mxu0 %v2068
    %2215 = vmatprep.subr.mxu0 %v2065
    %2216 = vmatpush2.msra.mxu0 %v2064
    %2217 = vmatprep.subr.mxu0 %v2061
    %2218 = vmatpush2.msra.mxu0 %v2060
    %2219 = vmatprep.subr.mxu0 %v2057
    %2220 = vmatpush2.msra.mxu0 %v2056
    %2221 = vmatprep.subr.mxu0 %v2053
    %2222 = vmatpush2.msra.mxu0 %v2052
    %2223 = vmatprep.subr.mxu0 %v2049
    %2224 = vmatpush2.msra.mxu0 %v2048
    %2225 = vmatprep.subr.mxu0 %v2045
    %2226 = vmatpush2.msra.mxu0 %v2044
    %2227 = vmatprep.subr.mxu0 %v2041
    %2228 = vmatpush2.msra.mxu0 %v2040
    %2229 = vmatprep.subr.mxu0 %v2037
    %2230 = vmatpush2.msra.mxu0 %v2036
    %2231 = vmatprep.subr.mxu0 %v2033
    %2232 = vmatpush2.msra.mxu0 %v2032
    %2233 = vmatprep.subr.mxu0 %v2029
    %2234 = vmatpush2.msra.mxu0 %v2028
    %2235 = vmatprep.subr.mxu0 %v2025
    %2236 = vmatpush2.msra.mxu0 %v2024
    %2237 = vmatprep.subr.mxu0 %v2021
    %2238 = vmatpush2.msra.mxu0 %v2020
    %2239 = vmatprep.mubr.f32.mxu0 %v1953
    %2240 = vmatmul.mubr.f32.gmra.mxu0 %v1952
    %v2241 = vpop.f32.mrf.mxu0
    %v2242 = vadd.f32 %v2095, %v2241
    %v2243 = vpop.f32.mrf.mxu0
    %v2244 = vadd.f32 %v2099, %v2243
    %2245 = vdwg.mxu0
    %v2246 = vld [vmem:[%s2] sm:$0xf]
    %s2247 = scalar_select %p1951, 1, 0
    %v2248 = vstv %s2247
    %vm2249 = vcmp.eq.s32.totalorder %v2248, 1
    %v2250 = vsel %vm2249, %v2246, 0.0
    %v2252 = vlaneseq
    %v2253 = vshrl.u32 %v2252, 7
    %v2254 = vsub.s32 0, %v2253
    %v2255 = vrot.slane %v2250, %v2254
    %v2256 = vlaneseq
    %v2257 = vshrl.u32 %v2256, 7
    %v2258 = vsub.s32 1, %v2257
    %v2259 = vrot.slane %v2250, %v2258
    %v2260 = vlaneseq
    %v2261 = vshrl.u32 %v2260, 7
    %v2262 = vsub.s32 2, %v2261
    %v2263 = vrot.slane %v2250, %v2262
    %v2264 = vlaneseq
    %v2265 = vshrl.u32 %v2264, 7
    %v2266 = vsub.s32 3, %v2265
    %v2267 = vrot.slane %v2250, %v2266
    %v2272 = vadd.f32 %v2171, %v2255
    %v2273 = vadd.f32 %v2173, %v2259
    %v2274 = vadd.f32 %v2242, %v2263
    %v2275 = vadd.f32 %v2244, %v2267
    %v2276 = vxor.u32 %v2272, 2147483648
    %v2277 = vmul.f32 %v2276, 1.442695
    %v2278 = vpow.pop %v2277
    %v2279 = vadd.f32 %v2278, 1.0
    %v2280 = vrcp.pop %v2279
    %v2281 = vmul.f32 1.0, %v2280
    %v2282 = vxor.u32 %v2273, 2147483648
    %v2283 = vmul.f32 %v2282, 1.442695
    %v2284 = vpow.pop %v2283
    %v2285 = vadd.f32 %v2284, 1.0
    %v2286 = vrcp.pop %v2285
    %v2287 = vmul.f32 1.0, %v2286
    %v2288 = vtanh.pop %v2274
    %v2289 = vxor.u32 %v2275, 2147483648
    %v2290 = vmul.f32 %v2289, 1.442695
    %v2291 = vpow.pop %v2290
    %v2292 = vadd.f32 %v2291, 1.0
    %v2293 = vrcp.pop %v2292
    %v2294 = vmul.f32 1.0, %v2293
    %v2295 = vld [vmem:[#allocation4] sm:$0xff]
    %v2296 = vmul.f32 %v2287, %v2295
    %v2297 = vmul.f32 %v2281, %v2288
    %v2298 = vadd.f32 %v2296, %v2297
    %2299 = vst [vmem:[#allocation4] sm:$0xff] %v2298
    %v2300 = vtanh.pop %v2298
    %v2301 = vmul.f32 %v2294, %v2300
    %2302 = vst [vmem:[#allocation3 + $0x8] sm:$0xff] %v2301
    %2303 = vst [vmem:[%s944] sm:$0xff] %v2301
    %v2304 = vld [vmem:[%s944] sm:$0xff]
    %v2305 = vld [vmem:[%s944 + $0x8] sm:$0xff]
    %v2306 = vld [vmem:[%s948] sm:$0xff]
    %v2307 = vld [vmem:[%s948 + $0x8] sm:$0xff]
    %v2308 = vld [vmem:[%s948 + $0x10] sm:$0xff]
    %v2309 = vld [vmem:[%s948 + $0x18] sm:$0xff]
    %v2310 = vld [vmem:[%s948 + $0x20] sm:$0xff]
    %v2311 = vld [vmem:[%s948 + $0x28] sm:$0xff]
    %v2312 = vld [vmem:[%s948 + $0x30] sm:$0xff]
    %v2313 = vld [vmem:[%s948 + $0x38] sm:$0xff]
    %v2314 = vld [vmem:[%s948 + $0x40] sm:$0xff]
    %v2315 = vld [vmem:[%s948 + $0x48] sm:$0xff]
    %v2316 = vld [vmem:[%s948 + $0x50] sm:$0xff]
    %v2317 = vld [vmem:[%s948 + $0x58] sm:$0xff]
    %v2318 = vld [vmem:[%s948 + $0x60] sm:$0xff]
    %v2319 = vld [vmem:[%s948 + $0x68] sm:$0xff]
    %v2320 = vld [vmem:[%s948 + $0x70] sm:$0xff]
    %v2321 = vld [vmem:[%s948 + $0x78] sm:$0xff]
    %v2322 = vld [vmem:[%s948 + $0x80] sm:$0xff]
    %v2323 = vld [vmem:[%s948 + $0x88] sm:$0xff]
    %v2324 = vld [vmem:[%s948 + $0x90] sm:$0xff]
    %v2325 = vld [vmem:[%s948 + $0x98] sm:$0xff]
    %v2326 = vld [vmem:[%s948 + $0xa0] sm:$0xff]
    %v2327 = vld [vmem:[%s948 + $0xa8] sm:$0xff]
    %v2328 = vld [vmem:[%s948 + $0xb0] sm:$0xff]
    %v2329 = vld [vmem:[%s948 + $0xb8] sm:$0xff]
    %v2330 = vld [vmem:[%s948 + $0xc0] sm:$0xff]
    %v2331 = vld [vmem:[%s948 + $0xc8] sm:$0xff]
    %v2332 = vld [vmem:[%s948 + $0xd0] sm:$0xff]
    %v2333 = vld [vmem:[%s948 + $0xd8] sm:$0xff]
    %v2334 = vld [vmem:[%s948 + $0xe0] sm:$0xff]
    %v2335 = vld [vmem:[%s948 + $0xe8] sm:$0xff]
    %v2336 = vld [vmem:[%s948 + $0xf0] sm:$0xff]
    %v2337 = vld [vmem:[%s948 + $0xf8] sm:$0xff]
    %v2338 = vld [vmem:[%s948 + $0x100] sm:$0xff]
    %v2339 = vld [vmem:[%s948 + $0x108] sm:$0xff]
    %v2340 = vld [vmem:[%s948 + $0x110] sm:$0xff]
    %v2341 = vld [vmem:[%s948 + $0x118] sm:$0xff]
    %v2342 = vld [vmem:[%s948 + $0x120] sm:$0xff]
    %v2343 = vld [vmem:[%s948 + $0x128] sm:$0xff]
    %v2344 = vld [vmem:[%s948 + $0x130] sm:$0xff]
    %v2345 = vld [vmem:[%s948 + $0x138] sm:$0xff]
    %v2346 = vld [vmem:[%s948 + $0x140] sm:$0xff]
    %v2347 = vld [vmem:[%s948 + $0x148] sm:$0xff]
    %v2348 = vld [vmem:[%s948 + $0x150] sm:$0xff]
    %v2349 = vld [vmem:[%s948 + $0x158] sm:$0xff]
    %v2350 = vld [vmem:[%s948 + $0x160] sm:$0xff]
    %v2351 = vld [vmem:[%s948 + $0x168] sm:$0xff]
    %v2352 = vld [vmem:[%s948 + $0x170] sm:$0xff]
    %v2353 = vld [vmem:[%s948 + $0x178] sm:$0xff]
    %v2354 = vld [vmem:[%s948 + $0x180] sm:$0xff]
    %v2355 = vld [vmem:[%s948 + $0x188] sm:$0xff]
    %v2356 = vld [vmem:[%s948 + $0x190] sm:$0xff]
    %v2357 = vld [vmem:[%s948 + $0x198] sm:$0xff]
    %v2358 = vld [vmem:[%s948 + $0x1a0] sm:$0xff]
    %v2359 = vld [vmem:[%s948 + $0x1a8] sm:$0xff]
    %v2360 = vld [vmem:[%s948 + $0x1b0] sm:$0xff]
    %v2361 = vld [vmem:[%s948 + $0x1b8] sm:$0xff]
    %v2362 = vld [vmem:[%s948 + $0x1c0] sm:$0xff]
    %v2363 = vld [vmem:[%s948 + $0x1c8] sm:$0xff]
    %v2364 = vld [vmem:[%s948 + $0x1d0] sm:$0xff]
    %v2365 = vld [vmem:[%s948 + $0x1d8] sm:$0xff]
    %v2366 = vld [vmem:[%s948 + $0x1e0] sm:$0xff]
    %v2367 = vld [vmem:[%s948 + $0x1e8] sm:$0xff]
    %v2368 = vld [vmem:[%s948 + $0x1f0] sm:$0xff]
    %v2369 = vld [vmem:[%s948 + $0x1f8] sm:$0xff]
    %v2370 = vld [vmem:[%s948 + $0x200] sm:$0xff]
    %v2371 = vld [vmem:[%s948 + $0x208] sm:$0xff]
    %v2372 = vld [vmem:[%s948 + $0x210] sm:$0xff]
    %v2373 = vld [vmem:[%s948 + $0x218] sm:$0xff]
    %v2374 = vld [vmem:[%s948 + $0x220] sm:$0xff]
    %v2375 = vld [vmem:[%s948 + $0x228] sm:$0xff]
    %v2376 = vld [vmem:[%s948 + $0x230] sm:$0xff]
    %v2377 = vld [vmem:[%s948 + $0x238] sm:$0xff]
    %v2378 = vld [vmem:[%s948 + $0x240] sm:$0xff]
    %v2379 = vld [vmem:[%s948 + $0x248] sm:$0xff]
    %v2380 = vld [vmem:[%s948 + $0x250] sm:$0xff]
    %v2381 = vld [vmem:[%s948 + $0x258] sm:$0xff]
    %v2382 = vld [vmem:[%s948 + $0x260] sm:$0xff]
    %v2383 = vld [vmem:[%s948 + $0x268] sm:$0xff]
    %v2384 = vld [vmem:[%s948 + $0x270] sm:$0xff]
    %v2385 = vld [vmem:[%s948 + $0x278] sm:$0xff]
    %v2386 = vld [vmem:[%s948 + $0x280] sm:$0xff]
    %v2387 = vld [vmem:[%s948 + $0x288] sm:$0xff]
    %v2388 = vld [vmem:[%s948 + $0x290] sm:$0xff]
    %v2389 = vld [vmem:[%s948 + $0x298] sm:$0xff]
    %v2390 = vld [vmem:[%s948 + $0x2a0] sm:$0xff]
    %v2391 = vld [vmem:[%s948 + $0x2a8] sm:$0xff]
    %v2392 = vld [vmem:[%s948 + $0x2b0] sm:$0xff]
    %v2393 = vld [vmem:[%s948 + $0x2b8] sm:$0xff]
    %v2394 = vld [vmem:[%s948 + $0x2c0] sm:$0xff]
    %v2395 = vld [vmem:[%s948 + $0x2c8] sm:$0xff]
    %v2396 = vld [vmem:[%s948 + $0x2d0] sm:$0xff]
    %v2397 = vld [vmem:[%s948 + $0x2d8] sm:$0xff]
    %v2398 = vld [vmem:[%s948 + $0x2e0] sm:$0xff]
    %v2399 = vld [vmem:[%s948 + $0x2e8] sm:$0xff]
    %v2400 = vld [vmem:[%s948 + $0x2f0] sm:$0xff]
    %v2401 = vld [vmem:[%s948 + $0x2f8] sm:$0xff]
    %v2402 = vld [vmem:[%s948 + $0x300] sm:$0xff]
    %v2403 = vld [vmem:[%s948 + $0x308] sm:$0xff]
    %v2404 = vld [vmem:[%s948 + $0x310] sm:$0xff]
    %v2405 = vld [vmem:[%s948 + $0x318] sm:$0xff]
    %v2406 = vld [vmem:[%s948 + $0x320] sm:$0xff]
    %v2407 = vld [vmem:[%s948 + $0x328] sm:$0xff]
    %v2408 = vld [vmem:[%s948 + $0x330] sm:$0xff]
    %v2409 = vld [vmem:[%s948 + $0x338] sm:$0xff]
    %v2410 = vld [vmem:[%s948 + $0x340] sm:$0xff]
    %v2411 = vld [vmem:[%s948 + $0x348] sm:$0xff]
    %v2412 = vld [vmem:[%s948 + $0x350] sm:$0xff]
    %v2413 = vld [vmem:[%s948 + $0x358] sm:$0xff]
    %v2414 = vld [vmem:[%s948 + $0x360] sm:$0xff]
    %v2415 = vld [vmem:[%s948 + $0x368] sm:$0xff]
    %v2416 = vld [vmem:[%s948 + $0x370] sm:$0xff]
    %v2417 = vld [vmem:[%s948 + $0x378] sm:$0xff]
    %v2418 = vld [vmem:[%s948 + $0x380] sm:$0xff]
    %v2419 = vld [vmem:[%s948 + $0x388] sm:$0xff]
    %v2420 = vld [vmem:[%s948 + $0x390] sm:$0xff]
    %v2421 = vld [vmem:[%s948 + $0x398] sm:$0xff]
    %v2422 = vld [vmem:[%s948 + $0x3a0] sm:$0xff]
    %v2423 = vld [vmem:[%s948 + $0x3a8] sm:$0xff]
    %v2424 = vld [vmem:[%s948 + $0x3b0] sm:$0xff]
    %v2425 = vld [vmem:[%s948 + $0x3b8] sm:$0xff]
    %v2426 = vld [vmem:[%s948 + $0x3c0] sm:$0xff]
    %v2427 = vld [vmem:[%s948 + $0x3c8] sm:$0xff]
    %v2428 = vld [vmem:[%s948 + $0x3d0] sm:$0xff]
    %v2429 = vld [vmem:[%s948 + $0x3d8] sm:$0xff]
    %v2430 = vld [vmem:[%s948 + $0x3e0] sm:$0xff]
    %v2431 = vld [vmem:[%s948 + $0x3e8] sm:$0xff]
    %v2432 = vld [vmem:[%s948 + $0x3f0] sm:$0xff]
    %v2433 = vld [vmem:[%s948 + $0x3f8] sm:$0xff]
    %v2434 = vld [vmem:[%s1077] sm:$0xf]
    %v2436 = vlaneseq
    %v2437 = vshrl.u32 %v2436, 7
    %v2438 = vsub.s32 0, %v2437
    %v2439 = vrot.slane %v2434, %v2438
    %v2440 = vlaneseq
    %v2441 = vshrl.u32 %v2440, 7
    %v2442 = vsub.s32 1, %v2441
    %v2443 = vrot.slane %v2434, %v2442
    %v2444 = vlaneseq
    %v2445 = vshrl.u32 %v2444, 7
    %v2446 = vsub.s32 2, %v2445
    %v2447 = vrot.slane %v2434, %v2446
    %v2448 = vlaneseq
    %v2449 = vshrl.u32 %v2448, 7
    %v2450 = vsub.s32 3, %v2449
    %v2451 = vrot.slane %v2434, %v2450
    %2456 = vmatprep.subr.mxu0 %v2367
    %2457 = vmatpush1.msra.mxu0 %v2366
    %2458 = vmatprep.subr.mxu0 %v2363
    %2459 = vmatpush1.msra.mxu0 %v2362
    %2460 = vmatprep.subr.mxu0 %v2359
    %2461 = vmatpush1.msra.mxu0 %v2358
    %2462 = vmatprep.subr.mxu0 %v2355
    %2463 = vmatpush1.msra.mxu0 %v2354
    %2464 = vmatprep.subr.mxu0 %v2351
    %2465 = vmatpush1.msra.mxu0 %v2350
    %2466 = vmatprep.subr.mxu0 %v2347
    %2467 = vmatpush1.msra.mxu0 %v2346
    %2468 = vmatprep.subr.mxu0 %v2343
    %2469 = vmatpush1.msra.mxu0 %v2342
    %2470 = vmatprep.subr.mxu0 %v2339
    %2471 = vmatpush1.msra.mxu0 %v2338
    %2472 = vmatprep.subr.mxu0 %v2335
    %2473 = vmatpush1.msra.mxu0 %v2334
    %2474 = vmatprep.subr.mxu0 %v2331
    %2475 = vmatpush1.msra.mxu0 %v2330
    %2476 = vmatprep.subr.mxu0 %v2327
    %2477 = vmatpush1.msra.mxu0 %v2326
    %2478 = vmatprep.subr.mxu0 %v2323
    %2479 = vmatpush1.msra.mxu0 %v2322
    %2480 = vmatprep.subr.mxu0 %v2319
    %2481 = vmatpush1.msra.mxu0 %v2318
    %2482 = vmatprep.subr.mxu0 %v2315
    %2483 = vmatpush1.msra.mxu0 %v2314
    %2484 = vmatprep.subr.mxu0 %v2311
    %2485 = vmatpush1.msra.mxu0 %v2310
    %2486 = vmatprep.subr.mxu0 %v2307
    %2487 = vmatpush1.msra.mxu0 %v2306
    %2488 = vmatprep.subr.mxu0 %v2431
    %2489 = vmatpush2.msra.mxu0 %v2430
    %2490 = vmatprep.subr.mxu0 %v2427
    %2491 = vmatpush2.msra.mxu0 %v2426
    %2492 = vmatprep.subr.mxu0 %v2423
    %2493 = vmatpush2.msra.mxu0 %v2422
    %2494 = vmatprep.subr.mxu0 %v2419
    %2495 = vmatpush2.msra.mxu0 %v2418
    %2496 = vmatprep.subr.mxu0 %v2415
    %2497 = vmatpush2.msra.mxu0 %v2414
    %2498 = vmatprep.subr.mxu0 %v2411
    %2499 = vmatpush2.msra.mxu0 %v2410
    %2500 = vmatprep.subr.mxu0 %v2407
    %2501 = vmatpush2.msra.mxu0 %v2406
    %2502 = vmatprep.subr.mxu0 %v2403
    %2503 = vmatpush2.msra.mxu0 %v2402
    %2504 = vmatprep.subr.mxu0 %v2399
    %2505 = vmatpush2.msra.mxu0 %v2398
    %2506 = vmatprep.subr.mxu0 %v2395
    %2507 = vmatpush2.msra.mxu0 %v2394
    %2508 = vmatprep.subr.mxu0 %v2391
    %2509 = vmatpush2.msra.mxu0 %v2390
    %2510 = vmatprep.subr.mxu0 %v2387
    %2511 = vmatpush2.msra.mxu0 %v2386
    %2512 = vmatprep.subr.mxu0 %v2383
    %2513 = vmatpush2.msra.mxu0 %v2382
    %2514 = vmatprep.subr.mxu0 %v2379
    %2515 = vmatpush2.msra.mxu0 %v2378
    %2516 = vmatprep.subr.mxu0 %v2375
    %2517 = vmatpush2.msra.mxu0 %v2374
    %2518 = vmatprep.subr.mxu0 %v2371
    %2519 = vmatpush2.msra.mxu0 %v2370
    %2520 = vmatprep.mubr.f32.mxu0 %v2305
    %2521 = vmatmul.mubr.f32.gmra.mxu0 %v2304
    %v2522 = vpop.f32.mrf.mxu0
    %v2523 = vadd.f32 %v2439, %v2522
    %v2524 = vpop.f32.mrf.mxu0
    %v2525 = vadd.f32 %v2443, %v2524
    %2526 = vdwg.mxu0
    %2527 = vmatprep.subr.mxu0 %v2369
    %2528 = vmatpush1.msra.mxu0 %v2368
    %2529 = vmatprep.subr.mxu0 %v2365
    %2530 = vmatpush1.msra.mxu0 %v2364
    %2531 = vmatprep.subr.mxu0 %v2361
    %2532 = vmatpush1.msra.mxu0 %v2360
    %2533 = vmatprep.subr.mxu0 %v2357
    %2534 = vmatpush1.msra.mxu0 %v2356
    %2535 = vmatprep.subr.mxu0 %v2353
    %2536 = vmatpush1.msra.mxu0 %v2352
    %2537 = vmatprep.subr.mxu0 %v2349
    %2538 = vmatpush1.msra.mxu0 %v2348
    %2539 = vmatprep.subr.mxu0 %v2345
    %2540 = vmatpush1.msra.mxu0 %v2344
    %2541 = vmatprep.subr.mxu0 %v2341
    %2542 = vmatpush1.msra.mxu0 %v2340
    %2543 = vmatprep.subr.mxu0 %v2337
    %2544 = vmatpush1.msra.mxu0 %v2336
    %2545 = vmatprep.subr.mxu0 %v2333
    %2546 = vmatpush1.msra.mxu0 %v2332
    %2547 = vmatprep.subr.mxu0 %v2329
    %2548 = vmatpush1.msra.mxu0 %v2328
    %2549 = vmatprep.subr.mxu0 %v2325
    %2550 = vmatpush1.msra.mxu0 %v2324
    %2551 = vmatprep.subr.mxu0 %v2321
    %2552 = vmatpush1.msra.mxu0 %v2320
    %2553 = vmatprep.subr.mxu0 %v2317
    %2554 = vmatpush1.msra.mxu0 %v2316
    %2555 = vmatprep.subr.mxu0 %v2313
    %2556 = vmatpush1.msra.mxu0 %v2312
    %2557 = vmatprep.subr.mxu0 %v2309
    %2558 = vmatpush1.msra.mxu0 %v2308
    %2559 = vmatprep.subr.mxu0 %v2433
    %2560 = vmatpush2.msra.mxu0 %v2432
    %2561 = vmatprep.subr.mxu0 %v2429
    %2562 = vmatpush2.msra.mxu0 %v2428
    %2563 = vmatprep.subr.mxu0 %v2425
    %2564 = vmatpush2.msra.mxu0 %v2424
    %2565 = vmatprep.subr.mxu0 %v2421
    %2566 = vmatpush2.msra.mxu0 %v2420
    %2567 = vmatprep.subr.mxu0 %v2417
    %2568 = vmatpush2.msra.mxu0 %v2416
    %2569 = vmatprep.subr.mxu0 %v2413
    %2570 = vmatpush2.msra.mxu0 %v2412
    %2571 = vmatprep.subr.mxu0 %v2409
    %2572 = vmatpush2.msra.mxu0 %v2408
    %2573 = vmatprep.subr.mxu0 %v2405
    %2574 = vmatpush2.msra.mxu0 %v2404
    %2575 = vmatprep.subr.mxu0 %v2401
    %2576 = vmatpush2.msra.mxu0 %v2400
    %2577 = vmatprep.subr.mxu0 %v2397
    %2578 = vmatpush2.msra.mxu0 %v2396
    %2579 = vmatprep.subr.mxu0 %v2393
    %2580 = vmatpush2.msra.mxu0 %v2392
    %2581 = vmatprep.subr.mxu0 %v2389
    %2582 = vmatpush2.msra.mxu0 %v2388
    %2583 = vmatprep.subr.mxu0 %v2385
    %2584 = vmatpush2.msra.mxu0 %v2384
    %2585 = vmatprep.subr.mxu0 %v2381
    %2586 = vmatpush2.msra.mxu0 %v2380
    %2587 = vmatprep.subr.mxu0 %v2377
    %2588 = vmatpush2.msra.mxu0 %v2376
    %2589 = vmatprep.subr.mxu0 %v2373
    %2590 = vmatpush2.msra.mxu0 %v2372
    %2591 = vmatprep.mubr.f32.mxu0 %v2305
    %2592 = vmatmul.mubr.f32.gmra.mxu0 %v2304
    %v2593 = vpop.f32.mrf.mxu0
    %v2594 = vadd.f32 %v2447, %v2593
    %v2595 = vpop.f32.mrf.mxu0
    %v2596 = vadd.f32 %v2451, %v2595
    %2597 = vdwg.mxu0
    %v2598 = vxor.u32 %v2523, 2147483648
    %v2599 = vmul.f32 %v2598, 1.442695
    %v2600 = vpow.pop %v2599
    %v2601 = vadd.f32 %v2600, 1.0
    %v2602 = vrcp.pop %v2601
    %v2603 = vmul.f32 1.0, %v2602
    %v2604 = vxor.u32 %v2525, 2147483648
    %v2605 = vmul.f32 %v2604, 1.442695
    %v2606 = vpow.pop %v2605
    %v2607 = vadd.f32 %v2606, 1.0
    %v2608 = vrcp.pop %v2607
    %v2609 = vmul.f32 1.0, %v2608
    %v2610 = vtanh.pop %v2594
    %v2611 = vxor.u32 %v2596, 2147483648
    %v2612 = vmul.f32 %v2611, 1.442695
    %v2613 = vpow.pop %v2612
    %v2614 = vadd.f32 %v2613, 1.0
    %v2615 = vrcp.pop %v2614
    %v2616 = vmul.f32 1.0, %v2615
    %v2617 = vld [vmem:[%s1261] sm:$0xff]
    %v2618 = vmul.f32 %v2609, %v2617
    %v2619 = vmul.f32 %v2603, %v2610
    %v2620 = vadd.f32 %v2618, %v2619
    %2621 = vst [vmem:[%s1261] sm:$0xff] %v2620
    %v2622 = vtanh.pop %v2620
    %v2623 = vmul.f32 %v2616, %v2622
    %2624 = vst [vmem:[%s944 + $0x8] sm:$0xff] %v2623
    %2625 = vst [vmem:[#allocation3] sm:$0xff] %v2623
    %s2626 = scalar_lea.vmem [#allocation5], 16
    %2627 = vst [vmem:[%s2626] sm:$0xff] %v2623
    %s2628 = sadd.s32 %s591, 3
    %p2629 = scmp.gt.s32.totalorder %s2628, 0
    %v2630 = vld [vmem:[#allocation3] sm:$0xff]
    %v2631 = vld [vmem:[#allocation3 + $0x8] sm:$0xff]
    %v2632 = vld [vmem:[#allocation2] sm:$0xff]
    %v2633 = vld [vmem:[#allocation2 + $0x8] sm:$0xff]
    %v2634 = vld [vmem:[#allocation2 + $0x10] sm:$0xff]
    %v2635 = vld [vmem:[#allocation2 + $0x18] sm:$0xff]
    %v2636 = vld [vmem:[#allocation2 + $0x20] sm:$0xff]
    %v2637 = vld [vmem:[#allocation2 + $0x28] sm:$0xff]
    %v2638 = vld [vmem:[#allocation2 + $0x30] sm:$0xff]
    %v2639 = vld [vmem:[#allocation2 + $0x38] sm:$0xff]
    %v2640 = vld [vmem:[#allocation2 + $0x40] sm:$0xff]
    %v2641 = vld [vmem:[#allocation2 + $0x48] sm:$0xff]
    %v2642 = vld [vmem:[#allocation2 + $0x50] sm:$0xff]
    %v2643 = vld [vmem:[#allocation2 + $0x58] sm:$0xff]
    %v2644 = vld [vmem:[#allocation2 + $0x60] sm:$0xff]
    %v2645 = vld [vmem:[#allocation2 + $0x68] sm:$0xff]
    %v2646 = vld [vmem:[#allocation2 + $0x70] sm:$0xff]
    %v2647 = vld [vmem:[#allocation2 + $0x78] sm:$0xff]
    %v2648 = vld [vmem:[#allocation2 + $0x80] sm:$0xff]
    %v2649 = vld [vmem:[#allocation2 + $0x88] sm:$0xff]
    %v2650 = vld [vmem:[#allocation2 + $0x90] sm:$0xff]
    %v2651 = vld [vmem:[#allocation2 + $0x98] sm:$0xff]
    %v2652 = vld [vmem:[#allocation2 + $0xa0] sm:$0xff]
    %v2653 = vld [vmem:[#allocation2 + $0xa8] sm:$0xff]
    %v2654 = vld [vmem:[#allocation2 + $0xb0] sm:$0xff]
    %v2655 = vld [vmem:[#allocation2 + $0xb8] sm:$0xff]
    %v2656 = vld [vmem:[#allocation2 + $0xc0] sm:$0xff]
    %v2657 = vld [vmem:[#allocation2 + $0xc8] sm:$0xff]
    %v2658 = vld [vmem:[#allocation2 + $0xd0] sm:$0xff]
    %v2659 = vld [vmem:[#allocation2 + $0xd8] sm:$0xff]
    %v2660 = vld [vmem:[#allocation2 + $0xe0] sm:$0xff]
    %v2661 = vld [vmem:[#allocation2 + $0xe8] sm:$0xff]
    %v2662 = vld [vmem:[#allocation2 + $0xf0] sm:$0xff]
    %v2663 = vld [vmem:[#allocation2 + $0xf8] sm:$0xff]
    %v2664 = vld [vmem:[#allocation2 + $0x100] sm:$0xff]
    %v2665 = vld [vmem:[#allocation2 + $0x108] sm:$0xff]
    %v2666 = vld [vmem:[#allocation2 + $0x110] sm:$0xff]
    %v2667 = vld [vmem:[#allocation2 + $0x118] sm:$0xff]
    %v2668 = vld [vmem:[#allocation2 + $0x120] sm:$0xff]
    %v2669 = vld [vmem:[#allocation2 + $0x128] sm:$0xff]
    %v2670 = vld [vmem:[#allocation2 + $0x130] sm:$0xff]
    %v2671 = vld [vmem:[#allocation2 + $0x138] sm:$0xff]
    %v2672 = vld [vmem:[#allocation2 + $0x140] sm:$0xff]
    %v2673 = vld [vmem:[#allocation2 + $0x148] sm:$0xff]
    %v2674 = vld [vmem:[#allocation2 + $0x150] sm:$0xff]
    %v2675 = vld [vmem:[#allocation2 + $0x158] sm:$0xff]
    %v2676 = vld [vmem:[#allocation2 + $0x160] sm:$0xff]
    %v2677 = vld [vmem:[#allocation2 + $0x168] sm:$0xff]
    %v2678 = vld [vmem:[#allocation2 + $0x170] sm:$0xff]
    %v2679 = vld [vmem:[#allocation2 + $0x178] sm:$0xff]
    %v2680 = vld [vmem:[#allocation2 + $0x180] sm:$0xff]
    %v2681 = vld [vmem:[#allocation2 + $0x188] sm:$0xff]
    %v2682 = vld [vmem:[#allocation2 + $0x190] sm:$0xff]
    %v2683 = vld [vmem:[#allocation2 + $0x198] sm:$0xff]
    %v2684 = vld [vmem:[#allocation2 + $0x1a0] sm:$0xff]
    %v2685 = vld [vmem:[#allocation2 + $0x1a8] sm:$0xff]
    %v2686 = vld [vmem:[#allocation2 + $0x1b0] sm:$0xff]
    %v2687 = vld [vmem:[#allocation2 + $0x1b8] sm:$0xff]
    %v2688 = vld [vmem:[#allocation2 + $0x1c0] sm:$0xff]
    %v2689 = vld [vmem:[#allocation2 + $0x1c8] sm:$0xff]
    %v2690 = vld [vmem:[#allocation2 + $0x1d0] sm:$0xff]
    %v2691 = vld [vmem:[#allocation2 + $0x1d8] sm:$0xff]
    %v2692 = vld [vmem:[#allocation2 + $0x1e0] sm:$0xff]
    %v2693 = vld [vmem:[#allocation2 + $0x1e8] sm:$0xff]
    %v2694 = vld [vmem:[#allocation2 + $0x1f0] sm:$0xff]
    %v2695 = vld [vmem:[#allocation2 + $0x1f8] sm:$0xff]
    %v2696 = vld [vmem:[#allocation2 + $0x200] sm:$0xff]
    %v2697 = vld [vmem:[#allocation2 + $0x208] sm:$0xff]
    %v2698 = vld [vmem:[#allocation2 + $0x210] sm:$0xff]
    %v2699 = vld [vmem:[#allocation2 + $0x218] sm:$0xff]
    %v2700 = vld [vmem:[#allocation2 + $0x220] sm:$0xff]
    %v2701 = vld [vmem:[#allocation2 + $0x228] sm:$0xff]
    %v2702 = vld [vmem:[#allocation2 + $0x230] sm:$0xff]
    %v2703 = vld [vmem:[#allocation2 + $0x238] sm:$0xff]
    %v2704 = vld [vmem:[#allocation2 + $0x240] sm:$0xff]
    %v2705 = vld [vmem:[#allocation2 + $0x248] sm:$0xff]
    %v2706 = vld [vmem:[#allocation2 + $0x250] sm:$0xff]
    %v2707 = vld [vmem:[#allocation2 + $0x258] sm:$0xff]
    %v2708 = vld [vmem:[#allocation2 + $0x260] sm:$0xff]
    %v2709 = vld [vmem:[#allocation2 + $0x268] sm:$0xff]
    %v2710 = vld [vmem:[#allocation2 + $0x270] sm:$0xff]
    %v2711 = vld [vmem:[#allocation2 + $0x278] sm:$0xff]
    %v2712 = vld [vmem:[#allocation2 + $0x280] sm:$0xff]
    %v2713 = vld [vmem:[#allocation2 + $0x288] sm:$0xff]
    %v2714 = vld [vmem:[#allocation2 + $0x290] sm:$0xff]
    %v2715 = vld [vmem:[#allocation2 + $0x298] sm:$0xff]
    %v2716 = vld [vmem:[#allocation2 + $0x2a0] sm:$0xff]
    %v2717 = vld [vmem:[#allocation2 + $0x2a8] sm:$0xff]
    %v2718 = vld [vmem:[#allocation2 + $0x2b0] sm:$0xff]
    %v2719 = vld [vmem:[#allocation2 + $0x2b8] sm:$0xff]
    %v2720 = vld [vmem:[#allocation2 + $0x2c0] sm:$0xff]
    %v2721 = vld [vmem:[#allocation2 + $0x2c8] sm:$0xff]
    %v2722 = vld [vmem:[#allocation2 + $0x2d0] sm:$0xff]
    %v2723 = vld [vmem:[#allocation2 + $0x2d8] sm:$0xff]
    %v2724 = vld [vmem:[#allocation2 + $0x2e0] sm:$0xff]
    %v2725 = vld [vmem:[#allocation2 + $0x2e8] sm:$0xff]
    %v2726 = vld [vmem:[#allocation2 + $0x2f0] sm:$0xff]
    %v2727 = vld [vmem:[#allocation2 + $0x2f8] sm:$0xff]
    %v2728 = vld [vmem:[#allocation2 + $0x300] sm:$0xff]
    %v2729 = vld [vmem:[#allocation2 + $0x308] sm:$0xff]
    %v2730 = vld [vmem:[#allocation2 + $0x310] sm:$0xff]
    %v2731 = vld [vmem:[#allocation2 + $0x318] sm:$0xff]
    %v2732 = vld [vmem:[#allocation2 + $0x320] sm:$0xff]
    %v2733 = vld [vmem:[#allocation2 + $0x328] sm:$0xff]
    %v2734 = vld [vmem:[#allocation2 + $0x330] sm:$0xff]
    %v2735 = vld [vmem:[#allocation2 + $0x338] sm:$0xff]
    %v2736 = vld [vmem:[#allocation2 + $0x340] sm:$0xff]
    %v2737 = vld [vmem:[#allocation2 + $0x348] sm:$0xff]
    %v2738 = vld [vmem:[#allocation2 + $0x350] sm:$0xff]
    %v2739 = vld [vmem:[#allocation2 + $0x358] sm:$0xff]
    %v2740 = vld [vmem:[#allocation2 + $0x360] sm:$0xff]
    %v2741 = vld [vmem:[#allocation2 + $0x368] sm:$0xff]
    %v2742 = vld [vmem:[#allocation2 + $0x370] sm:$0xff]
    %v2743 = vld [vmem:[#allocation2 + $0x378] sm:$0xff]
    %v2744 = vld [vmem:[#allocation2 + $0x380] sm:$0xff]
    %v2745 = vld [vmem:[#allocation2 + $0x388] sm:$0xff]
    %v2746 = vld [vmem:[#allocation2 + $0x390] sm:$0xff]
    %v2747 = vld [vmem:[#allocation2 + $0x398] sm:$0xff]
    %v2748 = vld [vmem:[#allocation2 + $0x3a0] sm:$0xff]
    %v2749 = vld [vmem:[#allocation2 + $0x3a8] sm:$0xff]
    %v2750 = vld [vmem:[#allocation2 + $0x3b0] sm:$0xff]
    %v2751 = vld [vmem:[#allocation2 + $0x3b8] sm:$0xff]
    %v2752 = vld [vmem:[#allocation2 + $0x3c0] sm:$0xff]
    %v2753 = vld [vmem:[#allocation2 + $0x3c8] sm:$0xff]
    %v2754 = vld [vmem:[#allocation2 + $0x3d0] sm:$0xff]
    %v2755 = vld [vmem:[#allocation2 + $0x3d8] sm:$0xff]
    %v2756 = vld [vmem:[#allocation2 + $0x3e0] sm:$0xff]
    %v2757 = vld [vmem:[#allocation2 + $0x3e8] sm:$0xff]
    %v2758 = vld [vmem:[#allocation2 + $0x3f0] sm:$0xff]
    %v2759 = vld [vmem:[#allocation2 + $0x3f8] sm:$0xff]
    %v2760 = vld [vmem:[%s1] sm:$0xf]
    %v2762 = vlaneseq
    %v2763 = vshrl.u32 %v2762, 7
    %v2764 = vsub.s32 0, %v2763
    %v2765 = vrot.slane %v2760, %v2764
    %v2766 = vlaneseq
    %v2767 = vshrl.u32 %v2766, 7
    %v2768 = vsub.s32 1, %v2767
    %v2769 = vrot.slane %v2760, %v2768
    %v2770 = vlaneseq
    %v2771 = vshrl.u32 %v2770, 7
    %v2772 = vsub.s32 2, %v2771
    %v2773 = vrot.slane %v2760, %v2772
    %v2774 = vlaneseq
    %v2775 = vshrl.u32 %v2774, 7
    %v2776 = vsub.s32 3, %v2775
    %v2777 = vrot.slane %v2760, %v2776
    %2782 = vmatprep.subr.mxu0 %v2693
    %2783 = vmatpush1.msra.mxu0 %v2692
    %2784 = vmatprep.subr.mxu0 %v2689
    %2785 = vmatpush1.msra.mxu0 %v2688
    %2786 = vmatprep.subr.mxu0 %v2685
    %2787 = vmatpush1.msra.mxu0 %v2684
    %2788 = vmatprep.subr.mxu0 %v2681
    %2789 = vmatpush1.msra.mxu0 %v2680
    %2790 = vmatprep.subr.mxu0 %v2677
    %2791 = vmatpush1.msra.mxu0 %v2676
    %2792 = vmatprep.subr.mxu0 %v2673
    %2793 = vmatpush1.msra.mxu0 %v2672
    %2794 = vmatprep.subr.mxu0 %v2669
    %2795 = vmatpush1.msra.mxu0 %v2668
    %2796 = vmatprep.subr.mxu0 %v2665
    %2797 = vmatpush1.msra.mxu0 %v2664
    %2798 = vmatprep.subr.mxu0 %v2661
    %2799 = vmatpush1.msra.mxu0 %v2660
    %2800 = vmatprep.subr.mxu0 %v2657
    %2801 = vmatpush1.msra.mxu0 %v2656
    %2802 = vmatprep.subr.mxu0 %v2653
    %2803 = vmatpush1.msra.mxu0 %v2652
    %2804 = vmatprep.subr.mxu0 %v2649
    %2805 = vmatpush1.msra.mxu0 %v2648
    %2806 = vmatprep.subr.mxu0 %v2645
    %2807 = vmatpush1.msra.mxu0 %v2644
    %2808 = vmatprep.subr.mxu0 %v2641
    %2809 = vmatpush1.msra.mxu0 %v2640
    %2810 = vmatprep.subr.mxu0 %v2637
    %2811 = vmatpush1.msra.mxu0 %v2636
    %2812 = vmatprep.subr.mxu0 %v2633
    %2813 = vmatpush1.msra.mxu0 %v2632
    %2814 = vmatprep.subr.mxu0 %v2757
    %2815 = vmatpush2.msra.mxu0 %v2756
    %2816 = vmatprep.subr.mxu0 %v2753
    %2817 = vmatpush2.msra.mxu0 %v2752
    %2818 = vmatprep.subr.mxu0 %v2749
    %2819 = vmatpush2.msra.mxu0 %v2748
    %2820 = vmatprep.subr.mxu0 %v2745
    %2821 = vmatpush2.msra.mxu0 %v2744
    %2822 = vmatprep.subr.mxu0 %v2741
    %2823 = vmatpush2.msra.mxu0 %v2740
    %2824 = vmatprep.subr.mxu0 %v2737
    %2825 = vmatpush2.msra.mxu0 %v2736
    %2826 = vmatprep.subr.mxu0 %v2733
    %2827 = vmatpush2.msra.mxu0 %v2732
    %2828 = vmatprep.subr.mxu0 %v2729
    %2829 = vmatpush2.msra.mxu0 %v2728
    %2830 = vmatprep.subr.mxu0 %v2725
    %2831 = vmatpush2.msra.mxu0 %v2724
    %2832 = vmatprep.subr.mxu0 %v2721
    %2833 = vmatpush2.msra.mxu0 %v2720
    %2834 = vmatprep.subr.mxu0 %v2717
    %2835 = vmatpush2.msra.mxu0 %v2716
    %2836 = vmatprep.subr.mxu0 %v2713
    %2837 = vmatpush2.msra.mxu0 %v2712
    %2838 = vmatprep.subr.mxu0 %v2709
    %2839 = vmatpush2.msra.mxu0 %v2708
    %2840 = vmatprep.subr.mxu0 %v2705
    %2841 = vmatpush2.msra.mxu0 %v2704
    %2842 = vmatprep.subr.mxu0 %v2701
    %2843 = vmatpush2.msra.mxu0 %v2700
    %2844 = vmatprep.subr.mxu0 %v2697
    %2845 = vmatpush2.msra.mxu0 %v2696
    %2846 = vmatprep.mubr.f32.mxu0 %v2631
    %2847 = vmatmul.mubr.f32.gmra.mxu0 %v2630
    %v2848 = vpop.f32.mrf.mxu0
    %v2849 = vadd.f32 %v2765, %v2848
    %v2850 = vpop.f32.mrf.mxu0
    %v2851 = vadd.f32 %v2769, %v2850
    %2852 = vdwg.mxu0
    %2853 = vmatprep.subr.mxu0 %v2695
    %2854 = vmatpush1.msra.mxu0 %v2694
    %2855 = vmatprep.subr.mxu0 %v2691
    %2856 = vmatpush1.msra.mxu0 %v2690
    %2857 = vmatprep.subr.mxu0 %v2687
    %2858 = vmatpush1.msra.mxu0 %v2686
    %2859 = vmatprep.subr.mxu0 %v2683
    %2860 = vmatpush1.msra.mxu0 %v2682
    %2861 = vmatprep.subr.mxu0 %v2679
    %2862 = vmatpush1.msra.mxu0 %v2678
    %2863 = vmatprep.subr.mxu0 %v2675
    %2864 = vmatpush1.msra.mxu0 %v2674
    %2865 = vmatprep.subr.mxu0 %v2671
    %2866 = vmatpush1.msra.mxu0 %v2670
    %2867 = vmatprep.subr.mxu0 %v2667
    %2868 = vmatpush1.msra.mxu0 %v2666
    %2869 = vmatprep.subr.mxu0 %v2663
    %2870 = vmatpush1.msra.mxu0 %v2662
    %2871 = vmatprep.subr.mxu0 %v2659
    %2872 = vmatpush1.msra.mxu0 %v2658
    %2873 = vmatprep.subr.mxu0 %v2655
    %2874 = vmatpush1.msra.mxu0 %v2654
    %2875 = vmatprep.subr.mxu0 %v2651
    %2876 = vmatpush1.msra.mxu0 %v2650
    %2877 = vmatprep.subr.mxu0 %v2647
    %2878 = vmatpush1.msra.mxu0 %v2646
    %2879 = vmatprep.subr.mxu0 %v2643
    %2880 = vmatpush1.msra.mxu0 %v2642
    %2881 = vmatprep.subr.mxu0 %v2639
    %2882 = vmatpush1.msra.mxu0 %v2638
    %2883 = vmatprep.subr.mxu0 %v2635
    %2884 = vmatpush1.msra.mxu0 %v2634
    %2885 = vmatprep.subr.mxu0 %v2759
    %2886 = vmatpush2.msra.mxu0 %v2758
    %2887 = vmatprep.subr.mxu0 %v2755
    %2888 = vmatpush2.msra.mxu0 %v2754
    %2889 = vmatprep.subr.mxu0 %v2751
    %2890 = vmatpush2.msra.mxu0 %v2750
    %2891 = vmatprep.subr.mxu0 %v2747
    %2892 = vmatpush2.msra.mxu0 %v2746
    %2893 = vmatprep.subr.mxu0 %v2743
    %2894 = vmatpush2.msra.mxu0 %v2742
    %2895 = vmatprep.subr.mxu0 %v2739
    %2896 = vmatpush2.msra.mxu0 %v2738
    %2897 = vmatprep.subr.mxu0 %v2735
    %2898 = vmatpush2.msra.mxu0 %v2734
    %2899 = vmatprep.subr.mxu0 %v2731
    %2900 = vmatpush2.msra.mxu0 %v2730
    %2901 = vmatprep.subr.mxu0 %v2727
    %2902 = vmatpush2.msra.mxu0 %v2726
    %2903 = vmatprep.subr.mxu0 %v2723
    %2904 = vmatpush2.msra.mxu0 %v2722
    %2905 = vmatprep.subr.mxu0 %v2719
    %2906 = vmatpush2.msra.mxu0 %v2718
    %2907 = vmatprep.subr.mxu0 %v2715
    %2908 = vmatpush2.msra.mxu0 %v2714
    %2909 = vmatprep.subr.mxu0 %v2711
    %2910 = vmatpush2.msra.mxu0 %v2710
    %2911 = vmatprep.subr.mxu0 %v2707
    %2912 = vmatpush2.msra.mxu0 %v2706
    %2913 = vmatprep.subr.mxu0 %v2703
    %2914 = vmatpush2.msra.mxu0 %v2702
    %2915 = vmatprep.subr.mxu0 %v2699
    %2916 = vmatpush2.msra.mxu0 %v2698
    %2917 = vmatprep.mubr.f32.mxu0 %v2631
    %2918 = vmatmul.mubr.f32.gmra.mxu0 %v2630
    %v2919 = vpop.f32.mrf.mxu0
    %v2920 = vadd.f32 %v2773, %v2919
    %v2921 = vpop.f32.mrf.mxu0
    %v2922 = vadd.f32 %v2777, %v2921
    %2923 = vdwg.mxu0
    %v2924 = vld [vmem:[%s2] sm:$0xf]
    %s2925 = scalar_select %p2629, 1, 0
    %v2926 = vstv %s2925
    %vm2927 = vcmp.eq.s32.totalorder %v2926, 1
    %v2928 = vsel %vm2927, %v2924, 0.0
    %v2930 = vlaneseq
    %v2931 = vshrl.u32 %v2930, 7
    %v2932 = vsub.s32 0, %v2931
    %v2933 = vrot.slane %v2928, %v2932
    %v2934 = vlaneseq
    %v2935 = vshrl.u32 %v2934, 7
    %v2936 = vsub.s32 1, %v2935
    %v2937 = vrot.slane %v2928, %v2936
    %v2938 = vlaneseq
    %v2939 = vshrl.u32 %v2938, 7
    %v2940 = vsub.s32 2, %v2939
    %v2941 = vrot.slane %v2928, %v2940
    %v2942 = vlaneseq
    %v2943 = vshrl.u32 %v2942, 7
    %v2944 = vsub.s32 3, %v2943
    %v2945 = vrot.slane %v2928, %v2944
    %v2950 = vadd.f32 %v2849, %v2933
    %v2951 = vadd.f32 %v2851, %v2937
    %v2952 = vadd.f32 %v2920, %v2941
    %v2953 = vadd.f32 %v2922, %v2945
    %v2954 = vxor.u32 %v2950, 2147483648
    %v2955 = vmul.f32 %v2954, 1.442695
    %v2956 = vpow.pop %v2955
    %v2957 = vadd.f32 %v2956, 1.0
    %v2958 = vrcp.pop %v2957
    %v2959 = vmul.f32 1.0, %v2958
    %v2960 = vxor.u32 %v2951, 2147483648
    %v2961 = vmul.f32 %v2960, 1.442695
    %v2962 = vpow.pop %v2961
    %v2963 = vadd.f32 %v2962, 1.0
    %v2964 = vrcp.pop %v2963
    %v2965 = vmul.f32 1.0, %v2964
    %v2966 = vtanh.pop %v2952
    %v2967 = vxor.u32 %v2953, 2147483648
    %v2968 = vmul.f32 %v2967, 1.442695
    %v2969 = vpow.pop %v2968
    %v2970 = vadd.f32 %v2969, 1.0
    %v2971 = vrcp.pop %v2970
    %v2972 = vmul.f32 1.0, %v2971
    %v2973 = vld [vmem:[#allocation4] sm:$0xff]
    %v2974 = vmul.f32 %v2965, %v2973
    %v2975 = vmul.f32 %v2959, %v2966
    %v2976 = vadd.f32 %v2974, %v2975
    %2977 = vst [vmem:[#allocation4] sm:$0xff] %v2976
    %v2978 = vtanh.pop %v2976
    %v2979 = vmul.f32 %v2972, %v2978
    %2980 = vst [vmem:[#allocation3 + $0x8] sm:$0xff] %v2979
    %2981 = vst [vmem:[%s944] sm:$0xff] %v2979
    %v2982 = vld [vmem:[%s944] sm:$0xff]
    %v2983 = vld [vmem:[%s944 + $0x8] sm:$0xff]
    %v2984 = vld [vmem:[%s948] sm:$0xff]
    %v2985 = vld [vmem:[%s948 + $0x8] sm:$0xff]
    %v2986 = vld [vmem:[%s948 + $0x10] sm:$0xff]
    %v2987 = vld [vmem:[%s948 + $0x18] sm:$0xff]
    %v2988 = vld [vmem:[%s948 + $0x20] sm:$0xff]
    %v2989 = vld [vmem:[%s948 + $0x28] sm:$0xff]
    %v2990 = vld [vmem:[%s948 + $0x30] sm:$0xff]
    %v2991 = vld [vmem:[%s948 + $0x38] sm:$0xff]
    %v2992 = vld [vmem:[%s948 + $0x40] sm:$0xff]
    %v2993 = vld [vmem:[%s948 + $0x48] sm:$0xff]
    %v2994 = vld [vmem:[%s948 + $0x50] sm:$0xff]
    %v2995 = vld [vmem:[%s948 + $0x58] sm:$0xff]
    %v2996 = vld [vmem:[%s948 + $0x60] sm:$0xff]
    %v2997 = vld [vmem:[%s948 + $0x68] sm:$0xff]
    %v2998 = vld [vmem:[%s948 + $0x70] sm:$0xff]
    %v2999 = vld [vmem:[%s948 + $0x78] sm:$0xff]
    %v3000 = vld [vmem:[%s948 + $0x80] sm:$0xff]
    %v3001 = vld [vmem:[%s948 + $0x88] sm:$0xff]
    %v3002 = vld [vmem:[%s948 + $0x90] sm:$0xff]
    %v3003 = vld [vmem:[%s948 + $0x98] sm:$0xff]
    %v3004 = vld [vmem:[%s948 + $0xa0] sm:$0xff]
    %v3005 = vld [vmem:[%s948 + $0xa8] sm:$0xff]
    %v3006 = vld [vmem:[%s948 + $0xb0] sm:$0xff]
    %v3007 = vld [vmem:[%s948 + $0xb8] sm:$0xff]
    %v3008 = vld [vmem:[%s948 + $0xc0] sm:$0xff]
    %v3009 = vld [vmem:[%s948 + $0xc8] sm:$0xff]
    %v3010 = vld [vmem:[%s948 + $0xd0] sm:$0xff]
    %v3011 = vld [vmem:[%s948 + $0xd8] sm:$0xff]
    %v3012 = vld [vmem:[%s948 + $0xe0] sm:$0xff]
    %v3013 = vld [vmem:[%s948 + $0xe8] sm:$0xff]
    %v3014 = vld [vmem:[%s948 + $0xf0] sm:$0xff]
    %v3015 = vld [vmem:[%s948 + $0xf8] sm:$0xff]
    %v3016 = vld [vmem:[%s948 + $0x100] sm:$0xff]
    %v3017 = vld [vmem:[%s948 + $0x108] sm:$0xff]
    %v3018 = vld [vmem:[%s948 + $0x110] sm:$0xff]
    %v3019 = vld [vmem:[%s948 + $0x118] sm:$0xff]
    %v3020 = vld [vmem:[%s948 + $0x120] sm:$0xff]
    %v3021 = vld [vmem:[%s948 + $0x128] sm:$0xff]
    %v3022 = vld [vmem:[%s948 + $0x130] sm:$0xff]
    %v3023 = vld [vmem:[%s948 + $0x138] sm:$0xff]
    %v3024 = vld [vmem:[%s948 + $0x140] sm:$0xff]
    %v3025 = vld [vmem:[%s948 + $0x148] sm:$0xff]
    %v3026 = vld [vmem:[%s948 + $0x150] sm:$0xff]
    %v3027 = vld [vmem:[%s948 + $0x158] sm:$0xff]
    %v3028 = vld [vmem:[%s948 + $0x160] sm:$0xff]
    %v3029 = vld [vmem:[%s948 + $0x168] sm:$0xff]
    %v3030 = vld [vmem:[%s948 + $0x170] sm:$0xff]
    %v3031 = vld [vmem:[%s948 + $0x178] sm:$0xff]
    %v3032 = vld [vmem:[%s948 + $0x180] sm:$0xff]
    %v3033 = vld [vmem:[%s948 + $0x188] sm:$0xff]
    %v3034 = vld [vmem:[%s948 + $0x190] sm:$0xff]
    %v3035 = vld [vmem:[%s948 + $0x198] sm:$0xff]
    %v3036 = vld [vmem:[%s948 + $0x1a0] sm:$0xff]
    %v3037 = vld [vmem:[%s948 + $0x1a8] sm:$0xff]
    %v3038 = vld [vmem:[%s948 + $0x1b0] sm:$0xff]
    %v3039 = vld [vmem:[%s948 + $0x1b8] sm:$0xff]
    %v3040 = vld [vmem:[%s948 + $0x1c0] sm:$0xff]
    %v3041 = vld [vmem:[%s948 + $0x1c8] sm:$0xff]
    %v3042 = vld [vmem:[%s948 + $0x1d0] sm:$0xff]
    %v3043 = vld [vmem:[%s948 + $0x1d8] sm:$0xff]
    %v3044 = vld [vmem:[%s948 + $0x1e0] sm:$0xff]
    %v3045 = vld [vmem:[%s948 + $0x1e8] sm:$0xff]
    %v3046 = vld [vmem:[%s948 + $0x1f0] sm:$0xff]
    %v3047 = vld [vmem:[%s948 + $0x1f8] sm:$0xff]
    %v3048 = vld [vmem:[%s948 + $0x200] sm:$0xff]
    %v3049 = vld [vmem:[%s948 + $0x208] sm:$0xff]
    %v3050 = vld [vmem:[%s948 + $0x210] sm:$0xff]
    %v3051 = vld [vmem:[%s948 + $0x218] sm:$0xff]
    %v3052 = vld [vmem:[%s948 + $0x220] sm:$0xff]
    %v3053 = vld [vmem:[%s948 + $0x228] sm:$0xff]
    %v3054 = vld [vmem:[%s948 + $0x230] sm:$0xff]
    %v3055 = vld [vmem:[%s948 + $0x238] sm:$0xff]
    %v3056 = vld [vmem:[%s948 + $0x240] sm:$0xff]
    %v3057 = vld [vmem:[%s948 + $0x248] sm:$0xff]
    %v3058 = vld [vmem:[%s948 + $0x250] sm:$0xff]
    %v3059 = vld [vmem:[%s948 + $0x258] sm:$0xff]
    %v3060 = vld [vmem:[%s948 + $0x260] sm:$0xff]
    %v3061 = vld [vmem:[%s948 + $0x268] sm:$0xff]
    %v3062 = vld [vmem:[%s948 + $0x270] sm:$0xff]
    %v3063 = vld [vmem:[%s948 + $0x278] sm:$0xff]
    %v3064 = vld [vmem:[%s948 + $0x280] sm:$0xff]
    %v3065 = vld [vmem:[%s948 + $0x288] sm:$0xff]
    %v3066 = vld [vmem:[%s948 + $0x290] sm:$0xff]
    %v3067 = vld [vmem:[%s948 + $0x298] sm:$0xff]
    %v3068 = vld [vmem:[%s948 + $0x2a0] sm:$0xff]
    %v3069 = vld [vmem:[%s948 + $0x2a8] sm:$0xff]
    %v3070 = vld [vmem:[%s948 + $0x2b0] sm:$0xff]
    %v3071 = vld [vmem:[%s948 + $0x2b8] sm:$0xff]
    %v3072 = vld [vmem:[%s948 + $0x2c0] sm:$0xff]
    %v3073 = vld [vmem:[%s948 + $0x2c8] sm:$0xff]
    %v3074 = vld [vmem:[%s948 + $0x2d0] sm:$0xff]
    %v3075 = vld [vmem:[%s948 + $0x2d8] sm:$0xff]
    %v3076 = vld [vmem:[%s948 + $0x2e0] sm:$0xff]
    %v3077 = vld [vmem:[%s948 + $0x2e8] sm:$0xff]
    %v3078 = vld [vmem:[%s948 + $0x2f0] sm:$0xff]
    %v3079 = vld [vmem:[%s948 + $0x2f8] sm:$0xff]
    %v3080 = vld [vmem:[%s948 + $0x300] sm:$0xff]
    %v3081 = vld [vmem:[%s948 + $0x308] sm:$0xff]
    %v3082 = vld [vmem:[%s948 + $0x310] sm:$0xff]
    %v3083 = vld [vmem:[%s948 + $0x318] sm:$0xff]
    %v3084 = vld [vmem:[%s948 + $0x320] sm:$0xff]
    %v3085 = vld [vmem:[%s948 + $0x328] sm:$0xff]
    %v3086 = vld [vmem:[%s948 + $0x330] sm:$0xff]
    %v3087 = vld [vmem:[%s948 + $0x338] sm:$0xff]
    %v3088 = vld [vmem:[%s948 + $0x340] sm:$0xff]
    %v3089 = vld [vmem:[%s948 + $0x348] sm:$0xff]
    %v3090 = vld [vmem:[%s948 + $0x350] sm:$0xff]
    %v3091 = vld [vmem:[%s948 + $0x358] sm:$0xff]
    %v3092 = vld [vmem:[%s948 + $0x360] sm:$0xff]
    %v3093 = vld [vmem:[%s948 + $0x368] sm:$0xff]
    %v3094 = vld [vmem:[%s948 + $0x370] sm:$0xff]
    %v3095 = vld [vmem:[%s948 + $0x378] sm:$0xff]
    %v3096 = vld [vmem:[%s948 + $0x380] sm:$0xff]
    %v3097 = vld [vmem:[%s948 + $0x388] sm:$0xff]
    %v3098 = vld [vmem:[%s948 + $0x390] sm:$0xff]
    %v3099 = vld [vmem:[%s948 + $0x398] sm:$0xff]
    %v3100 = vld [vmem:[%s948 + $0x3a0] sm:$0xff]
    %v3101 = vld [vmem:[%s948 + $0x3a8] sm:$0xff]
    %v3102 = vld [vmem:[%s948 + $0x3b0] sm:$0xff]
    %v3103 = vld [vmem:[%s948 + $0x3b8] sm:$0xff]
    %v3104 = vld [vmem:[%s948 + $0x3c0] sm:$0xff]
    %v3105 = vld [vmem:[%s948 + $0x3c8] sm:$0xff]
    %v3106 = vld [vmem:[%s948 + $0x3d0] sm:$0xff]
    %v3107 = vld [vmem:[%s948 + $0x3d8] sm:$0xff]
    %v3108 = vld [vmem:[%s948 + $0x3e0] sm:$0xff]
    %v3109 = vld [vmem:[%s948 + $0x3e8] sm:$0xff]
    %v3110 = vld [vmem:[%s948 + $0x3f0] sm:$0xff]
    %v3111 = vld [vmem:[%s948 + $0x3f8] sm:$0xff]
    %v3112 = vld [vmem:[%s1077] sm:$0xf]
    %v3114 = vlaneseq
    %v3115 = vshrl.u32 %v3114, 7
    %v3116 = vsub.s32 0, %v3115
    %v3117 = vrot.slane %v3112, %v3116
    %v3118 = vlaneseq
    %v3119 = vshrl.u32 %v3118, 7
    %v3120 = vsub.s32 1, %v3119
    %v3121 = vrot.slane %v3112, %v3120
    %v3122 = vlaneseq
    %v3123 = vshrl.u32 %v3122, 7
    %v3124 = vsub.s32 2, %v3123
    %v3125 = vrot.slane %v3112, %v3124
    %v3126 = vlaneseq
    %v3127 = vshrl.u32 %v3126, 7
    %v3128 = vsub.s32 3, %v3127
    %v3129 = vrot.slane %v3112, %v3128
    %3134 = vmatprep.subr.mxu0 %v3045
    %3135 = vmatpush1.msra.mxu0 %v3044
    %3136 = vmatprep.subr.mxu0 %v3041
    %3137 = vmatpush1.msra.mxu0 %v3040
    %3138 = vmatprep.subr.mxu0 %v3037
    %3139 = vmatpush1.msra.mxu0 %v3036
    %3140 = vmatprep.subr.mxu0 %v3033
    %3141 = vmatpush1.msra.mxu0 %v3032
    %3142 = vmatprep.subr.mxu0 %v3029
    %3143 = vmatpush1.msra.mxu0 %v3028
    %3144 = vmatprep.subr.mxu0 %v3025
    %3145 = vmatpush1.msra.mxu0 %v3024
    %3146 = vmatprep.subr.mxu0 %v3021
    %3147 = vmatpush1.msra.mxu0 %v3020
    %3148 = vmatprep.subr.mxu0 %v3017
    %3149 = vmatpush1.msra.mxu0 %v3016
    %3150 = vmatprep.subr.mxu0 %v3013
    %3151 = vmatpush1.msra.mxu0 %v3012
    %3152 = vmatprep.subr.mxu0 %v3009
    %3153 = vmatpush1.msra.mxu0 %v3008
    %3154 = vmatprep.subr.mxu0 %v3005
    %3155 = vmatpush1.msra.mxu0 %v3004
    %3156 = vmatprep.subr.mxu0 %v3001
    %3157 = vmatpush1.msra.mxu0 %v3000
    %3158 = vmatprep.subr.mxu0 %v2997
    %3159 = vmatpush1.msra.mxu0 %v2996
    %3160 = vmatprep.subr.mxu0 %v2993
    %3161 = vmatpush1.msra.mxu0 %v2992
    %3162 = vmatprep.subr.mxu0 %v2989
    %3163 = vmatpush1.msra.mxu0 %v2988
    %3164 = vmatprep.subr.mxu0 %v2985
    %3165 = vmatpush1.msra.mxu0 %v2984
    %3166 = vmatprep.subr.mxu0 %v3109
    %3167 = vmatpush2.msra.mxu0 %v3108
    %3168 = vmatprep.subr.mxu0 %v3105
    %3169 = vmatpush2.msra.mxu0 %v3104
    %3170 = vmatprep.subr.mxu0 %v3101
    %3171 = vmatpush2.msra.mxu0 %v3100
    %3172 = vmatprep.subr.mxu0 %v3097
    %3173 = vmatpush2.msra.mxu0 %v3096
    %3174 = vmatprep.subr.mxu0 %v3093
    %3175 = vmatpush2.msra.mxu0 %v3092
    %3176 = vmatprep.subr.mxu0 %v3089
    %3177 = vmatpush2.msra.mxu0 %v3088
    %3178 = vmatprep.subr.mxu0 %v3085
    %3179 = vmatpush2.msra.mxu0 %v3084
    %3180 = vmatprep.subr.mxu0 %v3081
    %3181 = vmatpush2.msra.mxu0 %v3080
    %3182 = vmatprep.subr.mxu0 %v3077
    %3183 = vmatpush2.msra.mxu0 %v3076
    %3184 = vmatprep.subr.mxu0 %v3073
    %3185 = vmatpush2.msra.mxu0 %v3072
    %3186 = vmatprep.subr.mxu0 %v3069
    %3187 = vmatpush2.msra.mxu0 %v3068
    %3188 = vmatprep.subr.mxu0 %v3065
    %3189 = vmatpush2.msra.mxu0 %v3064
    %3190 = vmatprep.subr.mxu0 %v3061
    %3191 = vmatpush2.msra.mxu0 %v3060
    %3192 = vmatprep.subr.mxu0 %v3057
    %3193 = vmatpush2.msra.mxu0 %v3056
    %3194 = vmatprep.subr.mxu0 %v3053
    %3195 = vmatpush2.msra.mxu0 %v3052
    %3196 = vmatprep.subr.mxu0 %v3049
    %3197 = vmatpush2.msra.mxu0 %v3048
    %3198 = vmatprep.mubr.f32.mxu0 %v2983
    %3199 = vmatmul.mubr.f32.gmra.mxu0 %v2982
    %v3200 = vpop.f32.mrf.mxu0
    %v3201 = vadd.f32 %v3117, %v3200
    %v3202 = vpop.f32.mrf.mxu0
    %v3203 = vadd.f32 %v3121, %v3202
    %3204 = vdwg.mxu0
    %3205 = vmatprep.subr.mxu0 %v3047
    %3206 = vmatpush1.msra.mxu0 %v3046
    %3207 = vmatprep.subr.mxu0 %v3043
    %3208 = vmatpush1.msra.mxu0 %v3042
    %3209 = vmatprep.subr.mxu0 %v3039
    %3210 = vmatpush1.msra.mxu0 %v3038
    %3211 = vmatprep.subr.mxu0 %v3035
    %3212 = vmatpush1.msra.mxu0 %v3034
    %3213 = vmatprep.subr.mxu0 %v3031
    %3214 = vmatpush1.msra.mxu0 %v3030
    %3215 = vmatprep.subr.mxu0 %v3027
    %3216 = vmatpush1.msra.mxu0 %v3026
    %3217 = vmatprep.subr.mxu0 %v3023
    %3218 = vmatpush1.msra.mxu0 %v3022
    %3219 = vmatprep.subr.mxu0 %v3019
    %3220 = vmatpush1.msra.mxu0 %v3018
    %3221 = vmatprep.subr.mxu0 %v3015
    %3222 = vmatpush1.msra.mxu0 %v3014
    %3223 = vmatprep.subr.mxu0 %v3011
    %3224 = vmatpush1.msra.mxu0 %v3010
    %3225 = vmatprep.subr.mxu0 %v3007
    %3226 = vmatpush1.msra.mxu0 %v3006
    %3227 = vmatprep.subr.mxu0 %v3003
    %3228 = vmatpush1.msra.mxu0 %v3002
    %3229 = vmatprep.subr.mxu0 %v2999
    %3230 = vmatpush1.msra.mxu0 %v2998
    %3231 = vmatprep.subr.mxu0 %v2995
    %3232 = vmatpush1.msra.mxu0 %v2994
    %3233 = vmatprep.subr.mxu0 %v2991
    %3234 = vmatpush1.msra.mxu0 %v2990
    %3235 = vmatprep.subr.mxu0 %v2987
    %3236 = vmatpush1.msra.mxu0 %v2986
    %3237 = vmatprep.subr.mxu0 %v3111
    %3238 = vmatpush2.msra.mxu0 %v3110
    %3239 = vmatprep.subr.mxu0 %v3107
    %3240 = vmatpush2.msra.mxu0 %v3106
    %3241 = vmatprep.subr.mxu0 %v3103
    %3242 = vmatpush2.msra.mxu0 %v3102
    %3243 = vmatprep.subr.mxu0 %v3099
    %3244 = vmatpush2.msra.mxu0 %v3098
    %3245 = vmatprep.subr.mxu0 %v3095
    %3246 = vmatpush2.msra.mxu0 %v3094
    %3247 = vmatprep.subr.mxu0 %v3091
    %3248 = vmatpush2.msra.mxu0 %v3090
    %3249 = vmatprep.subr.mxu0 %v3087
    %3250 = vmatpush2.msra.mxu0 %v3086
    %3251 = vmatprep.subr.mxu0 %v3083
    %3252 = vmatpush2.msra.mxu0 %v3082
    %3253 = vmatprep.subr.mxu0 %v3079
    %3254 = vmatpush2.msra.mxu0 %v3078
    %3255 = vmatprep.subr.mxu0 %v3075
    %3256 = vmatpush2.msra.mxu0 %v3074
    %3257 = vmatprep.subr.mxu0 %v3071
    %3258 = vmatpush2.msra.mxu0 %v3070
    %3259 = vmatprep.subr.mxu0 %v3067
    %3260 = vmatpush2.msra.mxu0 %v3066
    %3261 = vmatprep.subr.mxu0 %v3063
    %3262 = vmatpush2.msra.mxu0 %v3062
    %3263 = vmatprep.subr.mxu0 %v3059
    %3264 = vmatpush2.msra.mxu0 %v3058
    %3265 = vmatprep.subr.mxu0 %v3055
    %3266 = vmatpush2.msra.mxu0 %v3054
    %3267 = vmatprep.subr.mxu0 %v3051
    %3268 = vmatpush2.msra.mxu0 %v3050
    %3269 = vmatprep.mubr.f32.mxu0 %v2983
    %3270 = vmatmul.mubr.f32.gmra.mxu0 %v2982
    %v3271 = vpop.f32.mrf.mxu0
    %v3272 = vadd.f32 %v3125, %v3271
    %v3273 = vpop.f32.mrf.mxu0
    %v3274 = vadd.f32 %v3129, %v3273
    %3275 = vdwg.mxu0
    %v3276 = vxor.u32 %v3201, 2147483648
    %v3277 = vmul.f32 %v3276, 1.442695
    %v3278 = vpow.pop %v3277
    %v3279 = vadd.f32 %v3278, 1.0
    %v3280 = vrcp.pop %v3279
    %v3281 = vmul.f32 1.0, %v3280
    %v3282 = vxor.u32 %v3203, 2147483648
    %v3283 = vmul.f32 %v3282, 1.442695
    %v3284 = vpow.pop %v3283
    %v3285 = vadd.f32 %v3284, 1.0
    %v3286 = vrcp.pop %v3285
    %v3287 = vmul.f32 1.0, %v3286
    %v3288 = vtanh.pop %v3272
    %v3289 = vxor.u32 %v3274, 2147483648
    %v3290 = vmul.f32 %v3289, 1.442695
    %v3291 = vpow.pop %v3290
    %v3292 = vadd.f32 %v3291, 1.0
    %v3293 = vrcp.pop %v3292
    %v3294 = vmul.f32 1.0, %v3293
    %v3295 = vld [vmem:[%s1261] sm:$0xff]
    %v3296 = vmul.f32 %v3287, %v3295
    %v3297 = vmul.f32 %v3281, %v3288
    %v3298 = vadd.f32 %v3296, %v3297
    %3299 = vst [vmem:[%s1261] sm:$0xff] %v3298
    %v3300 = vtanh.pop %v3298
    %v3301 = vmul.f32 %v3294, %v3300
    %3302 = vst [vmem:[%s944 + $0x8] sm:$0xff] %v3301
    %3303 = vst [vmem:[#allocation3] sm:$0xff] %v3301
    %s3304 = scalar_lea.vmem [#allocation5], 24
    %3305 = vst [vmem:[%s3304] sm:$0xff] %v3301
    %s3306 = sadd.s32 %s591, 4
    %p3307 = scmp.gt.s32.totalorder %s3306, 0
    %v3308 = vld [vmem:[#allocation3] sm:$0xff]
    %v3309 = vld [vmem:[#allocation3 + $0x8] sm:$0xff]
    %v3310 = vld [vmem:[#allocation2] sm:$0xff]
    %v3311 = vld [vmem:[#allocation2 + $0x8] sm:$0xff]
    %v3312 = vld [vmem:[#allocation2 + $0x10] sm:$0xff]
    %v3313 = vld [vmem:[#allocation2 + $0x18] sm:$0xff]
    %v3314 = vld [vmem:[#allocation2 + $0x20] sm:$0xff]
    %v3315 = vld [vmem:[#allocation2 + $0x28] sm:$0xff]
    %v3316 = vld [vmem:[#allocation2 + $0x30] sm:$0xff]
    %v3317 = vld [vmem:[#allocation2 + $0x38] sm:$0xff]
    %v3318 = vld [vmem:[#allocation2 + $0x40] sm:$0xff]
    %v3319 = vld [vmem:[#allocation2 + $0x48] sm:$0xff]
    %v3320 = vld [vmem:[#allocation2 + $0x50] sm:$0xff]
    %v3321 = vld [vmem:[#allocation2 + $0x58] sm:$0xff]
    %v3322 = vld [vmem:[#allocation2 + $0x60] sm:$0xff]
    %v3323 = vld [vmem:[#allocation2 + $0x68] sm:$0xff]
    %v3324 = vld [vmem:[#allocation2 + $0x70] sm:$0xff]
    %v3325 = vld [vmem:[#allocation2 + $0x78] sm:$0xff]
    %v3326 = vld [vmem:[#allocation2 + $0x80] sm:$0xff]
    %v3327 = vld [vmem:[#allocation2 + $0x88] sm:$0xff]
    %v3328 = vld [vmem:[#allocation2 + $0x90] sm:$0xff]
    %v3329 = vld [vmem:[#allocation2 + $0x98] sm:$0xff]
    %v3330 = vld [vmem:[#allocation2 + $0xa0] sm:$0xff]
    %v3331 = vld [vmem:[#allocation2 + $0xa8] sm:$0xff]
    %v3332 = vld [vmem:[#allocation2 + $0xb0] sm:$0xff]
    %v3333 = vld [vmem:[#allocation2 + $0xb8] sm:$0xff]
    %v3334 = vld [vmem:[#allocation2 + $0xc0] sm:$0xff]
    %v3335 = vld [vmem:[#allocation2 + $0xc8] sm:$0xff]
    %v3336 = vld [vmem:[#allocation2 + $0xd0] sm:$0xff]
    %v3337 = vld [vmem:[#allocation2 + $0xd8] sm:$0xff]
    %v3338 = vld [vmem:[#allocation2 + $0xe0] sm:$0xff]
    %v3339 = vld [vmem:[#allocation2 + $0xe8] sm:$0xff]
    %v3340 = vld [vmem:[#allocation2 + $0xf0] sm:$0xff]
    %v3341 = vld [vmem:[#allocation2 + $0xf8] sm:$0xff]
    %v3342 = vld [vmem:[#allocation2 + $0x100] sm:$0xff]
    %v3343 = vld [vmem:[#allocation2 + $0x108] sm:$0xff]
    %v3344 = vld [vmem:[#allocation2 + $0x110] sm:$0xff]
    %v3345 = vld [vmem:[#allocation2 + $0x118] sm:$0xff]
    %v3346 = vld [vmem:[#allocation2 + $0x120] sm:$0xff]
    %v3347 = vld [vmem:[#allocation2 + $0x128] sm:$0xff]
    %v3348 = vld [vmem:[#allocation2 + $0x130] sm:$0xff]
    %v3349 = vld [vmem:[#allocation2 + $0x138] sm:$0xff]
    %v3350 = vld [vmem:[#allocation2 + $0x140] sm:$0xff]
    %v3351 = vld [vmem:[#allocation2 + $0x148] sm:$0xff]
    %v3352 = vld [vmem:[#allocation2 + $0x150] sm:$0xff]
    %v3353 = vld [vmem:[#allocation2 + $0x158] sm:$0xff]
    %v3354 = vld [vmem:[#allocation2 + $0x160] sm:$0xff]
    %v3355 = vld [vmem:[#allocation2 + $0x168] sm:$0xff]
    %v3356 = vld [vmem:[#allocation2 + $0x170] sm:$0xff]
    %v3357 = vld [vmem:[#allocation2 + $0x178] sm:$0xff]
    %v3358 = vld [vmem:[#allocation2 + $0x180] sm:$0xff]
    %v3359 = vld [vmem:[#allocation2 + $0x188] sm:$0xff]
    %v3360 = vld [vmem:[#allocation2 + $0x190] sm:$0xff]
    %v3361 = vld [vmem:[#allocation2 + $0x198] sm:$0xff]
    %v3362 = vld [vmem:[#allocation2 + $0x1a0] sm:$0xff]
    %v3363 = vld [vmem:[#allocation2 + $0x1a8] sm:$0xff]
    %v3364 = vld [vmem:[#allocation2 + $0x1b0] sm:$0xff]
    %v3365 = vld [vmem:[#allocation2 + $0x1b8] sm:$0xff]
    %v3366 = vld [vmem:[#allocation2 + $0x1c0] sm:$0xff]
    %v3367 = vld [vmem:[#allocation2 + $0x1c8] sm:$0xff]
    %v3368 = vld [vmem:[#allocation2 + $0x1d0] sm:$0xff]
    %v3369 = vld [vmem:[#allocation2 + $0x1d8] sm:$0xff]
    %v3370 = vld [vmem:[#allocation2 + $0x1e0] sm:$0xff]
    %v3371 = vld [vmem:[#allocation2 + $0x1e8] sm:$0xff]
    %v3372 = vld [vmem:[#allocation2 + $0x1f0] sm:$0xff]
    %v3373 = vld [vmem:[#allocation2 + $0x1f8] sm:$0xff]
    %v3374 = vld [vmem:[#allocation2 + $0x200] sm:$0xff]
    %v3375 = vld [vmem:[#allocation2 + $0x208] sm:$0xff]
    %v3376 = vld [vmem:[#allocation2 + $0x210] sm:$0xff]
    %v3377 = vld [vmem:[#allocation2 + $0x218] sm:$0xff]
    %v3378 = vld [vmem:[#allocation2 + $0x220] sm:$0xff]
    %v3379 = vld [vmem:[#allocation2 + $0x228] sm:$0xff]
    %v3380 = vld [vmem:[#allocation2 + $0x230] sm:$0xff]
    %v3381 = vld [vmem:[#allocation2 + $0x238] sm:$0xff]
    %v3382 = vld [vmem:[#allocation2 + $0x240] sm:$0xff]
    %v3383 = vld [vmem:[#allocation2 + $0x248] sm:$0xff]
    %v3384 = vld [vmem:[#allocation2 + $0x250] sm:$0xff]
    %v3385 = vld [vmem:[#allocation2 + $0x258] sm:$0xff]
    %v3386 = vld [vmem:[#allocation2 + $0x260] sm:$0xff]
    %v3387 = vld [vmem:[#allocation2 + $0x268] sm:$0xff]
    %v3388 = vld [vmem:[#allocation2 + $0x270] sm:$0xff]
    %v3389 = vld [vmem:[#allocation2 + $0x278] sm:$0xff]
    %v3390 = vld [vmem:[#allocation2 + $0x280] sm:$0xff]
    %v3391 = vld [vmem:[#allocation2 + $0x288] sm:$0xff]
    %v3392 = vld [vmem:[#allocation2 + $0x290] sm:$0xff]
    %v3393 = vld [vmem:[#allocation2 + $0x298] sm:$0xff]
    %v3394 = vld [vmem:[#allocation2 + $0x2a0] sm:$0xff]
    %v3395 = vld [vmem:[#allocation2 + $0x2a8] sm:$0xff]
    %v3396 = vld [vmem:[#allocation2 + $0x2b0] sm:$0xff]
    %v3397 = vld [vmem:[#allocation2 + $0x2b8] sm:$0xff]
    %v3398 = vld [vmem:[#allocation2 + $0x2c0] sm:$0xff]
    %v3399 = vld [vmem:[#allocation2 + $0x2c8] sm:$0xff]
    %v3400 = vld [vmem:[#allocation2 + $0x2d0] sm:$0xff]
    %v3401 = vld [vmem:[#allocation2 + $0x2d8] sm:$0xff]
    %v3402 = vld [vmem:[#allocation2 + $0x2e0] sm:$0xff]
    %v3403 = vld [vmem:[#allocation2 + $0x2e8] sm:$0xff]
    %v3404 = vld [vmem:[#allocation2 + $0x2f0] sm:$0xff]
    %v3405 = vld [vmem:[#allocation2 + $0x2f8] sm:$0xff]
    %v3406 = vld [vmem:[#allocation2 + $0x300] sm:$0xff]
    %v3407 = vld [vmem:[#allocation2 + $0x308] sm:$0xff]
    %v3408 = vld [vmem:[#allocation2 + $0x310] sm:$0xff]
    %v3409 = vld [vmem:[#allocation2 + $0x318] sm:$0xff]
    %v3410 = vld [vmem:[#allocation2 + $0x320] sm:$0xff]
    %v3411 = vld [vmem:[#allocation2 + $0x328] sm:$0xff]
    %v3412 = vld [vmem:[#allocation2 + $0x330] sm:$0xff]
    %v3413 = vld [vmem:[#allocation2 + $0x338] sm:$0xff]
    %v3414 = vld [vmem:[#allocation2 + $0x340] sm:$0xff]
    %v3415 = vld [vmem:[#allocation2 + $0x348] sm:$0xff]
    %v3416 = vld [vmem:[#allocation2 + $0x350] sm:$0xff]
    %v3417 = vld [vmem:[#allocation2 + $0x358] sm:$0xff]
    %v3418 = vld [vmem:[#allocation2 + $0x360] sm:$0xff]
    %v3419 = vld [vmem:[#allocation2 + $0x368] sm:$0xff]
    %v3420 = vld [vmem:[#allocation2 + $0x370] sm:$0xff]
    %v3421 = vld [vmem:[#allocation2 + $0x378] sm:$0xff]
    %v3422 = vld [vmem:[#allocation2 + $0x380] sm:$0xff]
    %v3423 = vld [vmem:[#allocation2 + $0x388] sm:$0xff]
    %v3424 = vld [vmem:[#allocation2 + $0x390] sm:$0xff]
    %v3425 = vld [vmem:[#allocation2 + $0x398] sm:$0xff]
    %v3426 = vld [vmem:[#allocation2 + $0x3a0] sm:$0xff]
    %v3427 = vld [vmem:[#allocation2 + $0x3a8] sm:$0xff]
    %v3428 = vld [vmem:[#allocation2 + $0x3b0] sm:$0xff]
    %v3429 = vld [vmem:[#allocation2 + $0x3b8] sm:$0xff]
    %v3430 = vld [vmem:[#allocation2 + $0x3c0] sm:$0xff]
    %v3431 = vld [vmem:[#allocation2 + $0x3c8] sm:$0xff]
    %v3432 = vld [vmem:[#allocation2 + $0x3d0] sm:$0xff]
    %v3433 = vld [vmem:[#allocation2 + $0x3d8] sm:$0xff]
    %v3434 = vld [vmem:[#allocation2 + $0x3e0] sm:$0xff]
    %v3435 = vld [vmem:[#allocation2 + $0x3e8] sm:$0xff]
    %v3436 = vld [vmem:[#allocation2 + $0x3f0] sm:$0xff]
    %v3437 = vld [vmem:[#allocation2 + $0x3f8] sm:$0xff]
    %v3438 = vld [vmem:[%s1] sm:$0xf]
    %v3440 = vlaneseq
    %v3441 = vshrl.u32 %v3440, 7
    %v3442 = vsub.s32 0, %v3441
    %v3443 = vrot.slane %v3438, %v3442
    %v3444 = vlaneseq
    %v3445 = vshrl.u32 %v3444, 7
    %v3446 = vsub.s32 1, %v3445
    %v3447 = vrot.slane %v3438, %v3446
    %v3448 = vlaneseq
    %v3449 = vshrl.u32 %v3448, 7
    %v3450 = vsub.s32 2, %v3449
    %v3451 = vrot.slane %v3438, %v3450
    %v3452 = vlaneseq
    %v3453 = vshrl.u32 %v3452, 7
    %v3454 = vsub.s32 3, %v3453
    %v3455 = vrot.slane %v3438, %v3454
    %3460 = vmatprep.subr.mxu0 %v3371
    %3461 = vmatpush1.msra.mxu0 %v3370
    %3462 = vmatprep.subr.mxu0 %v3367
    %3463 = vmatpush1.msra.mxu0 %v3366
    %3464 = vmatprep.subr.mxu0 %v3363
    %3465 = vmatpush1.msra.mxu0 %v3362
    %3466 = vmatprep.subr.mxu0 %v3359
    %3467 = vmatpush1.msra.mxu0 %v3358
    %3468 = vmatprep.subr.mxu0 %v3355
    %3469 = vmatpush1.msra.mxu0 %v3354
    %3470 = vmatprep.subr.mxu0 %v3351
    %3471 = vmatpush1.msra.mxu0 %v3350
    %3472 = vmatprep.subr.mxu0 %v3347
    %3473 = vmatpush1.msra.mxu0 %v3346
    %3474 = vmatprep.subr.mxu0 %v3343
    %3475 = vmatpush1.msra.mxu0 %v3342
    %3476 = vmatprep.subr.mxu0 %v3339
    %3477 = vmatpush1.msra.mxu0 %v3338
    %3478 = vmatprep.subr.mxu0 %v3335
    %3479 = vmatpush1.msra.mxu0 %v3334
    %3480 = vmatprep.subr.mxu0 %v3331
    %3481 = vmatpush1.msra.mxu0 %v3330
    %3482 = vmatprep.subr.mxu0 %v3327
    %3483 = vmatpush1.msra.mxu0 %v3326
    %3484 = vmatprep.subr.mxu0 %v3323
    %3485 = vmatpush1.msra.mxu0 %v3322
    %3486 = vmatprep.subr.mxu0 %v3319
    %3487 = vmatpush1.msra.mxu0 %v3318
    %3488 = vmatprep.subr.mxu0 %v3315
    %3489 = vmatpush1.msra.mxu0 %v3314
    %3490 = vmatprep.subr.mxu0 %v3311
    %3491 = vmatpush1.msra.mxu0 %v3310
    %3492 = vmatprep.subr.mxu0 %v3435
    %3493 = vmatpush2.msra.mxu0 %v3434
    %3494 = vmatprep.subr.mxu0 %v3431
    %3495 = vmatpush2.msra.mxu0 %v3430
    %3496 = vmatprep.subr.mxu0 %v3427
    %3497 = vmatpush2.msra.mxu0 %v3426
    %3498 = vmatprep.subr.mxu0 %v3423
    %3499 = vmatpush2.msra.mxu0 %v3422
    %3500 = vmatprep.subr.mxu0 %v3419
    %3501 = vmatpush2.msra.mxu0 %v3418
    %3502 = vmatprep.subr.mxu0 %v3415
    %3503 = vmatpush2.msra.mxu0 %v3414
    %3504 = vmatprep.subr.mxu0 %v3411
    %3505 = vmatpush2.msra.mxu0 %v3410
    %3506 = vmatprep.subr.mxu0 %v3407
    %3507 = vmatpush2.msra.mxu0 %v3406
    %3508 = vmatprep.subr.mxu0 %v3403
    %3509 = vmatpush2.msra.mxu0 %v3402
    %3510 = vmatprep.subr.mxu0 %v3399
    %3511 = vmatpush2.msra.mxu0 %v3398
    %3512 = vmatprep.subr.mxu0 %v3395
    %3513 = vmatpush2.msra.mxu0 %v3394
    %3514 = vmatprep.subr.mxu0 %v3391
    %3515 = vmatpush2.msra.mxu0 %v3390
    %3516 = vmatprep.subr.mxu0 %v3387
    %3517 = vmatpush2.msra.mxu0 %v3386
    %3518 = vmatprep.subr.mxu0 %v3383
    %3519 = vmatpush2.msra.mxu0 %v3382
    %3520 = vmatprep.subr.mxu0 %v3379
    %3521 = vmatpush2.msra.mxu0 %v3378
    %3522 = vmatprep.subr.mxu0 %v3375
    %3523 = vmatpush2.msra.mxu0 %v3374
    %3524 = vmatprep.mubr.f32.mxu0 %v3309
    %3525 = vmatmul.mubr.f32.gmra.mxu0 %v3308
    %v3526 = vpop.f32.mrf.mxu0
    %v3527 = vadd.f32 %v3443, %v3526
    %v3528 = vpop.f32.mrf.mxu0
    %v3529 = vadd.f32 %v3447, %v3528
    %3530 = vdwg.mxu0
    %3531 = vmatprep.subr.mxu0 %v3373
    %3532 = vmatpush1.msra.mxu0 %v3372
    %3533 = vmatprep.subr.mxu0 %v3369
    %3534 = vmatpush1.msra.mxu0 %v3368
    %3535 = vmatprep.subr.mxu0 %v3365
    %3536 = vmatpush1.msra.mxu0 %v3364
    %3537 = vmatprep.subr.mxu0 %v3361
    %3538 = vmatpush1.msra.mxu0 %v3360
    %3539 = vmatprep.subr.mxu0 %v3357
    %3540 = vmatpush1.msra.mxu0 %v3356
    %3541 = vmatprep.subr.mxu0 %v3353
    %3542 = vmatpush1.msra.mxu0 %v3352
    %3543 = vmatprep.subr.mxu0 %v3349
    %3544 = vmatpush1.msra.mxu0 %v3348
    %3545 = vmatprep.subr.mxu0 %v3345
    %3546 = vmatpush1.msra.mxu0 %v3344
    %3547 = vmatprep.subr.mxu0 %v3341
    %3548 = vmatpush1.msra.mxu0 %v3340
    %3549 = vmatprep.subr.mxu0 %v3337
    %3550 = vmatpush1.msra.mxu0 %v3336
    %3551 = vmatprep.subr.mxu0 %v3333
    %3552 = vmatpush1.msra.mxu0 %v3332
    %3553 = vmatprep.subr.mxu0 %v3329
    %3554 = vmatpush1.msra.mxu0 %v3328
    %3555 = vmatprep.subr.mxu0 %v3325
    %3556 = vmatpush1.msra.mxu0 %v3324
    %3557 = vmatprep.subr.mxu0 %v3321
    %3558 = vmatpush1.msra.mxu0 %v3320
    %3559 = vmatprep.subr.mxu0 %v3317
    %3560 = vmatpush1.msra.mxu0 %v3316
    %3561 = vmatprep.subr.mxu0 %v3313
    %3562 = vmatpush1.msra.mxu0 %v3312
    %3563 = vmatprep.subr.mxu0 %v3437
    %3564 = vmatpush2.msra.mxu0 %v3436
    %3565 = vmatprep.subr.mxu0 %v3433
    %3566 = vmatpush2.msra.mxu0 %v3432
    %3567 = vmatprep.subr.mxu0 %v3429
    %3568 = vmatpush2.msra.mxu0 %v3428
    %3569 = vmatprep.subr.mxu0 %v3425
    %3570 = vmatpush2.msra.mxu0 %v3424
    %3571 = vmatprep.subr.mxu0 %v3421
    %3572 = vmatpush2.msra.mxu0 %v3420
    %3573 = vmatprep.subr.mxu0 %v3417
    %3574 = vmatpush2.msra.mxu0 %v3416
    %3575 = vmatprep.subr.mxu0 %v3413
    %3576 = vmatpush2.msra.mxu0 %v3412
    %3577 = vmatprep.subr.mxu0 %v3409
    %3578 = vmatpush2.msra.mxu0 %v3408
    %3579 = vmatprep.subr.mxu0 %v3405
    %3580 = vmatpush2.msra.mxu0 %v3404
    %3581 = vmatprep.subr.mxu0 %v3401
    %3582 = vmatpush2.msra.mxu0 %v3400
    %3583 = vmatprep.subr.mxu0 %v3397
    %3584 = vmatpush2.msra.mxu0 %v3396
    %3585 = vmatprep.subr.mxu0 %v3393
    %3586 = vmatpush2.msra.mxu0 %v3392
    %3587 = vmatprep.subr.mxu0 %v3389
    %3588 = vmatpush2.msra.mxu0 %v3388
    %3589 = vmatprep.subr.mxu0 %v3385
    %3590 = vmatpush2.msra.mxu0 %v3384
    %3591 = vmatprep.subr.mxu0 %v3381
    %3592 = vmatpush2.msra.mxu0 %v3380
    %3593 = vmatprep.subr.mxu0 %v3377
    %3594 = vmatpush2.msra.mxu0 %v3376
    %3595 = vmatprep.mubr.f32.mxu0 %v3309
    %3596 = vmatmul.mubr.f32.gmra.mxu0 %v3308
    %v3597 = vpop.f32.mrf.mxu0
    %v3598 = vadd.f32 %v3451, %v3597
    %v3599 = vpop.f32.mrf.mxu0
    %v3600 = vadd.f32 %v3455, %v3599
    %3601 = vdwg.mxu0
    %v3602 = vld [vmem:[%s2] sm:$0xf]
    %s3603 = scalar_select %p3307, 1, 0
    %v3604 = vstv %s3603
    %vm3605 = vcmp.eq.s32.totalorder %v3604, 1
    %v3606 = vsel %vm3605, %v3602, 0.0
    %v3608 = vlaneseq
    %v3609 = vshrl.u32 %v3608, 7
    %v3610 = vsub.s32 0, %v3609
    %v3611 = vrot.slane %v3606, %v3610
    %v3612 = vlaneseq
    %v3613 = vshrl.u32 %v3612, 7
    %v3614 = vsub.s32 1, %v3613
    %v3615 = vrot.slane %v3606, %v3614
    %v3616 = vlaneseq
    %v3617 = vshrl.u32 %v3616, 7
    %v3618 = vsub.s32 2, %v3617
    %v3619 = vrot.slane %v3606, %v3618
    %v3620 = vlaneseq
    %v3621 = vshrl.u32 %v3620, 7
    %v3622 = vsub.s32 3, %v3621
    %v3623 = vrot.slane %v3606, %v3622
    %v3628 = vadd.f32 %v3527, %v3611
    %v3629 = vadd.f32 %v3529, %v3615
    %v3630 = vadd.f32 %v3598, %v3619
    %v3631 = vadd.f32 %v3600, %v3623
    %v3632 = vxor.u32 %v3628, 2147483648
    %v3633 = vmul.f32 %v3632, 1.442695
    %v3634 = vpow.pop %v3633
    %v3635 = vadd.f32 %v3634, 1.0
    %v3636 = vrcp.pop %v3635
    %v3637 = vmul.f32 1.0, %v3636
    %v3638 = vxor.u32 %v3629, 2147483648
    %v3639 = vmul.f32 %v3638, 1.442695
    %v3640 = vpow.pop %v3639
    %v3641 = vadd.f32 %v3640, 1.0
    %v3642 = vrcp.pop %v3641
    %v3643 = vmul.f32 1.0, %v3642
    %v3644 = vtanh.pop %v3630
    %v3645 = vxor.u32 %v3631, 2147483648
    %v3646 = vmul.f32 %v3645, 1.442695
    %v3647 = vpow.pop %v3646
    %v3648 = vadd.f32 %v3647, 1.0
    %v3649 = vrcp.pop %v3648
    %v3650 = vmul.f32 1.0, %v3649
    %v3651 = vld [vmem:[#allocation4] sm:$0xff]
    %v3652 = vmul.f32 %v3643, %v3651
    %v3653 = vmul.f32 %v3637, %v3644
    %v3654 = vadd.f32 %v3652, %v3653
    %3655 = vst [vmem:[#allocation4] sm:$0xff] %v3654
    %v3656 = vtanh.pop %v3654
    %v3657 = vmul.f32 %v3650, %v3656
    %3658 = vst [vmem:[#allocation3 + $0x8] sm:$0xff] %v3657
    %3659 = vst [vmem:[%s944] sm:$0xff] %v3657
    %v3660 = vld [vmem:[%s944] sm:$0xff]
    %v3661 = vld [vmem:[%s944 + $0x8] sm:$0xff]
    %v3662 = vld [vmem:[%s948] sm:$0xff]
    %v3663 = vld [vmem:[%s948 + $0x8] sm:$0xff]
    %v3664 = vld [vmem:[%s948 + $0x10] sm:$0xff]
    %v3665 = vld [vmem:[%s948 + $0x18] sm:$0xff]
    %v3666 = vld [vmem:[%s948 + $0x20] sm:$0xff]
    %v3667 = vld [vmem:[%s948 + $0x28] sm:$0xff]
    %v3668 = vld [vmem:[%s948 + $0x30] sm:$0xff]
    %v3669 = vld [vmem:[%s948 + $0x38] sm:$0xff]
    %v3670 = vld [vmem:[%s948 + $0x40] sm:$0xff]
    %v3671 = vld [vmem:[%s948 + $0x48] sm:$0xff]
    %v3672 = vld [vmem:[%s948 + $0x50] sm:$0xff]
    %v3673 = vld [vmem:[%s948 + $0x58] sm:$0xff]
    %v3674 = vld [vmem:[%s948 + $0x60] sm:$0xff]
    %v3675 = vld [vmem:[%s948 + $0x68] sm:$0xff]
    %v3676 = vld [vmem:[%s948 + $0x70] sm:$0xff]
    %v3677 = vld [vmem:[%s948 + $0x78] sm:$0xff]
    %v3678 = vld [vmem:[%s948 + $0x80] sm:$0xff]
    %v3679 = vld [vmem:[%s948 + $0x88] sm:$0xff]
    %v3680 = vld [vmem:[%s948 + $0x90] sm:$0xff]
    %v3681 = vld [vmem:[%s948 + $0x98] sm:$0xff]
    %v3682 = vld [vmem:[%s948 + $0xa0] sm:$0xff]
    %v3683 = vld [vmem:[%s948 + $0xa8] sm:$0xff]
    %v3684 = vld [vmem:[%s948 + $0xb0] sm:$0xff]
    %v3685 = vld [vmem:[%s948 + $0xb8] sm:$0xff]
    %v3686 = vld [vmem:[%s948 + $0xc0] sm:$0xff]
    %v3687 = vld [vmem:[%s948 + $0xc8] sm:$0xff]
    %v3688 = vld [vmem:[%s948 + $0xd0] sm:$0xff]
    %v3689 = vld [vmem:[%s948 + $0xd8] sm:$0xff]
    %v3690 = vld [vmem:[%s948 + $0xe0] sm:$0xff]
    %v3691 = vld [vmem:[%s948 + $0xe8] sm:$0xff]
    %v3692 = vld [vmem:[%s948 + $0xf0] sm:$0xff]
    %v3693 = vld [vmem:[%s948 + $0xf8] sm:$0xff]
    %v3694 = vld [vmem:[%s948 + $0x100] sm:$0xff]
    %v3695 = vld [vmem:[%s948 + $0x108] sm:$0xff]
    %v3696 = vld [vmem:[%s948 + $0x110] sm:$0xff]
    %v3697 = vld [vmem:[%s948 + $0x118] sm:$0xff]
    %v3698 = vld [vmem:[%s948 + $0x120] sm:$0xff]
    %v3699 = vld [vmem:[%s948 + $0x128] sm:$0xff]
    %v3700 = vld [vmem:[%s948 + $0x130] sm:$0xff]
    %v3701 = vld [vmem:[%s948 + $0x138] sm:$0xff]
    %v3702 = vld [vmem:[%s948 + $0x140] sm:$0xff]
    %v3703 = vld [vmem:[%s948 + $0x148] sm:$0xff]
    %v3704 = vld [vmem:[%s948 + $0x150] sm:$0xff]
    %v3705 = vld [vmem:[%s948 + $0x158] sm:$0xff]
    %v3706 = vld [vmem:[%s948 + $0x160] sm:$0xff]
    %v3707 = vld [vmem:[%s948 + $0x168] sm:$0xff]
    %v3708 = vld [vmem:[%s948 + $0x170] sm:$0xff]
    %v3709 = vld [vmem:[%s948 + $0x178] sm:$0xff]
    %v3710 = vld [vmem:[%s948 + $0x180] sm:$0xff]
    %v3711 = vld [vmem:[%s948 + $0x188] sm:$0xff]
    %v3712 = vld [vmem:[%s948 + $0x190] sm:$0xff]
    %v3713 = vld [vmem:[%s948 + $0x198] sm:$0xff]
    %v3714 = vld [vmem:[%s948 + $0x1a0] sm:$0xff]
    %v3715 = vld [vmem:[%s948 + $0x1a8] sm:$0xff]
    %v3716 = vld [vmem:[%s948 + $0x1b0] sm:$0xff]
    %v3717 = vld [vmem:[%s948 + $0x1b8] sm:$0xff]
    %v3718 = vld [vmem:[%s948 + $0x1c0] sm:$0xff]
    %v3719 = vld [vmem:[%s948 + $0x1c8] sm:$0xff]
    %v3720 = vld [vmem:[%s948 + $0x1d0] sm:$0xff]
    %v3721 = vld [vmem:[%s948 + $0x1d8] sm:$0xff]
    %v3722 = vld [vmem:[%s948 + $0x1e0] sm:$0xff]
    %v3723 = vld [vmem:[%s948 + $0x1e8] sm:$0xff]
    %v3724 = vld [vmem:[%s948 + $0x1f0] sm:$0xff]
    %v3725 = vld [vmem:[%s948 + $0x1f8] sm:$0xff]
    %v3726 = vld [vmem:[%s948 + $0x200] sm:$0xff]
    %v3727 = vld [vmem:[%s948 + $0x208] sm:$0xff]
    %v3728 = vld [vmem:[%s948 + $0x210] sm:$0xff]
    %v3729 = vld [vmem:[%s948 + $0x218] sm:$0xff]
    %v3730 = vld [vmem:[%s948 + $0x220] sm:$0xff]
    %v3731 = vld [vmem:[%s948 + $0x228] sm:$0xff]
    %v3732 = vld [vmem:[%s948 + $0x230] sm:$0xff]
    %v3733 = vld [vmem:[%s948 + $0x238] sm:$0xff]
    %v3734 = vld [vmem:[%s948 + $0x240] sm:$0xff]
    %v3735 = vld [vmem:[%s948 + $0x248] sm:$0xff]
    %v3736 = vld [vmem:[%s948 + $0x250] sm:$0xff]
    %v3737 = vld [vmem:[%s948 + $0x258] sm:$0xff]
    %v3738 = vld [vmem:[%s948 + $0x260] sm:$0xff]
    %v3739 = vld [vmem:[%s948 + $0x268] sm:$0xff]
    %v3740 = vld [vmem:[%s948 + $0x270] sm:$0xff]
    %v3741 = vld [vmem:[%s948 + $0x278] sm:$0xff]
    %v3742 = vld [vmem:[%s948 + $0x280] sm:$0xff]
    %v3743 = vld [vmem:[%s948 + $0x288] sm:$0xff]
    %v3744 = vld [vmem:[%s948 + $0x290] sm:$0xff]
    %v3745 = vld [vmem:[%s948 + $0x298] sm:$0xff]
    %v3746 = vld [vmem:[%s948 + $0x2a0] sm:$0xff]
    %v3747 = vld [vmem:[%s948 + $0x2a8] sm:$0xff]
    %v3748 = vld [vmem:[%s948 + $0x2b0] sm:$0xff]
    %v3749 = vld [vmem:[%s948 + $0x2b8] sm:$0xff]
    %v3750 = vld [vmem:[%s948 + $0x2c0] sm:$0xff]
    %v3751 = vld [vmem:[%s948 + $0x2c8] sm:$0xff]
    %v3752 = vld [vmem:[%s948 + $0x2d0] sm:$0xff]
    %v3753 = vld [vmem:[%s948 + $0x2d8] sm:$0xff]
    %v3754 = vld [vmem:[%s948 + $0x2e0] sm:$0xff]
    %v3755 = vld [vmem:[%s948 + $0x2e8] sm:$0xff]
    %v3756 = vld [vmem:[%s948 + $0x2f0] sm:$0xff]
    %v3757 = vld [vmem:[%s948 + $0x2f8] sm:$0xff]
    %v3758 = vld [vmem:[%s948 + $0x300] sm:$0xff]
    %v3759 = vld [vmem:[%s948 + $0x308] sm:$0xff]
    %v3760 = vld [vmem:[%s948 + $0x310] sm:$0xff]
    %v3761 = vld [vmem:[%s948 + $0x318] sm:$0xff]
    %v3762 = vld [vmem:[%s948 + $0x320] sm:$0xff]
    %v3763 = vld [vmem:[%s948 + $0x328] sm:$0xff]
    %v3764 = vld [vmem:[%s948 + $0x330] sm:$0xff]
    %v3765 = vld [vmem:[%s948 + $0x338] sm:$0xff]
    %v3766 = vld [vmem:[%s948 + $0x340] sm:$0xff]
    %v3767 = vld [vmem:[%s948 + $0x348] sm:$0xff]
    %v3768 = vld [vmem:[%s948 + $0x350] sm:$0xff]
    %v3769 = vld [vmem:[%s948 + $0x358] sm:$0xff]
    %v3770 = vld [vmem:[%s948 + $0x360] sm:$0xff]
    %v3771 = vld [vmem:[%s948 + $0x368] sm:$0xff]
    %v3772 = vld [vmem:[%s948 + $0x370] sm:$0xff]
    %v3773 = vld [vmem:[%s948 + $0x378] sm:$0xff]
    %v3774 = vld [vmem:[%s948 + $0x380] sm:$0xff]
    %v3775 = vld [vmem:[%s948 + $0x388] sm:$0xff]
    %v3776 = vld [vmem:[%s948 + $0x390] sm:$0xff]
    %v3777 = vld [vmem:[%s948 + $0x398] sm:$0xff]
    %v3778 = vld [vmem:[%s948 + $0x3a0] sm:$0xff]
    %v3779 = vld [vmem:[%s948 + $0x3a8] sm:$0xff]
    %v3780 = vld [vmem:[%s948 + $0x3b0] sm:$0xff]
    %v3781 = vld [vmem:[%s948 + $0x3b8] sm:$0xff]
    %v3782 = vld [vmem:[%s948 + $0x3c0] sm:$0xff]
    %v3783 = vld [vmem:[%s948 + $0x3c8] sm:$0xff]
    %v3784 = vld [vmem:[%s948 + $0x3d0] sm:$0xff]
    %v3785 = vld [vmem:[%s948 + $0x3d8] sm:$0xff]
    %v3786 = vld [vmem:[%s948 + $0x3e0] sm:$0xff]
    %v3787 = vld [vmem:[%s948 + $0x3e8] sm:$0xff]
    %v3788 = vld [vmem:[%s948 + $0x3f0] sm:$0xff]
    %v3789 = vld [vmem:[%s948 + $0x3f8] sm:$0xff]
    %v3790 = vld [vmem:[%s1077] sm:$0xf]
    %v3792 = vlaneseq
    %v3793 = vshrl.u32 %v3792, 7
    %v3794 = vsub.s32 0, %v3793
    %v3795 = vrot.slane %v3790, %v3794
    %v3796 = vlaneseq
    %v3797 = vshrl.u32 %v3796, 7
    %v3798 = vsub.s32 1, %v3797
    %v3799 = vrot.slane %v3790, %v3798
    %v3800 = vlaneseq
    %v3801 = vshrl.u32 %v3800, 7
    %v3802 = vsub.s32 2, %v3801
    %v3803 = vrot.slane %v3790, %v3802
    %v3804 = vlaneseq
    %v3805 = vshrl.u32 %v3804, 7
    %v3806 = vsub.s32 3, %v3805
    %v3807 = vrot.slane %v3790, %v3806
    %3812 = vmatprep.subr.mxu0 %v3723
    %3813 = vmatpush1.msra.mxu0 %v3722
    %3814 = vmatprep.subr.mxu0 %v3719
    %3815 = vmatpush1.msra.mxu0 %v3718
    %3816 = vmatprep.subr.mxu0 %v3715
    %3817 = vmatpush1.msra.mxu0 %v3714
    %3818 = vmatprep.subr.mxu0 %v3711
    %3819 = vmatpush1.msra.mxu0 %v3710
    %3820 = vmatprep.subr.mxu0 %v3707
    %3821 = vmatpush1.msra.mxu0 %v3706
    %3822 = vmatprep.subr.mxu0 %v3703
    %3823 = vmatpush1.msra.mxu0 %v3702
    %3824 = vmatprep.subr.mxu0 %v3699
    %3825 = vmatpush1.msra.mxu0 %v3698
    %3826 = vmatprep.subr.mxu0 %v3695
    %3827 = vmatpush1.msra.mxu0 %v3694
    %3828 = vmatprep.subr.mxu0 %v3691
    %3829 = vmatpush1.msra.mxu0 %v3690
    %3830 = vmatprep.subr.mxu0 %v3687
    %3831 = vmatpush1.msra.mxu0 %v3686
    %3832 = vmatprep.subr.mxu0 %v3683
    %3833 = vmatpush1.msra.mxu0 %v3682
    %3834 = vmatprep.subr.mxu0 %v3679
    %3835 = vmatpush1.msra.mxu0 %v3678
    %3836 = vmatprep.subr.mxu0 %v3675
    %3837 = vmatpush1.msra.mxu0 %v3674
    %3838 = vmatprep.subr.mxu0 %v3671
    %3839 = vmatpush1.msra.mxu0 %v3670
    %3840 = vmatprep.subr.mxu0 %v3667
    %3841 = vmatpush1.msra.mxu0 %v3666
    %3842 = vmatprep.subr.mxu0 %v3663
    %3843 = vmatpush1.msra.mxu0 %v3662
    %3844 = vmatprep.subr.mxu0 %v3787
    %3845 = vmatpush2.msra.mxu0 %v3786
    %3846 = vmatprep.subr.mxu0 %v3783
    %3847 = vmatpush2.msra.mxu0 %v3782
    %3848 = vmatprep.subr.mxu0 %v3779
    %3849 = vmatpush2.msra.mxu0 %v3778
    %3850 = vmatprep.subr.mxu0 %v3775
    %3851 = vmatpush2.msra.mxu0 %v3774
    %3852 = vmatprep.subr.mxu0 %v3771
    %3853 = vmatpush2.msra.mxu0 %v3770
    %3854 = vmatprep.subr.mxu0 %v3767
    %3855 = vmatpush2.msra.mxu0 %v3766
    %3856 = vmatprep.subr.mxu0 %v3763
    %3857 = vmatpush2.msra.mxu0 %v3762
    %3858 = vmatprep.subr.mxu0 %v3759
    %3859 = vmatpush2.msra.mxu0 %v3758
    %3860 = vmatprep.subr.mxu0 %v3755
    %3861 = vmatpush2.msra.mxu0 %v3754
    %3862 = vmatprep.subr.mxu0 %v3751
    %3863 = vmatpush2.msra.mxu0 %v3750
    %3864 = vmatprep.subr.mxu0 %v3747
    %3865 = vmatpush2.msra.mxu0 %v3746
    %3866 = vmatprep.subr.mxu0 %v3743
    %3867 = vmatpush2.msra.mxu0 %v3742
    %3868 = vmatprep.subr.mxu0 %v3739
    %3869 = vmatpush2.msra.mxu0 %v3738
    %3870 = vmatprep.subr.mxu0 %v3735
    %3871 = vmatpush2.msra.mxu0 %v3734
    %3872 = vmatprep.subr.mxu0 %v3731
    %3873 = vmatpush2.msra.mxu0 %v3730
    %3874 = vmatprep.subr.mxu0 %v3727
    %3875 = vmatpush2.msra.mxu0 %v3726
    %3876 = vmatprep.mubr.f32.mxu0 %v3661
    %3877 = vmatmul.mubr.f32.gmra.mxu0 %v3660
    %v3878 = vpop.f32.mrf.mxu0
    %v3879 = vadd.f32 %v3795, %v3878
    %v3880 = vpop.f32.mrf.mxu0
    %v3881 = vadd.f32 %v3799, %v3880
    %3882 = vdwg.mxu0
    %3883 = vmatprep.subr.mxu0 %v3725
    %3884 = vmatpush1.msra.mxu0 %v3724
    %3885 = vmatprep.subr.mxu0 %v3721
    %3886 = vmatpush1.msra.mxu0 %v3720
    %3887 = vmatprep.subr.mxu0 %v3717
    %3888 = vmatpush1.msra.mxu0 %v3716
    %3889 = vmatprep.subr.mxu0 %v3713
    %3890 = vmatpush1.msra.mxu0 %v3712
    %3891 = vmatprep.subr.mxu0 %v3709
    %3892 = vmatpush1.msra.mxu0 %v3708
    %3893 = vmatprep.subr.mxu0 %v3705
    %3894 = vmatpush1.msra.mxu0 %v3704
    %3895 = vmatprep.subr.mxu0 %v3701
    %3896 = vmatpush1.msra.mxu0 %v3700
    %3897 = vmatprep.subr.mxu0 %v3697
    %3898 = vmatpush1.msra.mxu0 %v3696
    %3899 = vmatprep.subr.mxu0 %v3693
    %3900 = vmatpush1.msra.mxu0 %v3692
    %3901 = vmatprep.subr.mxu0 %v3689
    %3902 = vmatpush1.msra.mxu0 %v3688
    %3903 = vmatprep.subr.mxu0 %v3685
    %3904 = vmatpush1.msra.mxu0 %v3684
    %3905 = vmatprep.subr.mxu0 %v3681
    %3906 = vmatpush1.msra.mxu0 %v3680
    %3907 = vmatprep.subr.mxu0 %v3677
    %3908 = vmatpush1.msra.mxu0 %v3676
    %3909 = vmatprep.subr.mxu0 %v3673
    %3910 = vmatpush1.msra.mxu0 %v3672
    %3911 = vmatprep.subr.mxu0 %v3669
    %3912 = vmatpush1.msra.mxu0 %v3668
    %3913 = vmatprep.subr.mxu0 %v3665
    %3914 = vmatpush1.msra.mxu0 %v3664
    %3915 = vmatprep.subr.mxu0 %v3789
    %3916 = vmatpush2.msra.mxu0 %v3788
    %3917 = vmatprep.subr.mxu0 %v3785
    %3918 = vmatpush2.msra.mxu0 %v3784
    %3919 = vmatprep.subr.mxu0 %v3781
    %3920 = vmatpush2.msra.mxu0 %v3780
    %3921 = vmatprep.subr.mxu0 %v3777
    %3922 = vmatpush2.msra.mxu0 %v3776
    %3923 = vmatprep.subr.mxu0 %v3773
    %3924 = vmatpush2.msra.mxu0 %v3772
    %3925 = vmatprep.subr.mxu0 %v3769
    %3926 = vmatpush2.msra.mxu0 %v3768
    %3927 = vmatprep.subr.mxu0 %v3765
    %3928 = vmatpush2.msra.mxu0 %v3764
    %3929 = vmatprep.subr.mxu0 %v3761
    %3930 = vmatpush2.msra.mxu0 %v3760
    %3931 = vmatprep.subr.mxu0 %v3757
    %3932 = vmatpush2.msra.mxu0 %v3756
    %3933 = vmatprep.subr.mxu0 %v3753
    %3934 = vmatpush2.msra.mxu0 %v3752
    %3935 = vmatprep.subr.mxu0 %v3749
    %3936 = vmatpush2.msra.mxu0 %v3748
    %3937 = vmatprep.subr.mxu0 %v3745
    %3938 = vmatpush2.msra.mxu0 %v3744
    %3939 = vmatprep.subr.mxu0 %v3741
    %3940 = vmatpush2.msra.mxu0 %v3740
    %3941 = vmatprep.subr.mxu0 %v3737
    %3942 = vmatpush2.msra.mxu0 %v3736
    %3943 = vmatprep.subr.mxu0 %v3733
    %3944 = vmatpush2.msra.mxu0 %v3732
    %3945 = vmatprep.subr.mxu0 %v3729
    %3946 = vmatpush2.msra.mxu0 %v3728
    %3947 = vmatprep.mubr.f32.mxu0 %v3661
    %3948 = vmatmul.mubr.f32.gmra.mxu0 %v3660
    %v3949 = vpop.f32.mrf.mxu0
    %v3950 = vadd.f32 %v3803, %v3949
    %v3951 = vpop.f32.mrf.mxu0
    %v3952 = vadd.f32 %v3807, %v3951
    %3953 = vdwg.mxu0
    %v3954 = vxor.u32 %v3879, 2147483648
    %v3955 = vmul.f32 %v3954, 1.442695
    %v3956 = vpow.pop %v3955
    %v3957 = vadd.f32 %v3956, 1.0
    %v3958 = vrcp.pop %v3957
    %v3959 = vmul.f32 1.0, %v3958
    %v3960 = vxor.u32 %v3881, 2147483648
    %v3961 = vmul.f32 %v3960, 1.442695
    %v3962 = vpow.pop %v3961
    %v3963 = vadd.f32 %v3962, 1.0
    %v3964 = vrcp.pop %v3963
    %v3965 = vmul.f32 1.0, %v3964
    %v3966 = vtanh.pop %v3950
    %v3967 = vxor.u32 %v3952, 2147483648
    %v3968 = vmul.f32 %v3967, 1.442695
    %v3969 = vpow.pop %v3968
    %v3970 = vadd.f32 %v3969, 1.0
    %v3971 = vrcp.pop %v3970
    %v3972 = vmul.f32 1.0, %v3971
    %v3973 = vld [vmem:[%s1261] sm:$0xff]
    %v3974 = vmul.f32 %v3965, %v3973
    %v3975 = vmul.f32 %v3959, %v3966
    %v3976 = vadd.f32 %v3974, %v3975
    %3977 = vst [vmem:[%s1261] sm:$0xff] %v3976
    %v3978 = vtanh.pop %v3976
    %v3979 = vmul.f32 %v3972, %v3978
    %3980 = vst [vmem:[%s944 + $0x8] sm:$0xff] %v3979
    %3981 = vst [vmem:[#allocation3] sm:$0xff] %v3979
    %s3982 = scalar_lea.vmem [#allocation5], 32
    %3983 = vst [vmem:[%s3982] sm:$0xff] %v3979
    %s3984 = sadd.s32 %s591, 5
    %p3985 = scmp.gt.s32.totalorder %s3984, 0
    %v3986 = vld [vmem:[#allocation3] sm:$0xff]
    %v3987 = vld [vmem:[#allocation3 + $0x8] sm:$0xff]
    %v3988 = vld [vmem:[#allocation2] sm:$0xff]
    %v3989 = vld [vmem:[#allocation2 + $0x8] sm:$0xff]
    %v3990 = vld [vmem:[#allocation2 + $0x10] sm:$0xff]
    %v3991 = vld [vmem:[#allocation2 + $0x18] sm:$0xff]
    %v3992 = vld [vmem:[#allocation2 + $0x20] sm:$0xff]
    %v3993 = vld [vmem:[#allocation2 + $0x28] sm:$0xff]
    %v3994 = vld [vmem:[#allocation2 + $0x30] sm:$0xff]
    %v3995 = vld [vmem:[#allocation2 + $0x38] sm:$0xff]
    %v3996 = vld [vmem:[#allocation2 + $0x40] sm:$0xff]
    %v3997 = vld [vmem:[#allocation2 + $0x48] sm:$0xff]
    %v3998 = vld [vmem:[#allocation2 + $0x50] sm:$0xff]
    %v3999 = vld [vmem:[#allocation2 + $0x58] sm:$0xff]
    %v4000 = vld [vmem:[#allocation2 + $0x60] sm:$0xff]
    %v4001 = vld [vmem:[#allocation2 + $0x68] sm:$0xff]
    %v4002 = vld [vmem:[#allocation2 + $0x70] sm:$0xff]
    %v4003 = vld [vmem:[#allocation2 + $0x78] sm:$0xff]
    %v4004 = vld [vmem:[#allocation2 + $0x80] sm:$0xff]
    %v4005 = vld [vmem:[#allocation2 + $0x88] sm:$0xff]
    %v4006 = vld [vmem:[#allocation2 + $0x90] sm:$0xff]
    %v4007 = vld [vmem:[#allocation2 + $0x98] sm:$0xff]
    %v4008 = vld [vmem:[#allocation2 + $0xa0] sm:$0xff]
    %v4009 = vld [vmem:[#allocation2 + $0xa8] sm:$0xff]
    %v4010 = vld [vmem:[#allocation2 + $0xb0] sm:$0xff]
    %v4011 = vld [vmem:[#allocation2 + $0xb8] sm:$0xff]
    %v4012 = vld [vmem:[#allocation2 + $0xc0] sm:$0xff]
    %v4013 = vld [vmem:[#allocation2 + $0xc8] sm:$0xff]
    %v4014 = vld [vmem:[#allocation2 + $0xd0] sm:$0xff]
    %v4015 = vld [vmem:[#allocation2 + $0xd8] sm:$0xff]
    %v4016 = vld [vmem:[#allocation2 + $0xe0] sm:$0xff]
    %v4017 = vld [vmem:[#allocation2 + $0xe8] sm:$0xff]
    %v4018 = vld [vmem:[#allocation2 + $0xf0] sm:$0xff]
    %v4019 = vld [vmem:[#allocation2 + $0xf8] sm:$0xff]
    %v4020 = vld [vmem:[#allocation2 + $0x100] sm:$0xff]
    %v4021 = vld [vmem:[#allocation2 + $0x108] sm:$0xff]
    %v4022 = vld [vmem:[#allocation2 + $0x110] sm:$0xff]
    %v4023 = vld [vmem:[#allocation2 + $0x118] sm:$0xff]
    %v4024 = vld [vmem:[#allocation2 + $0x120] sm:$0xff]
    %v4025 = vld [vmem:[#allocation2 + $0x128] sm:$0xff]
    %v4026 = vld [vmem:[#allocation2 + $0x130] sm:$0xff]
    %v4027 = vld [vmem:[#allocation2 + $0x138] sm:$0xff]
    %v4028 = vld [vmem:[#allocation2 + $0x140] sm:$0xff]
    %v4029 = vld [vmem:[#allocation2 + $0x148] sm:$0xff]
    %v4030 = vld [vmem:[#allocation2 + $0x150] sm:$0xff]
    %v4031 = vld [vmem:[#allocation2 + $0x158] sm:$0xff]
    %v4032 = vld [vmem:[#allocation2 + $0x160] sm:$0xff]
    %v4033 = vld [vmem:[#allocation2 + $0x168] sm:$0xff]
    %v4034 = vld [vmem:[#allocation2 + $0x170] sm:$0xff]
    %v4035 = vld [vmem:[#allocation2 + $0x178] sm:$0xff]
    %v4036 = vld [vmem:[#allocation2 + $0x180] sm:$0xff]
    %v4037 = vld [vmem:[#allocation2 + $0x188] sm:$0xff]
    %v4038 = vld [vmem:[#allocation2 + $0x190] sm:$0xff]
    %v4039 = vld [vmem:[#allocation2 + $0x198] sm:$0xff]
    %v4040 = vld [vmem:[#allocation2 + $0x1a0] sm:$0xff]
    %v4041 = vld [vmem:[#allocation2 + $0x1a8] sm:$0xff]
    %v4042 = vld [vmem:[#allocation2 + $0x1b0] sm:$0xff]
    %v4043 = vld [vmem:[#allocation2 + $0x1b8] sm:$0xff]
    %v4044 = vld [vmem:[#allocation2 + $0x1c0] sm:$0xff]
    %v4045 = vld [vmem:[#allocation2 + $0x1c8] sm:$0xff]
    %v4046 = vld [vmem:[#allocation2 + $0x1d0] sm:$0xff]
    %v4047 = vld [vmem:[#allocation2 + $0x1d8] sm:$0xff]
    %v4048 = vld [vmem:[#allocation2 + $0x1e0] sm:$0xff]
    %v4049 = vld [vmem:[#allocation2 + $0x1e8] sm:$0xff]
    %v4050 = vld [vmem:[#allocation2 + $0x1f0] sm:$0xff]
    %v4051 = vld [vmem:[#allocation2 + $0x1f8] sm:$0xff]
    %v4052 = vld [vmem:[#allocation2 + $0x200] sm:$0xff]
    %v4053 = vld [vmem:[#allocation2 + $0x208] sm:$0xff]
    %v4054 = vld [vmem:[#allocation2 + $0x210] sm:$0xff]
    %v4055 = vld [vmem:[#allocation2 + $0x218] sm:$0xff]
    %v4056 = vld [vmem:[#allocation2 + $0x220] sm:$0xff]
    %v4057 = vld [vmem:[#allocation2 + $0x228] sm:$0xff]
    %v4058 = vld [vmem:[#allocation2 + $0x230] sm:$0xff]
    %v4059 = vld [vmem:[#allocation2 + $0x238] sm:$0xff]
    %v4060 = vld [vmem:[#allocation2 + $0x240] sm:$0xff]
    %v4061 = vld [vmem:[#allocation2 + $0x248] sm:$0xff]
    %v4062 = vld [vmem:[#allocation2 + $0x250] sm:$0xff]
    %v4063 = vld [vmem:[#allocation2 + $0x258] sm:$0xff]
    %v4064 = vld [vmem:[#allocation2 + $0x260] sm:$0xff]
    %v4065 = vld [vmem:[#allocation2 + $0x268] sm:$0xff]
    %v4066 = vld [vmem:[#allocation2 + $0x270] sm:$0xff]
    %v4067 = vld [vmem:[#allocation2 + $0x278] sm:$0xff]
    %v4068 = vld [vmem:[#allocation2 + $0x280] sm:$0xff]
    %v4069 = vld [vmem:[#allocation2 + $0x288] sm:$0xff]
    %v4070 = vld [vmem:[#allocation2 + $0x290] sm:$0xff]
    %v4071 = vld [vmem:[#allocation2 + $0x298] sm:$0xff]
    %v4072 = vld [vmem:[#allocation2 + $0x2a0] sm:$0xff]
    %v4073 = vld [vmem:[#allocation2 + $0x2a8] sm:$0xff]
    %v4074 = vld [vmem:[#allocation2 + $0x2b0] sm:$0xff]
    %v4075 = vld [vmem:[#allocation2 + $0x2b8] sm:$0xff]
    %v4076 = vld [vmem:[#allocation2 + $0x2c0] sm:$0xff]
    %v4077 = vld [vmem:[#allocation2 + $0x2c8] sm:$0xff]
    %v4078 = vld [vmem:[#allocation2 + $0x2d0] sm:$0xff]
    %v4079 = vld [vmem:[#allocation2 + $0x2d8] sm:$0xff]
    %v4080 = vld [vmem:[#allocation2 + $0x2e0] sm:$0xff]
    %v4081 = vld [vmem:[#allocation2 + $0x2e8] sm:$0xff]
    %v4082 = vld [vmem:[#allocation2 + $0x2f0] sm:$0xff]
    %v4083 = vld [vmem:[#allocation2 + $0x2f8] sm:$0xff]
    %v4084 = vld [vmem:[#allocation2 + $0x300] sm:$0xff]
    %v4085 = vld [vmem:[#allocation2 + $0x308] sm:$0xff]
    %v4086 = vld [vmem:[#allocation2 + $0x310] sm:$0xff]
    %v4087 = vld [vmem:[#allocation2 + $0x318] sm:$0xff]
    %v4088 = vld [vmem:[#allocation2 + $0x320] sm:$0xff]
    %v4089 = vld [vmem:[#allocation2 + $0x328] sm:$0xff]
    %v4090 = vld [vmem:[#allocation2 + $0x330] sm:$0xff]
    %v4091 = vld [vmem:[#allocation2 + $0x338] sm:$0xff]
    %v4092 = vld [vmem:[#allocation2 + $0x340] sm:$0xff]
    %v4093 = vld [vmem:[#allocation2 + $0x348] sm:$0xff]
    %v4094 = vld [vmem:[#allocation2 + $0x350] sm:$0xff]
    %v4095 = vld [vmem:[#allocation2 + $0x358] sm:$0xff]
    %v4096 = vld [vmem:[#allocation2 + $0x360] sm:$0xff]
    %v4097 = vld [vmem:[#allocation2 + $0x368] sm:$0xff]
    %v4098 = vld [vmem:[#allocation2 + $0x370] sm:$0xff]
    %v4099 = vld [vmem:[#allocation2 + $0x378] sm:$0xff]
    %v4100 = vld [vmem:[#allocation2 + $0x380] sm:$0xff]
    %v4101 = vld [vmem:[#allocation2 + $0x388] sm:$0xff]
    %v4102 = vld [vmem:[#allocation2 + $0x390] sm:$0xff]
    %v4103 = vld [vmem:[#allocation2 + $0x398] sm:$0xff]
    %v4104 = vld [vmem:[#allocation2 + $0x3a0] sm:$0xff]
    %v4105 = vld [vmem:[#allocation2 + $0x3a8] sm:$0xff]
    %v4106 = vld [vmem:[#allocation2 + $0x3b0] sm:$0xff]
    %v4107 = vld [vmem:[#allocation2 + $0x3b8] sm:$0xff]
    %v4108 = vld [vmem:[#allocation2 + $0x3c0] sm:$0xff]
    %v4109 = vld [vmem:[#allocation2 + $0x3c8] sm:$0xff]
    %v4110 = vld [vmem:[#allocation2 + $0x3d0] sm:$0xff]
    %v4111 = vld [vmem:[#allocation2 + $0x3d8] sm:$0xff]
    %v4112 = vld [vmem:[#allocation2 + $0x3e0] sm:$0xff]
    %v4113 = vld [vmem:[#allocation2 + $0x3e8] sm:$0xff]
    %v4114 = vld [vmem:[#allocation2 + $0x3f0] sm:$0xff]
    %v4115 = vld [vmem:[#allocation2 + $0x3f8] sm:$0xff]
    %v4116 = vld [vmem:[%s1] sm:$0xf]
    %v4118 = vlaneseq
    %v4119 = vshrl.u32 %v4118, 7
    %v4120 = vsub.s32 0, %v4119
    %v4121 = vrot.slane %v4116, %v4120
    %v4122 = vlaneseq
    %v4123 = vshrl.u32 %v4122, 7
    %v4124 = vsub.s32 1, %v4123
    %v4125 = vrot.slane %v4116, %v4124
    %v4126 = vlaneseq
    %v4127 = vshrl.u32 %v4126, 7
    %v4128 = vsub.s32 2, %v4127
    %v4129 = vrot.slane %v4116, %v4128
    %v4130 = vlaneseq
    %v4131 = vshrl.u32 %v4130, 7
    %v4132 = vsub.s32 3, %v4131
    %v4133 = vrot.slane %v4116, %v4132
    %4138 = vmatprep.subr.mxu0 %v4049
    %4139 = vmatpush1.msra.mxu0 %v4048
    %4140 = vmatprep.subr.mxu0 %v4045
    %4141 = vmatpush1.msra.mxu0 %v4044
    %4142 = vmatprep.subr.mxu0 %v4041
    %4143 = vmatpush1.msra.mxu0 %v4040
    %4144 = vmatprep.subr.mxu0 %v4037
    %4145 = vmatpush1.msra.mxu0 %v4036
    %4146 = vmatprep.subr.mxu0 %v4033
    %4147 = vmatpush1.msra.mxu0 %v4032
    %4148 = vmatprep.subr.mxu0 %v4029
    %4149 = vmatpush1.msra.mxu0 %v4028
    %4150 = vmatprep.subr.mxu0 %v4025
    %4151 = vmatpush1.msra.mxu0 %v4024
    %4152 = vmatprep.subr.mxu0 %v4021
    %4153 = vmatpush1.msra.mxu0 %v4020
    %4154 = vmatprep.subr.mxu0 %v4017
    %4155 = vmatpush1.msra.mxu0 %v4016
    %4156 = vmatprep.subr.mxu0 %v4013
    %4157 = vmatpush1.msra.mxu0 %v4012
    %4158 = vmatprep.subr.mxu0 %v4009
    %4159 = vmatpush1.msra.mxu0 %v4008
    %4160 = vmatprep.subr.mxu0 %v4005
    %4161 = vmatpush1.msra.mxu0 %v4004
    %4162 = vmatprep.subr.mxu0 %v4001
    %4163 = vmatpush1.msra.mxu0 %v4000
    %4164 = vmatprep.subr.mxu0 %v3997
    %4165 = vmatpush1.msra.mxu0 %v3996
    %4166 = vmatprep.subr.mxu0 %v3993
    %4167 = vmatpush1.msra.mxu0 %v3992
    %4168 = vmatprep.subr.mxu0 %v3989
    %4169 = vmatpush1.msra.mxu0 %v3988
    %4170 = vmatprep.subr.mxu0 %v4113
    %4171 = vmatpush2.msra.mxu0 %v4112
    %4172 = vmatprep.subr.mxu0 %v4109
    %4173 = vmatpush2.msra.mxu0 %v4108
    %4174 = vmatprep.subr.mxu0 %v4105
    %4175 = vmatpush2.msra.mxu0 %v4104
    %4176 = vmatprep.subr.mxu0 %v4101
    %4177 = vmatpush2.msra.mxu0 %v4100
    %4178 = vmatprep.subr.mxu0 %v4097
    %4179 = vmatpush2.msra.mxu0 %v4096
    %4180 = vmatprep.subr.mxu0 %v4093
    %4181 = vmatpush2.msra.mxu0 %v4092
    %4182 = vmatprep.subr.mxu0 %v4089
    %4183 = vmatpush2.msra.mxu0 %v4088
    %4184 = vmatprep.subr.mxu0 %v4085
    %4185 = vmatpush2.msra.mxu0 %v4084
    %4186 = vmatprep.subr.mxu0 %v4081
    %4187 = vmatpush2.msra.mxu0 %v4080
    %4188 = vmatprep.subr.mxu0 %v4077
    %4189 = vmatpush2.msra.mxu0 %v4076
    %4190 = vmatprep.subr.mxu0 %v4073
    %4191 = vmatpush2.msra.mxu0 %v4072
    %4192 = vmatprep.subr.mxu0 %v4069
    %4193 = vmatpush2.msra.mxu0 %v4068
    %4194 = vmatprep.subr.mxu0 %v4065
    %4195 = vmatpush2.msra.mxu0 %v4064
    %4196 = vmatprep.subr.mxu0 %v4061
    %4197 = vmatpush2.msra.mxu0 %v4060
    %4198 = vmatprep.subr.mxu0 %v4057
    %4199 = vmatpush2.msra.mxu0 %v4056
    %4200 = vmatprep.subr.mxu0 %v4053
    %4201 = vmatpush2.msra.mxu0 %v4052
    %4202 = vmatprep.mubr.f32.mxu0 %v3987
    %4203 = vmatmul.mubr.f32.gmra.mxu0 %v3986
    %v4204 = vpop.f32.mrf.mxu0
    %v4205 = vadd.f32 %v4121, %v4204
    %v4206 = vpop.f32.mrf.mxu0
    %v4207 = vadd.f32 %v4125, %v4206
    %4208 = vdwg.mxu0
    %4209 = vmatprep.subr.mxu0 %v4051
    %4210 = vmatpush1.msra.mxu0 %v4050
    %4211 = vmatprep.subr.mxu0 %v4047
    %4212 = vmatpush1.msra.mxu0 %v4046
    %4213 = vmatprep.subr.mxu0 %v4043
    %4214 = vmatpush1.msra.mxu0 %v4042
    %4215 = vmatprep.subr.mxu0 %v4039
    %4216 = vmatpush1.msra.mxu0 %v4038
    %4217 = vmatprep.subr.mxu0 %v4035
    %4218 = vmatpush1.msra.mxu0 %v4034
    %4219 = vmatprep.subr.mxu0 %v4031
    %4220 = vmatpush1.msra.mxu0 %v4030
    %4221 = vmatprep.subr.mxu0 %v4027
    %4222 = vmatpush1.msra.mxu0 %v4026
    %4223 = vmatprep.subr.mxu0 %v4023
    %4224 = vmatpush1.msra.mxu0 %v4022
    %4225 = vmatprep.subr.mxu0 %v4019
    %4226 = vmatpush1.msra.mxu0 %v4018
    %4227 = vmatprep.subr.mxu0 %v4015
    %4228 = vmatpush1.msra.mxu0 %v4014
    %4229 = vmatprep.subr.mxu0 %v4011
    %4230 = vmatpush1.msra.mxu0 %v4010
    %4231 = vmatprep.subr.mxu0 %v4007
    %4232 = vmatpush1.msra.mxu0 %v4006
    %4233 = vmatprep.subr.mxu0 %v4003
    %4234 = vmatpush1.msra.mxu0 %v4002
    %4235 = vmatprep.subr.mxu0 %v3999
    %4236 = vmatpush1.msra.mxu0 %v3998
    %4237 = vmatprep.subr.mxu0 %v3995
    %4238 = vmatpush1.msra.mxu0 %v3994
    %4239 = vmatprep.subr.mxu0 %v3991
    %4240 = vmatpush1.msra.mxu0 %v3990
    %4241 = vmatprep.subr.mxu0 %v4115
    %4242 = vmatpush2.msra.mxu0 %v4114
    %4243 = vmatprep.subr.mxu0 %v4111
    %4244 = vmatpush2.msra.mxu0 %v4110
    %4245 = vmatprep.subr.mxu0 %v4107
    %4246 = vmatpush2.msra.mxu0 %v4106
    %4247 = vmatprep.subr.mxu0 %v4103
    %4248 = vmatpush2.msra.mxu0 %v4102
    %4249 = vmatprep.subr.mxu0 %v4099
    %4250 = vmatpush2.msra.mxu0 %v4098
    %4251 = vmatprep.subr.mxu0 %v4095
    %4252 = vmatpush2.msra.mxu0 %v4094
    %4253 = vmatprep.subr.mxu0 %v4091
    %4254 = vmatpush2.msra.mxu0 %v4090
    %4255 = vmatprep.subr.mxu0 %v4087
    %4256 = vmatpush2.msra.mxu0 %v4086
    %4257 = vmatprep.subr.mxu0 %v4083
    %4258 = vmatpush2.msra.mxu0 %v4082
    %4259 = vmatprep.subr.mxu0 %v4079
    %4260 = vmatpush2.msra.mxu0 %v4078
    %4261 = vmatprep.subr.mxu0 %v4075
    %4262 = vmatpush2.msra.mxu0 %v4074
    %4263 = vmatprep.subr.mxu0 %v4071
    %4264 = vmatpush2.msra.mxu0 %v4070
    %4265 = vmatprep.subr.mxu0 %v4067
    %4266 = vmatpush2.msra.mxu0 %v4066
    %4267 = vmatprep.subr.mxu0 %v4063
    %4268 = vmatpush2.msra.mxu0 %v4062
    %4269 = vmatprep.subr.mxu0 %v4059
    %4270 = vmatpush2.msra.mxu0 %v4058
    %4271 = vmatprep.subr.mxu0 %v4055
    %4272 = vmatpush2.msra.mxu0 %v4054
    %4273 = vmatprep.mubr.f32.mxu0 %v3987
    %4274 = vmatmul.mubr.f32.gmra.mxu0 %v3986
    %v4275 = vpop.f32.mrf.mxu0
    %v4276 = vadd.f32 %v4129, %v4275
    %v4277 = vpop.f32.mrf.mxu0
    %v4278 = vadd.f32 %v4133, %v4277
    %4279 = vdwg.mxu0
    %v4280 = vld [vmem:[%s2] sm:$0xf]
    %s4281 = scalar_select %p3985, 1, 0
    %v4282 = vstv %s4281
    %vm4283 = vcmp.eq.s32.totalorder %v4282, 1
    %v4284 = vsel %vm4283, %v4280, 0.0
    %v4286 = vlaneseq
    %v4287 = vshrl.u32 %v4286, 7
    %v4288 = vsub.s32 0, %v4287
    %v4289 = vrot.slane %v4284, %v4288
    %v4290 = vlaneseq
    %v4291 = vshrl.u32 %v4290, 7
    %v4292 = vsub.s32 1, %v4291
    %v4293 = vrot.slane %v4284, %v4292
    %v4294 = vlaneseq
    %v4295 = vshrl.u32 %v4294, 7
    %v4296 = vsub.s32 2, %v4295
    %v4297 = vrot.slane %v4284, %v4296
    %v4298 = vlaneseq
    %v4299 = vshrl.u32 %v4298, 7
    %v4300 = vsub.s32 3, %v4299
    %v4301 = vrot.slane %v4284, %v4300
    %v4306 = vadd.f32 %v4205, %v4289
    %v4307 = vadd.f32 %v4207, %v4293
    %v4308 = vadd.f32 %v4276, %v4297
    %v4309 = vadd.f32 %v4278, %v4301
    %v4310 = vxor.u32 %v4306, 2147483648
    %v4311 = vmul.f32 %v4310, 1.442695
    %v4312 = vpow.pop %v4311
    %v4313 = vadd.f32 %v4312, 1.0
    %v4314 = vrcp.pop %v4313
    %v4315 = vmul.f32 1.0, %v4314
    %v4316 = vxor.u32 %v4307, 2147483648
    %v4317 = vmul.f32 %v4316, 1.442695
    %v4318 = vpow.pop %v4317
    %v4319 = vadd.f32 %v4318, 1.0
    %v4320 = vrcp.pop %v4319
    %v4321 = vmul.f32 1.0, %v4320
    %v4322 = vtanh.pop %v4308
    %v4323 = vxor.u32 %v4309, 2147483648
    %v4324 = vmul.f32 %v4323, 1.442695
    %v4325 = vpow.pop %v4324
    %v4326 = vadd.f32 %v4325, 1.0
    %v4327 = vrcp.pop %v4326
    %v4328 = vmul.f32 1.0, %v4327
    %v4329 = vld [vmem:[#allocation4] sm:$0xff]
    %v4330 = vmul.f32 %v4321, %v4329
    %v4331 = vmul.f32 %v4315, %v4322
    %v4332 = vadd.f32 %v4330, %v4331
    %4333 = vst [vmem:[#allocation4] sm:$0xff] %v4332
    %v4334 = vtanh.pop %v4332
    %v4335 = vmul.f32 %v4328, %v4334
    %4336 = vst [vmem:[#allocation3 + $0x8] sm:$0xff] %v4335
    %4337 = vst [vmem:[%s944] sm:$0xff] %v4335
    %v4338 = vld [vmem:[%s944] sm:$0xff]
    %v4339 = vld [vmem:[%s944 + $0x8] sm:$0xff]
    %v4340 = vld [vmem:[%s948] sm:$0xff]
    %v4341 = vld [vmem:[%s948 + $0x8] sm:$0xff]
    %v4342 = vld [vmem:[%s948 + $0x10] sm:$0xff]
    %v4343 = vld [vmem:[%s948 + $0x18] sm:$0xff]
    %v4344 = vld [vmem:[%s948 + $0x20] sm:$0xff]
    %v4345 = vld [vmem:[%s948 + $0x28] sm:$0xff]
    %v4346 = vld [vmem:[%s948 + $0x30] sm:$0xff]
    %v4347 = vld [vmem:[%s948 + $0x38] sm:$0xff]
    %v4348 = vld [vmem:[%s948 + $0x40] sm:$0xff]
    %v4349 = vld [vmem:[%s948 + $0x48] sm:$0xff]
    %v4350 = vld [vmem:[%s948 + $0x50] sm:$0xff]
    %v4351 = vld [vmem:[%s948 + $0x58] sm:$0xff]
    %v4352 = vld [vmem:[%s948 + $0x60] sm:$0xff]
    %v4353 = vld [vmem:[%s948 + $0x68] sm:$0xff]
    %v4354 = vld [vmem:[%s948 + $0x70] sm:$0xff]
    %v4355 = vld [vmem:[%s948 + $0x78] sm:$0xff]
    %v4356 = vld [vmem:[%s948 + $0x80] sm:$0xff]
    %v4357 = vld [vmem:[%s948 + $0x88] sm:$0xff]
    %v4358 = vld [vmem:[%s948 + $0x90] sm:$0xff]
    %v4359 = vld [vmem:[%s948 + $0x98] sm:$0xff]
    %v4360 = vld [vmem:[%s948 + $0xa0] sm:$0xff]
    %v4361 = vld [vmem:[%s948 + $0xa8] sm:$0xff]
    %v4362 = vld [vmem:[%s948 + $0xb0] sm:$0xff]
    %v4363 = vld [vmem:[%s948 + $0xb8] sm:$0xff]
    %v4364 = vld [vmem:[%s948 + $0xc0] sm:$0xff]
    %v4365 = vld [vmem:[%s948 + $0xc8] sm:$0xff]
    %v4366 = vld [vmem:[%s948 + $0xd0] sm:$0xff]
    %v4367 = vld [vmem:[%s948 + $0xd8] sm:$0xff]
    %v4368 = vld [vmem:[%s948 + $0xe0] sm:$0xff]
    %v4369 = vld [vmem:[%s948 + $0xe8] sm:$0xff]
    %v4370 = vld [vmem:[%s948 + $0xf0] sm:$0xff]
    %v4371 = vld [vmem:[%s948 + $0xf8] sm:$0xff]
    %v4372 = vld [vmem:[%s948 + $0x100] sm:$0xff]
    %v4373 = vld [vmem:[%s948 + $0x108] sm:$0xff]
    %v4374 = vld [vmem:[%s948 + $0x110] sm:$0xff]
    %v4375 = vld [vmem:[%s948 + $0x118] sm:$0xff]
    %v4376 = vld [vmem:[%s948 + $0x120] sm:$0xff]
    %v4377 = vld [vmem:[%s948 + $0x128] sm:$0xff]
    %v4378 = vld [vmem:[%s948 + $0x130] sm:$0xff]
    %v4379 = vld [vmem:[%s948 + $0x138] sm:$0xff]
    %v4380 = vld [vmem:[%s948 + $0x140] sm:$0xff]
    %v4381 = vld [vmem:[%s948 + $0x148] sm:$0xff]
    %v4382 = vld [vmem:[%s948 + $0x150] sm:$0xff]
    %v4383 = vld [vmem:[%s948 + $0x158] sm:$0xff]
    %v4384 = vld [vmem:[%s948 + $0x160] sm:$0xff]
    %v4385 = vld [vmem:[%s948 + $0x168] sm:$0xff]
    %v4386 = vld [vmem:[%s948 + $0x170] sm:$0xff]
    %v4387 = vld [vmem:[%s948 + $0x178] sm:$0xff]
    %v4388 = vld [vmem:[%s948 + $0x180] sm:$0xff]
    %v4389 = vld [vmem:[%s948 + $0x188] sm:$0xff]
    %v4390 = vld [vmem:[%s948 + $0x190] sm:$0xff]
    %v4391 = vld [vmem:[%s948 + $0x198] sm:$0xff]
    %v4392 = vld [vmem:[%s948 + $0x1a0] sm:$0xff]
    %v4393 = vld [vmem:[%s948 + $0x1a8] sm:$0xff]
    %v4394 = vld [vmem:[%s948 + $0x1b0] sm:$0xff]
    %v4395 = vld [vmem:[%s948 + $0x1b8] sm:$0xff]
    %v4396 = vld [vmem:[%s948 + $0x1c0] sm:$0xff]
    %v4397 = vld [vmem:[%s948 + $0x1c8] sm:$0xff]
    %v4398 = vld [vmem:[%s948 + $0x1d0] sm:$0xff]
    %v4399 = vld [vmem:[%s948 + $0x1d8] sm:$0xff]
    %v4400 = vld [vmem:[%s948 + $0x1e0] sm:$0xff]
    %v4401 = vld [vmem:[%s948 + $0x1e8] sm:$0xff]
    %v4402 = vld [vmem:[%s948 + $0x1f0] sm:$0xff]
    %v4403 = vld [vmem:[%s948 + $0x1f8] sm:$0xff]
    %v4404 = vld [vmem:[%s948 + $0x200] sm:$0xff]
    %v4405 = vld [vmem:[%s948 + $0x208] sm:$0xff]
    %v4406 = vld [vmem:[%s948 + $0x210] sm:$0xff]
    %v4407 = vld [vmem:[%s948 + $0x218] sm:$0xff]
    %v4408 = vld [vmem:[%s948 + $0x220] sm:$0xff]
    %v4409 = vld [vmem:[%s948 + $0x228] sm:$0xff]
    %v4410 = vld [vmem:[%s948 + $0x230] sm:$0xff]
    %v4411 = vld [vmem:[%s948 + $0x238] sm:$0xff]
    %v4412 = vld [vmem:[%s948 + $0x240] sm:$0xff]
    %v4413 = vld [vmem:[%s948 + $0x248] sm:$0xff]
    %v4414 = vld [vmem:[%s948 + $0x250] sm:$0xff]
    %v4415 = vld [vmem:[%s948 + $0x258] sm:$0xff]
    %v4416 = vld [vmem:[%s948 + $0x260] sm:$0xff]
    %v4417 = vld [vmem:[%s948 + $0x268] sm:$0xff]
    %v4418 = vld [vmem:[%s948 + $0x270] sm:$0xff]
    %v4419 = vld [vmem:[%s948 + $0x278] sm:$0xff]
    %v4420 = vld [vmem:[%s948 + $0x280] sm:$0xff]
    %v4421 = vld [vmem:[%s948 + $0x288] sm:$0xff]
    %v4422 = vld [vmem:[%s948 + $0x290] sm:$0xff]
    %v4423 = vld [vmem:[%s948 + $0x298] sm:$0xff]
    %v4424 = vld [vmem:[%s948 + $0x2a0] sm:$0xff]
    %v4425 = vld [vmem:[%s948 + $0x2a8] sm:$0xff]
    %v4426 = vld [vmem:[%s948 + $0x2b0] sm:$0xff]
    %v4427 = vld [vmem:[%s948 + $0x2b8] sm:$0xff]
    %v4428 = vld [vmem:[%s948 + $0x2c0] sm:$0xff]
    %v4429 = vld [vmem:[%s948 + $0x2c8] sm:$0xff]
    %v4430 = vld [vmem:[%s948 + $0x2d0] sm:$0xff]
    %v4431 = vld [vmem:[%s948 + $0x2d8] sm:$0xff]
    %v4432 = vld [vmem:[%s948 + $0x2e0] sm:$0xff]
    %v4433 = vld [vmem:[%s948 + $0x2e8] sm:$0xff]
    %v4434 = vld [vmem:[%s948 + $0x2f0] sm:$0xff]
    %v4435 = vld [vmem:[%s948 + $0x2f8] sm:$0xff]
    %v4436 = vld [vmem:[%s948 + $0x300] sm:$0xff]
    %v4437 = vld [vmem:[%s948 + $0x308] sm:$0xff]
    %v4438 = vld [vmem:[%s948 + $0x310] sm:$0xff]
    %v4439 = vld [vmem:[%s948 + $0x318] sm:$0xff]
    %v4440 = vld [vmem:[%s948 + $0x320] sm:$0xff]
    %v4441 = vld [vmem:[%s948 + $0x328] sm:$0xff]
    %v4442 = vld [vmem:[%s948 + $0x330] sm:$0xff]
    %v4443 = vld [vmem:[%s948 + $0x338] sm:$0xff]
    %v4444 = vld [vmem:[%s948 + $0x340] sm:$0xff]
    %v4445 = vld [vmem:[%s948 + $0x348] sm:$0xff]
    %v4446 = vld [vmem:[%s948 + $0x350] sm:$0xff]
    %v4447 = vld [vmem:[%s948 + $0x358] sm:$0xff]
    %v4448 = vld [vmem:[%s948 + $0x360] sm:$0xff]
    %v4449 = vld [vmem:[%s948 + $0x368] sm:$0xff]
    %v4450 = vld [vmem:[%s948 + $0x370] sm:$0xff]
    %v4451 = vld [vmem:[%s948 + $0x378] sm:$0xff]
    %v4452 = vld [vmem:[%s948 + $0x380] sm:$0xff]
    %v4453 = vld [vmem:[%s948 + $0x388] sm:$0xff]
    %v4454 = vld [vmem:[%s948 + $0x390] sm:$0xff]
    %v4455 = vld [vmem:[%s948 + $0x398] sm:$0xff]
    %v4456 = vld [vmem:[%s948 + $0x3a0] sm:$0xff]
    %v4457 = vld [vmem:[%s948 + $0x3a8] sm:$0xff]
    %v4458 = vld [vmem:[%s948 + $0x3b0] sm:$0xff]
    %v4459 = vld [vmem:[%s948 + $0x3b8] sm:$0xff]
    %v4460 = vld [vmem:[%s948 + $0x3c0] sm:$0xff]
    %v4461 = vld [vmem:[%s948 + $0x3c8] sm:$0xff]
    %v4462 = vld [vmem:[%s948 + $0x3d0] sm:$0xff]
    %v4463 = vld [vmem:[%s948 + $0x3d8] sm:$0xff]
    %v4464 = vld [vmem:[%s948 + $0x3e0] sm:$0xff]
    %v4465 = vld [vmem:[%s948 + $0x3e8] sm:$0xff]
    %v4466 = vld [vmem:[%s948 + $0x3f0] sm:$0xff]
    %v4467 = vld [vmem:[%s948 + $0x3f8] sm:$0xff]
    %v4468 = vld [vmem:[%s1077] sm:$0xf]
    %v4470 = vlaneseq
    %v4471 = vshrl.u32 %v4470, 7
    %v4472 = vsub.s32 0, %v4471
    %v4473 = vrot.slane %v4468, %v4472
    %v4474 = vlaneseq
    %v4475 = vshrl.u32 %v4474, 7
    %v4476 = vsub.s32 1, %v4475
    %v4477 = vrot.slane %v4468, %v4476
    %v4478 = vlaneseq
    %v4479 = vshrl.u32 %v4478, 7
    %v4480 = vsub.s32 2, %v4479
    %v4481 = vrot.slane %v4468, %v4480
    %v4482 = vlaneseq
    %v4483 = vshrl.u32 %v4482, 7
    %v4484 = vsub.s32 3, %v4483
    %v4485 = vrot.slane %v4468, %v4484
    %4490 = vmatprep.subr.mxu0 %v4401
    %4491 = vmatpush1.msra.mxu0 %v4400
    %4492 = vmatprep.subr.mxu0 %v4397
    %4493 = vmatpush1.msra.mxu0 %v4396
    %4494 = vmatprep.subr.mxu0 %v4393
    %4495 = vmatpush1.msra.mxu0 %v4392
    %4496 = vmatprep.subr.mxu0 %v4389
    %4497 = vmatpush1.msra.mxu0 %v4388
    %4498 = vmatprep.subr.mxu0 %v4385
    %4499 = vmatpush1.msra.mxu0 %v4384
    %4500 = vmatprep.subr.mxu0 %v4381
    %4501 = vmatpush1.msra.mxu0 %v4380
    %4502 = vmatprep.subr.mxu0 %v4377
    %4503 = vmatpush1.msra.mxu0 %v4376
    %4504 = vmatprep.subr.mxu0 %v4373
    %4505 = vmatpush1.msra.mxu0 %v4372
    %4506 = vmatprep.subr.mxu0 %v4369
    %4507 = vmatpush1.msra.mxu0 %v4368
    %4508 = vmatprep.subr.mxu0 %v4365
    %4509 = vmatpush1.msra.mxu0 %v4364
    %4510 = vmatprep.subr.mxu0 %v4361
    %4511 = vmatpush1.msra.mxu0 %v4360
    %4512 = vmatprep.subr.mxu0 %v4357
    %4513 = vmatpush1.msra.mxu0 %v4356
    %4514 = vmatprep.subr.mxu0 %v4353
    %4515 = vmatpush1.msra.mxu0 %v4352
    %4516 = vmatprep.subr.mxu0 %v4349
    %4517 = vmatpush1.msra.mxu0 %v4348
    %4518 = vmatprep.subr.mxu0 %v4345
    %4519 = vmatpush1.msra.mxu0 %v4344
    %4520 = vmatprep.subr.mxu0 %v4341
    %4521 = vmatpush1.msra.mxu0 %v4340
    %4522 = vmatprep.subr.mxu0 %v4465
    %4523 = vmatpush2.msra.mxu0 %v4464
    %4524 = vmatprep.subr.mxu0 %v4461
    %4525 = vmatpush2.msra.mxu0 %v4460
    %4526 = vmatprep.subr.mxu0 %v4457
    %4527 = vmatpush2.msra.mxu0 %v4456
    %4528 = vmatprep.subr.mxu0 %v4453
    %4529 = vmatpush2.msra.mxu0 %v4452
    %4530 = vmatprep.subr.mxu0 %v4449
    %4531 = vmatpush2.msra.mxu0 %v4448
    %4532 = vmatprep.subr.mxu0 %v4445
    %4533 = vmatpush2.msra.mxu0 %v4444
    %4534 = vmatprep.subr.mxu0 %v4441
    %4535 = vmatpush2.msra.mxu0 %v4440
    %4536 = vmatprep.subr.mxu0 %v4437
    %4537 = vmatpush2.msra.mxu0 %v4436
    %4538 = vmatprep.subr.mxu0 %v4433
    %4539 = vmatpush2.msra.mxu0 %v4432
    %4540 = vmatprep.subr.mxu0 %v4429
    %4541 = vmatpush2.msra.mxu0 %v4428
    %4542 = vmatprep.subr.mxu0 %v4425
    %4543 = vmatpush2.msra.mxu0 %v4424
    %4544 = vmatprep.subr.mxu0 %v4421
    %4545 = vmatpush2.msra.mxu0 %v4420
    %4546 = vmatprep.subr.mxu0 %v4417
    %4547 = vmatpush2.msra.mxu0 %v4416
    %4548 = vmatprep.subr.mxu0 %v4413
    %4549 = vmatpush2.msra.mxu0 %v4412
    %4550 = vmatprep.subr.mxu0 %v4409
    %4551 = vmatpush2.msra.mxu0 %v4408
    %4552 = vmatprep.subr.mxu0 %v4405
    %4553 = vmatpush2.msra.mxu0 %v4404
    %4554 = vmatprep.mubr.f32.mxu0 %v4339
    %4555 = vmatmul.mubr.f32.gmra.mxu0 %v4338
    %v4556 = vpop.f32.mrf.mxu0
    %v4557 = vadd.f32 %v4473, %v4556
    %v4558 = vpop.f32.mrf.mxu0
    %v4559 = vadd.f32 %v4477, %v4558
    %4560 = vdwg.mxu0
    %4561 = vmatprep.subr.mxu0 %v4403
    %4562 = vmatpush1.msra.mxu0 %v4402
    %4563 = vmatprep.subr.mxu0 %v4399
    %4564 = vmatpush1.msra.mxu0 %v4398
    %4565 = vmatprep.subr.mxu0 %v4395
    %4566 = vmatpush1.msra.mxu0 %v4394
    %4567 = vmatprep.subr.mxu0 %v4391
    %4568 = vmatpush1.msra.mxu0 %v4390
    %4569 = vmatprep.subr.mxu0 %v4387
    %4570 = vmatpush1.msra.mxu0 %v4386
    %4571 = vmatprep.subr.mxu0 %v4383
    %4572 = vmatpush1.msra.mxu0 %v4382
    %4573 = vmatprep.subr.mxu0 %v4379
    %4574 = vmatpush1.msra.mxu0 %v4378
    %4575 = vmatprep.subr.mxu0 %v4375
    %4576 = vmatpush1.msra.mxu0 %v4374
    %4577 = vmatprep.subr.mxu0 %v4371
    %4578 = vmatpush1.msra.mxu0 %v4370
    %4579 = vmatprep.subr.mxu0 %v4367
    %4580 = vmatpush1.msra.mxu0 %v4366
    %4581 = vmatprep.subr.mxu0 %v4363
    %4582 = vmatpush1.msra.mxu0 %v4362
    %4583 = vmatprep.subr.mxu0 %v4359
    %4584 = vmatpush1.msra.mxu0 %v4358
    %4585 = vmatprep.subr.mxu0 %v4355
    %4586 = vmatpush1.msra.mxu0 %v4354
    %4587 = vmatprep.subr.mxu0 %v4351
    %4588 = vmatpush1.msra.mxu0 %v4350
    %4589 = vmatprep.subr.mxu0 %v4347
    %4590 = vmatpush1.msra.mxu0 %v4346
    %4591 = vmatprep.subr.mxu0 %v4343
    %4592 = vmatpush1.msra.mxu0 %v4342
    %4593 = vmatprep.subr.mxu0 %v4467
    %4594 = vmatpush2.msra.mxu0 %v4466
    %4595 = vmatprep.subr.mxu0 %v4463
    %4596 = vmatpush2.msra.mxu0 %v4462
    %4597 = vmatprep.subr.mxu0 %v4459
    %4598 = vmatpush2.msra.mxu0 %v4458
    %4599 = vmatprep.subr.mxu0 %v4455
    %4600 = vmatpush2.msra.mxu0 %v4454
    %4601 = vmatprep.subr.mxu0 %v4451
    %4602 = vmatpush2.msra.mxu0 %v4450
    %4603 = vmatprep.subr.mxu0 %v4447
    %4604 = vmatpush2.msra.mxu0 %v4446
    %4605 = vmatprep.subr.mxu0 %v4443
    %4606 = vmatpush2.msra.mxu0 %v4442
    %4607 = vmatprep.subr.mxu0 %v4439
    %4608 = vmatpush2.msra.mxu0 %v4438
    %4609 = vmatprep.subr.mxu0 %v4435
    %4610 = vmatpush2.msra.mxu0 %v4434
    %4611 = vmatprep.subr.mxu0 %v4431
    %4612 = vmatpush2.msra.mxu0 %v4430
    %4613 = vmatprep.subr.mxu0 %v4427
    %4614 = vmatpush2.msra.mxu0 %v4426
    %4615 = vmatprep.subr.mxu0 %v4423
    %4616 = vmatpush2.msra.mxu0 %v4422
    %4617 = vmatprep.subr.mxu0 %v4419
    %4618 = vmatpush2.msra.mxu0 %v4418
    %4619 = vmatprep.subr.mxu0 %v4415
    %4620 = vmatpush2.msra.mxu0 %v4414
    %4621 = vmatprep.subr.mxu0 %v4411
    %4622 = vmatpush2.msra.mxu0 %v4410
    %4623 = vmatprep.subr.mxu0 %v4407
    %4624 = vmatpush2.msra.mxu0 %v4406
    %4625 = vmatprep.mubr.f32.mxu0 %v4339
    %4626 = vmatmul.mubr.f32.gmra.mxu0 %v4338
    %v4627 = vpop.f32.mrf.mxu0
    %v4628 = vadd.f32 %v4481, %v4627
    %v4629 = vpop.f32.mrf.mxu0
    %v4630 = vadd.f32 %v4485, %v4629
    %4631 = vdwg.mxu0
    %v4632 = vxor.u32 %v4557, 2147483648
    %v4633 = vmul.f32 %v4632, 1.442695
    %v4634 = vpow.pop %v4633
    %v4635 = vadd.f32 %v4634, 1.0
    %v4636 = vrcp.pop %v4635
    %v4637 = vmul.f32 1.0, %v4636
    %v4638 = vxor.u32 %v4559, 2147483648
    %v4639 = vmul.f32 %v4638, 1.442695
    %v4640 = vpow.pop %v4639
    %v4641 = vadd.f32 %v4640, 1.0
    %v4642 = vrcp.pop %v4641
    %v4643 = vmul.f32 1.0, %v4642
    %v4644 = vtanh.pop %v4628
    %v4645 = vxor.u32 %v4630, 2147483648
    %v4646 = vmul.f32 %v4645, 1.442695
    %v4647 = vpow.pop %v4646
    %v4648 = vadd.f32 %v4647, 1.0
    %v4649 = vrcp.pop %v4648
    %v4650 = vmul.f32 1.0, %v4649
    %v4651 = vld [vmem:[%s1261] sm:$0xff]
    %v4652 = vmul.f32 %v4643, %v4651
    %v4653 = vmul.f32 %v4637, %v4644
    %v4654 = vadd.f32 %v4652, %v4653
    %4655 = vst [vmem:[%s1261] sm:$0xff] %v4654
    %v4656 = vtanh.pop %v4654
    %v4657 = vmul.f32 %v4650, %v4656
    %4658 = vst [vmem:[%s944 + $0x8] sm:$0xff] %v4657
    %4659 = vst [vmem:[#allocation3] sm:$0xff] %v4657
    %s4660 = scalar_lea.vmem [#allocation5], 40
    %4661 = vst [vmem:[%s4660] sm:$0xff] %v4657
    %s4662 = sadd.s32 %s591, 6
    %p4663 = scmp.gt.s32.totalorder %s4662, 0
    %v4664 = vld [vmem:[#allocation3] sm:$0xff]
    %v4665 = vld [vmem:[#allocation3 + $0x8] sm:$0xff]
    %v4666 = vld [vmem:[#allocation2] sm:$0xff]
    %v4667 = vld [vmem:[#allocation2 + $0x8] sm:$0xff]
    %v4668 = vld [vmem:[#allocation2 + $0x10] sm:$0xff]
    %v4669 = vld [vmem:[#allocation2 + $0x18] sm:$0xff]
    %v4670 = vld [vmem:[#allocation2 + $0x20] sm:$0xff]
    %v4671 = vld [vmem:[#allocation2 + $0x28] sm:$0xff]
    %v4672 = vld [vmem:[#allocation2 + $0x30] sm:$0xff]
    %v4673 = vld [vmem:[#allocation2 + $0x38] sm:$0xff]
    %v4674 = vld [vmem:[#allocation2 + $0x40] sm:$0xff]
    %v4675 = vld [vmem:[#allocation2 + $0x48] sm:$0xff]
    %v4676 = vld [vmem:[#allocation2 + $0x50] sm:$0xff]
    %v4677 = vld [vmem:[#allocation2 + $0x58] sm:$0xff]
    %v4678 = vld [vmem:[#allocation2 + $0x60] sm:$0xff]
    %v4679 = vld [vmem:[#allocation2 + $0x68] sm:$0xff]
    %v4680 = vld [vmem:[#allocation2 + $0x70] sm:$0xff]
    %v4681 = vld [vmem:[#allocation2 + $0x78] sm:$0xff]
    %v4682 = vld [vmem:[#allocation2 + $0x80] sm:$0xff]
    %v4683 = vld [vmem:[#allocation2 + $0x88] sm:$0xff]
    %v4684 = vld [vmem:[#allocation2 + $0x90] sm:$0xff]
    %v4685 = vld [vmem:[#allocation2 + $0x98] sm:$0xff]
    %v4686 = vld [vmem:[#allocation2 + $0xa0] sm:$0xff]
    %v4687 = vld [vmem:[#allocation2 + $0xa8] sm:$0xff]
    %v4688 = vld [vmem:[#allocation2 + $0xb0] sm:$0xff]
    %v4689 = vld [vmem:[#allocation2 + $0xb8] sm:$0xff]
    %v4690 = vld [vmem:[#allocation2 + $0xc0] sm:$0xff]
    %v4691 = vld [vmem:[#allocation2 + $0xc8] sm:$0xff]
    %v4692 = vld [vmem:[#allocation2 + $0xd0] sm:$0xff]
    %v4693 = vld [vmem:[#allocation2 + $0xd8] sm:$0xff]
    %v4694 = vld [vmem:[#allocation2 + $0xe0] sm:$0xff]
    %v4695 = vld [vmem:[#allocation2 + $0xe8] sm:$0xff]
    %v4696 = vld [vmem:[#allocation2 + $0xf0] sm:$0xff]
    %v4697 = vld [vmem:[#allocation2 + $0xf8] sm:$0xff]
    %v4698 = vld [vmem:[#allocation2 + $0x100] sm:$0xff]
    %v4699 = vld [vmem:[#allocation2 + $0x108] sm:$0xff]
    %v4700 = vld [vmem:[#allocation2 + $0x110] sm:$0xff]
    %v4701 = vld [vmem:[#allocation2 + $0x118] sm:$0xff]
    %v4702 = vld [vmem:[#allocation2 + $0x120] sm:$0xff]
    %v4703 = vld [vmem:[#allocation2 + $0x128] sm:$0xff]
    %v4704 = vld [vmem:[#allocation2 + $0x130] sm:$0xff]
    %v4705 = vld [vmem:[#allocation2 + $0x138] sm:$0xff]
    %v4706 = vld [vmem:[#allocation2 + $0x140] sm:$0xff]
    %v4707 = vld [vmem:[#allocation2 + $0x148] sm:$0xff]
    %v4708 = vld [vmem:[#allocation2 + $0x150] sm:$0xff]
    %v4709 = vld [vmem:[#allocation2 + $0x158] sm:$0xff]
    %v4710 = vld [vmem:[#allocation2 + $0x160] sm:$0xff]
    %v4711 = vld [vmem:[#allocation2 + $0x168] sm:$0xff]
    %v4712 = vld [vmem:[#allocation2 + $0x170] sm:$0xff]
    %v4713 = vld [vmem:[#allocation2 + $0x178] sm:$0xff]
    %v4714 = vld [vmem:[#allocation2 + $0x180] sm:$0xff]
    %v4715 = vld [vmem:[#allocation2 + $0x188] sm:$0xff]
    %v4716 = vld [vmem:[#allocation2 + $0x190] sm:$0xff]
    %v4717 = vld [vmem:[#allocation2 + $0x198] sm:$0xff]
    %v4718 = vld [vmem:[#allocation2 + $0x1a0] sm:$0xff]
    %v4719 = vld [vmem:[#allocation2 + $0x1a8] sm:$0xff]
    %v4720 = vld [vmem:[#allocation2 + $0x1b0] sm:$0xff]
    %v4721 = vld [vmem:[#allocation2 + $0x1b8] sm:$0xff]
    %v4722 = vld [vmem:[#allocation2 + $0x1c0] sm:$0xff]
    %v4723 = vld [vmem:[#allocation2 + $0x1c8] sm:$0xff]
    %v4724 = vld [vmem:[#allocation2 + $0x1d0] sm:$0xff]
    %v4725 = vld [vmem:[#allocation2 + $0x1d8] sm:$0xff]
    %v4726 = vld [vmem:[#allocation2 + $0x1e0] sm:$0xff]
    %v4727 = vld [vmem:[#allocation2 + $0x1e8] sm:$0xff]
    %v4728 = vld [vmem:[#allocation2 + $0x1f0] sm:$0xff]
    %v4729 = vld [vmem:[#allocation2 + $0x1f8] sm:$0xff]
    %v4730 = vld [vmem:[#allocation2 + $0x200] sm:$0xff]
    %v4731 = vld [vmem:[#allocation2 + $0x208] sm:$0xff]
    %v4732 = vld [vmem:[#allocation2 + $0x210] sm:$0xff]
    %v4733 = vld [vmem:[#allocation2 + $0x218] sm:$0xff]
    %v4734 = vld [vmem:[#allocation2 + $0x220] sm:$0xff]
    %v4735 = vld [vmem:[#allocation2 + $0x228] sm:$0xff]
    %v4736 = vld [vmem:[#allocation2 + $0x230] sm:$0xff]
    %v4737 = vld [vmem:[#allocation2 + $0x238] sm:$0xff]
    %v4738 = vld [vmem:[#allocation2 + $0x240] sm:$0xff]
    %v4739 = vld [vmem:[#allocation2 + $0x248] sm:$0xff]
    %v4740 = vld [vmem:[#allocation2 + $0x250] sm:$0xff]
    %v4741 = vld [vmem:[#allocation2 + $0x258] sm:$0xff]
    %v4742 = vld [vmem:[#allocation2 + $0x260] sm:$0xff]
    %v4743 = vld [vmem:[#allocation2 + $0x268] sm:$0xff]
    %v4744 = vld [vmem:[#allocation2 + $0x270] sm:$0xff]
    %v4745 = vld [vmem:[#allocation2 + $0x278] sm:$0xff]
    %v4746 = vld [vmem:[#allocation2 + $0x280] sm:$0xff]
    %v4747 = vld [vmem:[#allocation2 + $0x288] sm:$0xff]
    %v4748 = vld [vmem:[#allocation2 + $0x290] sm:$0xff]
    %v4749 = vld [vmem:[#allocation2 + $0x298] sm:$0xff]
    %v4750 = vld [vmem:[#allocation2 + $0x2a0] sm:$0xff]
    %v4751 = vld [vmem:[#allocation2 + $0x2a8] sm:$0xff]
    %v4752 = vld [vmem:[#allocation2 + $0x2b0] sm:$0xff]
    %v4753 = vld [vmem:[#allocation2 + $0x2b8] sm:$0xff]
    %v4754 = vld [vmem:[#allocation2 + $0x2c0] sm:$0xff]
    %v4755 = vld [vmem:[#allocation2 + $0x2c8] sm:$0xff]
    %v4756 = vld [vmem:[#allocation2 + $0x2d0] sm:$0xff]
    %v4757 = vld [vmem:[#allocation2 + $0x2d8] sm:$0xff]
    %v4758 = vld [vmem:[#allocation2 + $0x2e0] sm:$0xff]
    %v4759 = vld [vmem:[#allocation2 + $0x2e8] sm:$0xff]
    %v4760 = vld [vmem:[#allocation2 + $0x2f0] sm:$0xff]
    %v4761 = vld [vmem:[#allocation2 + $0x2f8] sm:$0xff]
    %v4762 = vld [vmem:[#allocation2 + $0x300] sm:$0xff]
    %v4763 = vld [vmem:[#allocation2 + $0x308] sm:$0xff]
    %v4764 = vld [vmem:[#allocation2 + $0x310] sm:$0xff]
    %v4765 = vld [vmem:[#allocation2 + $0x318] sm:$0xff]
    %v4766 = vld [vmem:[#allocation2 + $0x320] sm:$0xff]
    %v4767 = vld [vmem:[#allocation2 + $0x328] sm:$0xff]
    %v4768 = vld [vmem:[#allocation2 + $0x330] sm:$0xff]
    %v4769 = vld [vmem:[#allocation2 + $0x338] sm:$0xff]
    %v4770 = vld [vmem:[#allocation2 + $0x340] sm:$0xff]
    %v4771 = vld [vmem:[#allocation2 + $0x348] sm:$0xff]
    %v4772 = vld [vmem:[#allocation2 + $0x350] sm:$0xff]
    %v4773 = vld [vmem:[#allocation2 + $0x358] sm:$0xff]
    %v4774 = vld [vmem:[#allocation2 + $0x360] sm:$0xff]
    %v4775 = vld [vmem:[#allocation2 + $0x368] sm:$0xff]
    %v4776 = vld [vmem:[#allocation2 + $0x370] sm:$0xff]
    %v4777 = vld [vmem:[#allocation2 + $0x378] sm:$0xff]
    %v4778 = vld [vmem:[#allocation2 + $0x380] sm:$0xff]
    %v4779 = vld [vmem:[#allocation2 + $0x388] sm:$0xff]
    %v4780 = vld [vmem:[#allocation2 + $0x390] sm:$0xff]
    %v4781 = vld [vmem:[#allocation2 + $0x398] sm:$0xff]
    %v4782 = vld [vmem:[#allocation2 + $0x3a0] sm:$0xff]
    %v4783 = vld [vmem:[#allocation2 + $0x3a8] sm:$0xff]
    %v4784 = vld [vmem:[#allocation2 + $0x3b0] sm:$0xff]
    %v4785 = vld [vmem:[#allocation2 + $0x3b8] sm:$0xff]
    %v4786 = vld [vmem:[#allocation2 + $0x3c0] sm:$0xff]
    %v4787 = vld [vmem:[#allocation2 + $0x3c8] sm:$0xff]
    %v4788 = vld [vmem:[#allocation2 + $0x3d0] sm:$0xff]
    %v4789 = vld [vmem:[#allocation2 + $0x3d8] sm:$0xff]
    %v4790 = vld [vmem:[#allocation2 + $0x3e0] sm:$0xff]
    %v4791 = vld [vmem:[#allocation2 + $0x3e8] sm:$0xff]
    %v4792 = vld [vmem:[#allocation2 + $0x3f0] sm:$0xff]
    %v4793 = vld [vmem:[#allocation2 + $0x3f8] sm:$0xff]
    %v4794 = vld [vmem:[%s1] sm:$0xf]
    %v4796 = vlaneseq
    %v4797 = vshrl.u32 %v4796, 7
    %v4798 = vsub.s32 0, %v4797
    %v4799 = vrot.slane %v4794, %v4798
    %v4800 = vlaneseq
    %v4801 = vshrl.u32 %v4800, 7
    %v4802 = vsub.s32 1, %v4801
    %v4803 = vrot.slane %v4794, %v4802
    %v4804 = vlaneseq
    %v4805 = vshrl.u32 %v4804, 7
    %v4806 = vsub.s32 2, %v4805
    %v4807 = vrot.slane %v4794, %v4806
    %v4808 = vlaneseq
    %v4809 = vshrl.u32 %v4808, 7
    %v4810 = vsub.s32 3, %v4809
    %v4811 = vrot.slane %v4794, %v4810
    %4816 = vmatprep.subr.mxu0 %v4727
    %4817 = vmatpush1.msra.mxu0 %v4726
    %4818 = vmatprep.subr.mxu0 %v4723
    %4819 = vmatpush1.msra.mxu0 %v4722
    %4820 = vmatprep.subr.mxu0 %v4719
    %4821 = vmatpush1.msra.mxu0 %v4718
    %4822 = vmatprep.subr.mxu0 %v4715
    %4823 = vmatpush1.msra.mxu0 %v4714
    %4824 = vmatprep.subr.mxu0 %v4711
    %4825 = vmatpush1.msra.mxu0 %v4710
    %4826 = vmatprep.subr.mxu0 %v4707
    %4827 = vmatpush1.msra.mxu0 %v4706
    %4828 = vmatprep.subr.mxu0 %v4703
    %4829 = vmatpush1.msra.mxu0 %v4702
    %4830 = vmatprep.subr.mxu0 %v4699
    %4831 = vmatpush1.msra.mxu0 %v4698
    %4832 = vmatprep.subr.mxu0 %v4695
    %4833 = vmatpush1.msra.mxu0 %v4694
    %4834 = vmatprep.subr.mxu0 %v4691
    %4835 = vmatpush1.msra.mxu0 %v4690
    %4836 = vmatprep.subr.mxu0 %v4687
    %4837 = vmatpush1.msra.mxu0 %v4686
    %4838 = vmatprep.subr.mxu0 %v4683
    %4839 = vmatpush1.msra.mxu0 %v4682
    %4840 = vmatprep.subr.mxu0 %v4679
    %4841 = vmatpush1.msra.mxu0 %v4678
    %4842 = vmatprep.subr.mxu0 %v4675
    %4843 = vmatpush1.msra.mxu0 %v4674
    %4844 = vmatprep.subr.mxu0 %v4671
    %4845 = vmatpush1.msra.mxu0 %v4670
    %4846 = vmatprep.subr.mxu0 %v4667
    %4847 = vmatpush1.msra.mxu0 %v4666
    %4848 = vmatprep.subr.mxu0 %v4791
    %4849 = vmatpush2.msra.mxu0 %v4790
    %4850 = vmatprep.subr.mxu0 %v4787
    %4851 = vmatpush2.msra.mxu0 %v4786
    %4852 = vmatprep.subr.mxu0 %v4783
    %4853 = vmatpush2.msra.mxu0 %v4782
    %4854 = vmatprep.subr.mxu0 %v4779
    %4855 = vmatpush2.msra.mxu0 %v4778
    %4856 = vmatprep.subr.mxu0 %v4775
    %4857 = vmatpush2.msra.mxu0 %v4774
    %4858 = vmatprep.subr.mxu0 %v4771
    %4859 = vmatpush2.msra.mxu0 %v4770
    %4860 = vmatprep.subr.mxu0 %v4767
    %4861 = vmatpush2.msra.mxu0 %v4766
    %4862 = vmatprep.subr.mxu0 %v4763
    %4863 = vmatpush2.msra.mxu0 %v4762
    %4864 = vmatprep.subr.mxu0 %v4759
    %4865 = vmatpush2.msra.mxu0 %v4758
    %4866 = vmatprep.subr.mxu0 %v4755
    %4867 = vmatpush2.msra.mxu0 %v4754
    %4868 = vmatprep.subr.mxu0 %v4751
    %4869 = vmatpush2.msra.mxu0 %v4750
    %4870 = vmatprep.subr.mxu0 %v4747
    %4871 = vmatpush2.msra.mxu0 %v4746
    %4872 = vmatprep.subr.mxu0 %v4743
    %4873 = vmatpush2.msra.mxu0 %v4742
    %4874 = vmatprep.subr.mxu0 %v4739
    %4875 = vmatpush2.msra.mxu0 %v4738
    %4876 = vmatprep.subr.mxu0 %v4735
    %4877 = vmatpush2.msra.mxu0 %v4734
    %4878 = vmatprep.subr.mxu0 %v4731
    %4879 = vmatpush2.msra.mxu0 %v4730
    %4880 = vmatprep.mubr.f32.mxu0 %v4665
    %4881 = vmatmul.mubr.f32.gmra.mxu0 %v4664
    %v4882 = vpop.f32.mrf.mxu0
    %v4883 = vadd.f32 %v4799, %v4882
    %v4884 = vpop.f32.mrf.mxu0
    %v4885 = vadd.f32 %v4803, %v4884
    %4886 = vdwg.mxu0
    %4887 = vmatprep.subr.mxu0 %v4729
    %4888 = vmatpush1.msra.mxu0 %v4728
    %4889 = vmatprep.subr.mxu0 %v4725
    %4890 = vmatpush1.msra.mxu0 %v4724
    %4891 = vmatprep.subr.mxu0 %v4721
    %4892 = vmatpush1.msra.mxu0 %v4720
    %4893 = vmatprep.subr.mxu0 %v4717
    %4894 = vmatpush1.msra.mxu0 %v4716
    %4895 = vmatprep.subr.mxu0 %v4713
    %4896 = vmatpush1.msra.mxu0 %v4712
    %4897 = vmatprep.subr.mxu0 %v4709
    %4898 = vmatpush1.msra.mxu0 %v4708
    %4899 = vmatprep.subr.mxu0 %v4705
    %4900 = vmatpush1.msra.mxu0 %v4704
    %4901 = vmatprep.subr.mxu0 %v4701
    %4902 = vmatpush1.msra.mxu0 %v4700
    %4903 = vmatprep.subr.mxu0 %v4697
    %4904 = vmatpush1.msra.mxu0 %v4696
    %4905 = vmatprep.subr.mxu0 %v4693
    %4906 = vmatpush1.msra.mxu0 %v4692
    %4907 = vmatprep.subr.mxu0 %v4689
    %4908 = vmatpush1.msra.mxu0 %v4688
    %4909 = vmatprep.subr.mxu0 %v4685
    %4910 = vmatpush1.msra.mxu0 %v4684
    %4911 = vmatprep.subr.mxu0 %v4681
    %4912 = vmatpush1.msra.mxu0 %v4680
    %4913 = vmatprep.subr.mxu0 %v4677
    %4914 = vmatpush1.msra.mxu0 %v4676
    %4915 = vmatprep.subr.mxu0 %v4673
    %4916 = vmatpush1.msra.mxu0 %v4672
    %4917 = vmatprep.subr.mxu0 %v4669
    %4918 = vmatpush1.msra.mxu0 %v4668
    %4919 = vmatprep.subr.mxu0 %v4793
    %4920 = vmatpush2.msra.mxu0 %v4792
    %4921 = vmatprep.subr.mxu0 %v4789
    %4922 = vmatpush2.msra.mxu0 %v4788
    %4923 = vmatprep.subr.mxu0 %v4785
    %4924 = vmatpush2.msra.mxu0 %v4784
    %4925 = vmatprep.subr.mxu0 %v4781
    %4926 = vmatpush2.msra.mxu0 %v4780
    %4927 = vmatprep.subr.mxu0 %v4777
    %4928 = vmatpush2.msra.mxu0 %v4776
    %4929 = vmatprep.subr.mxu0 %v4773
    %4930 = vmatpush2.msra.mxu0 %v4772
    %4931 = vmatprep.subr.mxu0 %v4769
    %4932 = vmatpush2.msra.mxu0 %v4768
    %4933 = vmatprep.subr.mxu0 %v4765
    %4934 = vmatpush2.msra.mxu0 %v4764
    %4935 = vmatprep.subr.mxu0 %v4761
    %4936 = vmatpush2.msra.mxu0 %v4760
    %4937 = vmatprep.subr.mxu0 %v4757
    %4938 = vmatpush2.msra.mxu0 %v4756
    %4939 = vmatprep.subr.mxu0 %v4753
    %4940 = vmatpush2.msra.mxu0 %v4752
    %4941 = vmatprep.subr.mxu0 %v4749
    %4942 = vmatpush2.msra.mxu0 %v4748
    %4943 = vmatprep.subr.mxu0 %v4745
    %4944 = vmatpush2.msra.mxu0 %v4744
    %4945 = vmatprep.subr.mxu0 %v4741
    %4946 = vmatpush2.msra.mxu0 %v4740
    %4947 = vmatprep.subr.mxu0 %v4737
    %4948 = vmatpush2.msra.mxu0 %v4736
    %4949 = vmatprep.subr.mxu0 %v4733
    %4950 = vmatpush2.msra.mxu0 %v4732
    %4951 = vmatprep.mubr.f32.mxu0 %v4665
    %4952 = vmatmul.mubr.f32.gmra.mxu0 %v4664
    %v4953 = vpop.f32.mrf.mxu0
    %v4954 = vadd.f32 %v4807, %v4953
    %v4955 = vpop.f32.mrf.mxu0
    %v4956 = vadd.f32 %v4811, %v4955
    %4957 = vdwg.mxu0
    %v4958 = vld [vmem:[%s2] sm:$0xf]
    %s4959 = scalar_select %p4663, 1, 0
    %v4960 = vstv %s4959
    %vm4961 = vcmp.eq.s32.totalorder %v4960, 1
    %v4962 = vsel %vm4961, %v4958, 0.0
    %v4964 = vlaneseq
    %v4965 = vshrl.u32 %v4964, 7
    %v4966 = vsub.s32 0, %v4965
    %v4967 = vrot.slane %v4962, %v4966
    %v4968 = vlaneseq
    %v4969 = vshrl.u32 %v4968, 7
    %v4970 = vsub.s32 1, %v4969
    %v4971 = vrot.slane %v4962, %v4970
    %v4972 = vlaneseq
    %v4973 = vshrl.u32 %v4972, 7
    %v4974 = vsub.s32 2, %v4973
    %v4975 = vrot.slane %v4962, %v4974
    %v4976 = vlaneseq
    %v4977 = vshrl.u32 %v4976, 7
    %v4978 = vsub.s32 3, %v4977
    %v4979 = vrot.slane %v4962, %v4978
    %v4984 = vadd.f32 %v4883, %v4967
    %v4985 = vadd.f32 %v4885, %v4971
    %v4986 = vadd.f32 %v4954, %v4975
    %v4987 = vadd.f32 %v4956, %v4979
    %v4988 = vxor.u32 %v4984, 2147483648
    %v4989 = vmul.f32 %v4988, 1.442695
    %v4990 = vpow.pop %v4989
    %v4991 = vadd.f32 %v4990, 1.0
    %v4992 = vrcp.pop %v4991
    %v4993 = vmul.f32 1.0, %v4992
    %v4994 = vxor.u32 %v4985, 2147483648
    %v4995 = vmul.f32 %v4994, 1.442695
    %v4996 = vpow.pop %v4995
    %v4997 = vadd.f32 %v4996, 1.0
    %v4998 = vrcp.pop %v4997
    %v4999 = vmul.f32 1.0, %v4998
    %v5000 = vtanh.pop %v4986
    %v5001 = vxor.u32 %v4987, 2147483648
    %v5002 = vmul.f32 %v5001, 1.442695
    %v5003 = vpow.pop %v5002
    %v5004 = vadd.f32 %v5003, 1.0
    %v5005 = vrcp.pop %v5004
    %v5006 = vmul.f32 1.0, %v5005
    %v5007 = vld [vmem:[#allocation4] sm:$0xff]
    %v5008 = vmul.f32 %v4999, %v5007
    %v5009 = vmul.f32 %v4993, %v5000
    %v5010 = vadd.f32 %v5008, %v5009
    %5011 = vst [vmem:[#allocation4] sm:$0xff] %v5010
    %v5012 = vtanh.pop %v5010
    %v5013 = vmul.f32 %v5006, %v5012
    %5014 = vst [vmem:[#allocation3 + $0x8] sm:$0xff] %v5013
    %5015 = vst [vmem:[%s944] sm:$0xff] %v5013
    %v5016 = vld [vmem:[%s944] sm:$0xff]
    %v5017 = vld [vmem:[%s944 + $0x8] sm:$0xff]
    %v5018 = vld [vmem:[%s948] sm:$0xff]
    %v5019 = vld [vmem:[%s948 + $0x8] sm:$0xff]
    %v5020 = vld [vmem:[%s948 + $0x10] sm:$0xff]
    %v5021 = vld [vmem:[%s948 + $0x18] sm:$0xff]
    %v5022 = vld [vmem:[%s948 + $0x20] sm:$0xff]
    %v5023 = vld [vmem:[%s948 + $0x28] sm:$0xff]
    %v5024 = vld [vmem:[%s948 + $0x30] sm:$0xff]
    %v5025 = vld [vmem:[%s948 + $0x38] sm:$0xff]
    %v5026 = vld [vmem:[%s948 + $0x40] sm:$0xff]
    %v5027 = vld [vmem:[%s948 + $0x48] sm:$0xff]
    %v5028 = vld [vmem:[%s948 + $0x50] sm:$0xff]
    %v5029 = vld [vmem:[%s948 + $0x58] sm:$0xff]
    %v5030 = vld [vmem:[%s948 + $0x60] sm:$0xff]
    %v5031 = vld [vmem:[%s948 + $0x68] sm:$0xff]
    %v5032 = vld [vmem:[%s948 + $0x70] sm:$0xff]
    %v5033 = vld [vmem:[%s948 + $0x78] sm:$0xff]
    %v5034 = vld [vmem:[%s948 + $0x80] sm:$0xff]
    %v5035 = vld [vmem:[%s948 + $0x88] sm:$0xff]
    %v5036 = vld [vmem:[%s948 + $0x90] sm:$0xff]
    %v5037 = vld [vmem:[%s948 + $0x98] sm:$0xff]
    %v5038 = vld [vmem:[%s948 + $0xa0] sm:$0xff]
    %v5039 = vld [vmem:[%s948 + $0xa8] sm:$0xff]
    %v5040 = vld [vmem:[%s948 + $0xb0] sm:$0xff]
    %v5041 = vld [vmem:[%s948 + $0xb8] sm:$0xff]
    %v5042 = vld [vmem:[%s948 + $0xc0] sm:$0xff]
    %v5043 = vld [vmem:[%s948 + $0xc8] sm:$0xff]
    %v5044 = vld [vmem:[%s948 + $0xd0] sm:$0xff]
    %v5045 = vld [vmem:[%s948 + $0xd8] sm:$0xff]
    %v5046 = vld [vmem:[%s948 + $0xe0] sm:$0xff]
    %v5047 = vld [vmem:[%s948 + $0xe8] sm:$0xff]
    %v5048 = vld [vmem:[%s948 + $0xf0] sm:$0xff]
    %v5049 = vld [vmem:[%s948 + $0xf8] sm:$0xff]
    %v5050 = vld [vmem:[%s948 + $0x100] sm:$0xff]
    %v5051 = vld [vmem:[%s948 + $0x108] sm:$0xff]
    %v5052 = vld [vmem:[%s948 + $0x110] sm:$0xff]
    %v5053 = vld [vmem:[%s948 + $0x118] sm:$0xff]
    %v5054 = vld [vmem:[%s948 + $0x120] sm:$0xff]
    %v5055 = vld [vmem:[%s948 + $0x128] sm:$0xff]
    %v5056 = vld [vmem:[%s948 + $0x130] sm:$0xff]
    %v5057 = vld [vmem:[%s948 + $0x138] sm:$0xff]
    %v5058 = vld [vmem:[%s948 + $0x140] sm:$0xff]
    %v5059 = vld [vmem:[%s948 + $0x148] sm:$0xff]
    %v5060 = vld [vmem:[%s948 + $0x150] sm:$0xff]
    %v5061 = vld [vmem:[%s948 + $0x158] sm:$0xff]
    %v5062 = vld [vmem:[%s948 + $0x160] sm:$0xff]
    %v5063 = vld [vmem:[%s948 + $0x168] sm:$0xff]
    %v5064 = vld [vmem:[%s948 + $0x170] sm:$0xff]
    %v5065 = vld [vmem:[%s948 + $0x178] sm:$0xff]
    %v5066 = vld [vmem:[%s948 + $0x180] sm:$0xff]
    %v5067 = vld [vmem:[%s948 + $0x188] sm:$0xff]
    %v5068 = vld [vmem:[%s948 + $0x190] sm:$0xff]
    %v5069 = vld [vmem:[%s948 + $0x198] sm:$0xff]
    %v5070 = vld [vmem:[%s948 + $0x1a0] sm:$0xff]
    %v5071 = vld [vmem:[%s948 + $0x1a8] sm:$0xff]
    %v5072 = vld [vmem:[%s948 + $0x1b0] sm:$0xff]
    %v5073 = vld [vmem:[%s948 + $0x1b8] sm:$0xff]
    %v5074 = vld [vmem:[%s948 + $0x1c0] sm:$0xff]
    %v5075 = vld [vmem:[%s948 + $0x1c8] sm:$0xff]
    %v5076 = vld [vmem:[%s948 + $0x1d0] sm:$0xff]
    %v5077 = vld [vmem:[%s948 + $0x1d8] sm:$0xff]
    %v5078 = vld [vmem:[%s948 + $0x1e0] sm:$0xff]
    %v5079 = vld [vmem:[%s948 + $0x1e8] sm:$0xff]
    %v5080 = vld [vmem:[%s948 + $0x1f0] sm:$0xff]
    %v5081 = vld [vmem:[%s948 + $0x1f8] sm:$0xff]
    %v5082 = vld [vmem:[%s948 + $0x200] sm:$0xff]
    %v5083 = vld [vmem:[%s948 + $0x208] sm:$0xff]
    %v5084 = vld [vmem:[%s948 + $0x210] sm:$0xff]
    %v5085 = vld [vmem:[%s948 + $0x218] sm:$0xff]
    %v5086 = vld [vmem:[%s948 + $0x220] sm:$0xff]
    %v5087 = vld [vmem:[%s948 + $0x228] sm:$0xff]
    %v5088 = vld [vmem:[%s948 + $0x230] sm:$0xff]
    %v5089 = vld [vmem:[%s948 + $0x238] sm:$0xff]
    %v5090 = vld [vmem:[%s948 + $0x240] sm:$0xff]
    %v5091 = vld [vmem:[%s948 + $0x248] sm:$0xff]
    %v5092 = vld [vmem:[%s948 + $0x250] sm:$0xff]
    %v5093 = vld [vmem:[%s948 + $0x258] sm:$0xff]
    %v5094 = vld [vmem:[%s948 + $0x260] sm:$0xff]
    %v5095 = vld [vmem:[%s948 + $0x268] sm:$0xff]
    %v5096 = vld [vmem:[%s948 + $0x270] sm:$0xff]
    %v5097 = vld [vmem:[%s948 + $0x278] sm:$0xff]
    %v5098 = vld [vmem:[%s948 + $0x280] sm:$0xff]
    %v5099 = vld [vmem:[%s948 + $0x288] sm:$0xff]
    %v5100 = vld [vmem:[%s948 + $0x290] sm:$0xff]
    %v5101 = vld [vmem:[%s948 + $0x298] sm:$0xff]
    %v5102 = vld [vmem:[%s948 + $0x2a0] sm:$0xff]
    %v5103 = vld [vmem:[%s948 + $0x2a8] sm:$0xff]
    %v5104 = vld [vmem:[%s948 + $0x2b0] sm:$0xff]
    %v5105 = vld [vmem:[%s948 + $0x2b8] sm:$0xff]
    %v5106 = vld [vmem:[%s948 + $0x2c0] sm:$0xff]
    %v5107 = vld [vmem:[%s948 + $0x2c8] sm:$0xff]
    %v5108 = vld [vmem:[%s948 + $0x2d0] sm:$0xff]
    %v5109 = vld [vmem:[%s948 + $0x2d8] sm:$0xff]
    %v5110 = vld [vmem:[%s948 + $0x2e0] sm:$0xff]
    %v5111 = vld [vmem:[%s948 + $0x2e8] sm:$0xff]
    %v5112 = vld [vmem:[%s948 + $0x2f0] sm:$0xff]
    %v5113 = vld [vmem:[%s948 + $0x2f8] sm:$0xff]
    %v5114 = vld [vmem:[%s948 + $0x300] sm:$0xff]
    %v5115 = vld [vmem:[%s948 + $0x308] sm:$0xff]
    %v5116 = vld [vmem:[%s948 + $0x310] sm:$0xff]
    %v5117 = vld [vmem:[%s948 + $0x318] sm:$0xff]
    %v5118 = vld [vmem:[%s948 + $0x320] sm:$0xff]
    %v5119 = vld [vmem:[%s948 + $0x328] sm:$0xff]
    %v5120 = vld [vmem:[%s948 + $0x330] sm:$0xff]
    %v5121 = vld [vmem:[%s948 + $0x338] sm:$0xff]
    %v5122 = vld [vmem:[%s948 + $0x340] sm:$0xff]
    %v5123 = vld [vmem:[%s948 + $0x348] sm:$0xff]
    %v5124 = vld [vmem:[%s948 + $0x350] sm:$0xff]
    %v5125 = vld [vmem:[%s948 + $0x358] sm:$0xff]
    %v5126 = vld [vmem:[%s948 + $0x360] sm:$0xff]
    %v5127 = vld [vmem:[%s948 + $0x368] sm:$0xff]
    %v5128 = vld [vmem:[%s948 + $0x370] sm:$0xff]
    %v5129 = vld [vmem:[%s948 + $0x378] sm:$0xff]
    %v5130 = vld [vmem:[%s948 + $0x380] sm:$0xff]
    %v5131 = vld [vmem:[%s948 + $0x388] sm:$0xff]
    %v5132 = vld [vmem:[%s948 + $0x390] sm:$0xff]
    %v5133 = vld [vmem:[%s948 + $0x398] sm:$0xff]
    %v5134 = vld [vmem:[%s948 + $0x3a0] sm:$0xff]
    %v5135 = vld [vmem:[%s948 + $0x3a8] sm:$0xff]
    %v5136 = vld [vmem:[%s948 + $0x3b0] sm:$0xff]
    %v5137 = vld [vmem:[%s948 + $0x3b8] sm:$0xff]
    %v5138 = vld [vmem:[%s948 + $0x3c0] sm:$0xff]
    %v5139 = vld [vmem:[%s948 + $0x3c8] sm:$0xff]
    %v5140 = vld [vmem:[%s948 + $0x3d0] sm:$0xff]
    %v5141 = vld [vmem:[%s948 + $0x3d8] sm:$0xff]
    %v5142 = vld [vmem:[%s948 + $0x3e0] sm:$0xff]
    %v5143 = vld [vmem:[%s948 + $0x3e8] sm:$0xff]
    %v5144 = vld [vmem:[%s948 + $0x3f0] sm:$0xff]
    %v5145 = vld [vmem:[%s948 + $0x3f8] sm:$0xff]
    %v5146 = vld [vmem:[%s1077] sm:$0xf]
    %v5148 = vlaneseq
    %v5149 = vshrl.u32 %v5148, 7
    %v5150 = vsub.s32 0, %v5149
    %v5151 = vrot.slane %v5146, %v5150
    %v5152 = vlaneseq
    %v5153 = vshrl.u32 %v5152, 7
    %v5154 = vsub.s32 1, %v5153
    %v5155 = vrot.slane %v5146, %v5154
    %v5156 = vlaneseq
    %v5157 = vshrl.u32 %v5156, 7
    %v5158 = vsub.s32 2, %v5157
    %v5159 = vrot.slane %v5146, %v5158
    %v5160 = vlaneseq
    %v5161 = vshrl.u32 %v5160, 7
    %v5162 = vsub.s32 3, %v5161
    %v5163 = vrot.slane %v5146, %v5162
    %5168 = vmatprep.subr.mxu0 %v5079
    %5169 = vmatpush1.msra.mxu0 %v5078
    %5170 = vmatprep.subr.mxu0 %v5075
    %5171 = vmatpush1.msra.mxu0 %v5074
    %5172 = vmatprep.subr.mxu0 %v5071
    %5173 = vmatpush1.msra.mxu0 %v5070
    %5174 = vmatprep.subr.mxu0 %v5067
    %5175 = vmatpush1.msra.mxu0 %v5066
    %5176 = vmatprep.subr.mxu0 %v5063
    %5177 = vmatpush1.msra.mxu0 %v5062
    %5178 = vmatprep.subr.mxu0 %v5059
    %5179 = vmatpush1.msra.mxu0 %v5058
    %5180 = vmatprep.subr.mxu0 %v5055
    %5181 = vmatpush1.msra.mxu0 %v5054
    %5182 = vmatprep.subr.mxu0 %v5051
    %5183 = vmatpush1.msra.mxu0 %v5050
    %5184 = vmatprep.subr.mxu0 %v5047
    %5185 = vmatpush1.msra.mxu0 %v5046
    %5186 = vmatprep.subr.mxu0 %v5043
    %5187 = vmatpush1.msra.mxu0 %v5042
    %5188 = vmatprep.subr.mxu0 %v5039
    %5189 = vmatpush1.msra.mxu0 %v5038
    %5190 = vmatprep.subr.mxu0 %v5035
    %5191 = vmatpush1.msra.mxu0 %v5034
    %5192 = vmatprep.subr.mxu0 %v5031
    %5193 = vmatpush1.msra.mxu0 %v5030
    %5194 = vmatprep.subr.mxu0 %v5027
    %5195 = vmatpush1.msra.mxu0 %v5026
    %5196 = vmatprep.subr.mxu0 %v5023
    %5197 = vmatpush1.msra.mxu0 %v5022
    %5198 = vmatprep.subr.mxu0 %v5019
    %5199 = vmatpush1.msra.mxu0 %v5018
    %5200 = vmatprep.subr.mxu0 %v5143
    %5201 = vmatpush2.msra.mxu0 %v5142
    %5202 = vmatprep.subr.mxu0 %v5139
    %5203 = vmatpush2.msra.mxu0 %v5138
    %5204 = vmatprep.subr.mxu0 %v5135
    %5205 = vmatpush2.msra.mxu0 %v5134
    %5206 = vmatprep.subr.mxu0 %v5131
    %5207 = vmatpush2.msra.mxu0 %v5130
    %5208 = vmatprep.subr.mxu0 %v5127
    %5209 = vmatpush2.msra.mxu0 %v5126
    %5210 = vmatprep.subr.mxu0 %v5123
    %5211 = vmatpush2.msra.mxu0 %v5122
    %5212 = vmatprep.subr.mxu0 %v5119
    %5213 = vmatpush2.msra.mxu0 %v5118
    %5214 = vmatprep.subr.mxu0 %v5115
    %5215 = vmatpush2.msra.mxu0 %v5114
    %5216 = vmatprep.subr.mxu0 %v5111
    %5217 = vmatpush2.msra.mxu0 %v5110
    %5218 = vmatprep.subr.mxu0 %v5107
    %5219 = vmatpush2.msra.mxu0 %v5106
    %5220 = vmatprep.subr.mxu0 %v5103
    %5221 = vmatpush2.msra.mxu0 %v5102
    %5222 = vmatprep.subr.mxu0 %v5099
    %5223 = vmatpush2.msra.mxu0 %v5098
    %5224 = vmatprep.subr.mxu0 %v5095
    %5225 = vmatpush2.msra.mxu0 %v5094
    %5226 = vmatprep.subr.mxu0 %v5091
    %5227 = vmatpush2.msra.mxu0 %v5090
    %5228 = vmatprep.subr.mxu0 %v5087
    %5229 = vmatpush2.msra.mxu0 %v5086
    %5230 = vmatprep.subr.mxu0 %v5083
    %5231 = vmatpush2.msra.mxu0 %v5082
    %5232 = vmatprep.mubr.f32.mxu0 %v5017
    %5233 = vmatmul.mubr.f32.gmra.mxu0 %v5016
    %v5234 = vpop.f32.mrf.mxu0
    %v5235 = vadd.f32 %v5151, %v5234
    %v5236 = vpop.f32.mrf.mxu0
    %v5237 = vadd.f32 %v5155, %v5236
    %5238 = vdwg.mxu0
    %5239 = vmatprep.subr.mxu0 %v5081
    %5240 = vmatpush1.msra.mxu0 %v5080
    %5241 = vmatprep.subr.mxu0 %v5077
    %5242 = vmatpush1.msra.mxu0 %v5076
    %5243 = vmatprep.subr.mxu0 %v5073
    %5244 = vmatpush1.msra.mxu0 %v5072
    %5245 = vmatprep.subr.mxu0 %v5069
    %5246 = vmatpush1.msra.mxu0 %v5068
    %5247 = vmatprep.subr.mxu0 %v5065
    %5248 = vmatpush1.msra.mxu0 %v5064
    %5249 = vmatprep.subr.mxu0 %v5061
    %5250 = vmatpush1.msra.mxu0 %v5060
    %5251 = vmatprep.subr.mxu0 %v5057
    %5252 = vmatpush1.msra.mxu0 %v5056
    %5253 = vmatprep.subr.mxu0 %v5053
    %5254 = vmatpush1.msra.mxu0 %v5052
    %5255 = vmatprep.subr.mxu0 %v5049
    %5256 = vmatpush1.msra.mxu0 %v5048
    %5257 = vmatprep.subr.mxu0 %v5045
    %5258 = vmatpush1.msra.mxu0 %v5044
    %5259 = vmatprep.subr.mxu0 %v5041
    %5260 = vmatpush1.msra.mxu0 %v5040
    %5261 = vmatprep.subr.mxu0 %v5037
    %5262 = vmatpush1.msra.mxu0 %v5036
    %5263 = vmatprep.subr.mxu0 %v5033
    %5264 = vmatpush1.msra.mxu0 %v5032
    %5265 = vmatprep.subr.mxu0 %v5029
    %5266 = vmatpush1.msra.mxu0 %v5028
    %5267 = vmatprep.subr.mxu0 %v5025
    %5268 = vmatpush1.msra.mxu0 %v5024
    %5269 = vmatprep.subr.mxu0 %v5021
    %5270 = vmatpush1.msra.mxu0 %v5020
    %5271 = vmatprep.subr.mxu0 %v5145
    %5272 = vmatpush2.msra.mxu0 %v5144
    %5273 = vmatprep.subr.mxu0 %v5141
    %5274 = vmatpush2.msra.mxu0 %v5140
    %5275 = vmatprep.subr.mxu0 %v5137
    %5276 = vmatpush2.msra.mxu0 %v5136
    %5277 = vmatprep.subr.mxu0 %v5133
    %5278 = vmatpush2.msra.mxu0 %v5132
    %5279 = vmatprep.subr.mxu0 %v5129
    %5280 = vmatpush2.msra.mxu0 %v5128
    %5281 = vmatprep.subr.mxu0 %v5125
    %5282 = vmatpush2.msra.mxu0 %v5124
    %5283 = vmatprep.subr.mxu0 %v5121
    %5284 = vmatpush2.msra.mxu0 %v5120
    %5285 = vmatprep.subr.mxu0 %v5117
    %5286 = vmatpush2.msra.mxu0 %v5116
    %5287 = vmatprep.subr.mxu0 %v5113
    %5288 = vmatpush2.msra.mxu0 %v5112
    %5289 = vmatprep.subr.mxu0 %v5109
    %5290 = vmatpush2.msra.mxu0 %v5108
    %5291 = vmatprep.subr.mxu0 %v5105
    %5292 = vmatpush2.msra.mxu0 %v5104
    %5293 = vmatprep.subr.mxu0 %v5101
    %5294 = vmatpush2.msra.mxu0 %v5100
    %5295 = vmatprep.subr.mxu0 %v5097
    %5296 = vmatpush2.msra.mxu0 %v5096
    %5297 = vmatprep.subr.mxu0 %v5093
    %5298 = vmatpush2.msra.mxu0 %v5092
    %5299 = vmatprep.subr.mxu0 %v5089
    %5300 = vmatpush2.msra.mxu0 %v5088
    %5301 = vmatprep.subr.mxu0 %v5085
    %5302 = vmatpush2.msra.mxu0 %v5084
    %5303 = vmatprep.mubr.f32.mxu0 %v5017
    %5304 = vmatmul.mubr.f32.gmra.mxu0 %v5016
    %v5305 = vpop.f32.mrf.mxu0
    %v5306 = vadd.f32 %v5159, %v5305
    %v5307 = vpop.f32.mrf.mxu0
    %v5308 = vadd.f32 %v5163, %v5307
    %5309 = vdwg.mxu0
    %v5310 = vxor.u32 %v5235, 2147483648
    %v5311 = vmul.f32 %v5310, 1.442695
    %v5312 = vpow.pop %v5311
    %v5313 = vadd.f32 %v5312, 1.0
    %v5314 = vrcp.pop %v5313
    %v5315 = vmul.f32 1.0, %v5314
    %v5316 = vxor.u32 %v5237, 2147483648
    %v5317 = vmul.f32 %v5316, 1.442695
    %v5318 = vpow.pop %v5317
    %v5319 = vadd.f32 %v5318, 1.0
    %v5320 = vrcp.pop %v5319
    %v5321 = vmul.f32 1.0, %v5320
    %v5322 = vtanh.pop %v5306
    %v5323 = vxor.u32 %v5308, 2147483648
    %v5324 = vmul.f32 %v5323, 1.442695
    %v5325 = vpow.pop %v5324
    %v5326 = vadd.f32 %v5325, 1.0
    %v5327 = vrcp.pop %v5326
    %v5328 = vmul.f32 1.0, %v5327
    %v5329 = vld [vmem:[%s1261] sm:$0xff]
    %v5330 = vmul.f32 %v5321, %v5329
    %v5331 = vmul.f32 %v5315, %v5322
    %v5332 = vadd.f32 %v5330, %v5331
    %5333 = vst [vmem:[%s1261] sm:$0xff] %v5332
    %v5334 = vtanh.pop %v5332
    %v5335 = vmul.f32 %v5328, %v5334
    %5336 = vst [vmem:[%s944 + $0x8] sm:$0xff] %v5335
    %5337 = vst [vmem:[#allocation3] sm:$0xff] %v5335
    %s5338 = scalar_lea.vmem [#allocation5], 48
    %5339 = vst [vmem:[%s5338] sm:$0xff] %v5335
    %s5340 = sadd.s32 %s591, 7
    %p5341 = scmp.gt.s32.totalorder %s5340, 0
    %v5342 = vld [vmem:[#allocation3] sm:$0xff]
    %v5343 = vld [vmem:[#allocation3 + $0x8] sm:$0xff]
    %v5344 = vld [vmem:[#allocation2] sm:$0xff]
    %v5345 = vld [vmem:[#allocation2 + $0x8] sm:$0xff]
    %v5346 = vld [vmem:[#allocation2 + $0x10] sm:$0xff]
    %v5347 = vld [vmem:[#allocation2 + $0x18] sm:$0xff]
    %v5348 = vld [vmem:[#allocation2 + $0x20] sm:$0xff]
    %v5349 = vld [vmem:[#allocation2 + $0x28] sm:$0xff]
    %v5350 = vld [vmem:[#allocation2 + $0x30] sm:$0xff]
    %v5351 = vld [vmem:[#allocation2 + $0x38] sm:$0xff]
    %v5352 = vld [vmem:[#allocation2 + $0x40] sm:$0xff]
    %v5353 = vld [vmem:[#allocation2 + $0x48] sm:$0xff]
    %v5354 = vld [vmem:[#allocation2 + $0x50] sm:$0xff]
    %v5355 = vld [vmem:[#allocation2 + $0x58] sm:$0xff]
    %v5356 = vld [vmem:[#allocation2 + $0x60] sm:$0xff]
    %v5357 = vld [vmem:[#allocation2 + $0x68] sm:$0xff]
    %v5358 = vld [vmem:[#allocation2 + $0x70] sm:$0xff]
    %v5359 = vld [vmem:[#allocation2 + $0x78] sm:$0xff]
    %v5360 = vld [vmem:[#allocation2 + $0x80] sm:$0xff]
    %v5361 = vld [vmem:[#allocation2 + $0x88] sm:$0xff]
    %v5362 = vld [vmem:[#allocation2 + $0x90] sm:$0xff]
    %v5363 = vld [vmem:[#allocation2 + $0x98] sm:$0xff]
    %v5364 = vld [vmem:[#allocation2 + $0xa0] sm:$0xff]
    %v5365 = vld [vmem:[#allocation2 + $0xa8] sm:$0xff]
    %v5366 = vld [vmem:[#allocation2 + $0xb0] sm:$0xff]
    %v5367 = vld [vmem:[#allocation2 + $0xb8] sm:$0xff]
    %v5368 = vld [vmem:[#allocation2 + $0xc0] sm:$0xff]
    %v5369 = vld [vmem:[#allocation2 + $0xc8] sm:$0xff]
    %v5370 = vld [vmem:[#allocation2 + $0xd0] sm:$0xff]
    %v5371 = vld [vmem:[#allocation2 + $0xd8] sm:$0xff]
    %v5372 = vld [vmem:[#allocation2 + $0xe0] sm:$0xff]
    %v5373 = vld [vmem:[#allocation2 + $0xe8] sm:$0xff]
    %v5374 = vld [vmem:[#allocation2 + $0xf0] sm:$0xff]
    %v5375 = vld [vmem:[#allocation2 + $0xf8] sm:$0xff]
    %v5376 = vld [vmem:[#allocation2 + $0x100] sm:$0xff]
    %v5377 = vld [vmem:[#allocation2 + $0x108] sm:$0xff]
    %v5378 = vld [vmem:[#allocation2 + $0x110] sm:$0xff]
    %v5379 = vld [vmem:[#allocation2 + $0x118] sm:$0xff]
    %v5380 = vld [vmem:[#allocation2 + $0x120] sm:$0xff]
    %v5381 = vld [vmem:[#allocation2 + $0x128] sm:$0xff]
    %v5382 = vld [vmem:[#allocation2 + $0x130] sm:$0xff]
    %v5383 = vld [vmem:[#allocation2 + $0x138] sm:$0xff]
    %v5384 = vld [vmem:[#allocation2 + $0x140] sm:$0xff]
    %v5385 = vld [vmem:[#allocation2 + $0x148] sm:$0xff]
    %v5386 = vld [vmem:[#allocation2 + $0x150] sm:$0xff]
    %v5387 = vld [vmem:[#allocation2 + $0x158] sm:$0xff]
    %v5388 = vld [vmem:[#allocation2 + $0x160] sm:$0xff]
    %v5389 = vld [vmem:[#allocation2 + $0x168] sm:$0xff]
    %v5390 = vld [vmem:[#allocation2 + $0x170] sm:$0xff]
    %v5391 = vld [vmem:[#allocation2 + $0x178] sm:$0xff]
    %v5392 = vld [vmem:[#allocation2 + $0x180] sm:$0xff]
    %v5393 = vld [vmem:[#allocation2 + $0x188] sm:$0xff]
    %v5394 = vld [vmem:[#allocation2 + $0x190] sm:$0xff]
    %v5395 = vld [vmem:[#allocation2 + $0x198] sm:$0xff]
    %v5396 = vld [vmem:[#allocation2 + $0x1a0] sm:$0xff]
    %v5397 = vld [vmem:[#allocation2 + $0x1a8] sm:$0xff]
    %v5398 = vld [vmem:[#allocation2 + $0x1b0] sm:$0xff]
    %v5399 = vld [vmem:[#allocation2 + $0x1b8] sm:$0xff]
    %v5400 = vld [vmem:[#allocation2 + $0x1c0] sm:$0xff]
    %v5401 = vld [vmem:[#allocation2 + $0x1c8] sm:$0xff]
    %v5402 = vld [vmem:[#allocation2 + $0x1d0] sm:$0xff]
    %v5403 = vld [vmem:[#allocation2 + $0x1d8] sm:$0xff]
    %v5404 = vld [vmem:[#allocation2 + $0x1e0] sm:$0xff]
    %v5405 = vld [vmem:[#allocation2 + $0x1e8] sm:$0xff]
    %v5406 = vld [vmem:[#allocation2 + $0x1f0] sm:$0xff]
    %v5407 = vld [vmem:[#allocation2 + $0x1f8] sm:$0xff]
    %v5408 = vld [vmem:[#allocation2 + $0x200] sm:$0xff]
    %v5409 = vld [vmem:[#allocation2 + $0x208] sm:$0xff]
    %v5410 = vld [vmem:[#allocation2 + $0x210] sm:$0xff]
    %v5411 = vld [vmem:[#allocation2 + $0x218] sm:$0xff]
    %v5412 = vld [vmem:[#allocation2 + $0x220] sm:$0xff]
    %v5413 = vld [vmem:[#allocation2 + $0x228] sm:$0xff]
    %v5414 = vld [vmem:[#allocation2 + $0x230] sm:$0xff]
    %v5415 = vld [vmem:[#allocation2 + $0x238] sm:$0xff]
    %v5416 = vld [vmem:[#allocation2 + $0x240] sm:$0xff]
    %v5417 = vld [vmem:[#allocation2 + $0x248] sm:$0xff]
    %v5418 = vld [vmem:[#allocation2 + $0x250] sm:$0xff]
    %v5419 = vld [vmem:[#allocation2 + $0x258] sm:$0xff]
    %v5420 = vld [vmem:[#allocation2 + $0x260] sm:$0xff]
    %v5421 = vld [vmem:[#allocation2 + $0x268] sm:$0xff]
    %v5422 = vld [vmem:[#allocation2 + $0x270] sm:$0xff]
    %v5423 = vld [vmem:[#allocation2 + $0x278] sm:$0xff]
    %v5424 = vld [vmem:[#allocation2 + $0x280] sm:$0xff]
    %v5425 = vld [vmem:[#allocation2 + $0x288] sm:$0xff]
    %v5426 = vld [vmem:[#allocation2 + $0x290] sm:$0xff]
    %v5427 = vld [vmem:[#allocation2 + $0x298] sm:$0xff]
    %v5428 = vld [vmem:[#allocation2 + $0x2a0] sm:$0xff]
    %v5429 = vld [vmem:[#allocation2 + $0x2a8] sm:$0xff]
    %v5430 = vld [vmem:[#allocation2 + $0x2b0] sm:$0xff]
    %v5431 = vld [vmem:[#allocation2 + $0x2b8] sm:$0xff]
    %v5432 = vld [vmem:[#allocation2 + $0x2c0] sm:$0xff]
    %v5433 = vld [vmem:[#allocation2 + $0x2c8] sm:$0xff]
    %v5434 = vld [vmem:[#allocation2 + $0x2d0] sm:$0xff]
    %v5435 = vld [vmem:[#allocation2 + $0x2d8] sm:$0xff]
    %v5436 = vld [vmem:[#allocation2 + $0x2e0] sm:$0xff]
    %v5437 = vld [vmem:[#allocation2 + $0x2e8] sm:$0xff]
    %v5438 = vld [vmem:[#allocation2 + $0x2f0] sm:$0xff]
    %v5439 = vld [vmem:[#allocation2 + $0x2f8] sm:$0xff]
    %v5440 = vld [vmem:[#allocation2 + $0x300] sm:$0xff]
    %v5441 = vld [vmem:[#allocation2 + $0x308] sm:$0xff]
    %v5442 = vld [vmem:[#allocation2 + $0x310] sm:$0xff]
    %v5443 = vld [vmem:[#allocation2 + $0x318] sm:$0xff]
    %v5444 = vld [vmem:[#allocation2 + $0x320] sm:$0xff]
    %v5445 = vld [vmem:[#allocation2 + $0x328] sm:$0xff]
    %v5446 = vld [vmem:[#allocation2 + $0x330] sm:$0xff]
    %v5447 = vld [vmem:[#allocation2 + $0x338] sm:$0xff]
    %v5448 = vld [vmem:[#allocation2 + $0x340] sm:$0xff]
    %v5449 = vld [vmem:[#allocation2 + $0x348] sm:$0xff]
    %v5450 = vld [vmem:[#allocation2 + $0x350] sm:$0xff]
    %v5451 = vld [vmem:[#allocation2 + $0x358] sm:$0xff]
    %v5452 = vld [vmem:[#allocation2 + $0x360] sm:$0xff]
    %v5453 = vld [vmem:[#allocation2 + $0x368] sm:$0xff]
    %v5454 = vld [vmem:[#allocation2 + $0x370] sm:$0xff]
    %v5455 = vld [vmem:[#allocation2 + $0x378] sm:$0xff]
    %v5456 = vld [vmem:[#allocation2 + $0x380] sm:$0xff]
    %v5457 = vld [vmem:[#allocation2 + $0x388] sm:$0xff]
    %v5458 = vld [vmem:[#allocation2 + $0x390] sm:$0xff]
    %v5459 = vld [vmem:[#allocation2 + $0x398] sm:$0xff]
    %v5460 = vld [vmem:[#allocation2 + $0x3a0] sm:$0xff]
    %v5461 = vld [vmem:[#allocation2 + $0x3a8] sm:$0xff]
    %v5462 = vld [vmem:[#allocation2 + $0x3b0] sm:$0xff]
    %v5463 = vld [vmem:[#allocation2 + $0x3b8] sm:$0xff]
    %v5464 = vld [vmem:[#allocation2 + $0x3c0] sm:$0xff]
    %v5465 = vld [vmem:[#allocation2 + $0x3c8] sm:$0xff]
    %v5466 = vld [vmem:[#allocation2 + $0x3d0] sm:$0xff]
    %v5467 = vld [vmem:[#allocation2 + $0x3d8] sm:$0xff]
    %v5468 = vld [vmem:[#allocation2 + $0x3e0] sm:$0xff]
    %v5469 = vld [vmem:[#allocation2 + $0x3e8] sm:$0xff]
    %v5470 = vld [vmem:[#allocation2 + $0x3f0] sm:$0xff]
    %v5471 = vld [vmem:[#allocation2 + $0x3f8] sm:$0xff]
    %v5472 = vld [vmem:[%s1] sm:$0xf]
    %v5474 = vlaneseq
    %v5475 = vshrl.u32 %v5474, 7
    %v5476 = vsub.s32 0, %v5475
    %v5477 = vrot.slane %v5472, %v5476
    %v5478 = vlaneseq
    %v5479 = vshrl.u32 %v5478, 7
    %v5480 = vsub.s32 1, %v5479
    %v5481 = vrot.slane %v5472, %v5480
    %v5482 = vlaneseq
    %v5483 = vshrl.u32 %v5482, 7
    %v5484 = vsub.s32 2, %v5483
    %v5485 = vrot.slane %v5472, %v5484
    %v5486 = vlaneseq
    %v5487 = vshrl.u32 %v5486, 7
    %v5488 = vsub.s32 3, %v5487
    %v5489 = vrot.slane %v5472, %v5488
    %5494 = vmatprep.subr.mxu0 %v5405
    %5495 = vmatpush1.msra.mxu0 %v5404
    %5496 = vmatprep.subr.mxu0 %v5401
    %5497 = vmatpush1.msra.mxu0 %v5400
    %5498 = vmatprep.subr.mxu0 %v5397
    %5499 = vmatpush1.msra.mxu0 %v5396
    %5500 = vmatprep.subr.mxu0 %v5393
    %5501 = vmatpush1.msra.mxu0 %v5392
    %5502 = vmatprep.subr.mxu0 %v5389
    %5503 = vmatpush1.msra.mxu0 %v5388
    %5504 = vmatprep.subr.mxu0 %v5385
    %5505 = vmatpush1.msra.mxu0 %v5384
    %5506 = vmatprep.subr.mxu0 %v5381
    %5507 = vmatpush1.msra.mxu0 %v5380
    %5508 = vmatprep.subr.mxu0 %v5377
    %5509 = vmatpush1.msra.mxu0 %v5376
    %5510 = vmatprep.subr.mxu0 %v5373
    %5511 = vmatpush1.msra.mxu0 %v5372
    %5512 = vmatprep.subr.mxu0 %v5369
    %5513 = vmatpush1.msra.mxu0 %v5368
    %5514 = vmatprep.subr.mxu0 %v5365
    %5515 = vmatpush1.msra.mxu0 %v5364
    %5516 = vmatprep.subr.mxu0 %v5361
    %5517 = vmatpush1.msra.mxu0 %v5360
    %5518 = vmatprep.subr.mxu0 %v5357
    %5519 = vmatpush1.msra.mxu0 %v5356
    %5520 = vmatprep.subr.mxu0 %v5353
    %5521 = vmatpush1.msra.mxu0 %v5352
    %5522 = vmatprep.subr.mxu0 %v5349
    %5523 = vmatpush1.msra.mxu0 %v5348
    %5524 = vmatprep.subr.mxu0 %v5345
    %5525 = vmatpush1.msra.mxu0 %v5344
    %5526 = vmatprep.subr.mxu0 %v5469
    %5527 = vmatpush2.msra.mxu0 %v5468
    %5528 = vmatprep.subr.mxu0 %v5465
    %5529 = vmatpush2.msra.mxu0 %v5464
    %5530 = vmatprep.subr.mxu0 %v5461
    %5531 = vmatpush2.msra.mxu0 %v5460
    %5532 = vmatprep.subr.mxu0 %v5457
    %5533 = vmatpush2.msra.mxu0 %v5456
    %5534 = vmatprep.subr.mxu0 %v5453
    %5535 = vmatpush2.msra.mxu0 %v5452
    %5536 = vmatprep.subr.mxu0 %v5449
    %5537 = vmatpush2.msra.mxu0 %v5448
    %5538 = vmatprep.subr.mxu0 %v5445
    %5539 = vmatpush2.msra.mxu0 %v5444
    %5540 = vmatprep.subr.mxu0 %v5441
    %5541 = vmatpush2.msra.mxu0 %v5440
    %5542 = vmatprep.subr.mxu0 %v5437
    %5543 = vmatpush2.msra.mxu0 %v5436
    %5544 = vmatprep.subr.mxu0 %v5433
    %5545 = vmatpush2.msra.mxu0 %v5432
    %5546 = vmatprep.subr.mxu0 %v5429
    %5547 = vmatpush2.msra.mxu0 %v5428
    %5548 = vmatprep.subr.mxu0 %v5425
    %5549 = vmatpush2.msra.mxu0 %v5424
    %5550 = vmatprep.subr.mxu0 %v5421
    %5551 = vmatpush2.msra.mxu0 %v5420
    %5552 = vmatprep.subr.mxu0 %v5417
    %5553 = vmatpush2.msra.mxu0 %v5416
    %5554 = vmatprep.subr.mxu0 %v5413
    %5555 = vmatpush2.msra.mxu0 %v5412
    %5556 = vmatprep.subr.mxu0 %v5409
    %5557 = vmatpush2.msra.mxu0 %v5408
    %5558 = vmatprep.mubr.f32.mxu0 %v5343
    %5559 = vmatmul.mubr.f32.gmra.mxu0 %v5342
    %v5560 = vpop.f32.mrf.mxu0
    %v5561 = vadd.f32 %v5477, %v5560
    %v5562 = vpop.f32.mrf.mxu0
    %v5563 = vadd.f32 %v5481, %v5562
    %5564 = vdwg.mxu0
    %5565 = vmatprep.subr.mxu0 %v5407
    %5566 = vmatpush1.msra.mxu0 %v5406
    %5567 = vmatprep.subr.mxu0 %v5403
    %5568 = vmatpush1.msra.mxu0 %v5402
    %5569 = vmatprep.subr.mxu0 %v5399
    %5570 = vmatpush1.msra.mxu0 %v5398
    %5571 = vmatprep.subr.mxu0 %v5395
    %5572 = vmatpush1.msra.mxu0 %v5394
    %5573 = vmatprep.subr.mxu0 %v5391
    %5574 = vmatpush1.msra.mxu0 %v5390
    %5575 = vmatprep.subr.mxu0 %v5387
    %5576 = vmatpush1.msra.mxu0 %v5386
    %5577 = vmatprep.subr.mxu0 %v5383
    %5578 = vmatpush1.msra.mxu0 %v5382
    %5579 = vmatprep.subr.mxu0 %v5379
    %5580 = vmatpush1.msra.mxu0 %v5378
    %5581 = vmatprep.subr.mxu0 %v5375
    %5582 = vmatpush1.msra.mxu0 %v5374
    %5583 = vmatprep.subr.mxu0 %v5371
    %5584 = vmatpush1.msra.mxu0 %v5370
    %5585 = vmatprep.subr.mxu0 %v5367
    %5586 = vmatpush1.msra.mxu0 %v5366
    %5587 = vmatprep.subr.mxu0 %v5363
    %5588 = vmatpush1.msra.mxu0 %v5362
    %5589 = vmatprep.subr.mxu0 %v5359
    %5590 = vmatpush1.msra.mxu0 %v5358
    %5591 = vmatprep.subr.mxu0 %v5355
    %5592 = vmatpush1.msra.mxu0 %v5354
    %5593 = vmatprep.subr.mxu0 %v5351
    %5594 = vmatpush1.msra.mxu0 %v5350
    %5595 = vmatprep.subr.mxu0 %v5347
    %5596 = vmatpush1.msra.mxu0 %v5346
    %5597 = vmatprep.subr.mxu0 %v5471
    %5598 = vmatpush2.msra.mxu0 %v5470
    %5599 = vmatprep.subr.mxu0 %v5467
    %5600 = vmatpush2.msra.mxu0 %v5466
    %5601 = vmatprep.subr.mxu0 %v5463
    %5602 = vmatpush2.msra.mxu0 %v5462
    %5603 = vmatprep.subr.mxu0 %v5459
    %5604 = vmatpush2.msra.mxu0 %v5458
    %5605 = vmatprep.subr.mxu0 %v5455
    %5606 = vmatpush2.msra.mxu0 %v5454
    %5607 = vmatprep.subr.mxu0 %v5451
    %5608 = vmatpush2.msra.mxu0 %v5450
    %5609 = vmatprep.subr.mxu0 %v5447
    %5610 = vmatpush2.msra.mxu0 %v5446
    %5611 = vmatprep.subr.mxu0 %v5443
    %5612 = vmatpush2.msra.mxu0 %v5442
    %5613 = vmatprep.subr.mxu0 %v5439
    %5614 = vmatpush2.msra.mxu0 %v5438
    %5615 = vmatprep.subr.mxu0 %v5435
    %5616 = vmatpush2.msra.mxu0 %v5434
    %5617 = vmatprep.subr.mxu0 %v5431
    %5618 = vmatpush2.msra.mxu0 %v5430
    %5619 = vmatprep.subr.mxu0 %v5427
    %5620 = vmatpush2.msra.mxu0 %v5426
    %5621 = vmatprep.subr.mxu0 %v5423
    %5622 = vmatpush2.msra.mxu0 %v5422
    %5623 = vmatprep.subr.mxu0 %v5419
    %5624 = vmatpush2.msra.mxu0 %v5418
    %5625 = vmatprep.subr.mxu0 %v5415
    %5626 = vmatpush2.msra.mxu0 %v5414
    %5627 = vmatprep.subr.mxu0 %v5411
    %5628 = vmatpush2.msra.mxu0 %v5410
    %5629 = vmatprep.mubr.f32.mxu0 %v5343
    %5630 = vmatmul.mubr.f32.gmra.mxu0 %v5342
    %v5631 = vpop.f32.mrf.mxu0
    %v5632 = vadd.f32 %v5485, %v5631
    %v5633 = vpop.f32.mrf.mxu0
    %v5634 = vadd.f32 %v5489, %v5633
    %5635 = vdwg.mxu0
    %v5636 = vld [vmem:[%s2] sm:$0xf]
    %s5637 = scalar_select %p5341, 1, 0
    %v5638 = vstv %s5637
    %vm5639 = vcmp.eq.s32.totalorder %v5638, 1
    %v5640 = vsel %vm5639, %v5636, 0.0
    %v5642 = vlaneseq
    %v5643 = vshrl.u32 %v5642, 7
    %v5644 = vsub.s32 0, %v5643
    %v5645 = vrot.slane %v5640, %v5644
    %v5646 = vlaneseq
    %v5647 = vshrl.u32 %v5646, 7
    %v5648 = vsub.s32 1, %v5647
    %v5649 = vrot.slane %v5640, %v5648
    %v5650 = vlaneseq
    %v5651 = vshrl.u32 %v5650, 7
    %v5652 = vsub.s32 2, %v5651
    %v5653 = vrot.slane %v5640, %v5652
    %v5654 = vlaneseq
    %v5655 = vshrl.u32 %v5654, 7
    %v5656 = vsub.s32 3, %v5655
    %v5657 = vrot.slane %v5640, %v5656
    %v5662 = vadd.f32 %v5561, %v5645
    %v5663 = vadd.f32 %v5563, %v5649
    %v5664 = vadd.f32 %v5632, %v5653
    %v5665 = vadd.f32 %v5634, %v5657
    %v5666 = vxor.u32 %v5662, 2147483648
    %v5667 = vmul.f32 %v5666, 1.442695
    %v5668 = vpow.pop %v5667
    %v5669 = vadd.f32 %v5668, 1.0
    %v5670 = vrcp.pop %v5669
    %v5671 = vmul.f32 1.0, %v5670
    %v5672 = vxor.u32 %v5663, 2147483648
    %v5673 = vmul.f32 %v5672, 1.442695
    %v5674 = vpow.pop %v5673
    %v5675 = vadd.f32 %v5674, 1.0
    %v5676 = vrcp.pop %v5675
    %v5677 = vmul.f32 1.0, %v5676
    %v5678 = vtanh.pop %v5664
    %v5679 = vxor.u32 %v5665, 2147483648
    %v5680 = vmul.f32 %v5679, 1.442695
    %v5681 = vpow.pop %v5680
    %v5682 = vadd.f32 %v5681, 1.0
    %v5683 = vrcp.pop %v5682
    %v5684 = vmul.f32 1.0, %v5683
    %v5685 = vld [vmem:[#allocation4] sm:$0xff]
    %v5686 = vmul.f32 %v5677, %v5685
    %v5687 = vmul.f32 %v5671, %v5678
    %v5688 = vadd.f32 %v5686, %v5687
    %5689 = vst [vmem:[#allocation4] sm:$0xff] %v5688
    %v5690 = vtanh.pop %v5688
    %v5691 = vmul.f32 %v5684, %v5690
    %5692 = vst [vmem:[#allocation3 + $0x8] sm:$0xff] %v5691
    %5693 = vst [vmem:[%s944] sm:$0xff] %v5691
    %v5694 = vld [vmem:[%s944] sm:$0xff]
    %v5695 = vld [vmem:[%s944 + $0x8] sm:$0xff]
    %v5696 = vld [vmem:[%s948] sm:$0xff]
    %v5697 = vld [vmem:[%s948 + $0x8] sm:$0xff]
    %v5698 = vld [vmem:[%s948 + $0x10] sm:$0xff]
    %v5699 = vld [vmem:[%s948 + $0x18] sm:$0xff]
    %v5700 = vld [vmem:[%s948 + $0x20] sm:$0xff]
    %v5701 = vld [vmem:[%s948 + $0x28] sm:$0xff]
    %v5702 = vld [vmem:[%s948 + $0x30] sm:$0xff]
    %v5703 = vld [vmem:[%s948 + $0x38] sm:$0xff]
    %v5704 = vld [vmem:[%s948 + $0x40] sm:$0xff]
    %v5705 = vld [vmem:[%s948 + $0x48] sm:$0xff]
    %v5706 = vld [vmem:[%s948 + $0x50] sm:$0xff]
    %v5707 = vld [vmem:[%s948 + $0x58] sm:$0xff]
    %v5708 = vld [vmem:[%s948 + $0x60] sm:$0xff]
    %v5709 = vld [vmem:[%s948 + $0x68] sm:$0xff]
    %v5710 = vld [vmem:[%s948 + $0x70] sm:$0xff]
    %v5711 = vld [vmem:[%s948 + $0x78] sm:$0xff]
    %v5712 = vld [vmem:[%s948 + $0x80] sm:$0xff]
    %v5713 = vld [vmem:[%s948 + $0x88] sm:$0xff]
    %v5714 = vld [vmem:[%s948 + $0x90] sm:$0xff]
    %v5715 = vld [vmem:[%s948 + $0x98] sm:$0xff]
    %v5716 = vld [vmem:[%s948 + $0xa0] sm:$0xff]
    %v5717 = vld [vmem:[%s948 + $0xa8] sm:$0xff]
    %v5718 = vld [vmem:[%s948 + $0xb0] sm:$0xff]
    %v5719 = vld [vmem:[%s948 + $0xb8] sm:$0xff]
    %v5720 = vld [vmem:[%s948 + $0xc0] sm:$0xff]
    %v5721 = vld [vmem:[%s948 + $0xc8] sm:$0xff]
    %v5722 = vld [vmem:[%s948 + $0xd0] sm:$0xff]
    %v5723 = vld [vmem:[%s948 + $0xd8] sm:$0xff]
    %v5724 = vld [vmem:[%s948 + $0xe0] sm:$0xff]
    %v5725 = vld [vmem:[%s948 + $0xe8] sm:$0xff]
    %v5726 = vld [vmem:[%s948 + $0xf0] sm:$0xff]
    %v5727 = vld [vmem:[%s948 + $0xf8] sm:$0xff]
    %v5728 = vld [vmem:[%s948 + $0x100] sm:$0xff]
    %v5729 = vld [vmem:[%s948 + $0x108] sm:$0xff]
    %v5730 = vld [vmem:[%s948 + $0x110] sm:$0xff]
    %v5731 = vld [vmem:[%s948 + $0x118] sm:$0xff]
    %v5732 = vld [vmem:[%s948 + $0x120] sm:$0xff]
    %v5733 = vld [vmem:[%s948 + $0x128] sm:$0xff]
    %v5734 = vld [vmem:[%s948 + $0x130] sm:$0xff]
    %v5735 = vld [vmem:[%s948 + $0x138] sm:$0xff]
    %v5736 = vld [vmem:[%s948 + $0x140] sm:$0xff]
    %v5737 = vld [vmem:[%s948 + $0x148] sm:$0xff]
    %v5738 = vld [vmem:[%s948 + $0x150] sm:$0xff]
    %v5739 = vld [vmem:[%s948 + $0x158] sm:$0xff]
    %v5740 = vld [vmem:[%s948 + $0x160] sm:$0xff]
    %v5741 = vld [vmem:[%s948 + $0x168] sm:$0xff]
    %v5742 = vld [vmem:[%s948 + $0x170] sm:$0xff]
    %v5743 = vld [vmem:[%s948 + $0x178] sm:$0xff]
    %v5744 = vld [vmem:[%s948 + $0x180] sm:$0xff]
    %v5745 = vld [vmem:[%s948 + $0x188] sm:$0xff]
    %v5746 = vld [vmem:[%s948 + $0x190] sm:$0xff]
    %v5747 = vld [vmem:[%s948 + $0x198] sm:$0xff]
    %v5748 = vld [vmem:[%s948 + $0x1a0] sm:$0xff]
    %v5749 = vld [vmem:[%s948 + $0x1a8] sm:$0xff]
    %v5750 = vld [vmem:[%s948 + $0x1b0] sm:$0xff]
    %v5751 = vld [vmem:[%s948 + $0x1b8] sm:$0xff]
    %v5752 = vld [vmem:[%s948 + $0x1c0] sm:$0xff]
    %v5753 = vld [vmem:[%s948 + $0x1c8] sm:$0xff]
    %v5754 = vld [vmem:[%s948 + $0x1d0] sm:$0xff]
    %v5755 = vld [vmem:[%s948 + $0x1d8] sm:$0xff]
    %v5756 = vld [vmem:[%s948 + $0x1e0] sm:$0xff]
    %v5757 = vld [vmem:[%s948 + $0x1e8] sm:$0xff]
    %v5758 = vld [vmem:[%s948 + $0x1f0] sm:$0xff]
    %v5759 = vld [vmem:[%s948 + $0x1f8] sm:$0xff]
    %v5760 = vld [vmem:[%s948 + $0x200] sm:$0xff]
    %v5761 = vld [vmem:[%s948 + $0x208] sm:$0xff]
    %v5762 = vld [vmem:[%s948 + $0x210] sm:$0xff]
    %v5763 = vld [vmem:[%s948 + $0x218] sm:$0xff]
    %v5764 = vld [vmem:[%s948 + $0x220] sm:$0xff]
    %v5765 = vld [vmem:[%s948 + $0x228] sm:$0xff]
    %v5766 = vld [vmem:[%s948 + $0x230] sm:$0xff]
    %v5767 = vld [vmem:[%s948 + $0x238] sm:$0xff]
    %v5768 = vld [vmem:[%s948 + $0x240] sm:$0xff]
    %v5769 = vld [vmem:[%s948 + $0x248] sm:$0xff]
    %v5770 = vld [vmem:[%s948 + $0x250] sm:$0xff]
    %v5771 = vld [vmem:[%s948 + $0x258] sm:$0xff]
    %v5772 = vld [vmem:[%s948 + $0x260] sm:$0xff]
    %v5773 = vld [vmem:[%s948 + $0x268] sm:$0xff]
    %v5774 = vld [vmem:[%s948 + $0x270] sm:$0xff]
    %v5775 = vld [vmem:[%s948 + $0x278] sm:$0xff]
    %v5776 = vld [vmem:[%s948 + $0x280] sm:$0xff]
    %v5777 = vld [vmem:[%s948 + $0x288] sm:$0xff]
    %v5778 = vld [vmem:[%s948 + $0x290] sm:$0xff]
    %v5779 = vld [vmem:[%s948 + $0x298] sm:$0xff]
    %v5780 = vld [vmem:[%s948 + $0x2a0] sm:$0xff]
    %v5781 = vld [vmem:[%s948 + $0x2a8] sm:$0xff]
    %v5782 = vld [vmem:[%s948 + $0x2b0] sm:$0xff]
    %v5783 = vld [vmem:[%s948 + $0x2b8] sm:$0xff]
    %v5784 = vld [vmem:[%s948 + $0x2c0] sm:$0xff]
    %v5785 = vld [vmem:[%s948 + $0x2c8] sm:$0xff]
    %v5786 = vld [vmem:[%s948 + $0x2d0] sm:$0xff]
    %v5787 = vld [vmem:[%s948 + $0x2d8] sm:$0xff]
    %v5788 = vld [vmem:[%s948 + $0x2e0] sm:$0xff]
    %v5789 = vld [vmem:[%s948 + $0x2e8] sm:$0xff]
    %v5790 = vld [vmem:[%s948 + $0x2f0] sm:$0xff]
    %v5791 = vld [vmem:[%s948 + $0x2f8] sm:$0xff]
    %v5792 = vld [vmem:[%s948 + $0x300] sm:$0xff]
    %v5793 = vld [vmem:[%s948 + $0x308] sm:$0xff]
    %v5794 = vld [vmem:[%s948 + $0x310] sm:$0xff]
    %v5795 = vld [vmem:[%s948 + $0x318] sm:$0xff]
    %v5796 = vld [vmem:[%s948 + $0x320] sm:$0xff]
    %v5797 = vld [vmem:[%s948 + $0x328] sm:$0xff]
    %v5798 = vld [vmem:[%s948 + $0x330] sm:$0xff]
    %v5799 = vld [vmem:[%s948 + $0x338] sm:$0xff]
    %v5800 = vld [vmem:[%s948 + $0x340] sm:$0xff]
    %v5801 = vld [vmem:[%s948 + $0x348] sm:$0xff]
    %v5802 = vld [vmem:[%s948 + $0x350] sm:$0xff]
    %v5803 = vld [vmem:[%s948 + $0x358] sm:$0xff]
    %v5804 = vld [vmem:[%s948 + $0x360] sm:$0xff]
    %v5805 = vld [vmem:[%s948 + $0x368] sm:$0xff]
    %v5806 = vld [vmem:[%s948 + $0x370] sm:$0xff]
    %v5807 = vld [vmem:[%s948 + $0x378] sm:$0xff]
    %v5808 = vld [vmem:[%s948 + $0x380] sm:$0xff]
    %v5809 = vld [vmem:[%s948 + $0x388] sm:$0xff]
    %v5810 = vld [vmem:[%s948 + $0x390] sm:$0xff]
    %v5811 = vld [vmem:[%s948 + $0x398] sm:$0xff]
    %v5812 = vld [vmem:[%s948 + $0x3a0] sm:$0xff]
    %v5813 = vld [vmem:[%s948 + $0x3a8] sm:$0xff]
    %v5814 = vld [vmem:[%s948 + $0x3b0] sm:$0xff]
    %v5815 = vld [vmem:[%s948 + $0x3b8] sm:$0xff]
    %v5816 = vld [vmem:[%s948 + $0x3c0] sm:$0xff]
    %v5817 = vld [vmem:[%s948 + $0x3c8] sm:$0xff]
    %v5818 = vld [vmem:[%s948 + $0x3d0] sm:$0xff]
    %v5819 = vld [vmem:[%s948 + $0x3d8] sm:$0xff]
    %v5820 = vld [vmem:[%s948 + $0x3e0] sm:$0xff]
    %v5821 = vld [vmem:[%s948 + $0x3e8] sm:$0xff]
    %v5822 = vld [vmem:[%s948 + $0x3f0] sm:$0xff]
    %v5823 = vld [vmem:[%s948 + $0x3f8] sm:$0xff]
    %v5824 = vld [vmem:[%s1077] sm:$0xf]
    %v5826 = vlaneseq
    %v5827 = vshrl.u32 %v5826, 7
    %v5828 = vsub.s32 0, %v5827
    %v5829 = vrot.slane %v5824, %v5828
    %v5830 = vlaneseq
    %v5831 = vshrl.u32 %v5830, 7
    %v5832 = vsub.s32 1, %v5831
    %v5833 = vrot.slane %v5824, %v5832
    %v5834 = vlaneseq
    %v5835 = vshrl.u32 %v5834, 7
    %v5836 = vsub.s32 2, %v5835
    %v5837 = vrot.slane %v5824, %v5836
    %v5838 = vlaneseq
    %v5839 = vshrl.u32 %v5838, 7
    %v5840 = vsub.s32 3, %v5839
    %v5841 = vrot.slane %v5824, %v5840
    %5846 = vmatprep.subr.mxu0 %v5757
    %5847 = vmatpush1.msra.mxu0 %v5756
    %5848 = vmatprep.subr.mxu0 %v5753
    %5849 = vmatpush1.msra.mxu0 %v5752
    %5850 = vmatprep.subr.mxu0 %v5749
    %5851 = vmatpush1.msra.mxu0 %v5748
    %5852 = vmatprep.subr.mxu0 %v5745
    %5853 = vmatpush1.msra.mxu0 %v5744
    %5854 = vmatprep.subr.mxu0 %v5741
    %5855 = vmatpush1.msra.mxu0 %v5740
    %5856 = vmatprep.subr.mxu0 %v5737
    %5857 = vmatpush1.msra.mxu0 %v5736
    %5858 = vmatprep.subr.mxu0 %v5733
    %5859 = vmatpush1.msra.mxu0 %v5732
    %5860 = vmatprep.subr.mxu0 %v5729
    %5861 = vmatpush1.msra.mxu0 %v5728
    %5862 = vmatprep.subr.mxu0 %v5725
    %5863 = vmatpush1.msra.mxu0 %v5724
    %5864 = vmatprep.subr.mxu0 %v5721
    %5865 = vmatpush1.msra.mxu0 %v5720
    %5866 = vmatprep.subr.mxu0 %v5717
    %5867 = vmatpush1.msra.mxu0 %v5716
    %5868 = vmatprep.subr.mxu0 %v5713
    %5869 = vmatpush1.msra.mxu0 %v5712
    %5870 = vmatprep.subr.mxu0 %v5709
    %5871 = vmatpush1.msra.mxu0 %v5708
    %5872 = vmatprep.subr.mxu0 %v5705
    %5873 = vmatpush1.msra.mxu0 %v5704
    %5874 = vmatprep.subr.mxu0 %v5701
    %5875 = vmatpush1.msra.mxu0 %v5700
    %5876 = vmatprep.subr.mxu0 %v5697
    %5877 = vmatpush1.msra.mxu0 %v5696
    %5878 = vmatprep.subr.mxu0 %v5821
    %5879 = vmatpush2.msra.mxu0 %v5820
    %5880 = vmatprep.subr.mxu0 %v5817
    %5881 = vmatpush2.msra.mxu0 %v5816
    %5882 = vmatprep.subr.mxu0 %v5813
    %5883 = vmatpush2.msra.mxu0 %v5812
    %5884 = vmatprep.subr.mxu0 %v5809
    %5885 = vmatpush2.msra.mxu0 %v5808
    %5886 = vmatprep.subr.mxu0 %v5805
    %5887 = vmatpush2.msra.mxu0 %v5804
    %5888 = vmatprep.subr.mxu0 %v5801
    %5889 = vmatpush2.msra.mxu0 %v5800
    %5890 = vmatprep.subr.mxu0 %v5797
    %5891 = vmatpush2.msra.mxu0 %v5796
    %5892 = vmatprep.subr.mxu0 %v5793
    %5893 = vmatpush2.msra.mxu0 %v5792
    %5894 = vmatprep.subr.mxu0 %v5789
    %5895 = vmatpush2.msra.mxu0 %v5788
    %5896 = vmatprep.subr.mxu0 %v5785
    %5897 = vmatpush2.msra.mxu0 %v5784
    %5898 = vmatprep.subr.mxu0 %v5781
    %5899 = vmatpush2.msra.mxu0 %v5780
    %5900 = vmatprep.subr.mxu0 %v5777
    %5901 = vmatpush2.msra.mxu0 %v5776
    %5902 = vmatprep.subr.mxu0 %v5773
    %5903 = vmatpush2.msra.mxu0 %v5772
    %5904 = vmatprep.subr.mxu0 %v5769
    %5905 = vmatpush2.msra.mxu0 %v5768
    %5906 = vmatprep.subr.mxu0 %v5765
    %5907 = vmatpush2.msra.mxu0 %v5764
    %5908 = vmatprep.subr.mxu0 %v5761
    %5909 = vmatpush2.msra.mxu0 %v5760
    %5910 = vmatprep.mubr.f32.mxu0 %v5695
    %5911 = vmatmul.mubr.f32.gmra.mxu0 %v5694
    %v5912 = vpop.f32.mrf.mxu0
    %v5913 = vadd.f32 %v5829, %v5912
    %v5914 = vpop.f32.mrf.mxu0
    %v5915 = vadd.f32 %v5833, %v5914
    %5916 = vdwg.mxu0
    %5917 = vmatprep.subr.mxu0 %v5759
    %5918 = vmatpush1.msra.mxu0 %v5758
    %5919 = vmatprep.subr.mxu0 %v5755
    %5920 = vmatpush1.msra.mxu0 %v5754
    %5921 = vmatprep.subr.mxu0 %v5751
    %5922 = vmatpush1.msra.mxu0 %v5750
    %5923 = vmatprep.subr.mxu0 %v5747
    %5924 = vmatpush1.msra.mxu0 %v5746
    %5925 = vmatprep.subr.mxu0 %v5743
    %5926 = vmatpush1.msra.mxu0 %v5742
    %5927 = vmatprep.subr.mxu0 %v5739
    %5928 = vmatpush1.msra.mxu0 %v5738
    %5929 = vmatprep.subr.mxu0 %v5735
    %5930 = vmatpush1.msra.mxu0 %v5734
    %5931 = vmatprep.subr.mxu0 %v5731
    %5932 = vmatpush1.msra.mxu0 %v5730
    %5933 = vmatprep.subr.mxu0 %v5727
    %5934 = vmatpush1.msra.mxu0 %v5726
    %5935 = vmatprep.subr.mxu0 %v5723
    %5936 = vmatpush1.msra.mxu0 %v5722
    %5937 = vmatprep.subr.mxu0 %v5719
    %5938 = vmatpush1.msra.mxu0 %v5718
    %5939 = vmatprep.subr.mxu0 %v5715
    %5940 = vmatpush1.msra.mxu0 %v5714
    %5941 = vmatprep.subr.mxu0 %v5711
    %5942 = vmatpush1.msra.mxu0 %v5710
    %5943 = vmatprep.subr.mxu0 %v5707
    %5944 = vmatpush1.msra.mxu0 %v5706
    %5945 = vmatprep.subr.mxu0 %v5703
    %5946 = vmatpush1.msra.mxu0 %v5702
    %5947 = vmatprep.subr.mxu0 %v5699
    %5948 = vmatpush1.msra.mxu0 %v5698
    %5949 = vmatprep.subr.mxu0 %v5823
    %5950 = vmatpush2.msra.mxu0 %v5822
    %5951 = vmatprep.subr.mxu0 %v5819
    %5952 = vmatpush2.msra.mxu0 %v5818
    %5953 = vmatprep.subr.mxu0 %v5815
    %5954 = vmatpush2.msra.mxu0 %v5814
    %5955 = vmatprep.subr.mxu0 %v5811
    %5956 = vmatpush2.msra.mxu0 %v5810
    %5957 = vmatprep.subr.mxu0 %v5807
    %5958 = vmatpush2.msra.mxu0 %v5806
    %5959 = vmatprep.subr.mxu0 %v5803
    %5960 = vmatpush2.msra.mxu0 %v5802
    %5961 = vmatprep.subr.mxu0 %v5799
    %5962 = vmatpush2.msra.mxu0 %v5798
    %5963 = vmatprep.subr.mxu0 %v5795
    %5964 = vmatpush2.msra.mxu0 %v5794
    %5965 = vmatprep.subr.mxu0 %v5791
    %5966 = vmatpush2.msra.mxu0 %v5790
    %5967 = vmatprep.subr.mxu0 %v5787
    %5968 = vmatpush2.msra.mxu0 %v5786
    %5969 = vmatprep.subr.mxu0 %v5783
    %5970 = vmatpush2.msra.mxu0 %v5782
    %5971 = vmatprep.subr.mxu0 %v5779
    %5972 = vmatpush2.msra.mxu0 %v5778
    %5973 = vmatprep.subr.mxu0 %v5775
    %5974 = vmatpush2.msra.mxu0 %v5774
    %5975 = vmatprep.subr.mxu0 %v5771
    %5976 = vmatpush2.msra.mxu0 %v5770
    %5977 = vmatprep.subr.mxu0 %v5767
    %5978 = vmatpush2.msra.mxu0 %v5766
    %5979 = vmatprep.subr.mxu0 %v5763
    %5980 = vmatpush2.msra.mxu0 %v5762
    %5981 = vmatprep.mubr.f32.mxu0 %v5695
    %5982 = vmatmul.mubr.f32.gmra.mxu0 %v5694
    %v5983 = vpop.f32.mrf.mxu0
    %v5984 = vadd.f32 %v5837, %v5983
    %v5985 = vpop.f32.mrf.mxu0
    %v5986 = vadd.f32 %v5841, %v5985
    %5987 = vdwg.mxu0
    %v5988 = vxor.u32 %v5913, 2147483648
    %v5989 = vmul.f32 %v5988, 1.442695
    %v5990 = vpow.pop %v5989
    %v5991 = vadd.f32 %v5990, 1.0
    %v5992 = vrcp.pop %v5991
    %v5993 = vmul.f32 1.0, %v5992
    %v5994 = vxor.u32 %v5915, 2147483648
    %v5995 = vmul.f32 %v5994, 1.442695
    %v5996 = vpow.pop %v5995
    %v5997 = vadd.f32 %v5996, 1.0
    %v5998 = vrcp.pop %v5997
    %v5999 = vmul.f32 1.0, %v5998
    %v6000 = vtanh.pop %v5984
    %v6001 = vxor.u32 %v5986, 2147483648
    %v6002 = vmul.f32 %v6001, 1.442695
    %v6003 = vpow.pop %v6002
    %v6004 = vadd.f32 %v6003, 1.0
    %v6005 = vrcp.pop %v6004
    %v6006 = vmul.f32 1.0, %v6005
    %v6007 = vld [vmem:[%s1261] sm:$0xff]
    %v6008 = vmul.f32 %v5999, %v6007
    %v6009 = vmul.f32 %v5993, %v6000
    %v6010 = vadd.f32 %v6008, %v6009
    %6011 = vst [vmem:[%s1261] sm:$0xff] %v6010
    %v6012 = vtanh.pop %v6010
    %v6013 = vmul.f32 %v6006, %v6012
    %6014 = vst [vmem:[%s944 + $0x8] sm:$0xff] %v6013
    %6015 = vst [vmem:[#allocation3] sm:$0xff] %v6013
    %s6016 = scalar_lea.vmem [#allocation5], 56
    %6017 = vst [vmem:[%s6016] sm:$0xff] %v6013
    // Predicated region
    $region57: #{dlstm_forward.1} parent=1 // pred_check
      _
    $region58: #{dlstm_forward.1} parent=1 // pred_check_branch
      %6019 = sbr.rel (0) target = $region60
    $region59: #{dlstm_forward.1} parent=1 // pred_region
      %s6021 = ssub.s32 1024, 1024
      %6022 = vsyncadd [#allocation6], %s6021
      %s6023 = sshll.u32 [#allocation5], 4
      %s6024 = int_to_ptr.vmem [resolvable:$true] %s6023
      %6029 = dma.vmem_to_hbm [thread:$0]  %s6024, 1024, %s5, [#allocation6], 128, 128, 8
    $region60: #{dlstm_forward.1} parent=1 // pred_fallthru
      _
    // Predicated region
    $region61: #{dlstm_forward.1} parent=1 // pred_check
      _
    $region62: #{dlstm_forward.1} parent=1 // pred_check_branch
      %6031 = sbr.rel (0) target = $region64
    $region63: #{dlstm_forward.1} parent=1 // pred_region
      %6032 = dma.done [#allocation6], 1024
    $region64: #{dlstm_forward.1} parent=1 // pred_fallthru
      _
    %6033 = vsyncpa [#allocation6], 1

</llo_original>
